<compile_context>
chip_gen: v7x
topology: tpu7x:2x2x1
jax: 0.10.0
libtpu: 0.0.40
codegen_flags: <defaults>
</compile_context>

<pallas_src>
import math
import functools

import jax
import jax.numpy as jnp
from jax.experimental import pallas as pl
from jax.experimental.pallas import tpu as pltpu


_MATMUL_DTYPE = jnp.bfloat16   # MXU-native input dtype on v5e / v6e / v7x

_WEIGHT_ORDER = ("wqkv", "bqkv", "wo_sa", "bo_sa",
                 "wq_ca", "bq_ca", "wkv_ca", "bkv_ca", "wo_ca", "bo_ca",
                 "w1", "b1", "w2", "b2",
                 "g1", "be1", "g2", "be2", "g3", "be3")
_MATMUL_WEIGHTS = frozenset({"wqkv", "wo_sa", "wq_ca", "wkv_ca", "wo_ca", "w1", "w2"})


# ----------------------------- in-kernel helpers -----------------------------

def _mm(x, w):
    """bf16-input, f32-accumulate matmul (MXU-native)."""
    return jnp.dot(x.astype(w.dtype), w, preferred_element_type=jnp.float32)


def _layernorm(z, gamma, beta, eps):
    # PyTorch LayerNorm semantics (biased variance) + affine, in f32.
    mu = jnp.mean(z, axis=-1, keepdims=True)
    var = jnp.mean((z - mu) ** 2, axis=-1, keepdims=True)
    return (z - mu) * jax.lax.rsqrt(var + eps) * gamma + beta


def _attention(q, k, v, bias, wo, bo, *, batch, sq, skv, num_heads, dk):
    """Multi-head attention on batch-packed activations.

    q: (B*sq, D) f32 already scaled by 1/sqrt(dk); k, v: (B*skv, D) f32;
    bias: (sq, skv) additive f32 mask bias; wo: (D, D) bf16; bo: (1, D) f32.
    Each operand is lane-sliced once per head; per-batch row slices are cheap
    sublane slices; softmax stays exact f32; the output projection is ONE
    (B*sq, D) @ (D, D) matmul on the concatenated head outputs.
    """
    head_ctx = []
    for h in range(num_heads):                      # static unroll (H small)
        sl = slice(h * dk, (h + 1) * dk)
        qh = q[:, sl].astype(wo.dtype)              # (B*sq, dk)
        kh = k[:, sl].astype(wo.dtype)              # (B*skv, dk)
        vh = v[:, sl].astype(wo.dtype)
        outs = []
        for b in range(batch):                      # attention never mixes batches
            qb = qh[b * sq:(b + 1) * sq]
            kb = kh[b * skv:(b + 1) * skv]
            vb = vh[b * skv:(b + 1) * skv]
            # scores = qb @ kb^T (contract dk), f32 accumulation on the MXU
            s = jax.lax.dot_general(qb, kb, (((1,), (1,)), ((), ())),
                                    preferred_element_type=jnp.float32)
            s = s + bias                            # additive mask bias (one VPU add)
            s = s - jnp.max(s, axis=-1, keepdims=True)
            p = jnp.exp(s)
            p = p / jnp.sum(p, axis=-1, keepdims=True)   # exact softmax (f32)
            outs.append(jnp.dot(p.astype(vb.dtype), vb,
                                preferred_element_type=jnp.float32))  # (sq, dk)
        head_ctx.append(jnp.concatenate(outs, axis=0))    # (B*sq, dk)
    ctx = jnp.concatenate(head_ctx, axis=-1)              # (B*sq, D)
    return _mm(ctx, wo) + bo                              # ONE projection matmul


# ----------------------------- fused decoder kernel -----------------------------

def _decoder_stack_kernel(
    x_ref, enc_ref, tgt_bias_ref, src_bias_ref,
    wqkv_ref, bqkv_ref, wo_sa_ref, bo_sa_ref,
    wq_ca_ref, bq_ca_ref, wkv_ca_ref, bkv_ca_ref, wo_ca_ref, bo_ca_ref,
    w1_ref, b1_ref, w2_ref, b2_ref,
    g1_ref, be1_ref, g2_ref, be2_ref, g3_ref, be3_ref,
    o_ref,
    *, batch, seq_q, seq_kv, num_layers, num_heads, eps):
    D = x_ref.shape[-1]
    dk = D // num_heads
    scale = 1.0 / math.sqrt(dk)

    # Batch-packed activations: all projections / FFN matmuls run on B*S rows.
    x = x_ref[...].reshape(batch * seq_q, D)          # (B*Sq, D) f32
    enc = enc_ref[...].reshape(batch * seq_kv, D)     # (B*Skv, D) f32
    tgt_bias = tgt_bias_ref[...]                      # (Sq, Sq)  f32
    src_bias = src_bias_ref[...]                      # (Sq, Skv) f32

    attn = functools.partial(_attention, batch=batch, num_heads=num_heads, dk=dk)

    for l in range(num_layers):   # static unroll; all bf16 weights VMEM-resident
        # ---- masked self-attention (fused QKV projection) ----
        qkv = _mm(x, wqkv_ref[l]) + bqkv_ref[l]
        sa = attn(qkv[:, :D] * scale, qkv[:, D:2 * D], qkv[:, 2 * D:], tgt_bias,
                  wo_sa_ref[l], bo_sa_ref[l], sq=seq_q, skv=seq_q)
        x = _layernorm(x + sa, g1_ref[l], be1_ref[l], eps)

        # ---- encoder-decoder attention (fused KV projection) ----
        qc = (_mm(x, wq_ca_ref[l]) + bq_ca_ref[l]) * scale
        kv = _mm(enc, wkv_ca_ref[l]) + bkv_ca_ref[l]
        ca = attn(qc, kv[:, :D], kv[:, D:], src_bias,
                  wo_ca_ref[l], bo_ca_ref[l], sq=seq_q, skv=seq_kv)
        x = _layernorm(x + ca, g2_ref[l], be2_ref[l], eps)

        # ---- feed-forward (ReLU fused; dropout = identity in eval mode) ----
        h = jnp.maximum(_mm(x, w1_ref[l]) + b1_ref[l], 0.0)
        y = _mm(h, w2_ref[l]) + b2_ref[l]
        x = _layernorm(x + y, g3_ref[l], be3_ref[l], eps)

    o_ref[...] = x.astype(o_ref.dtype)                # (B*Sq, D), packed rows


# ----------------------------- pallas_call wrapper -----------------------------

def decoder_stack(x, enc_output, src_mask, tgt_mask, stacked, num_heads, eps=1e-5):
    """x: (B, S, D) embedded + pos-encoded input; enc_output: (B, Senc, D)."""
    B, S, D = x.shape
    Senc = enc_output.shape[1]
    L = stacked["wqkv"].shape[0]

    # Additive mask bias, computed once (masks are shared across batch & heads,
    # matching `scores.masked_fill(mask == 0, -1e9)` broadcasting).
    tgt_bias = jnp.where(tgt_mask == 0, -1.0e9, 0.0).astype(jnp.float32)
    src_bias = jnp.where(src_mask == 0, -1.0e9, 0.0).astype(jnp.float32)

    weights = []
    for name in _WEIGHT_ORDER:
        w = stacked[name]
        weights.append(w.astype(_MATMUL_DTYPE) if name in _MATMUL_WEIGHTS
                       else w.astype(jnp.float32))

    kern = functools.partial(_decoder_stack_kernel, batch=B, seq_q=S, seq_kv=Senc,
                             num_layers=L, num_heads=num_heads, eps=eps)

    vmem_spec = pl.BlockSpec(memory_space=pltpu.MemorySpace.VMEM)
    n_inputs = 4 + len(weights)
    out_packed = pl.pallas_call(
        kern,
        out_shape=jax.ShapeDtypeStruct((B * S, D), jnp.float32),
        in_specs=[vmem_spec] * n_inputs,
        out_specs=vmem_spec,
        compiler_params=pltpu.CompilerParams(vmem_limit_bytes=32 * 1024 * 1024),
    )(x, enc_output, tgt_bias, src_bias, *weights)
    return out_packed.reshape(B, S, D)


def decoder_forward(params, tokens, enc_output, src_mask, tgt_mask, num_heads):
    d_model = params["embedding"].shape[1]
    x = params["embedding"][tokens] * math.sqrt(d_model)          # (B, S, D)
    S = tokens.shape[1]
    x = x + params["pos_encoding"][None, :S, :]
    return decoder_stack(x, enc_output, src_mask, tgt_mask,
                         params["stacked"], num_heads)


# ----------------------------- parameter init -----------------------------

def positional_encoding(max_len, d_model):
    position = jnp.arange(max_len, dtype=jnp.float32)[:, None]
    div_term = jnp.exp(jnp.arange(0, d_model, 2, dtype=jnp.float32)
                       * (-math.log(10000.0) / d_model))
    enc = jnp.zeros((max_len, d_model), dtype=jnp.float32)
    enc = enc.at[:, 0::2].set(jnp.sin(position * div_term))
    enc = enc.at[:, 1::2].set(jnp.cos(position * div_term))
    return enc


def _init_linear(key, d_in, d_out):
    kw, kb = jax.random.split(key)
    bound = 1.0 / math.sqrt(d_in)
    # stored as (in, out) so the kernel computes x @ w + b (== x @ W_pt.T + b)
    w = jax.random.uniform(kw, (d_in, d_out), jnp.float32, -bound, bound)
    b = jax.random.uniform(kb, (1, d_out), jnp.float32, -bound, bound)
    return w, b


def init_decoder_params(key, vocab_size, d_model, num_layers, d_ff, max_len):
    keys = jax.random.split(key, num_layers + 1)
    emb = jax.random.normal(keys[0], (vocab_size, d_model), jnp.float32)
    acc = {name: [] for name in _WEIGHT_ORDER}
    for li in range(num_layers):
        ks = jax.random.split(keys[li + 1], 10)
        wq, bq = _init_linear(ks[0], d_model, d_model)
        wk, bk = _init_linear(ks[1], d_model, d_model)
        wv, bv = _init_linear(ks[2], d_model, d_model)
        wo, bo = _init_linear(ks[3], d_model, d_model)
        cwq, cbq = _init_linear(ks[4], d_model, d_model)
        cwk, cbk = _init_linear(ks[5], d_model, d_model)
        cwv, cbv = _init_linear(ks[6], d_model, d_model)
        cwo, cbo = _init_linear(ks[7], d_model, d_model)
        w1, b1 = _init_linear(ks[8], d_model, d_ff)
        w2, b2 = _init_linear(ks[9], d_ff, d_model)
        acc["wqkv"].append(jnp.concatenate([wq, wk, wv], axis=1))
        acc["bqkv"].append(jnp.concatenate([bq, bk, bv], axis=1))
        acc["wo_sa"].append(wo); acc["bo_sa"].append(bo)
        acc["wq_ca"].append(cwq); acc["bq_ca"].append(cbq)
        acc["wkv_ca"].append(jnp.concatenate([cwk, cwv], axis=1))
        acc["bkv_ca"].append(jnp.concatenate([cbk, cbv], axis=1))
        acc["wo_ca"].append(cwo); acc["bo_ca"].append(cbo)
        acc["w1"].append(w1); acc["b1"].append(b1)
        acc["w2"].append(w2); acc["b2"].append(b2)
        for g, be in (("g1", "be1"), ("g2", "be2"), ("g3", "be3")):
            acc[g].append(jnp.ones((1, d_model), jnp.float32))
            acc[be].append(jnp.zeros((1, d_model), jnp.float32))
    stacked = {k: jnp.stack(v) for k, v in acc.items()}
    return dict(embedding=emb,
                pos_encoding=positional_encoding(max_len, d_model),
                stacked=stacked)


# ----------------------------- pure-JAX reference -----------------------------

def _reference_forward(params, tokens, enc_output, src_mask, tgt_mask, num_heads,
                       matmul_dtype=jnp.float32):
    """Plain-JAX decoder.  matmul_dtype=bfloat16 mirrors the kernel's mixed
    precision exactly (bf16 matmul inputs, f32 accumulation, f32 softmax/LN)."""
    d_model = params["embedding"].shape[1]
    x = params["embedding"][tokens] * math.sqrt(d_model)
    S = tokens.shape[1]
    x = x + params["pos_encoding"][None, :S, :]
    st = params["stacked"]
    D, H = d_model, num_heads
    dk = D // H
    scale = 1.0 / math.sqrt(dk)

    def mm(a, w):
        return jnp.dot(a.astype(matmul_dtype), w.astype(matmul_dtype),
                       preferred_element_type=jnp.float32)

    def attn(q, k, v, mask):
        Bc, Sq, _ = q.shape
        Skv = k.shape[1]
        qh = (q * scale).reshape(Bc, Sq, H, dk).transpose(0, 2, 1, 3).astype(matmul_dtype)
        kh = k.reshape(Bc, Skv, H, dk).transpose(0, 2, 1, 3).astype(matmul_dtype)
        vh = v.reshape(Bc, Skv, H, dk).transpose(0, 2, 1, 3).astype(matmul_dtype)
        s = jnp.einsum("bhqd,bhkd->bhqk", qh, kh, preferred_element_type=jnp.float32)
        s = s + jnp.where(mask[None, None] == 0, -1.0e9, 0.0)
        s = s - s.max(-1, keepdims=True)
        p = jnp.exp(s)
        p = p / p.sum(-1, keepdims=True)
        o = jnp.einsum("bhqk,bhkd->bhqd", p.astype(matmul_dtype), vh,
                       preferred_element_type=jnp.float32)
        return o.transpose(0, 2, 1, 3).reshape(Bc, Sq, D)

    def ln(z, g, b):
        mu = z.mean(-1, keepdims=True)
        var = ((z - mu) ** 2).mean(-1, keepdims=True)
        return (z - mu) * jax.lax.rsqrt(var + 1e-5) * g + b

    L = st["wqkv"].shape[0]
    for l in range(L):
        qkv = mm(x, st["wqkv"][l]) + st["bqkv"][l]
        sa = attn(qkv[..., :D], qkv[..., D:2 * D], qkv[..., 2 * D:], tgt_mask)
        sa = mm(sa, st["wo_sa"][l]) + st["bo_sa"][l]
        x = ln(x + sa, st["g1"][l], st["be1"][l])
        qc = mm(x, st["wq_ca"][l]) + st["bq_ca"][l]
        kv = mm(enc_output, st["wkv_ca"][l]) + st["bkv_ca"][l]
        ca = attn(qc, kv[..., :D], kv[..., D:], src_mask)
        ca = mm(ca, st["wo_ca"][l]) + st["bo_ca"][l]
        x = ln(x + ca, st["g2"][l], st["be2"][l])
        h = jax.nn.relu(mm(x, st["w1"][l]) + st["b1"][l])
        y = mm(h, st["w2"][l]) + st["b2"][l]
        x = ln(x + y, st["g3"][l], st["be3"][l])
    return x


# ----------------------------- driver -----------------------------

if __name__ == "__main__":
    vocab_size, d_model, num_heads, num_layers, d_ff, max_len = 50, 32, 4, 2, 64, 16
    B, S_dec, S_enc = 2, 8, 8

    key = jax.random.PRNGKey(0)
    k_par, k_tok, k_enc = jax.random.split(key, 3)

    params = init_decoder_params(k_par, vocab_size, d_model, num_layers, d_ff, max_len)
    tokens = jax.random.randint(k_tok, (B, S_dec), 0, vocab_size, dtype=jnp.int32)
    enc_output = jax.random.normal(k_enc, (B, S_enc, d_model), jnp.float32)

    # causal target mask; source mask = all ones (no masking)
    tgt_mask = jnp.tril(jnp.ones((S_dec, S_dec), jnp.float32))
    src_mask = jnp.ones((S_dec, S_enc), jnp.float32)

    fwd = jax.jit(decoder_forward, static_argnums=(5,))
    out = fwd(params, tokens, enc_output, src_mask, tgt_mask, num_heads)
    out = jax.block_until_ready(out)

    assert out.shape == (B, S_dec, d_model), out.shape
    assert bool(jnp.all(jnp.isfinite(out)))

    # Tight check against a reference with the SAME mixed-precision policy
    # (bf16 matmul inputs, f32 accumulation / softmax / LayerNorm).
    ref_mixed = _reference_forward(params, tokens, enc_output, src_mask, tgt_mask,
                                   num_heads, matmul_dtype=jnp.bfloat16)
    err_mixed = float(jnp.max(jnp.abs(out - ref_mixed)))
    assert err_mixed < 5e-3, f"mixed-precision reference mismatch: {err_mixed}"

    # Loose sanity check against the full-f32 PyTorch semantics (bf16 matmul
    # inputs necessarily diverge slightly from pure f32).
    ref_f32 = _reference_forward(params, tokens, enc_output, src_mask, tgt_mask,
                                 num_heads, matmul_dtype=jnp.float32)
    err_f32 = float(jnp.max(jnp.abs(out - ref_f32)))
    assert err_f32 < 2.5e-1, f"f32 reference sanity mismatch: {err_f32}"

    print("KERNEL_OK")
</pallas_src>

<mosaic_0001>
module attributes {stable_mosaic.version = 11 : i64} {
  func.func @_decoder_stack_kernel(%arg0: memref<2x8x32xf32, #tpu.memory_space<vmem>>, %arg1: memref<2x8x32xf32, #tpu.memory_space<vmem>>, %arg2: memref<8x8xf32, #tpu.memory_space<vmem>>, %arg3: memref<8x8xf32, #tpu.memory_space<vmem>>, %arg4: memref<2x32x96xbf16, #tpu.memory_space<vmem>>, %arg5: memref<2x1x96xf32, #tpu.memory_space<vmem>>, %arg6: memref<2x32x32xbf16, #tpu.memory_space<vmem>>, %arg7: memref<2x1x32xf32, #tpu.memory_space<vmem>>, %arg8: memref<2x32x32xbf16, #tpu.memory_space<vmem>>, %arg9: memref<2x1x32xf32, #tpu.memory_space<vmem>>, %arg10: memref<2x32x64xbf16, #tpu.memory_space<vmem>>, %arg11: memref<2x1x64xf32, #tpu.memory_space<vmem>>, %arg12: memref<2x32x32xbf16, #tpu.memory_space<vmem>>, %arg13: memref<2x1x32xf32, #tpu.memory_space<vmem>>, %arg14: memref<2x32x64xbf16, #tpu.memory_space<vmem>>, %arg15: memref<2x1x64xf32, #tpu.memory_space<vmem>>, %arg16: memref<2x64x32xbf16, #tpu.memory_space<vmem>>, %arg17: memref<2x1x32xf32, #tpu.memory_space<vmem>>, %arg18: memref<2x1x32xf32, #tpu.memory_space<vmem>>, %arg19: memref<2x1x32xf32, #tpu.memory_space<vmem>>, %arg20: memref<2x1x32xf32, #tpu.memory_space<vmem>>, %arg21: memref<2x1x32xf32, #tpu.memory_space<vmem>>, %arg22: memref<2x1x32xf32, #tpu.memory_space<vmem>>, %arg23: memref<2x1x32xf32, #tpu.memory_space<vmem>>, %arg24: memref<16x32xf32, #tpu.memory_space<vmem>>) attributes {dimension_semantics = [], scalar_prefetch = 0 : i64, scratch_operands = 0 : i64, tpu.core_type = #tpu.core_type<tc>} {
    %c0 = arith.constant 0 : index
    %c0_0 = arith.constant 0 : index
    %c0_1 = arith.constant 0 : index
    %0 = vector.load %arg0[%c0, %c0_0, %c0_1] : memref<2x8x32xf32, #tpu.memory_space<vmem>>, vector<2x8x32xf32>
    %1 = vector.shape_cast %0 : vector<2x8x32xf32> to vector<16x32xf32>
    %c0_2 = arith.constant 0 : index
    %c0_3 = arith.constant 0 : index
    %c0_4 = arith.constant 0 : index
    %2 = vector.load %arg1[%c0_2, %c0_3, %c0_4] : memref<2x8x32xf32, #tpu.memory_space<vmem>>, vector<2x8x32xf32>
    %3 = vector.shape_cast %2 : vector<2x8x32xf32> to vector<16x32xf32>
    %c0_5 = arith.constant 0 : index
    %c0_6 = arith.constant 0 : index
    %4 = vector.load %arg2[%c0_5, %c0_6] : memref<8x8xf32, #tpu.memory_space<vmem>>, vector<8x8xf32>
    %c0_7 = arith.constant 0 : index
    %c0_8 = arith.constant 0 : index
    %5 = vector.load %arg3[%c0_7, %c0_8] : memref<8x8xf32, #tpu.memory_space<vmem>>, vector<8x8xf32>
    %c0_9 = arith.constant 0 : index
    %c0_10 = arith.constant 0 : index
    %c0_11 = arith.constant 0 : index
    %6 = vector.load %arg4[%c0_9, %c0_10, %c0_11] : memref<2x32x96xbf16, #tpu.memory_space<vmem>>, vector<1x32x96xbf16>
    %7 = vector.shape_cast %6 : vector<1x32x96xbf16> to vector<32x96xbf16>
    %8 = arith.truncf %1 : vector<16x32xf32> to vector<16x32xbf16>
    %cst = arith.constant dense<0.000000e+00> : vector<16x96xf32>
    %9 = tpu.matmul %8, %7, %cst {dimension_numbers = #tpu.dot_dimension_numbers<[1], [0], [0], [1], [0, 0, 1, 1], [], []>} : vector<16x32xbf16>, vector<32x96xbf16>, vector<16x96xf32> -> vector<16x96xf32>
    %c0_12 = arith.constant 0 : index
    %c0_13 = arith.constant 0 : index
    %c0_14 = arith.constant 0 : index
    %10 = vector.load %arg5[%c0_12, %c0_13, %c0_14] : memref<2x1x96xf32, #tpu.memory_space<vmem>>, vector<1x1x96xf32>
    %11 = vector.shape_cast %10 : vector<1x1x96xf32> to vector<1x96xf32>
    %12 = vector.broadcast %11 : vector<1x96xf32> to vector<16x96xf32>
    %13 = arith.addf %9, %12 : vector<16x96xf32>
    %14 = vector.extract_strided_slice %13 {offsets = [0, 0], sizes = [16, 32], strides = [1, 1]} : vector<16x96xf32> to vector<16x32xf32>
    %cst_15 = arith.constant 0.353553385 : f32
    %15 = vector.broadcast %cst_15 : f32 to vector<16x32xf32>
    %16 = arith.mulf %14, %15 : vector<16x32xf32>
    %17 = vector.extract_strided_slice %13 {offsets = [0, 32], sizes = [16, 32], strides = [1, 1]} : vector<16x96xf32> to vector<16x32xf32>
    %18 = vector.extract_strided_slice %13 {offsets = [0, 64], sizes = [16, 32], strides = [1, 1]} : vector<16x96xf32> to vector<16x32xf32>
    %c0_16 = arith.constant 0 : index
    %c0_17 = arith.constant 0 : index
    %c0_18 = arith.constant 0 : index
    %19 = vector.load %arg6[%c0_16, %c0_17, %c0_18] : memref<2x32x32xbf16, #tpu.memory_space<vmem>>, vector<1x32x32xbf16>
    %20 = vector.shape_cast %19 : vector<1x32x32xbf16> to vector<32x32xbf16>
    %c0_19 = arith.constant 0 : index
    %c0_20 = arith.constant 0 : index
    %c0_21 = arith.constant 0 : index
    %21 = vector.load %arg7[%c0_19, %c0_20, %c0_21] : memref<2x1x32xf32, #tpu.memory_space<vmem>>, vector<1x1x32xf32>
    %22 = vector.shape_cast %21 : vector<1x1x32xf32> to vector<1x32xf32>
    %23 = vector.extract_strided_slice %16 {offsets = [0, 0], sizes = [16, 8], strides = [1, 1]} : vector<16x32xf32> to vector<16x8xf32>
    %24 = arith.truncf %23 : vector<16x8xf32> to vector<16x8xbf16>
    %25 = vector.extract_strided_slice %17 {offsets = [0, 0], sizes = [16, 8], strides = [1, 1]} : vector<16x32xf32> to vector<16x8xf32>
    %26 = arith.truncf %25 : vector<16x8xf32> to vector<16x8xbf16>
    %27 = vector.extract_strided_slice %18 {offsets = [0, 0], sizes = [16, 8], strides = [1, 1]} : vector<16x32xf32> to vector<16x8xf32>
    %28 = arith.truncf %27 : vector<16x8xf32> to vector<16x8xbf16>
    %29 = vector.extract_strided_slice %24 {offsets = [0, 0], sizes = [8, 8], strides = [1, 1]} : vector<16x8xbf16> to vector<8x8xbf16>
    %30 = vector.extract_strided_slice %26 {offsets = [0, 0], sizes = [8, 8], strides = [1, 1]} : vector<16x8xbf16> to vector<8x8xbf16>
    %31 = vector.extract_strided_slice %28 {offsets = [0, 0], sizes = [8, 8], strides = [1, 1]} : vector<16x8xbf16> to vector<8x8xbf16>
    %cst_22 = arith.constant dense<0.000000e+00> : vector<8x8xf32>
    %32 = tpu.matmul %29, %30, %cst_22 {dimension_numbers = #tpu.dot_dimension_numbers<[1], [1], [0], [0], [0, 0, 1, 0], [], []>} : vector<8x8xbf16>, vector<8x8xbf16>, vector<8x8xf32> -> vector<8x8xf32>
    %33 = arith.addf %32, %4 : vector<8x8xf32>
    %cst_23 = arith.constant dense<0xFF800000> : vector<8xf32>
    %34 = vector.multi_reduction <maximumf>, %33, %cst_23 [1] : vector<8x8xf32> to vector<8xf32>
    %35 = vector.shape_cast %34 : vector<8xf32> to vector<8x1xf32>
    %36 = vector.broadcast %35 : vector<8x1xf32> to vector<8x8xf32>
    %37 = arith.subf %33, %36 : vector<8x8xf32>
    %38 = math.exp %37 : vector<8x8xf32>
    %cst_24 = arith.constant dense<0.000000e+00> : vector<8xf32>
    %39 = vector.multi_reduction <add>, %38, %cst_24 [1] : vector<8x8xf32> to vector<8xf32>
    %40 = vector.shape_cast %39 : vector<8xf32> to vector<8x1xf32>
    %41 = vector.broadcast %40 : vector<8x1xf32> to vector<8x8xf32>
    %42 = arith.divf %38, %41 : vector<8x8xf32>
    %43 = arith.truncf %42 : vector<8x8xf32> to vector<8x8xbf16>
    %cst_25 = arith.constant dense<0.000000e+00> : vector<8x8xf32>
    %44 = tpu.matmul %43, %31, %cst_25 {dimension_numbers = #tpu.dot_dimension_numbers<[1], [0], [0], [1], [0, 0, 1, 1], [], []>} : vector<8x8xbf16>, vector<8x8xbf16>, vector<8x8xf32> -> vector<8x8xf32>
    %45 = vector.extract_strided_slice %24 {offsets = [8, 0], sizes = [8, 8], strides = [1, 1]} : vector<16x8xbf16> to vector<8x8xbf16>
    %46 = vector.extract_strided_slice %26 {offsets = [8, 0], sizes = [8, 8], strides = [1, 1]} : vector<16x8xbf16> to vector<8x8xbf16>
    %47 = vector.extract_strided_slice %28 {offsets = [8, 0], sizes = [8, 8], strides = [1, 1]} : vector<16x8xbf16> to vector<8x8xbf16>
    %cst_26 = arith.constant dense<0.000000e+00> : vector<8x8xf32>
    %48 = tpu.matmul %45, %46, %cst_26 {dimension_numbers = #tpu.dot_dimension_numbers<[1], [1], [0], [0], [0, 0, 1, 0], [], []>} : vector<8x8xbf16>, vector<8x8xbf16>, vector<8x8xf32> -> vector<8x8xf32>
    %49 = arith.addf %48, %4 : vector<8x8xf32>
    %cst_27 = arith.constant dense<0xFF800000> : vector<8xf32>
    %50 = vector.multi_reduction <maximumf>, %49, %cst_27 [1] : vector<8x8xf32> to vector<8xf32>
    %51 = vector.shape_cast %50 : vector<8xf32> to vector<8x1xf32>
    %52 = vector.broadcast %51 : vector<8x1xf32> to vector<8x8xf32>
    %53 = arith.subf %49, %52 : vector<8x8xf32>
    %54 = math.exp %53 : vector<8x8xf32>
    %cst_28 = arith.constant dense<0.000000e+00> : vector<8xf32>
    %55 = vector.multi_reduction <add>, %54, %cst_28 [1] : vector<8x8xf32> to vector<8xf32>
    %56 = vector.shape_cast %55 : vector<8xf32> to vector<8x1xf32>
    %57 = vector.broadcast %56 : vector<8x1xf32> to vector<8x8xf32>
    %58 = arith.divf %54, %57 : vector<8x8xf32>
    %59 = arith.truncf %58 : vector<8x8xf32> to vector<8x8xbf16>
    %cst_29 = arith.constant dense<0.000000e+00> : vector<8x8xf32>
    %60 = tpu.matmul %59, %47, %cst_29 {dimension_numbers = #tpu.dot_dimension_numbers<[1], [0], [0], [1], [0, 0, 1, 1], [], []>} : vector<8x8xbf16>, vector<8x8xbf16>, vector<8x8xf32> -> vector<8x8xf32>
    %61 = tpu.concatenate %44, %60 in 0 : vector<8x8xf32>, vector<8x8xf32> -> vector<16x8xf32>
    %62 = vector.extract_strided_slice %16 {offsets = [0, 8], sizes = [16, 8], strides = [1, 1]} : vector<16x32xf32> to vector<16x8xf32>
    %63 = arith.truncf %62 : vector<16x8xf32> to vector<16x8xbf16>
    %64 = vector.extract_strided_slice %17 {offsets = [0, 8], sizes = [16, 8], strides = [1, 1]} : vector<16x32xf32> to vector<16x8xf32>
    %65 = arith.truncf %64 : vector<16x8xf32> to vector<16x8xbf16>
    %66 = vector.extract_strided_slice %18 {offsets = [0, 8], sizes = [16, 8], strides = [1, 1]} : vector<16x32xf32> to vector<16x8xf32>
    %67 = arith.truncf %66 : vector<16x8xf32> to vector<16x8xbf16>
    %68 = vector.extract_strided_slice %63 {offsets = [0, 0], sizes = [8, 8], strides = [1, 1]} : vector<16x8xbf16> to vector<8x8xbf16>
    %69 = vector.extract_strided_slice %65 {offsets = [0, 0], sizes = [8, 8], strides = [1, 1]} : vector<16x8xbf16> to vector<8x8xbf16>
    %70 = vector.extract_strided_slice %67 {offsets = [0, 0], sizes = [8, 8], strides = [1, 1]} : vector<16x8xbf16> to vector<8x8xbf16>
    %cst_30 = arith.constant dense<0.000000e+00> : vector<8x8xf32>
    %71 = tpu.matmul %68, %69, %cst_30 {dimension_numbers = #tpu.dot_dimension_numbers<[1], [1], [0], [0], [0, 0, 1, 0], [], []>} : vector<8x8xbf16>, vector<8x8xbf16>, vector<8x8xf32> -> vector<8x8xf32>
    %72 = arith.addf %71, %4 : vector<8x8xf32>
    %cst_31 = arith.constant dense<0xFF800000> : vector<8xf32>
    %73 = vector.multi_reduction <maximumf>, %72, %cst_31 [1] : vector<8x8xf32> to vector<8xf32>
    %74 = vector.shape_cast %73 : vector<8xf32> to vector<8x1xf32>
    %75 = vector.broadcast %74 : vector<8x1xf32> to vector<8x8xf32>
    %76 = arith.subf %72, %75 : vector<8x8xf32>
    %77 = math.exp %76 : vector<8x8xf32>
    %cst_32 = arith.constant dense<0.000000e+00> : vector<8xf32>
    %78 = vector.multi_reduction <add>, %77, %cst_32 [1] : vector<8x8xf32> to vector<8xf32>
    %79 = vector.shape_cast %78 : vector<8xf32> to vector<8x1xf32>
    %80 = vector.broadcast %79 : vector<8x1xf32> to vector<8x8xf32>
    %81 = arith.divf %77, %80 : vector<8x8xf32>
    %82 = arith.truncf %81 : vector<8x8xf32> to vector<8x8xbf16>
    %cst_33 = arith.constant dense<0.000000e+00> : vector<8x8xf32>
    %83 = tpu.matmul %82, %70, %cst_33 {dimension_numbers = #tpu.dot_dimension_numbers<[1], [0], [0], [1], [0, 0, 1, 1], [], []>} : vector<8x8xbf16>, vector<8x8xbf16>, vector<8x8xf32> -> vector<8x8xf32>
    %84 = vector.extract_strided_slice %63 {offsets = [8, 0], sizes = [8, 8], strides = [1, 1]} : vector<16x8xbf16> to vector<8x8xbf16>
    %85 = vector.extract_strided_slice %65 {offsets = [8, 0], sizes = [8, 8], strides = [1, 1]} : vector<16x8xbf16> to vector<8x8xbf16>
    %86 = vector.extract_strided_slice %67 {offsets = [8, 0], sizes = [8, 8], strides = [1, 1]} : vector<16x8xbf16> to vector<8x8xbf16>
    %cst_34 = arith.constant dense<0.000000e+00> : vector<8x8xf32>
    %87 = tpu.matmul %84, %85, %cst_34 {dimension_numbers = #tpu.dot_dimension_numbers<[1], [1], [0], [0], [0, 0, 1, 0], [], []>} : vector<8x8xbf16>, vector<8x8xbf16>, vector<8x8xf32> -> vector<8x8xf32>
    %88 = arith.addf %87, %4 : vector<8x8xf32>
    %cst_35 = arith.constant dense<0xFF800000> : vector<8xf32>
    %89 = vector.multi_reduction <maximumf>, %88, %cst_35 [1] : vector<8x8xf32> to vector<8xf32>
    %90 = vector.shape_cast %89 : vector<8xf32> to vector<8x1xf32>
    %91 = vector.broadcast %90 : vector<8x1xf32> to vector<8x8xf32>
    %92 = arith.subf %88, %91 : vector<8x8xf32>
    %93 = math.exp %92 : vector<8x8xf32>
    %cst_36 = arith.constant dense<0.000000e+00> : vector<8xf32>
    %94 = vector.multi_reduction <add>, %93, %cst_36 [1] : vector<8x8xf32> to vector<8xf32>
    %95 = vector.shape_cast %94 : vector<8xf32> to vector<8x1xf32>
    %96 = vector.broadcast %95 : vector<8x1xf32> to vector<8x8xf32>
    %97 = arith.divf %93, %96 : vector<8x8xf32>
    %98 = arith.truncf %97 : vector<8x8xf32> to vector<8x8xbf16>
    %cst_37 = arith.constant dense<0.000000e+00> : vector<8x8xf32>
    %99 = tpu.matmul %98, %86, %cst_37 {dimension_numbers = #tpu.dot_dimension_numbers<[1], [0], [0], [1], [0, 0, 1, 1], [], []>} : vector<8x8xbf16>, vector<8x8xbf16>, vector<8x8xf32> -> vector<8x8xf32>
    %100 = tpu.concatenate %83, %99 in 0 : vector<8x8xf32>, vector<8x8xf32> -> vector<16x8xf32>
    %101 = vector.extract_strided_slice %16 {offsets = [0, 16], sizes = [16, 8], strides = [1, 1]} : vector<16x32xf32> to vector<16x8xf32>
    %102 = arith.truncf %101 : vector<16x8xf32> to vector<16x8xbf16>
    %103 = vector.extract_strided_slice %17 {offsets = [0, 16], sizes = [16, 8], strides = [1, 1]} : vector<16x32xf32> to vector<16x8xf32>
    %104 = arith.truncf %103 : vector<16x8xf32> to vector<16x8xbf16>
    %105 = vector.extract_strided_slice %18 {offsets = [0, 16], sizes = [16, 8], strides = [1, 1]} : vector<16x32xf32> to vector<16x8xf32>
    %106 = arith.truncf %105 : vector<16x8xf32> to vector<16x8xbf16>
    %107 = vector.extract_strided_slice %102 {offsets = [0, 0], sizes = [8, 8], strides = [1, 1]} : vector<16x8xbf16> to vector<8x8xbf16>
    %108 = vector.extract_strided_slice %104 {offsets = [0, 0], sizes = [8, 8], strides = [1, 1]} : vector<16x8xbf16> to vector<8x8xbf16>
    %109 = vector.extract_strided_slice %106 {offsets = [0, 0], sizes = [8, 8], strides = [1, 1]} : vector<16x8xbf16> to vector<8x8xbf16>
    %cst_38 = arith.constant dense<0.000000e+00> : vector<8x8xf32>
    %110 = tpu.matmul %107, %108, %cst_38 {dimension_numbers = #tpu.dot_dimension_numbers<[1], [1], [0], [0], [0, 0, 1, 0], [], []>} : vector<8x8xbf16>, vector<8x8xbf16>, vector<8x8xf32> -> vector<8x8xf32>
    %111 = arith.addf %110, %4 : vector<8x8xf32>
    %cst_39 = arith.constant dense<0xFF800000> : vector<8xf32>
    %112 = vector.multi_reduction <maximumf>, %111, %cst_39 [1] : vector<8x8xf32> to vector<8xf32>
    %113 = vector.shape_cast %112 : vector<8xf32> to vector<8x1xf32>
    %114 = vector.broadcast %113 : vector<8x1xf32> to vector<8x8xf32>
    %115 = arith.subf %111, %114 : vector<8x8xf32>
    %116 = math.exp %115 : vector<8x8xf32>
    %cst_40 = arith.constant dense<0.000000e+00> : vector<8xf32>
    %117 = vector.multi_reduction <add>, %116, %cst_40 [1] : vector<8x8xf32> to vector<8xf32>
    %118 = vector.shape_cast %117 : vector<8xf32> to vector<8x1xf32>
    %119 = vector.broadcast %118 : vector<8x1xf32> to vector<8x8xf32>
    %120 = arith.divf %116, %119 : vector<8x8xf32>
    %121 = arith.truncf %120 : vector<8x8xf32> to vector<8x8xbf16>
    %cst_41 = arith.constant dense<0.000000e+00> : vector<8x8xf32>
    %122 = tpu.matmul %121, %109, %cst_41 {dimension_numbers = #tpu.dot_dimension_numbers<[1], [0], [0], [1], [0, 0, 1, 1], [], []>} : vector<8x8xbf16>, vector<8x8xbf16>, vector<8x8xf32> -> vector<8x8xf32>
    %123 = vector.extract_strided_slice %102 {offsets = [8, 0], sizes = [8, 8], strides = [1, 1]} : vector<16x8xbf16> to vector<8x8xbf16>
    %124 = vector.extract_strided_slice %104 {offsets = [8, 0], sizes = [8, 8], strides = [1, 1]} : vector<16x8xbf16> to vector<8x8xbf16>
    %125 = vector.extract_strided_slice %106 {offsets = [8, 0], sizes = [8, 8], strides = [1, 1]} : vector<16x8xbf16> to vector<8x8xbf16>
    %cst_42 = arith.constant dense<0.000000e+00> : vector<8x8xf32>
    %126 = tpu.matmul %123, %124, %cst_42 {dimension_numbers = #tpu.dot_dimension_numbers<[1], [1], [0], [0], [0, 0, 1, 0], [], []>} : vector<8x8xbf16>, vector<8x8xbf16>, vector<8x8xf32> -> vector<8x8xf32>
    %127 = arith.addf %126, %4 : vector<8x8xf32>
    %cst_43 = arith.constant dense<0xFF800000> : vector<8xf32>
    %128 = vector.multi_reduction <maximumf>, %127, %cst_43 [1] : vector<8x8xf32> to vector<8xf32>
    %129 = vector.shape_cast %128 : vector<8xf32> to vector<8x1xf32>
    %130 = vector.broadcast %129 : vector<8x1xf32> to vector<8x8xf32>
    %131 = arith.subf %127, %130 : vector<8x8xf32>
    %132 = math.exp %131 : vector<8x8xf32>
    %cst_44 = arith.constant dense<0.000000e+00> : vector<8xf32>
    %133 = vector.multi_reduction <add>, %132, %cst_44 [1] : vector<8x8xf32> to vector<8xf32>
    %134 = vector.shape_cast %133 : vector<8xf32> to vector<8x1xf32>
    %135 = vector.broadcast %134 : vector<8x1xf32> to vector<8x8xf32>
    %136 = arith.divf %132, %135 : vector<8x8xf32>
    %137 = arith.truncf %136 : vector<8x8xf32> to vector<8x8xbf16>
    %cst_45 = arith.constant dense<0.000000e+00> : vector<8x8xf32>
    %138 = tpu.matmul %137, %125, %cst_45 {dimension_numbers = #tpu.dot_dimension_numbers<[1], [0], [0], [1], [0, 0, 1, 1], [], []>} : vector<8x8xbf16>, vector<8x8xbf16>, vector<8x8xf32> -> vector<8x8xf32>
    %139 = tpu.concatenate %122, %138 in 0 : vector<8x8xf32>, vector<8x8xf32> -> vector<16x8xf32>
    %140 = vector.extract_strided_slice %16 {offsets = [0, 24], sizes = [16, 8], strides = [1, 1]} : vector<16x32xf32> to vector<16x8xf32>
    %141 = arith.truncf %140 : vector<16x8xf32> to vector<16x8xbf16>
    %142 = vector.extract_strided_slice %17 {offsets = [0, 24], sizes = [16, 8], strides = [1, 1]} : vector<16x32xf32> to vector<16x8xf32>
    %143 = arith.truncf %142 : vector<16x8xf32> to vector<16x8xbf16>
    %144 = vector.extract_strided_slice %18 {offsets = [0, 24], sizes = [16, 8], strides = [1, 1]} : vector<16x32xf32> to vector<16x8xf32>
    %145 = arith.truncf %144 : vector<16x8xf32> to vector<16x8xbf16>
    %146 = vector.extract_strided_slice %141 {offsets = [0, 0], sizes = [8, 8], strides = [1, 1]} : vector<16x8xbf16> to vector<8x8xbf16>
    %147 = vector.extract_strided_slice %143 {offsets = [0, 0], sizes = [8, 8], strides = [1, 1]} : vector<16x8xbf16> to vector<8x8xbf16>
    %148 = vector.extract_strided_slice %145 {offsets = [0, 0], sizes = [8, 8], strides = [1, 1]} : vector<16x8xbf16> to vector<8x8xbf16>
    %cst_46 = arith.constant dense<0.000000e+00> : vector<8x8xf32>
    %149 = tpu.matmul %146, %147, %cst_46 {dimension_numbers = #tpu.dot_dimension_numbers<[1], [1], [0], [0], [0, 0, 1, 0], [], []>} : vector<8x8xbf16>, vector<8x8xbf16>, vector<8x8xf32> -> vector<8x8xf32>
    %150 = arith.addf %149, %4 : vector<8x8xf32>
    %cst_47 = arith.constant dense<0xFF800000> : vector<8xf32>
    %151 = vector.multi_reduction <maximumf>, %150, %cst_47 [1] : vector<8x8xf32> to vector<8xf32>
    %152 = vector.shape_cast %151 : vector<8xf32> to vector<8x1xf32>
    %153 = vector.broadcast %152 : vector<8x1xf32> to vector<8x8xf32>
    %154 = arith.subf %150, %153 : vector<8x8xf32>
    %155 = math.exp %154 : vector<8x8xf32>
    %cst_48 = arith.constant dense<0.000000e+00> : vector<8xf32>
    %156 = vector.multi_reduction <add>, %155, %cst_48 [1] : vector<8x8xf32> to vector<8xf32>
    %157 = vector.shape_cast %156 : vector<8xf32> to vector<8x1xf32>
    %158 = vector.broadcast %157 : vector<8x1xf32> to vector<8x8xf32>
    %159 = arith.divf %155, %158 : vector<8x8xf32>
    %160 = arith.truncf %159 : vector<8x8xf32> to vector<8x8xbf16>
    %cst_49 = arith.constant dense<0.000000e+00> : vector<8x8xf32>
    %161 = tpu.matmul %160, %148, %cst_49 {dimension_numbers = #tpu.dot_dimension_numbers<[1], [0], [0], [1], [0, 0, 1, 1], [], []>} : vector<8x8xbf16>, vector<8x8xbf16>, vector<8x8xf32> -> vector<8x8xf32>
    %162 = vector.extract_strided_slice %141 {offsets = [8, 0], sizes = [8, 8], strides = [1, 1]} : vector<16x8xbf16> to vector<8x8xbf16>
    %163 = vector.extract_strided_slice %143 {offsets = [8, 0], sizes = [8, 8], strides = [1, 1]} : vector<16x8xbf16> to vector<8x8xbf16>
    %164 = vector.extract_strided_slice %145 {offsets = [8, 0], sizes = [8, 8], strides = [1, 1]} : vector<16x8xbf16> to vector<8x8xbf16>
    %cst_50 = arith.constant dense<0.000000e+00> : vector<8x8xf32>
    %165 = tpu.matmul %162, %163, %cst_50 {dimension_numbers = #tpu.dot_dimension_numbers<[1], [1], [0], [0], [0, 0, 1, 0], [], []>} : vector<8x8xbf16>, vector<8x8xbf16>, vector<8x8xf32> -> vector<8x8xf32>
    %166 = arith.addf %165, %4 : vector<8x8xf32>
    %cst_51 = arith.constant dense<0xFF800000> : vector<8xf32>
    %167 = vector.multi_reduction <maximumf>, %166, %cst_51 [1] : vector<8x8xf32> to vector<8xf32>
    %168 = vector.shape_cast %167 : vector<8xf32> to vector<8x1xf32>
    %169 = vector.broadcast %168 : vector<8x1xf32> to vector<8x8xf32>
    %170 = arith.subf %166, %169 : vector<8x8xf32>
    %171 = math.exp %170 : vector<8x8xf32>
    %cst_52 = arith.constant dense<0.000000e+00> : vector<8xf32>
    %172 = vector.multi_reduction <add>, %171, %cst_52 [1] : vector<8x8xf32> to vector<8xf32>
    %173 = vector.shape_cast %172 : vector<8xf32> to vector<8x1xf32>
    %174 = vector.broadcast %173 : vector<8x1xf32> to vector<8x8xf32>
    %175 = arith.divf %171, %174 : vector<8x8xf32>
    %176 = arith.truncf %175 : vector<8x8xf32> to vector<8x8xbf16>
    %cst_53 = arith.constant dense<0.000000e+00> : vector<8x8xf32>
    %177 = tpu.matmul %176, %164, %cst_53 {dimension_numbers = #tpu.dot_dimension_numbers<[1], [0], [0], [1], [0, 0, 1, 1], [], []>} : vector<8x8xbf16>, vector<8x8xbf16>, vector<8x8xf32> -> vector<8x8xf32>
    %178 = tpu.concatenate %161, %177 in 0 : vector<8x8xf32>, vector<8x8xf32> -> vector<16x8xf32>
    %179 = tpu.concatenate %61, %100, %139, %178 in 1 : vector<16x8xf32>, vector<16x8xf32>, vector<16x8xf32>, vector<16x8xf32> -> vector<16x32xf32>
    %180 = arith.truncf %179 : vector<16x32xf32> to vector<16x32xbf16>
    %cst_54 = arith.constant dense<0.000000e+00> : vector<16x32xf32>
    %181 = tpu.matmul %180, %20, %cst_54 {dimension_numbers = #tpu.dot_dimension_numbers<[1], [0], [0], [1], [0, 0, 1, 1], [], []>} : vector<16x32xbf16>, vector<32x32xbf16>, vector<16x32xf32> -> vector<16x32xf32>
    %182 = vector.broadcast %22 : vector<1x32xf32> to vector<16x32xf32>
    %183 = arith.addf %181, %182 : vector<16x32xf32>
    %184 = arith.addf %1, %183 : vector<16x32xf32>
    %c0_55 = arith.constant 0 : index
    %c0_56 = arith.constant 0 : index
    %c0_57 = arith.constant 0 : index
    %185 = vector.load %arg18[%c0_55, %c0_56, %c0_57] : memref<2x1x32xf32, #tpu.memory_space<vmem>>, vector<1x1x32xf32>
    %186 = vector.shape_cast %185 : vector<1x1x32xf32> to vector<1x32xf32>
    %c0_58 = arith.constant 0 : index
    %c0_59 = arith.constant 0 : index
    %c0_60 = arith.constant 0 : index
    %187 = vector.load %arg19[%c0_58, %c0_59, %c0_60] : memref<2x1x32xf32, #tpu.memory_space<vmem>>, vector<1x1x32xf32>
    %188 = vector.shape_cast %187 : vector<1x1x32xf32> to vector<1x32xf32>
    %cst_61 = arith.constant dense<0.000000e+00> : vector<16xf32>
    %189 = vector.multi_reduction <add>, %184, %cst_61 [1] : vector<16x32xf32> to vector<16xf32>
    %190 = vector.shape_cast %189 : vector<16xf32> to vector<16x1xf32>
    %cst_62 = arith.constant 3.200000e+01 : f32
    %191 = vector.broadcast %cst_62 : f32 to vector<16x1xf32>
    %192 = arith.divf %190, %191 : vector<16x1xf32>
    %193 = vector.broadcast %192 : vector<16x1xf32> to vector<16x32xf32>
    %194 = arith.subf %184, %193 : vector<16x32xf32>
    %195 = arith.mulf %194, %194 : vector<16x32xf32>
    %cst_63 = arith.constant dense<0.000000e+00> : vector<16xf32>
    %196 = vector.multi_reduction <add>, %195, %cst_63 [1] : vector<16x32xf32> to vector<16xf32>
    %197 = vector.shape_cast %196 : vector<16xf32> to vector<16x1xf32>
    %cst_64 = arith.constant 3.200000e+01 : f32
    %198 = vector.broadcast %cst_64 : f32 to vector<16x1xf32>
    %199 = arith.divf %197, %198 : vector<16x1xf32>
    %200 = vector.broadcast %192 : vector<16x1xf32> to vector<16x32xf32>
    %201 = arith.subf %184, %200 : vector<16x32xf32>
    %cst_65 = arith.constant 9.99999974E-6 : f32
    %202 = vector.broadcast %cst_65 : f32 to vector<16x1xf32>
    %203 = arith.addf %199, %202 : vector<16x1xf32>
    %204 = math.rsqrt %203 : vector<16x1xf32>
    %205 = vector.broadcast %204 : vector<16x1xf32> to vector<16x32xf32>
    %206 = arith.mulf %201, %205 : vector<16x32xf32>
    %207 = vector.broadcast %186 : vector<1x32xf32> to vector<16x32xf32>
    %208 = arith.mulf %206, %207 : vector<16x32xf32>
    %209 = vector.broadcast %188 : vector<1x32xf32> to vector<16x32xf32>
    %210 = arith.addf %208, %209 : vector<16x32xf32>
    %c0_66 = arith.constant 0 : index
    %c0_67 = arith.constant 0 : index
    %c0_68 = arith.constant 0 : index
    %211 = vector.load %arg8[%c0_66, %c0_67, %c0_68] : memref<2x32x32xbf16, #tpu.memory_space<vmem>>, vector<1x32x32xbf16>
    %212 = vector.shape_cast %211 : vector<1x32x32xbf16> to vector<32x32xbf16>
    %213 = arith.truncf %210 : vector<16x32xf32> to vector<16x32xbf16>
    %cst_69 = arith.constant dense<0.000000e+00> : vector<16x32xf32>
    %214 = tpu.matmul %213, %212, %cst_69 {dimension_numbers = #tpu.dot_dimension_numbers<[1], [0], [0], [1], [0, 0, 1, 1], [], []>} : vector<16x32xbf16>, vector<32x32xbf16>, vector<16x32xf32> -> vector<16x32xf32>
    %c0_70 = arith.constant 0 : index
    %c0_71 = arith.constant 0 : index
    %c0_72 = arith.constant 0 : index
    %215 = vector.load %arg9[%c0_70, %c0_71, %c0_72] : memref<2x1x32xf32, #tpu.memory_space<vmem>>, vector<1x1x32xf32>
    %216 = vector.shape_cast %215 : vector<1x1x32xf32> to vector<1x32xf32>
    %217 = vector.broadcast %216 : vector<1x32xf32> to vector<16x32xf32>
    %218 = arith.addf %214, %217 : vector<16x32xf32>
    %cst_73 = arith.constant 0.353553385 : f32
    %219 = vector.broadcast %cst_73 : f32 to vector<16x32xf32>
    %220 = arith.mulf %218, %219 : vector<16x32xf32>
    %c0_74 = arith.constant 0 : index
    %c0_75 = arith.constant 0 : index
    %c0_76 = arith.constant 0 : index
    %221 = vector.load %arg10[%c0_74, %c0_75, %c0_76] : memref<2x32x64xbf16, #tpu.memory_space<vmem>>, vector<1x32x64xbf16>
    %222 = vector.shape_cast %221 : vector<1x32x64xbf16> to vector<32x64xbf16>
    %223 = arith.truncf %3 : vector<16x32xf32> to vector<16x32xbf16>
    %cst_77 = arith.constant dense<0.000000e+00> : vector<16x64xf32>
    %224 = tpu.matmul %223, %222, %cst_77 {dimension_numbers = #tpu.dot_dimension_numbers<[1], [0], [0], [1], [0, 0, 1, 1], [], []>} : vector<16x32xbf16>, vector<32x64xbf16>, vector<16x64xf32> -> vector<16x64xf32>
    %c0_78 = arith.constant 0 : index
    %c0_79 = arith.constant 0 : index
    %c0_80 = arith.constant 0 : index
    %225 = vector.load %arg11[%c0_78, %c0_79, %c0_80] : memref<2x1x64xf32, #tpu.memory_space<vmem>>, vector<1x1x64xf32>
    %226 = vector.shape_cast %225 : vector<1x1x64xf32> to vector<1x64xf32>
    %227 = vector.broadcast %226 : vector<1x64xf32> to vector<16x64xf32>
    %228 = arith.addf %224, %227 : vector<16x64xf32>
    %229 = vector.extract_strided_slice %228 {offsets = [0, 0], sizes = [16, 32], strides = [1, 1]} : vector<16x64xf32> to vector<16x32xf32>
    %230 = vector.extract_strided_slice %228 {offsets = [0, 32], sizes = [16, 32], strides = [1, 1]} : vector<16x64xf32> to vector<16x32xf32>
    %c0_81 = arith.constant 0 : index
    %c0_82 = arith.constant 0 : index
    %c0_83 = arith.constant 0 : index
    %231 = vector.load %arg12[%c0_81, %c0_82, %c0_83] : memref<2x32x32xbf16, #tpu.memory_space<vmem>>, vector<1x32x32xbf16>
    %232 = vector.shape_cast %231 : vector<1x32x32xbf16> to vector<32x32xbf16>
    %c0_84 = arith.constant 0 : index
    %c0_85 = arith.constant 0 : index
    %c0_86 = arith.constant 0 : index
    %233 = vector.load %arg13[%c0_84, %c0_85, %c0_86] : memref<2x1x32xf32, #tpu.memory_space<vmem>>, vector<1x1x32xf32>
    %234 = vector.shape_cast %233 : vector<1x1x32xf32> to vector<1x32xf32>
    %235 = vector.extract_strided_slice %220 {offsets = [0, 0], sizes = [16, 8], strides = [1, 1]} : vector<16x32xf32> to vector<16x8xf32>
    %236 = arith.truncf %235 : vector<16x8xf32> to vector<16x8xbf16>
    %237 = vector.extract_strided_slice %229 {offsets = [0, 0], sizes = [16, 8], strides = [1, 1]} : vector<16x32xf32> to vector<16x8xf32>
    %238 = arith.truncf %237 : vector<16x8xf32> to vector<16x8xbf16>
    %239 = vector.extract_strided_slice %230 {offsets = [0, 0], sizes = [16, 8], strides = [1, 1]} : vector<16x32xf32> to vector<16x8xf32>
    %240 = arith.truncf %239 : vector<16x8xf32> to vector<16x8xbf16>
    %241 = vector.extract_strided_slice %236 {offsets = [0, 0], sizes = [8, 8], strides = [1, 1]} : vector<16x8xbf16> to vector<8x8xbf16>
    %242 = vector.extract_strided_slice %238 {offsets = [0, 0], sizes = [8, 8], strides = [1, 1]} : vector<16x8xbf16> to vector<8x8xbf16>
    %243 = vector.extract_strided_slice %240 {offsets = [0, 0], sizes = [8, 8], strides = [1, 1]} : vector<16x8xbf16> to vector<8x8xbf16>
    %cst_87 = arith.constant dense<0.000000e+00> : vector<8x8xf32>
    %244 = tpu.matmul %241, %242, %cst_87 {dimension_numbers = #tpu.dot_dimension_numbers<[1], [1], [0], [0], [0, 0, 1, 0], [], []>} : vector<8x8xbf16>, vector<8x8xbf16>, vector<8x8xf32> -> vector<8x8xf32>
    %245 = arith.addf %244, %5 : vector<8x8xf32>
    %cst_88 = arith.constant dense<0xFF800000> : vector<8xf32>
    %246 = vector.multi_reduction <maximumf>, %245, %cst_88 [1] : vector<8x8xf32> to vector<8xf32>
    %247 = vector.shape_cast %246 : vector<8xf32> to vector<8x1xf32>
    %248 = vector.broadcast %247 : vector<8x1xf32> to vector<8x8xf32>
    %249 = arith.subf %245, %248 : vector<8x8xf32>
    %250 = math.exp %249 : vector<8x8xf32>
    %cst_89 = arith.constant dense<0.000000e+00> : vector<8xf32>
    %251 = vector.multi_reduction <add>, %250, %cst_89 [1] : vector<8x8xf32> to vector<8xf32>
    %252 = vector.shape_cast %251 : vector<8xf32> to vector<8x1xf32>
    %253 = vector.broadcast %252 : vector<8x1xf32> to vector<8x8xf32>
    %254 = arith.divf %250, %253 : vector<8x8xf32>
    %255 = arith.truncf %254 : vector<8x8xf32> to vector<8x8xbf16>
    %cst_90 = arith.constant dense<0.000000e+00> : vector<8x8xf32>
    %256 = tpu.matmul %255, %243, %cst_90 {dimension_numbers = #tpu.dot_dimension_numbers<[1], [0], [0], [1], [0, 0, 1, 1], [], []>} : vector<8x8xbf16>, vector<8x8xbf16>, vector<8x8xf32> -> vector<8x8xf32>
    %257 = vector.extract_strided_slice %236 {offsets = [8, 0], sizes = [8, 8], strides = [1, 1]} : vector<16x8xbf16> to vector<8x8xbf16>
    %258 = vector.extract_strided_slice %238 {offsets = [8, 0], sizes = [8, 8], strides = [1, 1]} : vector<16x8xbf16> to vector<8x8xbf16>
    %259 = vector.extract_strided_slice %240 {offsets = [8, 0], sizes = [8, 8], strides = [1, 1]} : vector<16x8xbf16> to vector<8x8xbf16>
    %cst_91 = arith.constant dense<0.000000e+00> : vector<8x8xf32>
    %260 = tpu.matmul %257, %258, %cst_91 {dimension_numbers = #tpu.dot_dimension_numbers<[1], [1], [0], [0], [0, 0, 1, 0], [], []>} : vector<8x8xbf16>, vector<8x8xbf16>, vector<8x8xf32> -> vector<8x8xf32>
    %261 = arith.addf %260, %5 : vector<8x8xf32>
    %cst_92 = arith.constant dense<0xFF800000> : vector<8xf32>
    %262 = vector.multi_reduction <maximumf>, %261, %cst_92 [1] : vector<8x8xf32> to vector<8xf32>
    %263 = vector.shape_cast %262 : vector<8xf32> to vector<8x1xf32>
    %264 = vector.broadcast %263 : vector<8x1xf32> to vector<8x8xf32>
    %265 = arith.subf %261, %264 : vector<8x8xf32>
    %266 = math.exp %265 : vector<8x8xf32>
    %cst_93 = arith.constant dense<0.000000e+00> : vector<8xf32>
    %267 = vector.multi_reduction <add>, %266, %cst_93 [1] : vector<8x8xf32> to vector<8xf32>
    %268 = vector.shape_cast %267 : vector<8xf32> to vector<8x1xf32>
    %269 = vector.broadcast %268 : vector<8x1xf32> to vector<8x8xf32>
    %270 = arith.divf %266, %269 : vector<8x8xf32>
    %271 = arith.truncf %270 : vector<8x8xf32> to vector<8x8xbf16>
    %cst_94 = arith.constant dense<0.000000e+00> : vector<8x8xf32>
    %272 = tpu.matmul %271, %259, %cst_94 {dimension_numbers = #tpu.dot_dimension_numbers<[1], [0], [0], [1], [0, 0, 1, 1], [], []>} : vector<8x8xbf16>, vector<8x8xbf16>, vector<8x8xf32> -> vector<8x8xf32>
    %273 = tpu.concatenate %256, %272 in 0 : vector<8x8xf32>, vector<8x8xf32> -> vector<16x8xf32>
    %274 = vector.extract_strided_slice %220 {offsets = [0, 8], sizes = [16, 8], strides = [1, 1]} : vector<16x32xf32> to vector<16x8xf32>
    %275 = arith.truncf %274 : vector<16x8xf32> to vector<16x8xbf16>
    %276 = vector.extract_strided_slice %229 {offsets = [0, 8], sizes = [16, 8], strides = [1, 1]} : vector<16x32xf32> to vector<16x8xf32>
    %277 = arith.truncf %276 : vector<16x8xf32> to vector<16x8xbf16>
    %278 = vector.extract_strided_slice %230 {offsets = [0, 8], sizes = [16, 8], strides = [1, 1]} : vector<16x32xf32> to vector<16x8xf32>
    %279 = arith.truncf %278 : vector<16x8xf32> to vector<16x8xbf16>
    %280 = vector.extract_strided_slice %275 {offsets = [0, 0], sizes = [8, 8], strides = [1, 1]} : vector<16x8xbf16> to vector<8x8xbf16>
    %281 = vector.extract_strided_slice %277 {offsets = [0, 0], sizes = [8, 8], strides = [1, 1]} : vector<16x8xbf16> to vector<8x8xbf16>
    %282 = vector.extract_strided_slice %279 {offsets = [0, 0], sizes = [8, 8], strides = [1, 1]} : vector<16x8xbf16> to vector<8x8xbf16>
    %cst_95 = arith.constant dense<0.000000e+00> : vector<8x8xf32>
    %283 = tpu.matmul %280, %281, %cst_95 {dimension_numbers = #tpu.dot_dimension_numbers<[1], [1], [0], [0], [0, 0, 1, 0], [], []>} : vector<8x8xbf16>, vector<8x8xbf16>, vector<8x8xf32> -> vector<8x8xf32>
    %284 = arith.addf %283, %5 : vector<8x8xf32>
    %cst_96 = arith.constant dense<0xFF800000> : vector<8xf32>
    %285 = vector.multi_reduction <maximumf>, %284, %cst_96 [1] : vector<8x8xf32> to vector<8xf32>
    %286 = vector.shape_cast %285 : vector<8xf32> to vector<8x1xf32>
    %287 = vector.broadcast %286 : vector<8x1xf32> to vector<8x8xf32>
    %288 = arith.subf %284, %287 : vector<8x8xf32>
    %289 = math.exp %288 : vector<8x8xf32>
    %cst_97 = arith.constant dense<0.000000e+00> : vector<8xf32>
    %290 = vector.multi_reduction <add>, %289, %cst_97 [1] : vector<8x8xf32> to vector<8xf32>
    %291 = vector.shape_cast %290 : vector<8xf32> to vector<8x1xf32>
    %292 = vector.broadcast %291 : vector<8x1xf32> to vector<8x8xf32>
    %293 = arith.divf %289, %292 : vector<8x8xf32>
    %294 = arith.truncf %293 : vector<8x8xf32> to vector<8x8xbf16>
    %cst_98 = arith.constant dense<0.000000e+00> : vector<8x8xf32>
    %295 = tpu.matmul %294, %282, %cst_98 {dimension_numbers = #tpu.dot_dimension_numbers<[1], [0], [0], [1], [0, 0, 1, 1], [], []>} : vector<8x8xbf16>, vector<8x8xbf16>, vector<8x8xf32> -> vector<8x8xf32>
    %296 = vector.extract_strided_slice %275 {offsets = [8, 0], sizes = [8, 8], strides = [1, 1]} : vector<16x8xbf16> to vector<8x8xbf16>
    %297 = vector.extract_strided_slice %277 {offsets = [8, 0], sizes = [8, 8], strides = [1, 1]} : vector<16x8xbf16> to vector<8x8xbf16>
    %298 = vector.extract_strided_slice %279 {offsets = [8, 0], sizes = [8, 8], strides = [1, 1]} : vector<16x8xbf16> to vector<8x8xbf16>
    %cst_99 = arith.constant dense<0.000000e+00> : vector<8x8xf32>
    %299 = tpu.matmul %296, %297, %cst_99 {dimension_numbers = #tpu.dot_dimension_numbers<[1], [1], [0], [0], [0, 0, 1, 0], [], []>} : vector<8x8xbf16>, vector<8x8xbf16>, vector<8x8xf32> -> vector<8x8xf32>
    %300 = arith.addf %299, %5 : vector<8x8xf32>
    %cst_100 = arith.constant dense<0xFF800000> : vector<8xf32>
    %301 = vector.multi_reduction <maximumf>, %300, %cst_100 [1] : vector<8x8xf32> to vector<8xf32>
    %302 = vector.shape_cast %301 : vector<8xf32> to vector<8x1xf32>
    %303 = vector.broadcast %302 : vector<8x1xf32> to vector<8x8xf32>
    %304 = arith.subf %300, %303 : vector<8x8xf32>
    %305 = math.exp %304 : vector<8x8xf32>
    %cst_101 = arith.constant dense<0.000000e+00> : vector<8xf32>
    %306 = vector.multi_reduction <add>, %305, %cst_101 [1] : vector<8x8xf32> to vector<8xf32>
    %307 = vector.shape_cast %306 : vector<8xf32> to vector<8x1xf32>
    %308 = vector.broadcast %307 : vector<8x1xf32> to vector<8x8xf32>
    %309 = arith.divf %305, %308 : vector<8x8xf32>
    %310 = arith.truncf %309 : vector<8x8xf32> to vector<8x8xbf16>
    %cst_102 = arith.constant dense<0.000000e+00> : vector<8x8xf32>
    %311 = tpu.matmul %310, %298, %cst_102 {dimension_numbers = #tpu.dot_dimension_numbers<[1], [0], [0], [1], [0, 0, 1, 1], [], []>} : vector<8x8xbf16>, vector<8x8xbf16>, vector<8x8xf32> -> vector<8x8xf32>
    %312 = tpu.concatenate %295, %311 in 0 : vector<8x8xf32>, vector<8x8xf32> -> vector<16x8xf32>
    %313 = vector.extract_strided_slice %220 {offsets = [0, 16], sizes = [16, 8], strides = [1, 1]} : vector<16x32xf32> to vector<16x8xf32>
    %314 = arith.truncf %313 : vector<16x8xf32> to vector<16x8xbf16>
    %315 = vector.extract_strided_slice %229 {offsets = [0, 16], sizes = [16, 8], strides = [1, 1]} : vector<16x32xf32> to vector<16x8xf32>
    %316 = arith.truncf %315 : vector<16x8xf32> to vector<16x8xbf16>
    %317 = vector.extract_strided_slice %230 {offsets = [0, 16], sizes = [16, 8], strides = [1, 1]} : vector<16x32xf32> to vector<16x8xf32>
    %318 = arith.truncf %317 : vector<16x8xf32> to vector<16x8xbf16>
    %319 = vector.extract_strided_slice %314 {offsets = [0, 0], sizes = [8, 8], strides = [1, 1]} : vector<16x8xbf16> to vector<8x8xbf16>
    %320 = vector.extract_strided_slice %316 {offsets = [0, 0], sizes = [8, 8], strides = [1, 1]} : vector<16x8xbf16> to vector<8x8xbf16>
    %321 = vector.extract_strided_slice %318 {offsets = [0, 0], sizes = [8, 8], strides = [1, 1]} : vector<16x8xbf16> to vector<8x8xbf16>
    %cst_103 = arith.constant dense<0.000000e+00> : vector<8x8xf32>
    %322 = tpu.matmul %319, %320, %cst_103 {dimension_numbers = #tpu.dot_dimension_numbers<[1], [1], [0], [0], [0, 0, 1, 0], [], []>} : vector<8x8xbf16>, vector<8x8xbf16>, vector<8x8xf32> -> vector<8x8xf32>
    %323 = arith.addf %322, %5 : vector<8x8xf32>
    %cst_104 = arith.constant dense<0xFF800000> : vector<8xf32>
    %324 = vector.multi_reduction <maximumf>, %323, %cst_104 [1] : vector<8x8xf32> to vector<8xf32>
    %325 = vector.shape_cast %324 : vector<8xf32> to vector<8x1xf32>
    %326 = vector.broadcast %325 : vector<8x1xf32> to vector<8x8xf32>
    %327 = arith.subf %323, %326 : vector<8x8xf32>
    %328 = math.exp %327 : vector<8x8xf32>
    %cst_105 = arith.constant dense<0.000000e+00> : vector<8xf32>
    %329 = vector.multi_reduction <add>, %328, %cst_105 [1] : vector<8x8xf32> to vector<8xf32>
    %330 = vector.shape_cast %329 : vector<8xf32> to vector<8x1xf32>
    %331 = vector.broadcast %330 : vector<8x1xf32> to vector<8x8xf32>
    %332 = arith.divf %328, %331 : vector<8x8xf32>
    %333 = arith.truncf %332 : vector<8x8xf32> to vector<8x8xbf16>
    %cst_106 = arith.constant dense<0.000000e+00> : vector<8x8xf32>
    %334 = tpu.matmul %333, %321, %cst_106 {dimension_numbers = #tpu.dot_dimension_numbers<[1], [0], [0], [1], [0, 0, 1, 1], [], []>} : vector<8x8xbf16>, vector<8x8xbf16>, vector<8x8xf32> -> vector<8x8xf32>
    %335 = vector.extract_strided_slice %314 {offsets = [8, 0], sizes = [8, 8], strides = [1, 1]} : vector<16x8xbf16> to vector<8x8xbf16>
    %336 = vector.extract_strided_slice %316 {offsets = [8, 0], sizes = [8, 8], strides = [1, 1]} : vector<16x8xbf16> to vector<8x8xbf16>
    %337 = vector.extract_strided_slice %318 {offsets = [8, 0], sizes = [8, 8], strides = [1, 1]} : vector<16x8xbf16> to vector<8x8xbf16>
    %cst_107 = arith.constant dense<0.000000e+00> : vector<8x8xf32>
    %338 = tpu.matmul %335, %336, %cst_107 {dimension_numbers = #tpu.dot_dimension_numbers<[1], [1], [0], [0], [0, 0, 1, 0], [], []>} : vector<8x8xbf16>, vector<8x8xbf16>, vector<8x8xf32> -> vector<8x8xf32>
    %339 = arith.addf %338, %5 : vector<8x8xf32>
    %cst_108 = arith.constant dense<0xFF800000> : vector<8xf32>
    %340 = vector.multi_reduction <maximumf>, %339, %cst_108 [1] : vector<8x8xf32> to vector<8xf32>
    %341 = vector.shape_cast %340 : vector<8xf32> to vector<8x1xf32>
    %342 = vector.broadcast %341 : vector<8x1xf32> to vector<8x8xf32>
    %343 = arith.subf %339, %342 : vector<8x8xf32>
    %344 = math.exp %343 : vector<8x8xf32>
    %cst_109 = arith.constant dense<0.000000e+00> : vector<8xf32>
    %345 = vector.multi_reduction <add>, %344, %cst_109 [1] : vector<8x8xf32> to vector<8xf32>
    %346 = vector.shape_cast %345 : vector<8xf32> to vector<8x1xf32>
    %347 = vector.broadcast %346 : vector<8x1xf32> to vector<8x8xf32>
    %348 = arith.divf %344, %347 : vector<8x8xf32>
    %349 = arith.truncf %348 : vector<8x8xf32> to vector<8x8xbf16>
    %cst_110 = arith.constant dense<0.000000e+00> : vector<8x8xf32>
    %350 = tpu.matmul %349, %337, %cst_110 {dimension_numbers = #tpu.dot_dimension_numbers<[1], [0], [0], [1], [0, 0, 1, 1], [], []>} : vector<8x8xbf16>, vector<8x8xbf16>, vector<8x8xf32> -> vector<8x8xf32>
    %351 = tpu.concatenate %334, %350 in 0 : vector<8x8xf32>, vector<8x8xf32> -> vector<16x8xf32>
    %352 = vector.extract_strided_slice %220 {offsets = [0, 24], sizes = [16, 8], strides = [1, 1]} : vector<16x32xf32> to vector<16x8xf32>
    %353 = arith.truncf %352 : vector<16x8xf32> to vector<16x8xbf16>
    %354 = vector.extract_strided_slice %229 {offsets = [0, 24], sizes = [16, 8], strides = [1, 1]} : vector<16x32xf32> to vector<16x8xf32>
    %355 = arith.truncf %354 : vector<16x8xf32> to vector<16x8xbf16>
    %356 = vector.extract_strided_slice %230 {offsets = [0, 24], sizes = [16, 8], strides = [1, 1]} : vector<16x32xf32> to vector<16x8xf32>
    %357 = arith.truncf %356 : vector<16x8xf32> to vector<16x8xbf16>
    %358 = vector.extract_strided_slice %353 {offsets = [0, 0], sizes = [8, 8], strides = [1, 1]} : vector<16x8xbf16> to vector<8x8xbf16>
    %359 = vector.extract_strided_slice %355 {offsets = [0, 0], sizes = [8, 8], strides = [1, 1]} : vector<16x8xbf16> to vector<8x8xbf16>
    %360 = vector.extract_strided_slice %357 {offsets = [0, 0], sizes = [8, 8], strides = [1, 1]} : vector<16x8xbf16> to vector<8x8xbf16>
    %cst_111 = arith.constant dense<0.000000e+00> : vector<8x8xf32>
    %361 = tpu.matmul %358, %359, %cst_111 {dimension_numbers = #tpu.dot_dimension_numbers<[1], [1], [0], [0], [0, 0, 1, 0], [], []>} : vector<8x8xbf16>, vector<8x8xbf16>, vector<8x8xf32> -> vector<8x8xf32>
    %362 = arith.addf %361, %5 : vector<8x8xf32>
    %cst_112 = arith.constant dense<0xFF800000> : vector<8xf32>
    %363 = vector.multi_reduction <maximumf>, %362, %cst_112 [1] : vector<8x8xf32> to vector<8xf32>
    %364 = vector.shape_cast %363 : vector<8xf32> to vector<8x1xf32>
    %365 = vector.broadcast %364 : vector<8x1xf32> to vector<8x8xf32>
    %366 = arith.subf %362, %365 : vector<8x8xf32>
    %367 = math.exp %366 : vector<8x8xf32>
    %cst_113 = arith.constant dense<0.000000e+00> : vector<8xf32>
    %368 = vector.multi_reduction <add>, %367, %cst_113 [1] : vector<8x8xf32> to vector<8xf32>
    %369 = vector.shape_cast %368 : vector<8xf32> to vector<8x1xf32>
    %370 = vector.broadcast %369 : vector<8x1xf32> to vector<8x8xf32>
    %371 = arith.divf %367, %370 : vector<8x8xf32>
    %372 = arith.truncf %371 : vector<8x8xf32> to vector<8x8xbf16>
    %cst_114 = arith.constant dense<0.000000e+00> : vector<8x8xf32>
    %373 = tpu.matmul %372, %360, %cst_114 {dimension_numbers = #tpu.dot_dimension_numbers<[1], [0], [0], [1], [0, 0, 1, 1], [], []>} : vector<8x8xbf16>, vector<8x8xbf16>, vector<8x8xf32> -> vector<8x8xf32>
    %374 = vector.extract_strided_slice %353 {offsets = [8, 0], sizes = [8, 8], strides = [1, 1]} : vector<16x8xbf16> to vector<8x8xbf16>
    %375 = vector.extract_strided_slice %355 {offsets = [8, 0], sizes = [8, 8], strides = [1, 1]} : vector<16x8xbf16> to vector<8x8xbf16>
    %376 = vector.extract_strided_slice %357 {offsets = [8, 0], sizes = [8, 8], strides = [1, 1]} : vector<16x8xbf16> to vector<8x8xbf16>
    %cst_115 = arith.constant dense<0.000000e+00> : vector<8x8xf32>
    %377 = tpu.matmul %374, %375, %cst_115 {dimension_numbers = #tpu.dot_dimension_numbers<[1], [1], [0], [0], [0, 0, 1, 0], [], []>} : vector<8x8xbf16>, vector<8x8xbf16>, vector<8x8xf32> -> vector<8x8xf32>
    %378 = arith.addf %377, %5 : vector<8x8xf32>
    %cst_116 = arith.constant dense<0xFF800000> : vector<8xf32>
    %379 = vector.multi_reduction <maximumf>, %378, %cst_116 [1] : vector<8x8xf32> to vector<8xf32>
    %380 = vector.shape_cast %379 : vector<8xf32> to vector<8x1xf32>
    %381 = vector.broadcast %380 : vector<8x1xf32> to vector<8x8xf32>
    %382 = arith.subf %378, %381 : vector<8x8xf32>
    %383 = math.exp %382 : vector<8x8xf32>
    %cst_117 = arith.constant dense<0.000000e+00> : vector<8xf32>
    %384 = vector.multi_reduction <add>, %383, %cst_117 [1] : vector<8x8xf32> to vector<8xf32>
    %385 = vector.shape_cast %384 : vector<8xf32> to vector<8x1xf32>
    %386 = vector.broadcast %385 : vector<8x1xf32> to vector<8x8xf32>
    %387 = arith.divf %383, %386 : vector<8x8xf32>
    %388 = arith.truncf %387 : vector<8x8xf32> to vector<8x8xbf16>
    %cst_118 = arith.constant dense<0.000000e+00> : vector<8x8xf32>
    %389 = tpu.matmul %388, %376, %cst_118 {dimension_numbers = #tpu.dot_dimension_numbers<[1], [0], [0], [1], [0, 0, 1, 1], [], []>} : vector<8x8xbf16>, vector<8x8xbf16>, vector<8x8xf32> -> vector<8x8xf32>
    %390 = tpu.concatenate %373, %389 in 0 : vector<8x8xf32>, vector<8x8xf32> -> vector<16x8xf32>
    %391 = tpu.concatenate %273, %312, %351, %390 in 1 : vector<16x8xf32>, vector<16x8xf32>, vector<16x8xf32>, vector<16x8xf32> -> vector<16x32xf32>
    %392 = arith.truncf %391 : vector<16x32xf32> to vector<16x32xbf16>
    %cst_119 = arith.constant dense<0.000000e+00> : vector<16x32xf32>
    %393 = tpu.matmul %392, %232, %cst_119 {dimension_numbers = #tpu.dot_dimension_numbers<[1], [0], [0], [1], [0, 0, 1, 1], [], []>} : vector<16x32xbf16>, vector<32x32xbf16>, vector<16x32xf32> -> vector<16x32xf32>
    %394 = vector.broadcast %234 : vector<1x32xf32> to vector<16x32xf32>
    %395 = arith.addf %393, %394 : vector<16x32xf32>
    %396 = arith.addf %210, %395 : vector<16x32xf32>
    %c0_120 = arith.constant 0 : index
    %c0_121 = arith.constant 0 : index
    %c0_122 = arith.constant 0 : index
    %397 = vector.load %arg20[%c0_120, %c0_121, %c0_122] : memref<2x1x32xf32, #tpu.memory_space<vmem>>, vector<1x1x32xf32>
    %398 = vector.shape_cast %397 : vector<1x1x32xf32> to vector<1x32xf32>
    %c0_123 = arith.constant 0 : index
    %c0_124 = arith.constant 0 : index
    %c0_125 = arith.constant 0 : index
    %399 = vector.load %arg21[%c0_123, %c0_124, %c0_125] : memref<2x1x32xf32, #tpu.memory_space<vmem>>, vector<1x1x32xf32>
    %400 = vector.shape_cast %399 : vector<1x1x32xf32> to vector<1x32xf32>
    %cst_126 = arith.constant dense<0.000000e+00> : vector<16xf32>
    %401 = vector.multi_reduction <add>, %396, %cst_126 [1] : vector<16x32xf32> to vector<16xf32>
    %402 = vector.shape_cast %401 : vector<16xf32> to vector<16x1xf32>
    %cst_127 = arith.constant 3.200000e+01 : f32
    %403 = vector.broadcast %cst_127 : f32 to vector<16x1xf32>
    %404 = arith.divf %402, %403 : vector<16x1xf32>
    %405 = vector.broadcast %404 : vector<16x1xf32> to vector<16x32xf32>
    %406 = arith.subf %396, %405 : vector<16x32xf32>
    %407 = arith.mulf %406, %406 : vector<16x32xf32>
    %cst_128 = arith.constant dense<0.000000e+00> : vector<16xf32>
    %408 = vector.multi_reduction <add>, %407, %cst_128 [1] : vector<16x32xf32> to vector<16xf32>
    %409 = vector.shape_cast %408 : vector<16xf32> to vector<16x1xf32>
    %cst_129 = arith.constant 3.200000e+01 : f32
    %410 = vector.broadcast %cst_129 : f32 to vector<16x1xf32>
    %411 = arith.divf %409, %410 : vector<16x1xf32>
    %412 = vector.broadcast %404 : vector<16x1xf32> to vector<16x32xf32>
    %413 = arith.subf %396, %412 : vector<16x32xf32>
    %cst_130 = arith.constant 9.99999974E-6 : f32
    %414 = vector.broadcast %cst_130 : f32 to vector<16x1xf32>
    %415 = arith.addf %411, %414 : vector<16x1xf32>
    %416 = math.rsqrt %415 : vector<16x1xf32>
    %417 = vector.broadcast %416 : vector<16x1xf32> to vector<16x32xf32>
    %418 = arith.mulf %413, %417 : vector<16x32xf32>
    %419 = vector.broadcast %398 : vector<1x32xf32> to vector<16x32xf32>
    %420 = arith.mulf %418, %419 : vector<16x32xf32>
    %421 = vector.broadcast %400 : vector<1x32xf32> to vector<16x32xf32>
    %422 = arith.addf %420, %421 : vector<16x32xf32>
    %c0_131 = arith.constant 0 : index
    %c0_132 = arith.constant 0 : index
    %c0_133 = arith.constant 0 : index
    %423 = vector.load %arg14[%c0_131, %c0_132, %c0_133] : memref<2x32x64xbf16, #tpu.memory_space<vmem>>, vector<1x32x64xbf16>
    %424 = vector.shape_cast %423 : vector<1x32x64xbf16> to vector<32x64xbf16>
    %425 = arith.truncf %422 : vector<16x32xf32> to vector<16x32xbf16>
    %cst_134 = arith.constant dense<0.000000e+00> : vector<16x64xf32>
    %426 = tpu.matmul %425, %424, %cst_134 {dimension_numbers = #tpu.dot_dimension_numbers<[1], [0], [0], [1], [0, 0, 1, 1], [], []>} : vector<16x32xbf16>, vector<32x64xbf16>, vector<16x64xf32> -> vector<16x64xf32>
    %c0_135 = arith.constant 0 : index
    %c0_136 = arith.constant 0 : index
    %c0_137 = arith.constant 0 : index
    %427 = vector.load %arg15[%c0_135, %c0_136, %c0_137] : memref<2x1x64xf32, #tpu.memory_space<vmem>>, vector<1x1x64xf32>
    %428 = vector.shape_cast %427 : vector<1x1x64xf32> to vector<1x64xf32>
    %429 = vector.broadcast %428 : vector<1x64xf32> to vector<16x64xf32>
    %430 = arith.addf %426, %429 : vector<16x64xf32>
    %cst_138 = arith.constant 0.000000e+00 : f32
    %431 = vector.broadcast %cst_138 : f32 to vector<16x64xf32>
    %432 = arith.maximumf %430, %431 : vector<16x64xf32>
    %c0_139 = arith.constant 0 : index
    %c0_140 = arith.constant 0 : index
    %c0_141 = arith.constant 0 : index
    %433 = vector.load %arg16[%c0_139, %c0_140, %c0_141] : memref<2x64x32xbf16, #tpu.memory_space<vmem>>, vector<1x64x32xbf16>
    %434 = vector.shape_cast %433 : vector<1x64x32xbf16> to vector<64x32xbf16>
    %435 = arith.truncf %432 : vector<16x64xf32> to vector<16x64xbf16>
    %cst_142 = arith.constant dense<0.000000e+00> : vector<16x32xf32>
    %436 = tpu.matmul %435, %434, %cst_142 {dimension_numbers = #tpu.dot_dimension_numbers<[1], [0], [0], [1], [0, 0, 1, 1], [], []>} : vector<16x64xbf16>, vector<64x32xbf16>, vector<16x32xf32> -> vector<16x32xf32>
    %c0_143 = arith.constant 0 : index
    %c0_144 = arith.constant 0 : index
    %c0_145 = arith.constant 0 : index
    %437 = vector.load %arg17[%c0_143, %c0_144, %c0_145] : memref<2x1x32xf32, #tpu.memory_space<vmem>>, vector<1x1x32xf32>
    %438 = vector.shape_cast %437 : vector<1x1x32xf32> to vector<1x32xf32>
    %439 = vector.broadcast %438 : vector<1x32xf32> to vector<16x32xf32>
    %440 = arith.addf %436, %439 : vector<16x32xf32>
    %441 = arith.addf %422, %440 : vector<16x32xf32>
    %c0_146 = arith.constant 0 : index
    %c0_147 = arith.constant 0 : index
    %c0_148 = arith.constant 0 : index
    %442 = vector.load %arg22[%c0_146, %c0_147, %c0_148] : memref<2x1x32xf32, #tpu.memory_space<vmem>>, vector<1x1x32xf32>
    %443 = vector.shape_cast %442 : vector<1x1x32xf32> to vector<1x32xf32>
    %c0_149 = arith.constant 0 : index
    %c0_150 = arith.constant 0 : index
    %c0_151 = arith.constant 0 : index
    %444 = vector.load %arg23[%c0_149, %c0_150, %c0_151] : memref<2x1x32xf32, #tpu.memory_space<vmem>>, vector<1x1x32xf32>
    %445 = vector.shape_cast %444 : vector<1x1x32xf32> to vector<1x32xf32>
    %cst_152 = arith.constant dense<0.000000e+00> : vector<16xf32>
    %446 = vector.multi_reduction <add>, %441, %cst_152 [1] : vector<16x32xf32> to vector<16xf32>
    %447 = vector.shape_cast %446 : vector<16xf32> to vector<16x1xf32>
    %cst_153 = arith.constant 3.200000e+01 : f32
    %448 = vector.broadcast %cst_153 : f32 to vector<16x1xf32>
    %449 = arith.divf %447, %448 : vector<16x1xf32>
    %450 = vector.broadcast %449 : vector<16x1xf32> to vector<16x32xf32>
    %451 = arith.subf %441, %450 : vector<16x32xf32>
    %452 = arith.mulf %451, %451 : vector<16x32xf32>
    %cst_154 = arith.constant dense<0.000000e+00> : vector<16xf32>
    %453 = vector.multi_reduction <add>, %452, %cst_154 [1] : vector<16x32xf32> to vector<16xf32>
    %454 = vector.shape_cast %453 : vector<16xf32> to vector<16x1xf32>
    %cst_155 = arith.constant 3.200000e+01 : f32
    %455 = vector.broadcast %cst_155 : f32 to vector<16x1xf32>
    %456 = arith.divf %454, %455 : vector<16x1xf32>
    %457 = vector.broadcast %449 : vector<16x1xf32> to vector<16x32xf32>
    %458 = arith.subf %441, %457 : vector<16x32xf32>
    %cst_156 = arith.constant 9.99999974E-6 : f32
    %459 = vector.broadcast %cst_156 : f32 to vector<16x1xf32>
    %460 = arith.addf %456, %459 : vector<16x1xf32>
    %461 = math.rsqrt %460 : vector<16x1xf32>
    %462 = vector.broadcast %461 : vector<16x1xf32> to vector<16x32xf32>
    %463 = arith.mulf %458, %462 : vector<16x32xf32>
    %464 = vector.broadcast %443 : vector<1x32xf32> to vector<16x32xf32>
    %465 = arith.mulf %463, %464 : vector<16x32xf32>
    %466 = vector.broadcast %445 : vector<1x32xf32> to vector<16x32xf32>
    %467 = arith.addf %465, %466 : vector<16x32xf32>
    %c1 = arith.constant 1 : index
    %c0_157 = arith.constant 0 : index
    %c0_158 = arith.constant 0 : index
    %468 = vector.load %arg4[%c1, %c0_157, %c0_158] : memref<2x32x96xbf16, #tpu.memory_space<vmem>>, vector<1x32x96xbf16>
    %469 = vector.shape_cast %468 : vector<1x32x96xbf16> to vector<32x96xbf16>
    %470 = arith.truncf %467 : vector<16x32xf32> to vector<16x32xbf16>
    %cst_159 = arith.constant dense<0.000000e+00> : vector<16x96xf32>
    %471 = tpu.matmul %470, %469, %cst_159 {dimension_numbers = #tpu.dot_dimension_numbers<[1], [0], [0], [1], [0, 0, 1, 1], [], []>} : vector<16x32xbf16>, vector<32x96xbf16>, vector<16x96xf32> -> vector<16x96xf32>
    %c1_160 = arith.constant 1 : index
    %c0_161 = arith.constant 0 : index
    %c0_162 = arith.constant 0 : index
    %472 = vector.load %arg5[%c1_160, %c0_161, %c0_162] : memref<2x1x96xf32, #tpu.memory_space<vmem>>, vector<1x1x96xf32>
    %473 = vector.shape_cast %472 : vector<1x1x96xf32> to vector<1x96xf32>
    %474 = vector.broadcast %473 : vector<1x96xf32> to vector<16x96xf32>
    %475 = arith.addf %471, %474 : vector<16x96xf32>
    %476 = vector.extract_strided_slice %475 {offsets = [0, 0], sizes = [16, 32], strides = [1, 1]} : vector<16x96xf32> to vector<16x32xf32>
    %cst_163 = arith.constant 0.353553385 : f32
    %477 = vector.broadcast %cst_163 : f32 to vector<16x32xf32>
    %478 = arith.mulf %476, %477 : vector<16x32xf32>
    %479 = vector.extract_strided_slice %475 {offsets = [0, 32], sizes = [16, 32], strides = [1, 1]} : vector<16x96xf32> to vector<16x32xf32>
    %480 = vector.extract_strided_slice %475 {offsets = [0, 64], sizes = [16, 32], strides = [1, 1]} : vector<16x96xf32> to vector<16x32xf32>
    %c1_164 = arith.constant 1 : index
    %c0_165 = arith.constant 0 : index
    %c0_166 = arith.constant 0 : index
    %481 = vector.load %arg6[%c1_164, %c0_165, %c0_166] : memref<2x32x32xbf16, #tpu.memory_space<vmem>>, vector<1x32x32xbf16>
    %482 = vector.shape_cast %481 : vector<1x32x32xbf16> to vector<32x32xbf16>
    %c1_167 = arith.constant 1 : index
    %c0_168 = arith.constant 0 : index
    %c0_169 = arith.constant 0 : index
    %483 = vector.load %arg7[%c1_167, %c0_168, %c0_169] : memref<2x1x32xf32, #tpu.memory_space<vmem>>, vector<1x1x32xf32>
    %484 = vector.shape_cast %483 : vector<1x1x32xf32> to vector<1x32xf32>
    %485 = vector.extract_strided_slice %478 {offsets = [0, 0], sizes = [16, 8], strides = [1, 1]} : vector<16x32xf32> to vector<16x8xf32>
    %486 = arith.truncf %485 : vector<16x8xf32> to vector<16x8xbf16>
    %487 = vector.extract_strided_slice %479 {offsets = [0, 0], sizes = [16, 8], strides = [1, 1]} : vector<16x32xf32> to vector<16x8xf32>
    %488 = arith.truncf %487 : vector<16x8xf32> to vector<16x8xbf16>
    %489 = vector.extract_strided_slice %480 {offsets = [0, 0], sizes = [16, 8], strides = [1, 1]} : vector<16x32xf32> to vector<16x8xf32>
    %490 = arith.truncf %489 : vector<16x8xf32> to vector<16x8xbf16>
    %491 = vector.extract_strided_slice %486 {offsets = [0, 0], sizes = [8, 8], strides = [1, 1]} : vector<16x8xbf16> to vector<8x8xbf16>
    %492 = vector.extract_strided_slice %488 {offsets = [0, 0], sizes = [8, 8], strides = [1, 1]} : vector<16x8xbf16> to vector<8x8xbf16>
    %493 = vector.extract_strided_slice %490 {offsets = [0, 0], sizes = [8, 8], strides = [1, 1]} : vector<16x8xbf16> to vector<8x8xbf16>
    %cst_170 = arith.constant dense<0.000000e+00> : vector<8x8xf32>
    %494 = tpu.matmul %491, %492, %cst_170 {dimension_numbers = #tpu.dot_dimension_numbers<[1], [1], [0], [0], [0, 0, 1, 0], [], []>} : vector<8x8xbf16>, vector<8x8xbf16>, vector<8x8xf32> -> vector<8x8xf32>
    %495 = arith.addf %494, %4 : vector<8x8xf32>
    %cst_171 = arith.constant dense<0xFF800000> : vector<8xf32>
    %496 = vector.multi_reduction <maximumf>, %495, %cst_171 [1] : vector<8x8xf32> to vector<8xf32>
    %497 = vector.shape_cast %496 : vector<8xf32> to vector<8x1xf32>
    %498 = vector.broadcast %497 : vector<8x1xf32> to vector<8x8xf32>
    %499 = arith.subf %495, %498 : vector<8x8xf32>
    %500 = math.exp %499 : vector<8x8xf32>
    %cst_172 = arith.constant dense<0.000000e+00> : vector<8xf32>
    %501 = vector.multi_reduction <add>, %500, %cst_172 [1] : vector<8x8xf32> to vector<8xf32>
    %502 = vector.shape_cast %501 : vector<8xf32> to vector<8x1xf32>
    %503 = vector.broadcast %502 : vector<8x1xf32> to vector<8x8xf32>
    %504 = arith.divf %500, %503 : vector<8x8xf32>
    %505 = arith.truncf %504 : vector<8x8xf32> to vector<8x8xbf16>
    %cst_173 = arith.constant dense<0.000000e+00> : vector<8x8xf32>
    %506 = tpu.matmul %505, %493, %cst_173 {dimension_numbers = #tpu.dot_dimension_numbers<[1], [0], [0], [1], [0, 0, 1, 1], [], []>} : vector<8x8xbf16>, vector<8x8xbf16>, vector<8x8xf32> -> vector<8x8xf32>
    %507 = vector.extract_strided_slice %486 {offsets = [8, 0], sizes = [8, 8], strides = [1, 1]} : vector<16x8xbf16> to vector<8x8xbf16>
    %508 = vector.extract_strided_slice %488 {offsets = [8, 0], sizes = [8, 8], strides = [1, 1]} : vector<16x8xbf16> to vector<8x8xbf16>
    %509 = vector.extract_strided_slice %490 {offsets = [8, 0], sizes = [8, 8], strides = [1, 1]} : vector<16x8xbf16> to vector<8x8xbf16>
    %cst_174 = arith.constant dense<0.000000e+00> : vector<8x8xf32>
    %510 = tpu.matmul %507, %508, %cst_174 {dimension_numbers = #tpu.dot_dimension_numbers<[1], [1], [0], [0], [0, 0, 1, 0], [], []>} : vector<8x8xbf16>, vector<8x8xbf16>, vector<8x8xf32> -> vector<8x8xf32>
    %511 = arith.addf %510, %4 : vector<8x8xf32>
    %cst_175 = arith.constant dense<0xFF800000> : vector<8xf32>
    %512 = vector.multi_reduction <maximumf>, %511, %cst_175 [1] : vector<8x8xf32> to vector<8xf32>
    %513 = vector.shape_cast %512 : vector<8xf32> to vector<8x1xf32>
    %514 = vector.broadcast %513 : vector<8x1xf32> to vector<8x8xf32>
    %515 = arith.subf %511, %514 : vector<8x8xf32>
    %516 = math.exp %515 : vector<8x8xf32>
    %cst_176 = arith.constant dense<0.000000e+00> : vector<8xf32>
    %517 = vector.multi_reduction <add>, %516, %cst_176 [1] : vector<8x8xf32> to vector<8xf32>
    %518 = vector.shape_cast %517 : vector<8xf32> to vector<8x1xf32>
    %519 = vector.broadcast %518 : vector<8x1xf32> to vector<8x8xf32>
    %520 = arith.divf %516, %519 : vector<8x8xf32>
    %521 = arith.truncf %520 : vector<8x8xf32> to vector<8x8xbf16>
    %cst_177 = arith.constant dense<0.000000e+00> : vector<8x8xf32>
    %522 = tpu.matmul %521, %509, %cst_177 {dimension_numbers = #tpu.dot_dimension_numbers<[1], [0], [0], [1], [0, 0, 1, 1], [], []>} : vector<8x8xbf16>, vector<8x8xbf16>, vector<8x8xf32> -> vector<8x8xf32>
    %523 = tpu.concatenate %506, %522 in 0 : vector<8x8xf32>, vector<8x8xf32> -> vector<16x8xf32>
    %524 = vector.extract_strided_slice %478 {offsets = [0, 8], sizes = [16, 8], strides = [1, 1]} : vector<16x32xf32> to vector<16x8xf32>
    %525 = arith.truncf %524 : vector<16x8xf32> to vector<16x8xbf16>
    %526 = vector.extract_strided_slice %479 {offsets = [0, 8], sizes = [16, 8], strides = [1, 1]} : vector<16x32xf32> to vector<16x8xf32>
    %527 = arith.truncf %526 : vector<16x8xf32> to vector<16x8xbf16>
    %528 = vector.extract_strided_slice %480 {offsets = [0, 8], sizes = [16, 8], strides = [1, 1]} : vector<16x32xf32> to vector<16x8xf32>
    %529 = arith.truncf %528 : vector<16x8xf32> to vector<16x8xbf16>
    %530 = vector.extract_strided_slice %525 {offsets = [0, 0], sizes = [8, 8], strides = [1, 1]} : vector<16x8xbf16> to vector<8x8xbf16>
    %531 = vector.extract_strided_slice %527 {offsets = [0, 0], sizes = [8, 8], strides = [1, 1]} : vector<16x8xbf16> to vector<8x8xbf16>
    %532 = vector.extract_strided_slice %529 {offsets = [0, 0], sizes = [8, 8], strides = [1, 1]} : vector<16x8xbf16> to vector<8x8xbf16>
    %cst_178 = arith.constant dense<0.000000e+00> : vector<8x8xf32>
    %533 = tpu.matmul %530, %531, %cst_178 {dimension_numbers = #tpu.dot_dimension_numbers<[1], [1], [0], [0], [0, 0, 1, 0], [], []>} : vector<8x8xbf16>, vector<8x8xbf16>, vector<8x8xf32> -> vector<8x8xf32>
    %534 = arith.addf %533, %4 : vector<8x8xf32>
    %cst_179 = arith.constant dense<0xFF800000> : vector<8xf32>
    %535 = vector.multi_reduction <maximumf>, %534, %cst_179 [1] : vector<8x8xf32> to vector<8xf32>
    %536 = vector.shape_cast %535 : vector<8xf32> to vector<8x1xf32>
    %537 = vector.broadcast %536 : vector<8x1xf32> to vector<8x8xf32>
    %538 = arith.subf %534, %537 : vector<8x8xf32>
    %539 = math.exp %538 : vector<8x8xf32>
    %cst_180 = arith.constant dense<0.000000e+00> : vector<8xf32>
    %540 = vector.multi_reduction <add>, %539, %cst_180 [1] : vector<8x8xf32> to vector<8xf32>
    %541 = vector.shape_cast %540 : vector<8xf32> to vector<8x1xf32>
    %542 = vector.broadcast %541 : vector<8x1xf32> to vector<8x8xf32>
    %543 = arith.divf %539, %542 : vector<8x8xf32>
    %544 = arith.truncf %543 : vector<8x8xf32> to vector<8x8xbf16>
    %cst_181 = arith.constant dense<0.000000e+00> : vector<8x8xf32>
    %545 = tpu.matmul %544, %532, %cst_181 {dimension_numbers = #tpu.dot_dimension_numbers<[1], [0], [0], [1], [0, 0, 1, 1], [], []>} : vector<8x8xbf16>, vector<8x8xbf16>, vector<8x8xf32> -> vector<8x8xf32>
    %546 = vector.extract_strided_slice %525 {offsets = [8, 0], sizes = [8, 8], strides = [1, 1]} : vector<16x8xbf16> to vector<8x8xbf16>
    %547 = vector.extract_strided_slice %527 {offsets = [8, 0], sizes = [8, 8], strides = [1, 1]} : vector<16x8xbf16> to vector<8x8xbf16>
    %548 = vector.extract_strided_slice %529 {offsets = [8, 0], sizes = [8, 8], strides = [1, 1]} : vector<16x8xbf16> to vector<8x8xbf16>
    %cst_182 = arith.constant dense<0.000000e+00> : vector<8x8xf32>
    %549 = tpu.matmul %546, %547, %cst_182 {dimension_numbers = #tpu.dot_dimension_numbers<[1], [1], [0], [0], [0, 0, 1, 0], [], []>} : vector<8x8xbf16>, vector<8x8xbf16>, vector<8x8xf32> -> vector<8x8xf32>
    %550 = arith.addf %549, %4 : vector<8x8xf32>
    %cst_183 = arith.constant dense<0xFF800000> : vector<8xf32>
    %551 = vector.multi_reduction <maximumf>, %550, %cst_183 [1] : vector<8x8xf32> to vector<8xf32>
    %552 = vector.shape_cast %551 : vector<8xf32> to vector<8x1xf32>
    %553 = vector.broadcast %552 : vector<8x1xf32> to vector<8x8xf32>
    %554 = arith.subf %550, %553 : vector<8x8xf32>
    %555 = math.exp %554 : vector<8x8xf32>
    %cst_184 = arith.constant dense<0.000000e+00> : vector<8xf32>
    %556 = vector.multi_reduction <add>, %555, %cst_184 [1] : vector<8x8xf32> to vector<8xf32>
    %557 = vector.shape_cast %556 : vector<8xf32> to vector<8x1xf32>
    %558 = vector.broadcast %557 : vector<8x1xf32> to vector<8x8xf32>
    %559 = arith.divf %555, %558 : vector<8x8xf32>
    %560 = arith.truncf %559 : vector<8x8xf32> to vector<8x8xbf16>
    %cst_185 = arith.constant dense<0.000000e+00> : vector<8x8xf32>
    %561 = tpu.matmul %560, %548, %cst_185 {dimension_numbers = #tpu.dot_dimension_numbers<[1], [0], [0], [1], [0, 0, 1, 1], [], []>} : vector<8x8xbf16>, vector<8x8xbf16>, vector<8x8xf32> -> vector<8x8xf32>
    %562 = tpu.concatenate %545, %561 in 0 : vector<8x8xf32>, vector<8x8xf32> -> vector<16x8xf32>
    %563 = vector.extract_strided_slice %478 {offsets = [0, 16], sizes = [16, 8], strides = [1, 1]} : vector<16x32xf32> to vector<16x8xf32>
    %564 = arith.truncf %563 : vector<16x8xf32> to vector<16x8xbf16>
    %565 = vector.extract_strided_slice %479 {offsets = [0, 16], sizes = [16, 8], strides = [1, 1]} : vector<16x32xf32> to vector<16x8xf32>
    %566 = arith.truncf %565 : vector<16x8xf32> to vector<16x8xbf16>
    %567 = vector.extract_strided_slice %480 {offsets = [0, 16], sizes = [16, 8], strides = [1, 1]} : vector<16x32xf32> to vector<16x8xf32>
    %568 = arith.truncf %567 : vector<16x8xf32> to vector<16x8xbf16>
    %569 = vector.extract_strided_slice %564 {offsets = [0, 0], sizes = [8, 8], strides = [1, 1]} : vector<16x8xbf16> to vector<8x8xbf16>
    %570 = vector.extract_strided_slice %566 {offsets = [0, 0], sizes = [8, 8], strides = [1, 1]} : vector<16x8xbf16> to vector<8x8xbf16>
    %571 = vector.extract_strided_slice %568 {offsets = [0, 0], sizes = [8, 8], strides = [1, 1]} : vector<16x8xbf16> to vector<8x8xbf16>
    %cst_186 = arith.constant dense<0.000000e+00> : vector<8x8xf32>
    %572 = tpu.matmul %569, %570, %cst_186 {dimension_numbers = #tpu.dot_dimension_numbers<[1], [1], [0], [0], [0, 0, 1, 0], [], []>} : vector<8x8xbf16>, vector<8x8xbf16>, vector<8x8xf32> -> vector<8x8xf32>
    %573 = arith.addf %572, %4 : vector<8x8xf32>
    %cst_187 = arith.constant dense<0xFF800000> : vector<8xf32>
    %574 = vector.multi_reduction <maximumf>, %573, %cst_187 [1] : vector<8x8xf32> to vector<8xf32>
    %575 = vector.shape_cast %574 : vector<8xf32> to vector<8x1xf32>
    %576 = vector.broadcast %575 : vector<8x1xf32> to vector<8x8xf32>
    %577 = arith.subf %573, %576 : vector<8x8xf32>
    %578 = math.exp %577 : vector<8x8xf32>
    %cst_188 = arith.constant dense<0.000000e+00> : vector<8xf32>
    %579 = vector.multi_reduction <add>, %578, %cst_188 [1] : vector<8x8xf32> to vector<8xf32>
    %580 = vector.shape_cast %579 : vector<8xf32> to vector<8x1xf32>
    %581 = vector.broadcast %580 : vector<8x1xf32> to vector<8x8xf32>
    %582 = arith.divf %578, %581 : vector<8x8xf32>
    %583 = arith.truncf %582 : vector<8x8xf32> to vector<8x8xbf16>
    %cst_189 = arith.constant dense<0.000000e+00> : vector<8x8xf32>
    %584 = tpu.matmul %583, %571, %cst_189 {dimension_numbers = #tpu.dot_dimension_numbers<[1], [0], [0], [1], [0, 0, 1, 1], [], []>} : vector<8x8xbf16>, vector<8x8xbf16>, vector<8x8xf32> -> vector<8x8xf32>
    %585 = vector.extract_strided_slice %564 {offsets = [8, 0], sizes = [8, 8], strides = [1, 1]} : vector<16x8xbf16> to vector<8x8xbf16>
    %586 = vector.extract_strided_slice %566 {offsets = [8, 0], sizes = [8, 8], strides = [1, 1]} : vector<16x8xbf16> to vector<8x8xbf16>
    %587 = vector.extract_strided_slice %568 {offsets = [8, 0], sizes = [8, 8], strides = [1, 1]} : vector<16x8xbf16> to vector<8x8xbf16>
    %cst_190 = arith.constant dense<0.000000e+00> : vector<8x8xf32>
    %588 = tpu.matmul %585, %586, %cst_190 {dimension_numbers = #tpu.dot_dimension_numbers<[1], [1], [0], [0], [0, 0, 1, 0], [], []>} : vector<8x8xbf16>, vector<8x8xbf16>, vector<8x8xf32> -> vector<8x8xf32>
    %589 = arith.addf %588, %4 : vector<8x8xf32>
    %cst_191 = arith.constant dense<0xFF800000> : vector<8xf32>
    %590 = vector.multi_reduction <maximumf>, %589, %cst_191 [1] : vector<8x8xf32> to vector<8xf32>
    %591 = vector.shape_cast %590 : vector<8xf32> to vector<8x1xf32>
    %592 = vector.broadcast %591 : vector<8x1xf32> to vector<8x8xf32>
    %593 = arith.subf %589, %592 : vector<8x8xf32>
    %594 = math.exp %593 : vector<8x8xf32>
    %cst_192 = arith.constant dense<0.000000e+00> : vector<8xf32>
    %595 = vector.multi_reduction <add>, %594, %cst_192 [1] : vector<8x8xf32> to vector<8xf32>
    %596 = vector.shape_cast %595 : vector<8xf32> to vector<8x1xf32>
    %597 = vector.broadcast %596 : vector<8x1xf32> to vector<8x8xf32>
    %598 = arith.divf %594, %597 : vector<8x8xf32>
    %599 = arith.truncf %598 : vector<8x8xf32> to vector<8x8xbf16>
    %cst_193 = arith.constant dense<0.000000e+00> : vector<8x8xf32>
    %600 = tpu.matmul %599, %587, %cst_193 {dimension_numbers = #tpu.dot_dimension_numbers<[1], [0], [0], [1], [0, 0, 1, 1], [], []>} : vector<8x8xbf16>, vector<8x8xbf16>, vector<8x8xf32> -> vector<8x8xf32>
    %601 = tpu.concatenate %584, %600 in 0 : vector<8x8xf32>, vector<8x8xf32> -> vector<16x8xf32>
    %602 = vector.extract_strided_slice %478 {offsets = [0, 24], sizes = [16, 8], strides = [1, 1]} : vector<16x32xf32> to vector<16x8xf32>
    %603 = arith.truncf %602 : vector<16x8xf32> to vector<16x8xbf16>
    %604 = vector.extract_strided_slice %479 {offsets = [0, 24], sizes = [16, 8], strides = [1, 1]} : vector<16x32xf32> to vector<16x8xf32>
    %605 = arith.truncf %604 : vector<16x8xf32> to vector<16x8xbf16>
    %606 = vector.extract_strided_slice %480 {offsets = [0, 24], sizes = [16, 8], strides = [1, 1]} : vector<16x32xf32> to vector<16x8xf32>
    %607 = arith.truncf %606 : vector<16x8xf32> to vector<16x8xbf16>
    %608 = vector.extract_strided_slice %603 {offsets = [0, 0], sizes = [8, 8], strides = [1, 1]} : vector<16x8xbf16> to vector<8x8xbf16>
    %609 = vector.extract_strided_slice %605 {offsets = [0, 0], sizes = [8, 8], strides = [1, 1]} : vector<16x8xbf16> to vector<8x8xbf16>
    %610 = vector.extract_strided_slice %607 {offsets = [0, 0], sizes = [8, 8], strides = [1, 1]} : vector<16x8xbf16> to vector<8x8xbf16>
    %cst_194 = arith.constant dense<0.000000e+00> : vector<8x8xf32>
    %611 = tpu.matmul %608, %609, %cst_194 {dimension_numbers = #tpu.dot_dimension_numbers<[1], [1], [0], [0], [0, 0, 1, 0], [], []>} : vector<8x8xbf16>, vector<8x8xbf16>, vector<8x8xf32> -> vector<8x8xf32>
    %612 = arith.addf %611, %4 : vector<8x8xf32>
    %cst_195 = arith.constant dense<0xFF800000> : vector<8xf32>
    %613 = vector.multi_reduction <maximumf>, %612, %cst_195 [1] : vector<8x8xf32> to vector<8xf32>
    %614 = vector.shape_cast %613 : vector<8xf32> to vector<8x1xf32>
    %615 = vector.broadcast %614 : vector<8x1xf32> to vector<8x8xf32>
    %616 = arith.subf %612, %615 : vector<8x8xf32>
    %617 = math.exp %616 : vector<8x8xf32>
    %cst_196 = arith.constant dense<0.000000e+00> : vector<8xf32>
    %618 = vector.multi_reduction <add>, %617, %cst_196 [1] : vector<8x8xf32> to vector<8xf32>
    %619 = vector.shape_cast %618 : vector<8xf32> to vector<8x1xf32>
    %620 = vector.broadcast %619 : vector<8x1xf32> to vector<8x8xf32>
    %621 = arith.divf %617, %620 : vector<8x8xf32>
    %622 = arith.truncf %621 : vector<8x8xf32> to vector<8x8xbf16>
    %cst_197 = arith.constant dense<0.000000e+00> : vector<8x8xf32>
    %623 = tpu.matmul %622, %610, %cst_197 {dimension_numbers = #tpu.dot_dimension_numbers<[1], [0], [0], [1], [0, 0, 1, 1], [], []>} : vector<8x8xbf16>, vector<8x8xbf16>, vector<8x8xf32> -> vector<8x8xf32>
    %624 = vector.extract_strided_slice %603 {offsets = [8, 0], sizes = [8, 8], strides = [1, 1]} : vector<16x8xbf16> to vector<8x8xbf16>
    %625 = vector.extract_strided_slice %605 {offsets = [8, 0], sizes = [8, 8], strides = [1, 1]} : vector<16x8xbf16> to vector<8x8xbf16>
    %626 = vector.extract_strided_slice %607 {offsets = [8, 0], sizes = [8, 8], strides = [1, 1]} : vector<16x8xbf16> to vector<8x8xbf16>
    %cst_198 = arith.constant dense<0.000000e+00> : vector<8x8xf32>
    %627 = tpu.matmul %624, %625, %cst_198 {dimension_numbers = #tpu.dot_dimension_numbers<[1], [1], [0], [0], [0, 0, 1, 0], [], []>} : vector<8x8xbf16>, vector<8x8xbf16>, vector<8x8xf32> -> vector<8x8xf32>
    %628 = arith.addf %627, %4 : vector<8x8xf32>
    %cst_199 = arith.constant dense<0xFF800000> : vector<8xf32>
    %629 = vector.multi_reduction <maximumf>, %628, %cst_199 [1] : vector<8x8xf32> to vector<8xf32>
    %630 = vector.shape_cast %629 : vector<8xf32> to vector<8x1xf32>
    %631 = vector.broadcast %630 : vector<8x1xf32> to vector<8x8xf32>
    %632 = arith.subf %628, %631 : vector<8x8xf32>
    %633 = math.exp %632 : vector<8x8xf32>
    %cst_200 = arith.constant dense<0.000000e+00> : vector<8xf32>
    %634 = vector.multi_reduction <add>, %633, %cst_200 [1] : vector<8x8xf32> to vector<8xf32>
    %635 = vector.shape_cast %634 : vector<8xf32> to vector<8x1xf32>
    %636 = vector.broadcast %635 : vector<8x1xf32> to vector<8x8xf32>
    %637 = arith.divf %633, %636 : vector<8x8xf32>
    %638 = arith.truncf %637 : vector<8x8xf32> to vector<8x8xbf16>
    %cst_201 = arith.constant dense<0.000000e+00> : vector<8x8xf32>
    %639 = tpu.matmul %638, %626, %cst_201 {dimension_numbers = #tpu.dot_dimension_numbers<[1], [0], [0], [1], [0, 0, 1, 1], [], []>} : vector<8x8xbf16>, vector<8x8xbf16>, vector<8x8xf32> -> vector<8x8xf32>
    %640 = tpu.concatenate %623, %639 in 0 : vector<8x8xf32>, vector<8x8xf32> -> vector<16x8xf32>
    %641 = tpu.concatenate %523, %562, %601, %640 in 1 : vector<16x8xf32>, vector<16x8xf32>, vector<16x8xf32>, vector<16x8xf32> -> vector<16x32xf32>
    %642 = arith.truncf %641 : vector<16x32xf32> to vector<16x32xbf16>
    %cst_202 = arith.constant dense<0.000000e+00> : vector<16x32xf32>
    %643 = tpu.matmul %642, %482, %cst_202 {dimension_numbers = #tpu.dot_dimension_numbers<[1], [0], [0], [1], [0, 0, 1, 1], [], []>} : vector<16x32xbf16>, vector<32x32xbf16>, vector<16x32xf32> -> vector<16x32xf32>
    %644 = vector.broadcast %484 : vector<1x32xf32> to vector<16x32xf32>
    %645 = arith.addf %643, %644 : vector<16x32xf32>
    %646 = arith.addf %467, %645 : vector<16x32xf32>
    %c1_203 = arith.constant 1 : index
    %c0_204 = arith.constant 0 : index
    %c0_205 = arith.constant 0 : index
    %647 = vector.load %arg18[%c1_203, %c0_204, %c0_205] : memref<2x1x32xf32, #tpu.memory_space<vmem>>, vector<1x1x32xf32>
    %648 = vector.shape_cast %647 : vector<1x1x32xf32> to vector<1x32xf32>
    %c1_206 = arith.constant 1 : index
    %c0_207 = arith.constant 0 : index
    %c0_208 = arith.constant 0 : index
    %649 = vector.load %arg19[%c1_206, %c0_207, %c0_208] : memref<2x1x32xf32, #tpu.memory_space<vmem>>, vector<1x1x32xf32>
    %650 = vector.shape_cast %649 : vector<1x1x32xf32> to vector<1x32xf32>
    %cst_209 = arith.constant dense<0.000000e+00> : vector<16xf32>
    %651 = vector.multi_reduction <add>, %646, %cst_209 [1] : vector<16x32xf32> to vector<16xf32>
    %652 = vector.shape_cast %651 : vector<16xf32> to vector<16x1xf32>
    %cst_210 = arith.constant 3.200000e+01 : f32
    %653 = vector.broadcast %cst_210 : f32 to vector<16x1xf32>
    %654 = arith.divf %652, %653 : vector<16x1xf32>
    %655 = vector.broadcast %654 : vector<16x1xf32> to vector<16x32xf32>
    %656 = arith.subf %646, %655 : vector<16x32xf32>
    %657 = arith.mulf %656, %656 : vector<16x32xf32>
    %cst_211 = arith.constant dense<0.000000e+00> : vector<16xf32>
    %658 = vector.multi_reduction <add>, %657, %cst_211 [1] : vector<16x32xf32> to vector<16xf32>
    %659 = vector.shape_cast %658 : vector<16xf32> to vector<16x1xf32>
    %cst_212 = arith.constant 3.200000e+01 : f32
    %660 = vector.broadcast %cst_212 : f32 to vector<16x1xf32>
    %661 = arith.divf %659, %660 : vector<16x1xf32>
    %662 = vector.broadcast %654 : vector<16x1xf32> to vector<16x32xf32>
    %663 = arith.subf %646, %662 : vector<16x32xf32>
    %cst_213 = arith.constant 9.99999974E-6 : f32
    %664 = vector.broadcast %cst_213 : f32 to vector<16x1xf32>
    %665 = arith.addf %661, %664 : vector<16x1xf32>
    %666 = math.rsqrt %665 : vector<16x1xf32>
    %667 = vector.broadcast %666 : vector<16x1xf32> to vector<16x32xf32>
    %668 = arith.mulf %663, %667 : vector<16x32xf32>
    %669 = vector.broadcast %648 : vector<1x32xf32> to vector<16x32xf32>
    %670 = arith.mulf %668, %669 : vector<16x32xf32>
    %671 = vector.broadcast %650 : vector<1x32xf32> to vector<16x32xf32>
    %672 = arith.addf %670, %671 : vector<16x32xf32>
    %c1_214 = arith.constant 1 : index
    %c0_215 = arith.constant 0 : index
    %c0_216 = arith.constant 0 : index
    %673 = vector.load %arg8[%c1_214, %c0_215, %c0_216] : memref<2x32x32xbf16, #tpu.memory_space<vmem>>, vector<1x32x32xbf16>
    %674 = vector.shape_cast %673 : vector<1x32x32xbf16> to vector<32x32xbf16>
    %675 = arith.truncf %672 : vector<16x32xf32> to vector<16x32xbf16>
    %cst_217 = arith.constant dense<0.000000e+00> : vector<16x32xf32>
    %676 = tpu.matmul %675, %674, %cst_217 {dimension_numbers = #tpu.dot_dimension_numbers<[1], [0], [0], [1], [0, 0, 1, 1], [], []>} : vector<16x32xbf16>, vector<32x32xbf16>, vector<16x32xf32> -> vector<16x32xf32>
    %c1_218 = arith.constant 1 : index
    %c0_219 = arith.constant 0 : index
    %c0_220 = arith.constant 0 : index
    %677 = vector.load %arg9[%c1_218, %c0_219, %c0_220] : memref<2x1x32xf32, #tpu.memory_space<vmem>>, vector<1x1x32xf32>
    %678 = vector.shape_cast %677 : vector<1x1x32xf32> to vector<1x32xf32>
    %679 = vector.broadcast %678 : vector<1x32xf32> to vector<16x32xf32>
    %680 = arith.addf %676, %679 : vector<16x32xf32>
    %cst_221 = arith.constant 0.353553385 : f32
    %681 = vector.broadcast %cst_221 : f32 to vector<16x32xf32>
    %682 = arith.mulf %680, %681 : vector<16x32xf32>
    %c1_222 = arith.constant 1 : index
    %c0_223 = arith.constant 0 : index
    %c0_224 = arith.constant 0 : index
    %683 = vector.load %arg10[%c1_222, %c0_223, %c0_224] : memref<2x32x64xbf16, #tpu.memory_space<vmem>>, vector<1x32x64xbf16>
    %684 = vector.shape_cast %683 : vector<1x32x64xbf16> to vector<32x64xbf16>
    %685 = arith.truncf %3 : vector<16x32xf32> to vector<16x32xbf16>
    %cst_225 = arith.constant dense<0.000000e+00> : vector<16x64xf32>
    %686 = tpu.matmul %685, %684, %cst_225 {dimension_numbers = #tpu.dot_dimension_numbers<[1], [0], [0], [1], [0, 0, 1, 1], [], []>} : vector<16x32xbf16>, vector<32x64xbf16>, vector<16x64xf32> -> vector<16x64xf32>
    %c1_226 = arith.constant 1 : index
    %c0_227 = arith.constant 0 : index
    %c0_228 = arith.constant 0 : index
    %687 = vector.load %arg11[%c1_226, %c0_227, %c0_228] : memref<2x1x64xf32, #tpu.memory_space<vmem>>, vector<1x1x64xf32>
    %688 = vector.shape_cast %687 : vector<1x1x64xf32> to vector<1x64xf32>
    %689 = vector.broadcast %688 : vector<1x64xf32> to vector<16x64xf32>
    %690 = arith.addf %686, %689 : vector<16x64xf32>
    %691 = vector.extract_strided_slice %690 {offsets = [0, 0], sizes = [16, 32], strides = [1, 1]} : vector<16x64xf32> to vector<16x32xf32>
    %692 = vector.extract_strided_slice %690 {offsets = [0, 32], sizes = [16, 32], strides = [1, 1]} : vector<16x64xf32> to vector<16x32xf32>
    %c1_229 = arith.constant 1 : index
    %c0_230 = arith.constant 0 : index
    %c0_231 = arith.constant 0 : index
    %693 = vector.load %arg12[%c1_229, %c0_230, %c0_231] : memref<2x32x32xbf16, #tpu.memory_space<vmem>>, vector<1x32x32xbf16>
    %694 = vector.shape_cast %693 : vector<1x32x32xbf16> to vector<32x32xbf16>
    %c1_232 = arith.constant 1 : index
    %c0_233 = arith.constant 0 : index
    %c0_234 = arith.constant 0 : index
    %695 = vector.load %arg13[%c1_232, %c0_233, %c0_234] : memref<2x1x32xf32, #tpu.memory_space<vmem>>, vector<1x1x32xf32>
    %696 = vector.shape_cast %695 : vector<1x1x32xf32> to vector<1x32xf32>
    %697 = vector.extract_strided_slice %682 {offsets = [0, 0], sizes = [16, 8], strides = [1, 1]} : vector<16x32xf32> to vector<16x8xf32>
    %698 = arith.truncf %697 : vector<16x8xf32> to vector<16x8xbf16>
    %699 = vector.extract_strided_slice %691 {offsets = [0, 0], sizes = [16, 8], strides = [1, 1]} : vector<16x32xf32> to vector<16x8xf32>
    %700 = arith.truncf %699 : vector<16x8xf32> to vector<16x8xbf16>
    %701 = vector.extract_strided_slice %692 {offsets = [0, 0], sizes = [16, 8], strides = [1, 1]} : vector<16x32xf32> to vector<16x8xf32>
    %702 = arith.truncf %701 : vector<16x8xf32> to vector<16x8xbf16>
    %703 = vector.extract_strided_slice %698 {offsets = [0, 0], sizes = [8, 8], strides = [1, 1]} : vector<16x8xbf16> to vector<8x8xbf16>
    %704 = vector.extract_strided_slice %700 {offsets = [0, 0], sizes = [8, 8], strides = [1, 1]} : vector<16x8xbf16> to vector<8x8xbf16>
    %705 = vector.extract_strided_slice %702 {offsets = [0, 0], sizes = [8, 8], strides = [1, 1]} : vector<16x8xbf16> to vector<8x8xbf16>
    %cst_235 = arith.constant dense<0.000000e+00> : vector<8x8xf32>
    %706 = tpu.matmul %703, %704, %cst_235 {dimension_numbers = #tpu.dot_dimension_numbers<[1], [1], [0], [0], [0, 0, 1, 0], [], []>} : vector<8x8xbf16>, vector<8x8xbf16>, vector<8x8xf32> -> vector<8x8xf32>
    %707 = arith.addf %706, %5 : vector<8x8xf32>
    %cst_236 = arith.constant dense<0xFF800000> : vector<8xf32>
    %708 = vector.multi_reduction <maximumf>, %707, %cst_236 [1] : vector<8x8xf32> to vector<8xf32>
    %709 = vector.shape_cast %708 : vector<8xf32> to vector<8x1xf32>
    %710 = vector.broadcast %709 : vector<8x1xf32> to vector<8x8xf32>
    %711 = arith.subf %707, %710 : vector<8x8xf32>
    %712 = math.exp %711 : vector<8x8xf32>
    %cst_237 = arith.constant dense<0.000000e+00> : vector<8xf32>
    %713 = vector.multi_reduction <add>, %712, %cst_237 [1] : vector<8x8xf32> to vector<8xf32>
    %714 = vector.shape_cast %713 : vector<8xf32> to vector<8x1xf32>
    %715 = vector.broadcast %714 : vector<8x1xf32> to vector<8x8xf32>
    %716 = arith.divf %712, %715 : vector<8x8xf32>
    %717 = arith.truncf %716 : vector<8x8xf32> to vector<8x8xbf16>
    %cst_238 = arith.constant dense<0.000000e+00> : vector<8x8xf32>
    %718 = tpu.matmul %717, %705, %cst_238 {dimension_numbers = #tpu.dot_dimension_numbers<[1], [0], [0], [1], [0, 0, 1, 1], [], []>} : vector<8x8xbf16>, vector<8x8xbf16>, vector<8x8xf32> -> vector<8x8xf32>
    %719 = vector.extract_strided_slice %698 {offsets = [8, 0], sizes = [8, 8], strides = [1, 1]} : vector<16x8xbf16> to vector<8x8xbf16>
    %720 = vector.extract_strided_slice %700 {offsets = [8, 0], sizes = [8, 8], strides = [1, 1]} : vector<16x8xbf16> to vector<8x8xbf16>
    %721 = vector.extract_strided_slice %702 {offsets = [8, 0], sizes = [8, 8], strides = [1, 1]} : vector<16x8xbf16> to vector<8x8xbf16>
    %cst_239 = arith.constant dense<0.000000e+00> : vector<8x8xf32>
    %722 = tpu.matmul %719, %720, %cst_239 {dimension_numbers = #tpu.dot_dimension_numbers<[1], [1], [0], [0], [0, 0, 1, 0], [], []>} : vector<8x8xbf16>, vector<8x8xbf16>, vector<8x8xf32> -> vector<8x8xf32>
    %723 = arith.addf %722, %5 : vector<8x8xf32>
    %cst_240 = arith.constant dense<0xFF800000> : vector<8xf32>
    %724 = vector.multi_reduction <maximumf>, %723, %cst_240 [1] : vector<8x8xf32> to vector<8xf32>
    %725 = vector.shape_cast %724 : vector<8xf32> to vector<8x1xf32>
    %726 = vector.broadcast %725 : vector<8x1xf32> to vector<8x8xf32>
    %727 = arith.subf %723, %726 : vector<8x8xf32>
    %728 = math.exp %727 : vector<8x8xf32>
    %cst_241 = arith.constant dense<0.000000e+00> : vector<8xf32>
    %729 = vector.multi_reduction <add>, %728, %cst_241 [1] : vector<8x8xf32> to vector<8xf32>
    %730 = vector.shape_cast %729 : vector<8xf32> to vector<8x1xf32>
    %731 = vector.broadcast %730 : vector<8x1xf32> to vector<8x8xf32>
    %732 = arith.divf %728, %731 : vector<8x8xf32>
    %733 = arith.truncf %732 : vector<8x8xf32> to vector<8x8xbf16>
    %cst_242 = arith.constant dense<0.000000e+00> : vector<8x8xf32>
    %734 = tpu.matmul %733, %721, %cst_242 {dimension_numbers = #tpu.dot_dimension_numbers<[1], [0], [0], [1], [0, 0, 1, 1], [], []>} : vector<8x8xbf16>, vector<8x8xbf16>, vector<8x8xf32> -> vector<8x8xf32>
    %735 = tpu.concatenate %718, %734 in 0 : vector<8x8xf32>, vector<8x8xf32> -> vector<16x8xf32>
    %736 = vector.extract_strided_slice %682 {offsets = [0, 8], sizes = [16, 8], strides = [1, 1]} : vector<16x32xf32> to vector<16x8xf32>
    %737 = arith.truncf %736 : vector<16x8xf32> to vector<16x8xbf16>
    %738 = vector.extract_strided_slice %691 {offsets = [0, 8], sizes = [16, 8], strides = [1, 1]} : vector<16x32xf32> to vector<16x8xf32>
    %739 = arith.truncf %738 : vector<16x8xf32> to vector<16x8xbf16>
    %740 = vector.extract_strided_slice %692 {offsets = [0, 8], sizes = [16, 8], strides = [1, 1]} : vector<16x32xf32> to vector<16x8xf32>
    %741 = arith.truncf %740 : vector<16x8xf32> to vector<16x8xbf16>
    %742 = vector.extract_strided_slice %737 {offsets = [0, 0], sizes = [8, 8], strides = [1, 1]} : vector<16x8xbf16> to vector<8x8xbf16>
    %743 = vector.extract_strided_slice %739 {offsets = [0, 0], sizes = [8, 8], strides = [1, 1]} : vector<16x8xbf16> to vector<8x8xbf16>
    %744 = vector.extract_strided_slice %741 {offsets = [0, 0], sizes = [8, 8], strides = [1, 1]} : vector<16x8xbf16> to vector<8x8xbf16>
    %cst_243 = arith.constant dense<0.000000e+00> : vector<8x8xf32>
    %745 = tpu.matmul %742, %743, %cst_243 {dimension_numbers = #tpu.dot_dimension_numbers<[1], [1], [0], [0], [0, 0, 1, 0], [], []>} : vector<8x8xbf16>, vector<8x8xbf16>, vector<8x8xf32> -> vector<8x8xf32>
    %746 = arith.addf %745, %5 : vector<8x8xf32>
    %cst_244 = arith.constant dense<0xFF800000> : vector<8xf32>
    %747 = vector.multi_reduction <maximumf>, %746, %cst_244 [1] : vector<8x8xf32> to vector<8xf32>
    %748 = vector.shape_cast %747 : vector<8xf32> to vector<8x1xf32>
    %749 = vector.broadcast %748 : vector<8x1xf32> to vector<8x8xf32>
    %750 = arith.subf %746, %749 : vector<8x8xf32>
    %751 = math.exp %750 : vector<8x8xf32>
    %cst_245 = arith.constant dense<0.000000e+00> : vector<8xf32>
    %752 = vector.multi_reduction <add>, %751, %cst_245 [1] : vector<8x8xf32> to vector<8xf32>
    %753 = vector.shape_cast %752 : vector<8xf32> to vector<8x1xf32>
    %754 = vector.broadcast %753 : vector<8x1xf32> to vector<8x8xf32>
    %755 = arith.divf %751, %754 : vector<8x8xf32>
    %756 = arith.truncf %755 : vector<8x8xf32> to vector<8x8xbf16>
    %cst_246 = arith.constant dense<0.000000e+00> : vector<8x8xf32>
    %757 = tpu.matmul %756, %744, %cst_246 {dimension_numbers = #tpu.dot_dimension_numbers<[1], [0], [0], [1], [0, 0, 1, 1], [], []>} : vector<8x8xbf16>, vector<8x8xbf16>, vector<8x8xf32> -> vector<8x8xf32>
    %758 = vector.extract_strided_slice %737 {offsets = [8, 0], sizes = [8, 8], strides = [1, 1]} : vector<16x8xbf16> to vector<8x8xbf16>
    %759 = vector.extract_strided_slice %739 {offsets = [8, 0], sizes = [8, 8], strides = [1, 1]} : vector<16x8xbf16> to vector<8x8xbf16>
    %760 = vector.extract_strided_slice %741 {offsets = [8, 0], sizes = [8, 8], strides = [1, 1]} : vector<16x8xbf16> to vector<8x8xbf16>
    %cst_247 = arith.constant dense<0.000000e+00> : vector<8x8xf32>
    %761 = tpu.matmul %758, %759, %cst_247 {dimension_numbers = #tpu.dot_dimension_numbers<[1], [1], [0], [0], [0, 0, 1, 0], [], []>} : vector<8x8xbf16>, vector<8x8xbf16>, vector<8x8xf32> -> vector<8x8xf32>
    %762 = arith.addf %761, %5 : vector<8x8xf32>
    %cst_248 = arith.constant dense<0xFF800000> : vector<8xf32>
    %763 = vector.multi_reduction <maximumf>, %762, %cst_248 [1] : vector<8x8xf32> to vector<8xf32>
    %764 = vector.shape_cast %763 : vector<8xf32> to vector<8x1xf32>
    %765 = vector.broadcast %764 : vector<8x1xf32> to vector<8x8xf32>
    %766 = arith.subf %762, %765 : vector<8x8xf32>
    %767 = math.exp %766 : vector<8x8xf32>
    %cst_249 = arith.constant dense<0.000000e+00> : vector<8xf32>
    %768 = vector.multi_reduction <add>, %767, %cst_249 [1] : vector<8x8xf32> to vector<8xf32>
    %769 = vector.shape_cast %768 : vector<8xf32> to vector<8x1xf32>
    %770 = vector.broadcast %769 : vector<8x1xf32> to vector<8x8xf32>
    %771 = arith.divf %767, %770 : vector<8x8xf32>
    %772 = arith.truncf %771 : vector<8x8xf32> to vector<8x8xbf16>
    %cst_250 = arith.constant dense<0.000000e+00> : vector<8x8xf32>
    %773 = tpu.matmul %772, %760, %cst_250 {dimension_numbers = #tpu.dot_dimension_numbers<[1], [0], [0], [1], [0, 0, 1, 1], [], []>} : vector<8x8xbf16>, vector<8x8xbf16>, vector<8x8xf32> -> vector<8x8xf32>
    %774 = tpu.concatenate %757, %773 in 0 : vector<8x8xf32>, vector<8x8xf32> -> vector<16x8xf32>
    %775 = vector.extract_strided_slice %682 {offsets = [0, 16], sizes = [16, 8], strides = [1, 1]} : vector<16x32xf32> to vector<16x8xf32>
    %776 = arith.truncf %775 : vector<16x8xf32> to vector<16x8xbf16>
    %777 = vector.extract_strided_slice %691 {offsets = [0, 16], sizes = [16, 8], strides = [1, 1]} : vector<16x32xf32> to vector<16x8xf32>
    %778 = arith.truncf %777 : vector<16x8xf32> to vector<16x8xbf16>
    %779 = vector.extract_strided_slice %692 {offsets = [0, 16], sizes = [16, 8], strides = [1, 1]} : vector<16x32xf32> to vector<16x8xf32>
    %780 = arith.truncf %779 : vector<16x8xf32> to vector<16x8xbf16>
    %781 = vector.extract_strided_slice %776 {offsets = [0, 0], sizes = [8, 8], strides = [1, 1]} : vector<16x8xbf16> to vector<8x8xbf16>
    %782 = vector.extract_strided_slice %778 {offsets = [0, 0], sizes = [8, 8], strides = [1, 1]} : vector<16x8xbf16> to vector<8x8xbf16>
    %783 = vector.extract_strided_slice %780 {offsets = [0, 0], sizes = [8, 8], strides = [1, 1]} : vector<16x8xbf16> to vector<8x8xbf16>
    %cst_251 = arith.constant dense<0.000000e+00> : vector<8x8xf32>
    %784 = tpu.matmul %781, %782, %cst_251 {dimension_numbers = #tpu.dot_dimension_numbers<[1], [1], [0], [0], [0, 0, 1, 0], [], []>} : vector<8x8xbf16>, vector<8x8xbf16>, vector<8x8xf32> -> vector<8x8xf32>
    %785 = arith.addf %784, %5 : vector<8x8xf32>
    %cst_252 = arith.constant dense<0xFF800000> : vector<8xf32>
    %786 = vector.multi_reduction <maximumf>, %785, %cst_252 [1] : vector<8x8xf32> to vector<8xf32>
    %787 = vector.shape_cast %786 : vector<8xf32> to vector<8x1xf32>
    %788 = vector.broadcast %787 : vector<8x1xf32> to vector<8x8xf32>
    %789 = arith.subf %785, %788 : vector<8x8xf32>
    %790 = math.exp %789 : vector<8x8xf32>
    %cst_253 = arith.constant dense<0.000000e+00> : vector<8xf32>
    %791 = vector.multi_reduction <add>, %790, %cst_253 [1] : vector<8x8xf32> to vector<8xf32>
    %792 = vector.shape_cast %791 : vector<8xf32> to vector<8x1xf32>
    %793 = vector.broadcast %792 : vector<8x1xf32> to vector<8x8xf32>
    %794 = arith.divf %790, %793 : vector<8x8xf32>
    %795 = arith.truncf %794 : vector<8x8xf32> to vector<8x8xbf16>
    %cst_254 = arith.constant dense<0.000000e+00> : vector<8x8xf32>
    %796 = tpu.matmul %795, %783, %cst_254 {dimension_numbers = #tpu.dot_dimension_numbers<[1], [0], [0], [1], [0, 0, 1, 1], [], []>} : vector<8x8xbf16>, vector<8x8xbf16>, vector<8x8xf32> -> vector<8x8xf32>
    %797 = vector.extract_strided_slice %776 {offsets = [8, 0], sizes = [8, 8], strides = [1, 1]} : vector<16x8xbf16> to vector<8x8xbf16>
    %798 = vector.extract_strided_slice %778 {offsets = [8, 0], sizes = [8, 8], strides = [1, 1]} : vector<16x8xbf16> to vector<8x8xbf16>
    %799 = vector.extract_strided_slice %780 {offsets = [8, 0], sizes = [8, 8], strides = [1, 1]} : vector<16x8xbf16> to vector<8x8xbf16>
    %cst_255 = arith.constant dense<0.000000e+00> : vector<8x8xf32>
    %800 = tpu.matmul %797, %798, %cst_255 {dimension_numbers = #tpu.dot_dimension_numbers<[1], [1], [0], [0], [0, 0, 1, 0], [], []>} : vector<8x8xbf16>, vector<8x8xbf16>, vector<8x8xf32> -> vector<8x8xf32>
    %801 = arith.addf %800, %5 : vector<8x8xf32>
    %cst_256 = arith.constant dense<0xFF800000> : vector<8xf32>
    %802 = vector.multi_reduction <maximumf>, %801, %cst_256 [1] : vector<8x8xf32> to vector<8xf32>
    %803 = vector.shape_cast %802 : vector<8xf32> to vector<8x1xf32>
    %804 = vector.broadcast %803 : vector<8x1xf32> to vector<8x8xf32>
    %805 = arith.subf %801, %804 : vector<8x8xf32>
    %806 = math.exp %805 : vector<8x8xf32>
    %cst_257 = arith.constant dense<0.000000e+00> : vector<8xf32>
    %807 = vector.multi_reduction <add>, %806, %cst_257 [1] : vector<8x8xf32> to vector<8xf32>
    %808 = vector.shape_cast %807 : vector<8xf32> to vector<8x1xf32>
    %809 = vector.broadcast %808 : vector<8x1xf32> to vector<8x8xf32>
    %810 = arith.divf %806, %809 : vector<8x8xf32>
    %811 = arith.truncf %810 : vector<8x8xf32> to vector<8x8xbf16>
    %cst_258 = arith.constant dense<0.000000e+00> : vector<8x8xf32>
    %812 = tpu.matmul %811, %799, %cst_258 {dimension_numbers = #tpu.dot_dimension_numbers<[1], [0], [0], [1], [0, 0, 1, 1], [], []>} : vector<8x8xbf16>, vector<8x8xbf16>, vector<8x8xf32> -> vector<8x8xf32>
    %813 = tpu.concatenate %796, %812 in 0 : vector<8x8xf32>, vector<8x8xf32> -> vector<16x8xf32>
    %814 = vector.extract_strided_slice %682 {offsets = [0, 24], sizes = [16, 8], strides = [1, 1]} : vector<16x32xf32> to vector<16x8xf32>
    %815 = arith.truncf %814 : vector<16x8xf32> to vector<16x8xbf16>
    %816 = vector.extract_strided_slice %691 {offsets = [0, 24], sizes = [16, 8], strides = [1, 1]} : vector<16x32xf32> to vector<16x8xf32>
    %817 = arith.truncf %816 : vector<16x8xf32> to vector<16x8xbf16>
    %818 = vector.extract_strided_slice %692 {offsets = [0, 24], sizes = [16, 8], strides = [1, 1]} : vector<16x32xf32> to vector<16x8xf32>
    %819 = arith.truncf %818 : vector<16x8xf32> to vector<16x8xbf16>
    %820 = vector.extract_strided_slice %815 {offsets = [0, 0], sizes = [8, 8], strides = [1, 1]} : vector<16x8xbf16> to vector<8x8xbf16>
    %821 = vector.extract_strided_slice %817 {offsets = [0, 0], sizes = [8, 8], strides = [1, 1]} : vector<16x8xbf16> to vector<8x8xbf16>
    %822 = vector.extract_strided_slice %819 {offsets = [0, 0], sizes = [8, 8], strides = [1, 1]} : vector<16x8xbf16> to vector<8x8xbf16>
    %cst_259 = arith.constant dense<0.000000e+00> : vector<8x8xf32>
    %823 = tpu.matmul %820, %821, %cst_259 {dimension_numbers = #tpu.dot_dimension_numbers<[1], [1], [0], [0], [0, 0, 1, 0], [], []>} : vector<8x8xbf16>, vector<8x8xbf16>, vector<8x8xf32> -> vector<8x8xf32>
    %824 = arith.addf %823, %5 : vector<8x8xf32>
    %cst_260 = arith.constant dense<0xFF800000> : vector<8xf32>
    %825 = vector.multi_reduction <maximumf>, %824, %cst_260 [1] : vector<8x8xf32> to vector<8xf32>
    %826 = vector.shape_cast %825 : vector<8xf32> to vector<8x1xf32>
    %827 = vector.broadcast %826 : vector<8x1xf32> to vector<8x8xf32>
    %828 = arith.subf %824, %827 : vector<8x8xf32>
    %829 = math.exp %828 : vector<8x8xf32>
    %cst_261 = arith.constant dense<0.000000e+00> : vector<8xf32>
    %830 = vector.multi_reduction <add>, %829, %cst_261 [1] : vector<8x8xf32> to vector<8xf32>
    %831 = vector.shape_cast %830 : vector<8xf32> to vector<8x1xf32>
    %832 = vector.broadcast %831 : vector<8x1xf32> to vector<8x8xf32>
    %833 = arith.divf %829, %832 : vector<8x8xf32>
    %834 = arith.truncf %833 : vector<8x8xf32> to vector<8x8xbf16>
    %cst_262 = arith.constant dense<0.000000e+00> : vector<8x8xf32>
    %835 = tpu.matmul %834, %822, %cst_262 {dimension_numbers = #tpu.dot_dimension_numbers<[1], [0], [0], [1], [0, 0, 1, 1], [], []>} : vector<8x8xbf16>, vector<8x8xbf16>, vector<8x8xf32> -> vector<8x8xf32>
    %836 = vector.extract_strided_slice %815 {offsets = [8, 0], sizes = [8, 8], strides = [1, 1]} : vector<16x8xbf16> to vector<8x8xbf16>
    %837 = vector.extract_strided_slice %817 {offsets = [8, 0], sizes = [8, 8], strides = [1, 1]} : vector<16x8xbf16> to vector<8x8xbf16>
    %838 = vector.extract_strided_slice %819 {offsets = [8, 0], sizes = [8, 8], strides = [1, 1]} : vector<16x8xbf16> to vector<8x8xbf16>
    %cst_263 = arith.constant dense<0.000000e+00> : vector<8x8xf32>
    %839 = tpu.matmul %836, %837, %cst_263 {dimension_numbers = #tpu.dot_dimension_numbers<[1], [1], [0], [0], [0, 0, 1, 0], [], []>} : vector<8x8xbf16>, vector<8x8xbf16>, vector<8x8xf32> -> vector<8x8xf32>
    %840 = arith.addf %839, %5 : vector<8x8xf32>
    %cst_264 = arith.constant dense<0xFF800000> : vector<8xf32>
    %841 = vector.multi_reduction <maximumf>, %840, %cst_264 [1] : vector<8x8xf32> to vector<8xf32>
    %842 = vector.shape_cast %841 : vector<8xf32> to vector<8x1xf32>
    %843 = vector.broadcast %842 : vector<8x1xf32> to vector<8x8xf32>
    %844 = arith.subf %840, %843 : vector<8x8xf32>
    %845 = math.exp %844 : vector<8x8xf32>
    %cst_265 = arith.constant dense<0.000000e+00> : vector<8xf32>
    %846 = vector.multi_reduction <add>, %845, %cst_265 [1] : vector<8x8xf32> to vector<8xf32>
    %847 = vector.shape_cast %846 : vector<8xf32> to vector<8x1xf32>
    %848 = vector.broadcast %847 : vector<8x1xf32> to vector<8x8xf32>
    %849 = arith.divf %845, %848 : vector<8x8xf32>
    %850 = arith.truncf %849 : vector<8x8xf32> to vector<8x8xbf16>
    %cst_266 = arith.constant dense<0.000000e+00> : vector<8x8xf32>
    %851 = tpu.matmul %850, %838, %cst_266 {dimension_numbers = #tpu.dot_dimension_numbers<[1], [0], [0], [1], [0, 0, 1, 1], [], []>} : vector<8x8xbf16>, vector<8x8xbf16>, vector<8x8xf32> -> vector<8x8xf32>
    %852 = tpu.concatenate %835, %851 in 0 : vector<8x8xf32>, vector<8x8xf32> -> vector<16x8xf32>
    %853 = tpu.concatenate %735, %774, %813, %852 in 1 : vector<16x8xf32>, vector<16x8xf32>, vector<16x8xf32>, vector<16x8xf32> -> vector<16x32xf32>
    %854 = arith.truncf %853 : vector<16x32xf32> to vector<16x32xbf16>
    %cst_267 = arith.constant dense<0.000000e+00> : vector<16x32xf32>
    %855 = tpu.matmul %854, %694, %cst_267 {dimension_numbers = #tpu.dot_dimension_numbers<[1], [0], [0], [1], [0, 0, 1, 1], [], []>} : vector<16x32xbf16>, vector<32x32xbf16>, vector<16x32xf32> -> vector<16x32xf32>
    %856 = vector.broadcast %696 : vector<1x32xf32> to vector<16x32xf32>
    %857 = arith.addf %855, %856 : vector<16x32xf32>
    %858 = arith.addf %672, %857 : vector<16x32xf32>
    %c1_268 = arith.constant 1 : index
    %c0_269 = arith.constant 0 : index
    %c0_270 = arith.constant 0 : index
    %859 = vector.load %arg20[%c1_268, %c0_269, %c0_270] : memref<2x1x32xf32, #tpu.memory_space<vmem>>, vector<1x1x32xf32>
    %860 = vector.shape_cast %859 : vector<1x1x32xf32> to vector<1x32xf32>
    %c1_271 = arith.constant 1 : index
    %c0_272 = arith.constant 0 : index
    %c0_273 = arith.constant 0 : index
    %861 = vector.load %arg21[%c1_271, %c0_272, %c0_273] : memref<2x1x32xf32, #tpu.memory_space<vmem>>, vector<1x1x32xf32>
    %862 = vector.shape_cast %861 : vector<1x1x32xf32> to vector<1x32xf32>
    %cst_274 = arith.constant dense<0.000000e+00> : vector<16xf32>
    %863 = vector.multi_reduction <add>, %858, %cst_274 [1] : vector<16x32xf32> to vector<16xf32>
    %864 = vector.shape_cast %863 : vector<16xf32> to vector<16x1xf32>
    %cst_275 = arith.constant 3.200000e+01 : f32
    %865 = vector.broadcast %cst_275 : f32 to vector<16x1xf32>
    %866 = arith.divf %864, %865 : vector<16x1xf32>
    %867 = vector.broadcast %866 : vector<16x1xf32> to vector<16x32xf32>
    %868 = arith.subf %858, %867 : vector<16x32xf32>
    %869 = arith.mulf %868, %868 : vector<16x32xf32>
    %cst_276 = arith.constant dense<0.000000e+00> : vector<16xf32>
    %870 = vector.multi_reduction <add>, %869, %cst_276 [1] : vector<16x32xf32> to vector<16xf32>
    %871 = vector.shape_cast %870 : vector<16xf32> to vector<16x1xf32>
    %cst_277 = arith.constant 3.200000e+01 : f32
    %872 = vector.broadcast %cst_277 : f32 to vector<16x1xf32>
    %873 = arith.divf %871, %872 : vector<16x1xf32>
    %874 = vector.broadcast %866 : vector<16x1xf32> to vector<16x32xf32>
    %875 = arith.subf %858, %874 : vector<16x32xf32>
    %cst_278 = arith.constant 9.99999974E-6 : f32
    %876 = vector.broadcast %cst_278 : f32 to vector<16x1xf32>
    %877 = arith.addf %873, %876 : vector<16x1xf32>
    %878 = math.rsqrt %877 : vector<16x1xf32>
    %879 = vector.broadcast %878 : vector<16x1xf32> to vector<16x32xf32>
    %880 = arith.mulf %875, %879 : vector<16x32xf32>
    %881 = vector.broadcast %860 : vector<1x32xf32> to vector<16x32xf32>
    %882 = arith.mulf %880, %881 : vector<16x32xf32>
    %883 = vector.broadcast %862 : vector<1x32xf32> to vector<16x32xf32>
    %884 = arith.addf %882, %883 : vector<16x32xf32>
    %c1_279 = arith.constant 1 : index
    %c0_280 = arith.constant 0 : index
    %c0_281 = arith.constant 0 : index
    %885 = vector.load %arg14[%c1_279, %c0_280, %c0_281] : memref<2x32x64xbf16, #tpu.memory_space<vmem>>, vector<1x32x64xbf16>
    %886 = vector.shape_cast %885 : vector<1x32x64xbf16> to vector<32x64xbf16>
    %887 = arith.truncf %884 : vector<16x32xf32> to vector<16x32xbf16>
    %cst_282 = arith.constant dense<0.000000e+00> : vector<16x64xf32>
    %888 = tpu.matmul %887, %886, %cst_282 {dimension_numbers = #tpu.dot_dimension_numbers<[1], [0], [0], [1], [0, 0, 1, 1], [], []>} : vector<16x32xbf16>, vector<32x64xbf16>, vector<16x64xf32> -> vector<16x64xf32>
    %c1_283 = arith.constant 1 : index
    %c0_284 = arith.constant 0 : index
    %c0_285 = arith.constant 0 : index
    %889 = vector.load %arg15[%c1_283, %c0_284, %c0_285] : memref<2x1x64xf32, #tpu.memory_space<vmem>>, vector<1x1x64xf32>
    %890 = vector.shape_cast %889 : vector<1x1x64xf32> to vector<1x64xf32>
    %891 = vector.broadcast %890 : vector<1x64xf32> to vector<16x64xf32>
    %892 = arith.addf %888, %891 : vector<16x64xf32>
    %cst_286 = arith.constant 0.000000e+00 : f32
    %893 = vector.broadcast %cst_286 : f32 to vector<16x64xf32>
    %894 = arith.maximumf %892, %893 : vector<16x64xf32>
    %c1_287 = arith.constant 1 : index
    %c0_288 = arith.constant 0 : index
    %c0_289 = arith.constant 0 : index
    %895 = vector.load %arg16[%c1_287, %c0_288, %c0_289] : memref<2x64x32xbf16, #tpu.memory_space<vmem>>, vector<1x64x32xbf16>
    %896 = vector.shape_cast %895 : vector<1x64x32xbf16> to vector<64x32xbf16>
    %897 = arith.truncf %894 : vector<16x64xf32> to vector<16x64xbf16>
    %cst_290 = arith.constant dense<0.000000e+00> : vector<16x32xf32>
    %898 = tpu.matmul %897, %896, %cst_290 {dimension_numbers = #tpu.dot_dimension_numbers<[1], [0], [0], [1], [0, 0, 1, 1], [], []>} : vector<16x64xbf16>, vector<64x32xbf16>, vector<16x32xf32> -> vector<16x32xf32>
    %c1_291 = arith.constant 1 : index
    %c0_292 = arith.constant 0 : index
    %c0_293 = arith.constant 0 : index
    %899 = vector.load %arg17[%c1_291, %c0_292, %c0_293] : memref<2x1x32xf32, #tpu.memory_space<vmem>>, vector<1x1x32xf32>
    %900 = vector.shape_cast %899 : vector<1x1x32xf32> to vector<1x32xf32>
    %901 = vector.broadcast %900 : vector<1x32xf32> to vector<16x32xf32>
    %902 = arith.addf %898, %901 : vector<16x32xf32>
    %903 = arith.addf %884, %902 : vector<16x32xf32>
    %c1_294 = arith.constant 1 : index
    %c0_295 = arith.constant 0 : index
    %c0_296 = arith.constant 0 : index
    %904 = vector.load %arg22[%c1_294, %c0_295, %c0_296] : memref<2x1x32xf32, #tpu.memory_space<vmem>>, vector<1x1x32xf32>
    %905 = vector.shape_cast %904 : vector<1x1x32xf32> to vector<1x32xf32>
    %c1_297 = arith.constant 1 : index
    %c0_298 = arith.constant 0 : index
    %c0_299 = arith.constant 0 : index
    %906 = vector.load %arg23[%c1_297, %c0_298, %c0_299] : memref<2x1x32xf32, #tpu.memory_space<vmem>>, vector<1x1x32xf32>
    %907 = vector.shape_cast %906 : vector<1x1x32xf32> to vector<1x32xf32>
    %cst_300 = arith.constant dense<0.000000e+00> : vector<16xf32>
    %908 = vector.multi_reduction <add>, %903, %cst_300 [1] : vector<16x32xf32> to vector<16xf32>
    %909 = vector.shape_cast %908 : vector<16xf32> to vector<16x1xf32>
    %cst_301 = arith.constant 3.200000e+01 : f32
    %910 = vector.broadcast %cst_301 : f32 to vector<16x1xf32>
    %911 = arith.divf %909, %910 : vector<16x1xf32>
    %912 = vector.broadcast %911 : vector<16x1xf32> to vector<16x32xf32>
    %913 = arith.subf %903, %912 : vector<16x32xf32>
    %914 = arith.mulf %913, %913 : vector<16x32xf32>
    %cst_302 = arith.constant dense<0.000000e+00> : vector<16xf32>
    %915 = vector.multi_reduction <add>, %914, %cst_302 [1] : vector<16x32xf32> to vector<16xf32>
    %916 = vector.shape_cast %915 : vector<16xf32> to vector<16x1xf32>
    %cst_303 = arith.constant 3.200000e+01 : f32
    %917 = vector.broadcast %cst_303 : f32 to vector<16x1xf32>
    %918 = arith.divf %916, %917 : vector<16x1xf32>
    %919 = vector.broadcast %911 : vector<16x1xf32> to vector<16x32xf32>
    %920 = arith.subf %903, %919 : vector<16x32xf32>
    %cst_304 = arith.constant 9.99999974E-6 : f32
    %921 = vector.broadcast %cst_304 : f32 to vector<16x1xf32>
    %922 = arith.addf %918, %921 : vector<16x1xf32>
    %923 = math.rsqrt %922 : vector<16x1xf32>
    %924 = vector.broadcast %923 : vector<16x1xf32> to vector<16x32xf32>
    %925 = arith.mulf %920, %924 : vector<16x32xf32>
    %926 = vector.broadcast %905 : vector<1x32xf32> to vector<16x32xf32>
    %927 = arith.mulf %925, %926 : vector<16x32xf32>
    %928 = vector.broadcast %907 : vector<1x32xf32> to vector<16x32xf32>
    %929 = arith.addf %927, %928 : vector<16x32xf32>
    %c0_305 = arith.constant 0 : index
    %c0_306 = arith.constant 0 : index
    %930 = vector.load %arg24[%c0_305, %c0_306] : memref<16x32xf32, #tpu.memory_space<vmem>>, vector<16x32xf32>
    tpu.vector_store %arg24[%c0_305, %c0_306], %929 {strides = array<i32>} : memref<16x32xf32, #tpu.memory_space<vmem>>, vector<16x32xf32>,
    return
  }
}

</mosaic_0001>

<llo_original>
// kernel: decoder_forward.1
$region0: #{decoder_forward.1}
  #allocation0 [shape = 'u32[]', space=smem, size = 0x4, offset = 0x4, fixed_abs, tag = 'smem constant byte address 0x4 - core index']
  #allocation1 [shape = 'u32[144,128]{1,0:T(1,128)}', space=vmem, size = 0x12000, scoped, tag = 'internal scratch']
  %s0 = inlined_call_operand.vmem [shape: f32[2,8,32], index: 0, kind: input, shape index: {}]
  %s1 = inlined_call_operand.vmem [shape: f32[2,8,32], index: 1, kind: input, shape index: {}]
  %s2 = inlined_call_operand.vmem [shape: f32[8,8], index: 2, kind: input, shape index: {}]
  %s3 = inlined_call_operand.vmem [shape: f32[8,8], index: 3, kind: input, shape index: {}]
  %s4 = inlined_call_operand.vmem [shape: bf16[2,32,96], index: 4, kind: input, shape index: {}]
  %s5 = inlined_call_operand.vmem [shape: f32[2,1,96], index: 5, kind: input, shape index: {}]
  %s6 = inlined_call_operand.vmem [shape: bf16[2,32,32], index: 6, kind: input, shape index: {}]
  %s7 = inlined_call_operand.vmem [shape: f32[2,1,32], index: 7, kind: input, shape index: {}]
  %s8 = inlined_call_operand.vmem [shape: bf16[2,32,32], index: 8, kind: input, shape index: {}]
  %s9 = inlined_call_operand.vmem [shape: f32[2,1,32], index: 9, kind: input, shape index: {}]
  %s10 = inlined_call_operand.vmem [shape: bf16[2,32,64], index: 10, kind: input, shape index: {}]
  %s11 = inlined_call_operand.vmem [shape: f32[2,1,64], index: 11, kind: input, shape index: {}]
  %s12 = inlined_call_operand.vmem [shape: bf16[2,32,32], index: 12, kind: input, shape index: {}]
  %s13 = inlined_call_operand.vmem [shape: f32[2,1,32], index: 13, kind: input, shape index: {}]
  %s14 = inlined_call_operand.vmem [shape: bf16[2,32,64], index: 14, kind: input, shape index: {}]
  %s15 = inlined_call_operand.vmem [shape: f32[2,1,64], index: 15, kind: input, shape index: {}]
  %s16 = inlined_call_operand.vmem [shape: bf16[2,64,32], index: 16, kind: input, shape index: {}]
  %s17 = inlined_call_operand.vmem [shape: f32[2,1,32], index: 17, kind: input, shape index: {}]
  %s18 = inlined_call_operand.vmem [shape: f32[2,1,32], index: 18, kind: input, shape index: {}]
  %s19 = inlined_call_operand.vmem [shape: f32[2,1,32], index: 19, kind: input, shape index: {}]
  %s20 = inlined_call_operand.vmem [shape: f32[2,1,32], index: 20, kind: input, shape index: {}]
  %s21 = inlined_call_operand.vmem [shape: f32[2,1,32], index: 21, kind: input, shape index: {}]
  %s22 = inlined_call_operand.vmem [shape: f32[2,1,32], index: 22, kind: input, shape index: {}]
  %s23 = inlined_call_operand.vmem [shape: f32[2,1,32], index: 23, kind: input, shape index: {}]
  %s24 = inlined_call_operand.hbm [shape: f32[16,32], index: 24, kind: output, shape index: {}]
  %s25 = sld [smem:[#allocation0]]
  $region106: #{decoder_forward.1} parent=0
    _
  %s27 = ssub.s32 1, %s25
  %s28 = scalar_select 0, %s27, %s25
  $region1: #{decoder_forward.1} parent=0
    #allocation2 [shape = 'u8[8192]{0}', space=vmem, size = 0x2000, scoped, tag = 'output window, operand 0, single buffered']
    #allocation3 [shape = 's32[1]{0}', space=sflag, size = 0x4, scoped, tag = 'scoped memory for decoder_forward.1']
    %29 = vsyncpa [#allocation3], 0
    // Predicated region
    $region2: #{decoder_forward.1} parent=1 // pred_check
      _
    $region3: #{decoder_forward.1} parent=1 // pred_check_branch
      %31 = sbr.rel (0) target = $region5
    $region4: #{decoder_forward.1} parent=1 // pred_region
      _
    $region5: #{decoder_forward.1} parent=1 // pred_fallthru
      _
    // Predicated region
    $region6: #{decoder_forward.1} parent=1 // pred_check
      _
    $region7: #{decoder_forward.1} parent=1 // pred_check_branch
      %33 = sbr.rel (0) target = $region9
    $region8: #{decoder_forward.1} parent=1 // pred_region
      _
    $region9: #{decoder_forward.1} parent=1 // pred_fallthru
      _
    // Predicated region
    $region10: #{decoder_forward.1} parent=1 // pred_check
      _
    $region11: #{decoder_forward.1} parent=1 // pred_check_branch
      %35 = sbr.rel (0) target = $region13
    $region12: #{decoder_forward.1} parent=1 // pred_region
      _
    $region13: #{decoder_forward.1} parent=1 // pred_fallthru
      _
    // Predicated region
    $region14: #{decoder_forward.1} parent=1 // pred_check
      _
    $region15: #{decoder_forward.1} parent=1 // pred_check_branch
      %37 = sbr.rel (0) target = $region17
    $region16: #{decoder_forward.1} parent=1 // pred_region
      _
    $region17: #{decoder_forward.1} parent=1 // pred_fallthru
      _
    // Predicated region
    $region18: #{decoder_forward.1} parent=1 // pred_check
      _
    $region19: #{decoder_forward.1} parent=1 // pred_check_branch
      %39 = sbr.rel (0) target = $region21
    $region20: #{decoder_forward.1} parent=1 // pred_region
      _
    $region21: #{decoder_forward.1} parent=1 // pred_fallthru
      _
    // Predicated region
    $region22: #{decoder_forward.1} parent=1 // pred_check
      _
    $region23: #{decoder_forward.1} parent=1 // pred_check_branch
      %41 = sbr.rel (0) target = $region25
    $region24: #{decoder_forward.1} parent=1 // pred_region
      _
    $region25: #{decoder_forward.1} parent=1 // pred_fallthru
      _
    // Predicated region
    $region26: #{decoder_forward.1} parent=1 // pred_check
      _
    $region27: #{decoder_forward.1} parent=1 // pred_check_branch
      %43 = sbr.rel (0) target = $region29
    $region28: #{decoder_forward.1} parent=1 // pred_region
      _
    $region29: #{decoder_forward.1} parent=1 // pred_fallthru
      _
    // Predicated region
    $region30: #{decoder_forward.1} parent=1 // pred_check
      _
    $region31: #{decoder_forward.1} parent=1 // pred_check_branch
      %45 = sbr.rel (0) target = $region33
    $region32: #{decoder_forward.1} parent=1 // pred_region
      _
    $region33: #{decoder_forward.1} parent=1 // pred_fallthru
      _
    // Predicated region
    $region34: #{decoder_forward.1} parent=1 // pred_check
      _
    $region35: #{decoder_forward.1} parent=1 // pred_check_branch
      %47 = sbr.rel (0) target = $region37
    $region36: #{decoder_forward.1} parent=1 // pred_region
      _
    $region37: #{decoder_forward.1} parent=1 // pred_fallthru
      _
    // Predicated region
    $region38: #{decoder_forward.1} parent=1 // pred_check
      _
    $region39: #{decoder_forward.1} parent=1 // pred_check_branch
      %49 = sbr.rel (0) target = $region41
    $region40: #{decoder_forward.1} parent=1 // pred_region
      _
    $region41: #{decoder_forward.1} parent=1 // pred_fallthru
      _
    // Predicated region
    $region42: #{decoder_forward.1} parent=1 // pred_check
      _
    $region43: #{decoder_forward.1} parent=1 // pred_check_branch
      %51 = sbr.rel (0) target = $region45
    $region44: #{decoder_forward.1} parent=1 // pred_region
      _
    $region45: #{decoder_forward.1} parent=1 // pred_fallthru
      _
    // Predicated region
    $region46: #{decoder_forward.1} parent=1 // pred_check
      _
    $region47: #{decoder_forward.1} parent=1 // pred_check_branch
      %53 = sbr.rel (0) target = $region49
    $region48: #{decoder_forward.1} parent=1 // pred_region
      _
    $region49: #{decoder_forward.1} parent=1 // pred_fallthru
      _
    // Predicated region
    $region50: #{decoder_forward.1} parent=1 // pred_check
      _
    $region51: #{decoder_forward.1} parent=1 // pred_check_branch
      %55 = sbr.rel (0) target = $region53
    $region52: #{decoder_forward.1} parent=1 // pred_region
      _
    $region53: #{decoder_forward.1} parent=1 // pred_fallthru
      _
    // Predicated region
    $region54: #{decoder_forward.1} parent=1 // pred_check
      _
    $region55: #{decoder_forward.1} parent=1 // pred_check_branch
      %57 = sbr.rel (0) target = $region57
    $region56: #{decoder_forward.1} parent=1 // pred_region
      _
    $region57: #{decoder_forward.1} parent=1 // pred_fallthru
      _
    // Predicated region
    $region58: #{decoder_forward.1} parent=1 // pred_check
      _
    $region59: #{decoder_forward.1} parent=1 // pred_check_branch
      %59 = sbr.rel (0) target = $region61
    $region60: #{decoder_forward.1} parent=1 // pred_region
      _
    $region61: #{decoder_forward.1} parent=1 // pred_fallthru
      _
    // Predicated region
    $region62: #{decoder_forward.1} parent=1 // pred_check
      _
    $region63: #{decoder_forward.1} parent=1 // pred_check_branch
      %61 = sbr.rel (0) target = $region65
    $region64: #{decoder_forward.1} parent=1 // pred_region
      _
    $region65: #{decoder_forward.1} parent=1 // pred_fallthru
      _
    // Predicated region
    $region66: #{decoder_forward.1} parent=1 // pred_check
      _
    $region67: #{decoder_forward.1} parent=1 // pred_check_branch
      %63 = sbr.rel (0) target = $region69
    $region68: #{decoder_forward.1} parent=1 // pred_region
      _
    $region69: #{decoder_forward.1} parent=1 // pred_fallthru
      _
    // Predicated region
    $region70: #{decoder_forward.1} parent=1 // pred_check
      _
    $region71: #{decoder_forward.1} parent=1 // pred_check_branch
      %65 = sbr.rel (0) target = $region73
    $region72: #{decoder_forward.1} parent=1 // pred_region
      _
    $region73: #{decoder_forward.1} parent=1 // pred_fallthru
      _
    // Predicated region
    $region74: #{decoder_forward.1} parent=1 // pred_check
      _
    $region75: #{decoder_forward.1} parent=1 // pred_check_branch
      %67 = sbr.rel (0) target = $region77
    $region76: #{decoder_forward.1} parent=1 // pred_region
      _
    $region77: #{decoder_forward.1} parent=1 // pred_fallthru
      _
    // Predicated region
    $region78: #{decoder_forward.1} parent=1 // pred_check
      _
    $region79: #{decoder_forward.1} parent=1 // pred_check_branch
      %69 = sbr.rel (0) target = $region81
    $region80: #{decoder_forward.1} parent=1 // pred_region
      _
    $region81: #{decoder_forward.1} parent=1 // pred_fallthru
      _
    // Predicated region
    $region82: #{decoder_forward.1} parent=1 // pred_check
      _
    $region83: #{decoder_forward.1} parent=1 // pred_check_branch
      %71 = sbr.rel (0) target = $region85
    $region84: #{decoder_forward.1} parent=1 // pred_region
      _
    $region85: #{decoder_forward.1} parent=1 // pred_fallthru
      _
    // Predicated region
    $region86: #{decoder_forward.1} parent=1 // pred_check
      _
    $region87: #{decoder_forward.1} parent=1 // pred_check_branch
      %73 = sbr.rel (0) target = $region89
    $region88: #{decoder_forward.1} parent=1 // pred_region
      _
    $region89: #{decoder_forward.1} parent=1 // pred_fallthru
      _
    // Predicated region
    $region90: #{decoder_forward.1} parent=1 // pred_check
      _
    $region91: #{decoder_forward.1} parent=1 // pred_check_branch
      %75 = sbr.rel (0) target = $region93
    $region92: #{decoder_forward.1} parent=1 // pred_region
      _
    $region93: #{decoder_forward.1} parent=1 // pred_fallthru
      _
    // Predicated region
    $region94: #{decoder_forward.1} parent=1 // pred_check
      _
    $region95: #{decoder_forward.1} parent=1 // pred_check_branch
      %77 = sbr.rel (0) target = $region97
    $region96: #{decoder_forward.1} parent=1 // pred_region
      _
    $region97: #{decoder_forward.1} parent=1 // pred_fallthru
      _
    %v79 = vld [vmem:[%s0] sm:$0xff]
    %v80 = vld [vmem:[%s0 + $0x8] sm:$0xff]
    %v81 = vld [vmem:[%s1] sm:$0xff]
    %v82 = vld [vmem:[%s1 + $0x8] sm:$0xff]
    %v83 = vld [vmem:[%s2] sm:$0xff]
    %v84 = vld [vmem:[%s3] sm:$0xff]
    %v85 = vld [vmem:[%s4] sm:$0xf]
    %v86 = vld [vmem:[%s4 + $0x4] sm:$0xf]
    %v87 = vld [vmem:[%s4 + $0x8] sm:$0xf]
    %v88 = vld [vmem:[%s4 + $0xc] sm:$0xf]
    %v89 = vpack.c.bf16 %v80, %v79
    %v90 = vld [vmem:[%s5] sm:$0x1]
    %v92 = vlaneseq
    %v93 = vshrl.u32 %v92, 7
    %v94 = vsub.s32 0, %v93
    %v95 = vrot.slane %v90, %v94
    %v101 = vunpack.c.l.b16 %v85
    %v102 = vunpack.c.l.b16 %v86
    %v103 = vunpack.c.l.b16 %v87
    %v104 = vunpack.c.l.b16 %v88
    %v105 = vpack.c.b16 %v102, %v101
    %v106 = vpack.c.b16 %v104, %v103
    %vm109 = vcmask 261120
    %v111 = vsel %vm109, %v89, 0
    %113 = vmatprep.subr.bf16.mxu0 0
    %114 = vmatpush1.bf16.msra.mxu0 %v105
    %115 = vmatprep.subr.bf16.mxu0 0
    %116 = vmatpush1.bf16.msra.mxu0 %v106
    %117 = vmatprep.subr.bf16.mxu0 0
    %118 = vmatpush1.bf16.msra.mxu0 0
    %119 = vmatprep.subr.bf16.mxu0 0
    %120 = vmatpush1.bf16.msra.mxu0 0
    %121 = vmatprep.subr.bf16.mxu0 0
    %122 = vmatpush1.bf16.msra.mxu0 0
    %123 = vmatprep.subr.bf16.mxu0 0
    %124 = vmatpush1.bf16.msra.mxu0 0
    %125 = vmatprep.subr.bf16.mxu0 0
    %126 = vmatpush1.bf16.msra.mxu0 0
    %127 = vmatprep.subr.bf16.mxu0 0
    %128 = vmatpush1.bf16.msra.mxu0 0
    %129 = vmatprep.subr.bf16.mxu0 0
    %130 = vmatpush1.bf16.msra.mxu0 0
    %131 = vmatprep.subr.bf16.mxu0 0
    %132 = vmatpush1.bf16.msra.mxu0 0
    %133 = vmatprep.subr.bf16.mxu0 0
    %134 = vmatpush1.bf16.msra.mxu0 0
    %135 = vmatprep.subr.bf16.mxu0 0
    %136 = vmatpush1.bf16.msra.mxu0 0
    %137 = vmatprep.subr.bf16.mxu0 0
    %138 = vmatpush1.bf16.msra.mxu0 0
    %139 = vmatprep.subr.bf16.mxu0 0
    %140 = vmatpush1.bf16.msra.mxu0 0
    %141 = vmatprep.subr.bf16.mxu0 0
    %142 = vmatpush1.bf16.msra.mxu0 0
    %143 = vmatprep.subr.bf16.mxu0 0
    %144 = vmatpush1.bf16.msra.mxu0 0
    %145 = vmatprep.mubr.bf16.mxu0 0
    %146 = vmatmul.mubr.bf16.gmra.mrb[0].mxu0 %v111
    %v147 = vpop.f32.mrb[0].mxu0
    %v148 = vadd.f32 %v95, %v147
    %v149 = vpop.f32.mrb[0].mxu0
    %v150 = vpop.f32.mrb[0].mxu0
    %v151 = vadd.f32 %v95, %v150
    %v152 = vpop.f32.mrb[0].mxu0
    %153 = vdwg.mxu0
    %v154 = vmul.f32 %v148, 0.35355338
    %v155 = vmul.f32 %v151, 0.35355338
    %v156 = vld [vmem:[%s6] sm:$0xf]
    %v157 = vld [vmem:[%s6 + $0x4] sm:$0xf]
    %v158 = vld [vmem:[%s6 + $0x8] sm:$0xf]
    %v159 = vld [vmem:[%s6 + $0xc] sm:$0xf]
    %v160 = vld [vmem:[%s7] sm:$0x1]
    %v161 = vpack.c.bf16 %v155, %v154
    %v162 = vpack.c.bf16 %v151, %v148
    %164 = vrot.lane.b32.xlu0 %v162, 96
    %v165 = vpop.permute.xlu0 %164
    %vm166 = vcmask 64512
    %v168 = vsel %vm166, %v161, 0
    %v171 = vsel %vm166, %v165, 0
    %173 = vmatprep.subr.bf16.mxu0 0
    %174 = vmatpush1.bf16.xpose.msra.mxu0 %v171
    %175 = vmatprep.subr.bf16.mxu0 0
    %176 = vmatpush1.bf16.xpose.msra.mxu0 0
    %177 = vmatprep.subr.bf16.mxu0 0
    %178 = vmatpush1.bf16.xpose.msra.mxu0 0
    %179 = vmatprep.subr.bf16.mxu0 0
    %180 = vmatpush1.bf16.xpose.msra.mxu0 0
    %181 = vmatprep.subr.bf16.mxu0 0
    %182 = vmatpush1.bf16.xpose.msra.mxu0 0
    %183 = vmatprep.subr.bf16.mxu0 0
    %184 = vmatpush1.bf16.xpose.msra.mxu0 0
    %185 = vmatprep.subr.bf16.mxu0 0
    %186 = vmatpush1.bf16.xpose.msra.mxu0 0
    %187 = vmatprep.subr.bf16.mxu0 0
    %188 = vmatpush1.bf16.xpose.msra.mxu0 0
    %189 = vmatprep.subr.bf16.mxu0 0
    %190 = vmatpush1.bf16.xpose.msra.mxu0 0
    %191 = vmatprep.subr.bf16.mxu0 0
    %192 = vmatpush1.bf16.xpose.msra.mxu0 0
    %193 = vmatprep.subr.bf16.mxu0 0
    %194 = vmatpush1.bf16.xpose.msra.mxu0 0
    %195 = vmatprep.subr.bf16.mxu0 0
    %196 = vmatpush1.bf16.xpose.msra.mxu0 0
    %197 = vmatprep.subr.bf16.mxu0 0
    %198 = vmatpush1.bf16.xpose.msra.mxu0 0
    %199 = vmatprep.subr.bf16.mxu0 0
    %200 = vmatpush1.bf16.xpose.msra.mxu0 0
    %201 = vmatprep.subr.bf16.mxu0 0
    %202 = vmatpush1.bf16.xpose.msra.mxu0 0
    %203 = vmatprep.subr.bf16.mxu0 0
    %204 = vmatpush1.bf16.xpose.msra.mxu0 0
    %205 = vmatprep.mubr.bf16.mxu0 0
    %206 = vmatmul.mubr.bf16.gmra.mrb[0].mxu0 %v168
    %v207 = vpop.f32.mrb[0].mxu0
    %v208 = vadd.f32 %v83, %v207
    %v209 = vpop.f32.mrb[0].mxu0
    %v210 = vpop.f32.mrb[0].mxu0
    %v211 = vpop.f32.mrb[0].mxu0
    %212 = vdwg.mxu0
    %v213 = vsel %vm166, %v208, -inf
    %214 = vmax.xlane.f32.xlu0 %v213
    %v215 = vpop.xlane.xlu0 %214
    %v216 = vsub.f32 %v208, %v215
    %v217 = vmul.f32 %v216, 1.442695
    %v218 = vpow.pop %v217
    %v219 = vsel %vm166, %v218, 0.0
    %220 = vadd.xlane.f32.xlu0 %v219
    %v221 = vpop.xlane.xlu0 %220
    %v222 = vrcp.pop %v221
    %v223 = vmul.f32 %v218, %v222
    %v224 = vpack.c.bf16 %v223, %v223
    %225 = vrot.lane.b32.xlu0 %v162, 64
    %v226 = vpop.permute.xlu0 %225
    %v228 = vsel %vm166, %v224, 0
    %vm230 = vcmask 1043456
    %v232 = vsel %vm230, %v226, 0
    %234 = vmatprep.subr.bf16.mxu0 0
    %235 = vmatpush1.bf16.msra.mxu0 %v232
    %236 = vmatprep.subr.bf16.mxu0 0
    %237 = vmatpush1.bf16.msra.mxu0 0
    %238 = vmatprep.subr.bf16.mxu0 0
    %239 = vmatpush1.bf16.msra.mxu0 0
    %240 = vmatprep.subr.bf16.mxu0 0
    %241 = vmatpush1.bf16.msra.mxu0 0
    %242 = vmatprep.subr.bf16.mxu0 0
    %243 = vmatpush1.bf16.msra.mxu0 0
    %244 = vmatprep.subr.bf16.mxu0 0
    %245 = vmatpush1.bf16.msra.mxu0 0
    %246 = vmatprep.subr.bf16.mxu0 0
    %247 = vmatpush1.bf16.msra.mxu0 0
    %248 = vmatprep.subr.bf16.mxu0 0
    %249 = vmatpush1.bf16.msra.mxu0 0
    %250 = vmatprep.subr.bf16.mxu0 0
    %251 = vmatpush1.bf16.msra.mxu0 0
    %252 = vmatprep.subr.bf16.mxu0 0
    %253 = vmatpush1.bf16.msra.mxu0 0
    %254 = vmatprep.subr.bf16.mxu0 0
    %255 = vmatpush1.bf16.msra.mxu0 0
    %256 = vmatprep.subr.bf16.mxu0 0
    %257 = vmatpush1.bf16.msra.mxu0 0
    %258 = vmatprep.subr.bf16.mxu0 0
    %259 = vmatpush1.bf16.msra.mxu0 0
    %260 = vmatprep.subr.bf16.mxu0 0
    %261 = vmatpush1.bf16.msra.mxu0 0
    %262 = vmatprep.subr.bf16.mxu0 0
    %263 = vmatpush1.bf16.msra.mxu0 0
    %264 = vmatprep.subr.bf16.mxu0 0
    %265 = vmatpush1.bf16.msra.mxu0 0
    %266 = vmatprep.mubr.bf16.mxu0 0
    %267 = vmatmul.mubr.bf16.gmra.mrb[0].mxu0 %v228
    %v268 = vpop.f32.mrb[0].mxu0
    %v269 = vadd.f32 0.0, %v268
    %v270 = vpop.f32.mrb[0].mxu0
    %v271 = vpop.f32.mrb[0].mxu0
    %v272 = vpop.f32.mrb[0].mxu0
    %273 = vdwg.mxu0
    %v275 = vrot.slane %v161, 4
    %v276 = vrot.slane %v162, 4
    %277 = vrot.lane.b32.xlu0 %v276, 96
    %v278 = vpop.permute.xlu0 %277
    %v280 = vsel %vm166, %v275, 0
    %v283 = vsel %vm166, %v278, 0
    %285 = vmatprep.subr.bf16.mxu0 0
    %286 = vmatpush1.bf16.xpose.msra.mxu0 %v283
    %287 = vmatprep.subr.bf16.mxu0 0
    %288 = vmatpush1.bf16.xpose.msra.mxu0 0
    %289 = vmatprep.subr.bf16.mxu0 0
    %290 = vmatpush1.bf16.xpose.msra.mxu0 0
    %291 = vmatprep.subr.bf16.mxu0 0
    %292 = vmatpush1.bf16.xpose.msra.mxu0 0
    %293 = vmatprep.subr.bf16.mxu0 0
    %294 = vmatpush1.bf16.xpose.msra.mxu0 0
    %295 = vmatprep.subr.bf16.mxu0 0
    %296 = vmatpush1.bf16.xpose.msra.mxu0 0
    %297 = vmatprep.subr.bf16.mxu0 0
    %298 = vmatpush1.bf16.xpose.msra.mxu0 0
    %299 = vmatprep.subr.bf16.mxu0 0
    %300 = vmatpush1.bf16.xpose.msra.mxu0 0
    %301 = vmatprep.subr.bf16.mxu0 0
    %302 = vmatpush1.bf16.xpose.msra.mxu0 0
    %303 = vmatprep.subr.bf16.mxu0 0
    %304 = vmatpush1.bf16.xpose.msra.mxu0 0
    %305 = vmatprep.subr.bf16.mxu0 0
    %306 = vmatpush1.bf16.xpose.msra.mxu0 0
    %307 = vmatprep.subr.bf16.mxu0 0
    %308 = vmatpush1.bf16.xpose.msra.mxu0 0
    %309 = vmatprep.subr.bf16.mxu0 0
    %310 = vmatpush1.bf16.xpose.msra.mxu0 0
    %311 = vmatprep.subr.bf16.mxu0 0
    %312 = vmatpush1.bf16.xpose.msra.mxu0 0
    %313 = vmatprep.subr.bf16.mxu0 0
    %314 = vmatpush1.bf16.xpose.msra.mxu0 0
    %315 = vmatprep.subr.bf16.mxu0 0
    %316 = vmatpush1.bf16.xpose.msra.mxu0 0
    %317 = vmatprep.mubr.bf16.mxu0 0
    %318 = vmatmul.mubr.bf16.gmra.mrb[0].mxu0 %v280
    %v319 = vpop.f32.mrb[0].mxu0
    %v320 = vadd.f32 %v83, %v319
    %v321 = vpop.f32.mrb[0].mxu0
    %v322 = vpop.f32.mrb[0].mxu0
    %v323 = vpop.f32.mrb[0].mxu0
    %324 = vdwg.mxu0
    %v325 = vsel %vm166, %v320, -inf
    %326 = vmax.xlane.f32.xlu0 %v325
    %v327 = vpop.xlane.xlu0 %326
    %v328 = vsub.f32 %v320, %v327
    %v329 = vmul.f32 %v328, 1.442695
    %v330 = vpow.pop %v329
    %v331 = vsel %vm166, %v330, 0.0
    %332 = vadd.xlane.f32.xlu0 %v331
    %v333 = vpop.xlane.xlu0 %332
    %v334 = vrcp.pop %v333
    %v335 = vmul.f32 %v330, %v334
    %v336 = vpack.c.bf16 %v335, %v335
    %337 = vrot.lane.b32.xlu0 %v276, 64
    %v338 = vpop.permute.xlu0 %337
    %v340 = vsel %vm166, %v336, 0
    %v343 = vsel %vm230, %v338, 0
    %345 = vmatprep.subr.bf16.mxu0 0
    %346 = vmatpush1.bf16.msra.mxu0 %v343
    %347 = vmatprep.subr.bf16.mxu0 0
    %348 = vmatpush1.bf16.msra.mxu0 0
    %349 = vmatprep.subr.bf16.mxu0 0
    %350 = vmatpush1.bf16.msra.mxu0 0
    %351 = vmatprep.subr.bf16.mxu0 0
    %352 = vmatpush1.bf16.msra.mxu0 0
    %353 = vmatprep.subr.bf16.mxu0 0
    %354 = vmatpush1.bf16.msra.mxu0 0
    %355 = vmatprep.subr.bf16.mxu0 0
    %356 = vmatpush1.bf16.msra.mxu0 0
    %357 = vmatprep.subr.bf16.mxu0 0
    %358 = vmatpush1.bf16.msra.mxu0 0
    %359 = vmatprep.subr.bf16.mxu0 0
    %360 = vmatpush1.bf16.msra.mxu0 0
    %361 = vmatprep.subr.bf16.mxu0 0
    %362 = vmatpush1.bf16.msra.mxu0 0
    %363 = vmatprep.subr.bf16.mxu0 0
    %364 = vmatpush1.bf16.msra.mxu0 0
    %365 = vmatprep.subr.bf16.mxu0 0
    %366 = vmatpush1.bf16.msra.mxu0 0
    %367 = vmatprep.subr.bf16.mxu0 0
    %368 = vmatpush1.bf16.msra.mxu0 0
    %369 = vmatprep.subr.bf16.mxu0 0
    %370 = vmatpush1.bf16.msra.mxu0 0
    %371 = vmatprep.subr.bf16.mxu0 0
    %372 = vmatpush1.bf16.msra.mxu0 0
    %373 = vmatprep.subr.bf16.mxu0 0
    %374 = vmatpush1.bf16.msra.mxu0 0
    %375 = vmatprep.subr.bf16.mxu0 0
    %376 = vmatpush1.bf16.msra.mxu0 0
    %377 = vmatprep.mubr.bf16.mxu0 0
    %378 = vmatmul.mubr.bf16.gmra.mrb[0].mxu0 %v340
    %v379 = vpop.f32.mrb[0].mxu0
    %v380 = vadd.f32 0.0, %v379
    %v381 = vpop.f32.mrb[0].mxu0
    %v382 = vpop.f32.mrb[0].mxu0
    %v383 = vpop.f32.mrb[0].mxu0
    %384 = vdwg.mxu0
    %385 = vrot.lane.b32.xlu0 %v161, 120
    %v386 = vpop.permute.xlu0 %385
    %387 = vrot.lane.b32.xlu0 %v162, 88
    %v388 = vpop.permute.xlu0 %387
    %v390 = vsel %vm166, %v386, 0
    %v393 = vsel %vm166, %v388, 0
    %395 = vmatprep.subr.bf16.mxu0 0
    %396 = vmatpush1.bf16.xpose.msra.mxu0 %v393
    %397 = vmatprep.subr.bf16.mxu0 0
    %398 = vmatpush1.bf16.xpose.msra.mxu0 0
    %399 = vmatprep.subr.bf16.mxu0 0
    %400 = vmatpush1.bf16.xpose.msra.mxu0 0
    %401 = vmatprep.subr.bf16.mxu0 0
    %402 = vmatpush1.bf16.xpose.msra.mxu0 0
    %403 = vmatprep.subr.bf16.mxu0 0
    %404 = vmatpush1.bf16.xpose.msra.mxu0 0
    %405 = vmatprep.subr.bf16.mxu0 0
    %406 = vmatpush1.bf16.xpose.msra.mxu0 0
    %407 = vmatprep.subr.bf16.mxu0 0
    %408 = vmatpush1.bf16.xpose.msra.mxu0 0
    %409 = vmatprep.subr.bf16.mxu0 0
    %410 = vmatpush1.bf16.xpose.msra.mxu0 0
    %411 = vmatprep.subr.bf16.mxu0 0
    %412 = vmatpush1.bf16.xpose.msra.mxu0 0
    %413 = vmatprep.subr.bf16.mxu0 0
    %414 = vmatpush1.bf16.xpose.msra.mxu0 0
    %415 = vmatprep.subr.bf16.mxu0 0
    %416 = vmatpush1.bf16.xpose.msra.mxu0 0
    %417 = vmatprep.subr.bf16.mxu0 0
    %418 = vmatpush1.bf16.xpose.msra.mxu0 0
    %419 = vmatprep.subr.bf16.mxu0 0
    %420 = vmatpush1.bf16.xpose.msra.mxu0 0
    %421 = vmatprep.subr.bf16.mxu0 0
    %422 = vmatpush1.bf16.xpose.msra.mxu0 0
    %423 = vmatprep.subr.bf16.mxu0 0
    %424 = vmatpush1.bf16.xpose.msra.mxu0 0
    %425 = vmatprep.subr.bf16.mxu0 0
    %426 = vmatpush1.bf16.xpose.msra.mxu0 0
    %427 = vmatprep.mubr.bf16.mxu0 0
    %428 = vmatmul.mubr.bf16.gmra.mrb[0].mxu0 %v390
    %v429 = vpop.f32.mrb[0].mxu0
    %v430 = vadd.f32 %v83, %v429
    %v431 = vpop.f32.mrb[0].mxu0
    %v432 = vpop.f32.mrb[0].mxu0
    %v433 = vpop.f32.mrb[0].mxu0
    %434 = vdwg.mxu0
    %v435 = vsel %vm166, %v430, -inf
    %436 = vmax.xlane.f32.xlu0 %v435
    %v437 = vpop.xlane.xlu0 %436
    %v438 = vsub.f32 %v430, %v437
    %v439 = vmul.f32 %v438, 1.442695
    %v440 = vpow.pop %v439
    %v441 = vsel %vm166, %v440, 0.0
    %442 = vadd.xlane.f32.xlu0 %v441
    %v443 = vpop.xlane.xlu0 %442
    %v444 = vrcp.pop %v443
    %v445 = vmul.f32 %v440, %v444
    %v446 = vpack.c.bf16 %v445, %v445
    %447 = vrot.lane.b32.xlu0 %v162, 56
    %v448 = vpop.permute.xlu0 %447
    %v450 = vsel %vm166, %v446, 0
    %v453 = vsel %vm230, %v448, 0
    %455 = vmatprep.subr.bf16.mxu0 0
    %456 = vmatpush1.bf16.msra.mxu0 %v453
    %457 = vmatprep.subr.bf16.mxu0 0
    %458 = vmatpush1.bf16.msra.mxu0 0
    %459 = vmatprep.subr.bf16.mxu0 0
    %460 = vmatpush1.bf16.msra.mxu0 0
    %461 = vmatprep.subr.bf16.mxu0 0
    %462 = vmatpush1.bf16.msra.mxu0 0
    %463 = vmatprep.subr.bf16.mxu0 0
    %464 = vmatpush1.bf16.msra.mxu0 0
    %465 = vmatprep.subr.bf16.mxu0 0
    %466 = vmatpush1.bf16.msra.mxu0 0
    %467 = vmatprep.subr.bf16.mxu0 0
    %468 = vmatpush1.bf16.msra.mxu0 0
    %469 = vmatprep.subr.bf16.mxu0 0
    %470 = vmatpush1.bf16.msra.mxu0 0
    %471 = vmatprep.subr.bf16.mxu0 0
    %472 = vmatpush1.bf16.msra.mxu0 0
    %473 = vmatprep.subr.bf16.mxu0 0
    %474 = vmatpush1.bf16.msra.mxu0 0
    %475 = vmatprep.subr.bf16.mxu0 0
    %476 = vmatpush1.bf16.msra.mxu0 0
    %477 = vmatprep.subr.bf16.mxu0 0
    %478 = vmatpush1.bf16.msra.mxu0 0
    %479 = vmatprep.subr.bf16.mxu0 0
    %480 = vmatpush1.bf16.msra.mxu0 0
    %481 = vmatprep.subr.bf16.mxu0 0
    %482 = vmatpush1.bf16.msra.mxu0 0
    %483 = vmatprep.subr.bf16.mxu0 0
    %484 = vmatpush1.bf16.msra.mxu0 0
    %485 = vmatprep.subr.bf16.mxu0 0
    %486 = vmatpush1.bf16.msra.mxu0 0
    %487 = vmatprep.mubr.bf16.mxu0 0
    %488 = vmatmul.mubr.bf16.gmra.mrb[0].mxu0 %v450
    %v489 = vpop.f32.mrb[0].mxu0
    %v490 = vadd.f32 0.0, %v489
    %v491 = vpop.f32.mrb[0].mxu0
    %v492 = vpop.f32.mrb[0].mxu0
    %v493 = vpop.f32.mrb[0].mxu0
    %494 = vdwg.mxu0
    %495 = vrot.lane.b32.xlu0 %v275, 120
    %v496 = vpop.permute.xlu0 %495
    %497 = vrot.lane.b32.xlu0 %v276, 88
    %v498 = vpop.permute.xlu0 %497
    %v500 = vsel %vm166, %v496, 0
    %v503 = vsel %vm166, %v498, 0
    %505 = vmatprep.subr.bf16.mxu0 0
    %506 = vmatpush1.bf16.xpose.msra.mxu0 %v503
    %507 = vmatprep.subr.bf16.mxu0 0
    %508 = vmatpush1.bf16.xpose.msra.mxu0 0
    %509 = vmatprep.subr.bf16.mxu0 0
    %510 = vmatpush1.bf16.xpose.msra.mxu0 0
    %511 = vmatprep.subr.bf16.mxu0 0
    %512 = vmatpush1.bf16.xpose.msra.mxu0 0
    %513 = vmatprep.subr.bf16.mxu0 0
    %514 = vmatpush1.bf16.xpose.msra.mxu0 0
    %515 = vmatprep.subr.bf16.mxu0 0
    %516 = vmatpush1.bf16.xpose.msra.mxu0 0
    %517 = vmatprep.subr.bf16.mxu0 0
    %518 = vmatpush1.bf16.xpose.msra.mxu0 0
    %519 = vmatprep.subr.bf16.mxu0 0
    %520 = vmatpush1.bf16.xpose.msra.mxu0 0
    %521 = vmatprep.subr.bf16.mxu0 0
    %522 = vmatpush1.bf16.xpose.msra.mxu0 0
    %523 = vmatprep.subr.bf16.mxu0 0
    %524 = vmatpush1.bf16.xpose.msra.mxu0 0
    %525 = vmatprep.subr.bf16.mxu0 0
    %526 = vmatpush1.bf16.xpose.msra.mxu0 0
    %527 = vmatprep.subr.bf16.mxu0 0
    %528 = vmatpush1.bf16.xpose.msra.mxu0 0
    %529 = vmatprep.subr.bf16.mxu0 0
    %530 = vmatpush1.bf16.xpose.msra.mxu0 0
    %531 = vmatprep.subr.bf16.mxu0 0
    %532 = vmatpush1.bf16.xpose.msra.mxu0 0
    %533 = vmatprep.subr.bf16.mxu0 0
    %534 = vmatpush1.bf16.xpose.msra.mxu0 0
    %535 = vmatprep.subr.bf16.mxu0 0
    %536 = vmatpush1.bf16.xpose.msra.mxu0 0
    %537 = vmatprep.mubr.bf16.mxu0 0
    %538 = vmatmul.mubr.bf16.gmra.mrb[0].mxu0 %v500
    %v539 = vpop.f32.mrb[0].mxu0
    %v540 = vadd.f32 %v83, %v539
    %v541 = vpop.f32.mrb[0].mxu0
    %v542 = vpop.f32.mrb[0].mxu0
    %v543 = vpop.f32.mrb[0].mxu0
    %544 = vdwg.mxu0
    %v545 = vsel %vm166, %v540, -inf
    %546 = vmax.xlane.f32.xlu0 %v545
    %v547 = vpop.xlane.xlu0 %546
    %v548 = vsub.f32 %v540, %v547
    %v549 = vmul.f32 %v548, 1.442695
    %v550 = vpow.pop %v549
    %v551 = vsel %vm166, %v550, 0.0
    %552 = vadd.xlane.f32.xlu0 %v551
    %v553 = vpop.xlane.xlu0 %552
    %v554 = vrcp.pop %v553
    %v555 = vmul.f32 %v550, %v554
    %v556 = vpack.c.bf16 %v555, %v555
    %557 = vrot.lane.b32.xlu0 %v276, 56
    %v558 = vpop.permute.xlu0 %557
    %v560 = vsel %vm166, %v556, 0
    %v563 = vsel %vm230, %v558, 0
    %565 = vmatprep.subr.bf16.mxu0 0
    %566 = vmatpush1.bf16.msra.mxu0 %v563
    %567 = vmatprep.subr.bf16.mxu0 0
    %568 = vmatpush1.bf16.msra.mxu0 0
    %569 = vmatprep.subr.bf16.mxu0 0
    %570 = vmatpush1.bf16.msra.mxu0 0
    %571 = vmatprep.subr.bf16.mxu0 0
    %572 = vmatpush1.bf16.msra.mxu0 0
    %573 = vmatprep.subr.bf16.mxu0 0
    %574 = vmatpush1.bf16.msra.mxu0 0
    %575 = vmatprep.subr.bf16.mxu0 0
    %576 = vmatpush1.bf16.msra.mxu0 0
    %577 = vmatprep.subr.bf16.mxu0 0
    %578 = vmatpush1.bf16.msra.mxu0 0
    %579 = vmatprep.subr.bf16.mxu0 0
    %580 = vmatpush1.bf16.msra.mxu0 0
    %581 = vmatprep.subr.bf16.mxu0 0
    %582 = vmatpush1.bf16.msra.mxu0 0
    %583 = vmatprep.subr.bf16.mxu0 0
    %584 = vmatpush1.bf16.msra.mxu0 0
    %585 = vmatprep.subr.bf16.mxu0 0
    %586 = vmatpush1.bf16.msra.mxu0 0
    %587 = vmatprep.subr.bf16.mxu0 0
    %588 = vmatpush1.bf16.msra.mxu0 0
    %589 = vmatprep.subr.bf16.mxu0 0
    %590 = vmatpush1.bf16.msra.mxu0 0
    %591 = vmatprep.subr.bf16.mxu0 0
    %592 = vmatpush1.bf16.msra.mxu0 0
    %593 = vmatprep.subr.bf16.mxu0 0
    %594 = vmatpush1.bf16.msra.mxu0 0
    %595 = vmatprep.subr.bf16.mxu0 0
    %596 = vmatpush1.bf16.msra.mxu0 0
    %597 = vmatprep.mubr.bf16.mxu0 0
    %598 = vmatmul.mubr.bf16.gmra.mrb[0].mxu0 %v560
    %v599 = vpop.f32.mrb[0].mxu0
    %v600 = vadd.f32 0.0, %v599
    %v601 = vpop.f32.mrb[0].mxu0
    %v602 = vpop.f32.mrb[0].mxu0
    %v603 = vpop.f32.mrb[0].mxu0
    %604 = vdwg.mxu0
    %605 = vrot.lane.b32.xlu0 %v161, 112
    %v606 = vpop.permute.xlu0 %605
    %607 = vrot.lane.b32.xlu0 %v162, 80
    %v608 = vpop.permute.xlu0 %607
    %v610 = vsel %vm166, %v606, 0
    %v613 = vsel %vm166, %v608, 0
    %615 = vmatprep.subr.bf16.mxu0 0
    %616 = vmatpush1.bf16.xpose.msra.mxu0 %v613
    %617 = vmatprep.subr.bf16.mxu0 0
    %618 = vmatpush1.bf16.xpose.msra.mxu0 0
    %619 = vmatprep.subr.bf16.mxu0 0
    %620 = vmatpush1.bf16.xpose.msra.mxu0 0
    %621 = vmatprep.subr.bf16.mxu0 0
    %622 = vmatpush1.bf16.xpose.msra.mxu0 0
    %623 = vmatprep.subr.bf16.mxu0 0
    %624 = vmatpush1.bf16.xpose.msra.mxu0 0
    %625 = vmatprep.subr.bf16.mxu0 0
    %626 = vmatpush1.bf16.xpose.msra.mxu0 0
    %627 = vmatprep.subr.bf16.mxu0 0
    %628 = vmatpush1.bf16.xpose.msra.mxu0 0
    %629 = vmatprep.subr.bf16.mxu0 0
    %630 = vmatpush1.bf16.xpose.msra.mxu0 0
    %631 = vmatprep.subr.bf16.mxu0 0
    %632 = vmatpush1.bf16.xpose.msra.mxu0 0
    %633 = vmatprep.subr.bf16.mxu0 0
    %634 = vmatpush1.bf16.xpose.msra.mxu0 0
    %635 = vmatprep.subr.bf16.mxu0 0
    %636 = vmatpush1.bf16.xpose.msra.mxu0 0
    %637 = vmatprep.subr.bf16.mxu0 0
    %638 = vmatpush1.bf16.xpose.msra.mxu0 0
    %639 = vmatprep.subr.bf16.mxu0 0
    %640 = vmatpush1.bf16.xpose.msra.mxu0 0
    %641 = vmatprep.subr.bf16.mxu0 0
    %642 = vmatpush1.bf16.xpose.msra.mxu0 0
    %643 = vmatprep.subr.bf16.mxu0 0
    %644 = vmatpush1.bf16.xpose.msra.mxu0 0
    %645 = vmatprep.subr.bf16.mxu0 0
    %646 = vmatpush1.bf16.xpose.msra.mxu0 0
    %647 = vmatprep.mubr.bf16.mxu0 0
    %648 = vmatmul.mubr.bf16.gmra.mrb[0].mxu0 %v610
    %v649 = vpop.f32.mrb[0].mxu0
    %v650 = vadd.f32 %v83, %v649
    %v651 = vpop.f32.mrb[0].mxu0
    %v652 = vpop.f32.mrb[0].mxu0
    %v653 = vpop.f32.mrb[0].mxu0
    %654 = vdwg.mxu0
    %v655 = vsel %vm166, %v650, -inf
    %656 = vmax.xlane.f32.xlu0 %v655
    %v657 = vpop.xlane.xlu0 %656
    %v658 = vsub.f32 %v650, %v657
    %v659 = vmul.f32 %v658, 1.442695
    %v660 = vpow.pop %v659
    %v661 = vsel %vm166, %v660, 0.0
    %662 = vadd.xlane.f32.xlu0 %v661
    %v663 = vpop.xlane.xlu0 %662
    %v664 = vrcp.pop %v663
    %v665 = vmul.f32 %v660, %v664
    %v666 = vpack.c.bf16 %v665, %v665
    %667 = vrot.lane.b32.xlu0 %v162, 48
    %v668 = vpop.permute.xlu0 %667
    %v670 = vsel %vm166, %v666, 0
    %v673 = vsel %vm230, %v668, 0
    %675 = vmatprep.subr.bf16.mxu0 0
    %676 = vmatpush1.bf16.msra.mxu0 %v673
    %677 = vmatprep.subr.bf16.mxu0 0
    %678 = vmatpush1.bf16.msra.mxu0 0
    %679 = vmatprep.subr.bf16.mxu0 0
    %680 = vmatpush1.bf16.msra.mxu0 0
    %681 = vmatprep.subr.bf16.mxu0 0
    %682 = vmatpush1.bf16.msra.mxu0 0
    %683 = vmatprep.subr.bf16.mxu0 0
    %684 = vmatpush1.bf16.msra.mxu0 0
    %685 = vmatprep.subr.bf16.mxu0 0
    %686 = vmatpush1.bf16.msra.mxu0 0
    %687 = vmatprep.subr.bf16.mxu0 0
    %688 = vmatpush1.bf16.msra.mxu0 0
    %689 = vmatprep.subr.bf16.mxu0 0
    %690 = vmatpush1.bf16.msra.mxu0 0
    %691 = vmatprep.subr.bf16.mxu0 0
    %692 = vmatpush1.bf16.msra.mxu0 0
    %693 = vmatprep.subr.bf16.mxu0 0
    %694 = vmatpush1.bf16.msra.mxu0 0
    %695 = vmatprep.subr.bf16.mxu0 0
    %696 = vmatpush1.bf16.msra.mxu0 0
    %697 = vmatprep.subr.bf16.mxu0 0
    %698 = vmatpush1.bf16.msra.mxu0 0
    %699 = vmatprep.subr.bf16.mxu0 0
    %700 = vmatpush1.bf16.msra.mxu0 0
    %701 = vmatprep.subr.bf16.mxu0 0
    %702 = vmatpush1.bf16.msra.mxu0 0
    %703 = vmatprep.subr.bf16.mxu0 0
    %704 = vmatpush1.bf16.msra.mxu0 0
    %705 = vmatprep.subr.bf16.mxu0 0
    %706 = vmatpush1.bf16.msra.mxu0 0
    %707 = vmatprep.mubr.bf16.mxu0 0
    %708 = vmatmul.mubr.bf16.gmra.mrb[0].mxu0 %v670
    %v709 = vpop.f32.mrb[0].mxu0
    %v710 = vadd.f32 0.0, %v709
    %v711 = vpop.f32.mrb[0].mxu0
    %v712 = vpop.f32.mrb[0].mxu0
    %v713 = vpop.f32.mrb[0].mxu0
    %714 = vdwg.mxu0
    %715 = vrot.lane.b32.xlu0 %v275, 112
    %v716 = vpop.permute.xlu0 %715
    %717 = vrot.lane.b32.xlu0 %v276, 80
    %v718 = vpop.permute.xlu0 %717
    %v720 = vsel %vm166, %v716, 0
    %v723 = vsel %vm166, %v718, 0
    %725 = vmatprep.subr.bf16.mxu0 0
    %726 = vmatpush1.bf16.xpose.msra.mxu0 %v723
    %727 = vmatprep.subr.bf16.mxu0 0
    %728 = vmatpush1.bf16.xpose.msra.mxu0 0
    %729 = vmatprep.subr.bf16.mxu0 0
    %730 = vmatpush1.bf16.xpose.msra.mxu0 0
    %731 = vmatprep.subr.bf16.mxu0 0
    %732 = vmatpush1.bf16.xpose.msra.mxu0 0
    %733 = vmatprep.subr.bf16.mxu0 0
    %734 = vmatpush1.bf16.xpose.msra.mxu0 0
    %735 = vmatprep.subr.bf16.mxu0 0
    %736 = vmatpush1.bf16.xpose.msra.mxu0 0
    %737 = vmatprep.subr.bf16.mxu0 0
    %738 = vmatpush1.bf16.xpose.msra.mxu0 0
    %739 = vmatprep.subr.bf16.mxu0 0
    %740 = vmatpush1.bf16.xpose.msra.mxu0 0
    %741 = vmatprep.subr.bf16.mxu0 0
    %742 = vmatpush1.bf16.xpose.msra.mxu0 0
    %743 = vmatprep.subr.bf16.mxu0 0
    %744 = vmatpush1.bf16.xpose.msra.mxu0 0
    %745 = vmatprep.subr.bf16.mxu0 0
    %746 = vmatpush1.bf16.xpose.msra.mxu0 0
    %747 = vmatprep.subr.bf16.mxu0 0
    %748 = vmatpush1.bf16.xpose.msra.mxu0 0
    %749 = vmatprep.subr.bf16.mxu0 0
    %750 = vmatpush1.bf16.xpose.msra.mxu0 0
    %751 = vmatprep.subr.bf16.mxu0 0
    %752 = vmatpush1.bf16.xpose.msra.mxu0 0
    %753 = vmatprep.subr.bf16.mxu0 0
    %754 = vmatpush1.bf16.xpose.msra.mxu0 0
    %755 = vmatprep.subr.bf16.mxu0 0
    %756 = vmatpush1.bf16.xpose.msra.mxu0 0
    %757 = vmatprep.mubr.bf16.mxu0 0
    %758 = vmatmul.mubr.bf16.gmra.mrb[0].mxu0 %v720
    %v759 = vpop.f32.mrb[0].mxu0
    %v760 = vadd.f32 %v83, %v759
    %v761 = vpop.f32.mrb[0].mxu0
    %v762 = vpop.f32.mrb[0].mxu0
    %v763 = vpop.f32.mrb[0].mxu0
    %764 = vdwg.mxu0
    %v765 = vsel %vm166, %v760, -inf
    %766 = vmax.xlane.f32.xlu0 %v765
    %v767 = vpop.xlane.xlu0 %766
    %v768 = vsub.f32 %v760, %v767
    %v769 = vmul.f32 %v768, 1.442695
    %v770 = vpow.pop %v769
    %v771 = vsel %vm166, %v770, 0.0
    %772 = vadd.xlane.f32.xlu0 %v771
    %v773 = vpop.xlane.xlu0 %772
    %v774 = vrcp.pop %v773
    %v775 = vmul.f32 %v770, %v774
    %v776 = vpack.c.bf16 %v775, %v775
    %777 = vrot.lane.b32.xlu0 %v276, 48
    %v778 = vpop.permute.xlu0 %777
    %v780 = vsel %vm166, %v776, 0
    %v783 = vsel %vm230, %v778, 0
    %785 = vmatprep.subr.bf16.mxu0 0
    %786 = vmatpush1.bf16.msra.mxu0 %v783
    %787 = vmatprep.subr.bf16.mxu0 0
    %788 = vmatpush1.bf16.msra.mxu0 0
    %789 = vmatprep.subr.bf16.mxu0 0
    %790 = vmatpush1.bf16.msra.mxu0 0
    %791 = vmatprep.subr.bf16.mxu0 0
    %792 = vmatpush1.bf16.msra.mxu0 0
    %793 = vmatprep.subr.bf16.mxu0 0
    %794 = vmatpush1.bf16.msra.mxu0 0
    %795 = vmatprep.subr.bf16.mxu0 0
    %796 = vmatpush1.bf16.msra.mxu0 0
    %797 = vmatprep.subr.bf16.mxu0 0
    %798 = vmatpush1.bf16.msra.mxu0 0
    %799 = vmatprep.subr.bf16.mxu0 0
    %800 = vmatpush1.bf16.msra.mxu0 0
    %801 = vmatprep.subr.bf16.mxu0 0
    %802 = vmatpush1.bf16.msra.mxu0 0
    %803 = vmatprep.subr.bf16.mxu0 0
    %804 = vmatpush1.bf16.msra.mxu0 0
    %805 = vmatprep.subr.bf16.mxu0 0
    %806 = vmatpush1.bf16.msra.mxu0 0
    %807 = vmatprep.subr.bf16.mxu0 0
    %808 = vmatpush1.bf16.msra.mxu0 0
    %809 = vmatprep.subr.bf16.mxu0 0
    %810 = vmatpush1.bf16.msra.mxu0 0
    %811 = vmatprep.subr.bf16.mxu0 0
    %812 = vmatpush1.bf16.msra.mxu0 0
    %813 = vmatprep.subr.bf16.mxu0 0
    %814 = vmatpush1.bf16.msra.mxu0 0
    %815 = vmatprep.subr.bf16.mxu0 0
    %816 = vmatpush1.bf16.msra.mxu0 0
    %817 = vmatprep.mubr.bf16.mxu0 0
    %818 = vmatmul.mubr.bf16.gmra.mrb[0].mxu0 %v780
    %v819 = vpop.f32.mrb[0].mxu0
    %v820 = vadd.f32 0.0, %v819
    %v821 = vpop.f32.mrb[0].mxu0
    %v822 = vpop.f32.mrb[0].mxu0
    %v823 = vpop.f32.mrb[0].mxu0
    %824 = vdwg.mxu0
    %825 = vrot.lane.b32.xlu0 %v161, 104
    %v826 = vpop.permute.xlu0 %825
    %827 = vrot.lane.b32.xlu0 %v162, 72
    %v828 = vpop.permute.xlu0 %827
    %v830 = vsel %vm166, %v826, 0
    %v833 = vsel %vm166, %v828, 0
    %835 = vmatprep.subr.bf16.mxu0 0
    %836 = vmatpush1.bf16.xpose.msra.mxu0 %v833
    %837 = vmatprep.subr.bf16.mxu0 0
    %838 = vmatpush1.bf16.xpose.msra.mxu0 0
    %839 = vmatprep.subr.bf16.mxu0 0
    %840 = vmatpush1.bf16.xpose.msra.mxu0 0
    %841 = vmatprep.subr.bf16.mxu0 0
    %842 = vmatpush1.bf16.xpose.msra.mxu0 0
    %843 = vmatprep.subr.bf16.mxu0 0
    %844 = vmatpush1.bf16.xpose.msra.mxu0 0
    %845 = vmatprep.subr.bf16.mxu0 0
    %846 = vmatpush1.bf16.xpose.msra.mxu0 0
    %847 = vmatprep.subr.bf16.mxu0 0
    %848 = vmatpush1.bf16.xpose.msra.mxu0 0
    %849 = vmatprep.subr.bf16.mxu0 0
    %850 = vmatpush1.bf16.xpose.msra.mxu0 0
    %851 = vmatprep.subr.bf16.mxu0 0
    %852 = vmatpush1.bf16.xpose.msra.mxu0 0
    %853 = vmatprep.subr.bf16.mxu0 0
    %854 = vmatpush1.bf16.xpose.msra.mxu0 0
    %855 = vmatprep.subr.bf16.mxu0 0
    %856 = vmatpush1.bf16.xpose.msra.mxu0 0
    %857 = vmatprep.subr.bf16.mxu0 0
    %858 = vmatpush1.bf16.xpose.msra.mxu0 0
    %859 = vmatprep.subr.bf16.mxu0 0
    %860 = vmatpush1.bf16.xpose.msra.mxu0 0
    %861 = vmatprep.subr.bf16.mxu0 0
    %862 = vmatpush1.bf16.xpose.msra.mxu0 0
    %863 = vmatprep.subr.bf16.mxu0 0
    %864 = vmatpush1.bf16.xpose.msra.mxu0 0
    %865 = vmatprep.subr.bf16.mxu0 0
    %866 = vmatpush1.bf16.xpose.msra.mxu0 0
    %867 = vmatprep.mubr.bf16.mxu0 0
    %868 = vmatmul.mubr.bf16.gmra.mrb[0].mxu0 %v830
    %v869 = vpop.f32.mrb[0].mxu0
    %v870 = vadd.f32 %v83, %v869
    %v871 = vpop.f32.mrb[0].mxu0
    %v872 = vpop.f32.mrb[0].mxu0
    %v873 = vpop.f32.mrb[0].mxu0
    %874 = vdwg.mxu0
    %v875 = vsel %vm166, %v870, -inf
    %876 = vmax.xlane.f32.xlu0 %v875
    %v877 = vpop.xlane.xlu0 %876
    %v878 = vsub.f32 %v870, %v877
    %v879 = vmul.f32 %v878, 1.442695
    %v880 = vpow.pop %v879
    %v881 = vsel %vm166, %v880, 0.0
    %882 = vadd.xlane.f32.xlu0 %v881
    %v883 = vpop.xlane.xlu0 %882
    %v884 = vrcp.pop %v883
    %v885 = vmul.f32 %v880, %v884
    %v886 = vpack.c.bf16 %v885, %v885
    %887 = vrot.lane.b32.xlu0 %v162, 40
    %v888 = vpop.permute.xlu0 %887
    %v890 = vsel %vm166, %v886, 0
    %v893 = vsel %vm230, %v888, 0
    %895 = vmatprep.subr.bf16.mxu0 0
    %896 = vmatpush1.bf16.msra.mxu0 %v893
    %897 = vmatprep.subr.bf16.mxu0 0
    %898 = vmatpush1.bf16.msra.mxu0 0
    %899 = vmatprep.subr.bf16.mxu0 0
    %900 = vmatpush1.bf16.msra.mxu0 0
    %901 = vmatprep.subr.bf16.mxu0 0
    %902 = vmatpush1.bf16.msra.mxu0 0
    %903 = vmatprep.subr.bf16.mxu0 0
    %904 = vmatpush1.bf16.msra.mxu0 0
    %905 = vmatprep.subr.bf16.mxu0 0
    %906 = vmatpush1.bf16.msra.mxu0 0
    %907 = vmatprep.subr.bf16.mxu0 0
    %908 = vmatpush1.bf16.msra.mxu0 0
    %909 = vmatprep.subr.bf16.mxu0 0
    %910 = vmatpush1.bf16.msra.mxu0 0
    %911 = vmatprep.subr.bf16.mxu0 0
    %912 = vmatpush1.bf16.msra.mxu0 0
    %913 = vmatprep.subr.bf16.mxu0 0
    %914 = vmatpush1.bf16.msra.mxu0 0
    %915 = vmatprep.subr.bf16.mxu0 0
    %916 = vmatpush1.bf16.msra.mxu0 0
    %917 = vmatprep.subr.bf16.mxu0 0
    %918 = vmatpush1.bf16.msra.mxu0 0
    %919 = vmatprep.subr.bf16.mxu0 0
    %920 = vmatpush1.bf16.msra.mxu0 0
    %921 = vmatprep.subr.bf16.mxu0 0
    %922 = vmatpush1.bf16.msra.mxu0 0
    %923 = vmatprep.subr.bf16.mxu0 0
    %924 = vmatpush1.bf16.msra.mxu0 0
    %925 = vmatprep.subr.bf16.mxu0 0
    %926 = vmatpush1.bf16.msra.mxu0 0
    %927 = vmatprep.mubr.bf16.mxu0 0
    %928 = vmatmul.mubr.bf16.gmra.mrb[0].mxu0 %v890
    %v929 = vpop.f32.mrb[0].mxu0
    %v930 = vadd.f32 0.0, %v929
    %v931 = vpop.f32.mrb[0].mxu0
    %v932 = vpop.f32.mrb[0].mxu0
    %v933 = vpop.f32.mrb[0].mxu0
    %934 = vdwg.mxu0
    %935 = vrot.lane.b32.xlu0 %v275, 104
    %v936 = vpop.permute.xlu0 %935
    %937 = vrot.lane.b32.xlu0 %v276, 72
    %v938 = vpop.permute.xlu0 %937
    %v940 = vsel %vm166, %v936, 0
    %v943 = vsel %vm166, %v938, 0
    %945 = vmatprep.subr.bf16.mxu0 0
    %946 = vmatpush1.bf16.xpose.msra.mxu0 %v943
    %947 = vmatprep.subr.bf16.mxu0 0
    %948 = vmatpush1.bf16.xpose.msra.mxu0 0
    %949 = vmatprep.subr.bf16.mxu0 0
    %950 = vmatpush1.bf16.xpose.msra.mxu0 0
    %951 = vmatprep.subr.bf16.mxu0 0
    %952 = vmatpush1.bf16.xpose.msra.mxu0 0
    %953 = vmatprep.subr.bf16.mxu0 0
    %954 = vmatpush1.bf16.xpose.msra.mxu0 0
    %955 = vmatprep.subr.bf16.mxu0 0
    %956 = vmatpush1.bf16.xpose.msra.mxu0 0
    %957 = vmatprep.subr.bf16.mxu0 0
    %958 = vmatpush1.bf16.xpose.msra.mxu0 0
    %959 = vmatprep.subr.bf16.mxu0 0
    %960 = vmatpush1.bf16.xpose.msra.mxu0 0
    %961 = vmatprep.subr.bf16.mxu0 0
    %962 = vmatpush1.bf16.xpose.msra.mxu0 0
    %963 = vmatprep.subr.bf16.mxu0 0
    %964 = vmatpush1.bf16.xpose.msra.mxu0 0
    %965 = vmatprep.subr.bf16.mxu0 0
    %966 = vmatpush1.bf16.xpose.msra.mxu0 0
    %967 = vmatprep.subr.bf16.mxu0 0
    %968 = vmatpush1.bf16.xpose.msra.mxu0 0
    %969 = vmatprep.subr.bf16.mxu0 0
    %970 = vmatpush1.bf16.xpose.msra.mxu0 0
    %971 = vmatprep.subr.bf16.mxu0 0
    %972 = vmatpush1.bf16.xpose.msra.mxu0 0
    %973 = vmatprep.subr.bf16.mxu0 0
    %974 = vmatpush1.bf16.xpose.msra.mxu0 0
    %975 = vmatprep.subr.bf16.mxu0 0
    %976 = vmatpush1.bf16.xpose.msra.mxu0 0
    %977 = vmatprep.mubr.bf16.mxu0 0
    %978 = vmatmul.mubr.bf16.gmra.mrb[0].mxu0 %v940
    %v979 = vpop.f32.mrb[0].mxu0
    %v980 = vadd.f32 %v83, %v979
    %v981 = vpop.f32.mrb[0].mxu0
    %v982 = vpop.f32.mrb[0].mxu0
    %v983 = vpop.f32.mrb[0].mxu0
    %984 = vdwg.mxu0
    %v985 = vsel %vm166, %v980, -inf
    %986 = vmax.xlane.f32.xlu0 %v985
    %v987 = vpop.xlane.xlu0 %986
    %v988 = vsub.f32 %v980, %v987
    %v989 = vmul.f32 %v988, 1.442695
    %v990 = vpow.pop %v989
    %v991 = vsel %vm166, %v990, 0.0
    %992 = vadd.xlane.f32.xlu0 %v991
    %v993 = vpop.xlane.xlu0 %992
    %v994 = vrcp.pop %v993
    %v995 = vmul.f32 %v990, %v994
    %v996 = vpack.c.bf16 %v995, %v995
    %997 = vrot.lane.b32.xlu0 %v276, 40
    %v998 = vpop.permute.xlu0 %997
    %v1000 = vsel %vm166, %v996, 0
    %v1003 = vsel %vm230, %v998, 0
    %1005 = vmatprep.subr.bf16.mxu0 0
    %1006 = vmatpush1.bf16.msra.mxu0 %v1003
    %1007 = vmatprep.subr.bf16.mxu0 0
    %1008 = vmatpush1.bf16.msra.mxu0 0
    %1009 = vmatprep.subr.bf16.mxu0 0
    %1010 = vmatpush1.bf16.msra.mxu0 0
    %1011 = vmatprep.subr.bf16.mxu0 0
    %1012 = vmatpush1.bf16.msra.mxu0 0
    %1013 = vmatprep.subr.bf16.mxu0 0
    %1014 = vmatpush1.bf16.msra.mxu0 0
    %1015 = vmatprep.subr.bf16.mxu0 0
    %1016 = vmatpush1.bf16.msra.mxu0 0
    %1017 = vmatprep.subr.bf16.mxu0 0
    %1018 = vmatpush1.bf16.msra.mxu0 0
    %1019 = vmatprep.subr.bf16.mxu0 0
    %1020 = vmatpush1.bf16.msra.mxu0 0
    %1021 = vmatprep.subr.bf16.mxu0 0
    %1022 = vmatpush1.bf16.msra.mxu0 0
    %1023 = vmatprep.subr.bf16.mxu0 0
    %1024 = vmatpush1.bf16.msra.mxu0 0
    %1025 = vmatprep.subr.bf16.mxu0 0
    %1026 = vmatpush1.bf16.msra.mxu0 0
    %1027 = vmatprep.subr.bf16.mxu0 0
    %1028 = vmatpush1.bf16.msra.mxu0 0
    %1029 = vmatprep.subr.bf16.mxu0 0
    %1030 = vmatpush1.bf16.msra.mxu0 0
    %1031 = vmatprep.subr.bf16.mxu0 0
    %1032 = vmatpush1.bf16.msra.mxu0 0
    %1033 = vmatprep.subr.bf16.mxu0 0
    %1034 = vmatpush1.bf16.msra.mxu0 0
    %1035 = vmatprep.subr.bf16.mxu0 0
    %1036 = vmatpush1.bf16.msra.mxu0 0
    %1037 = vmatprep.mubr.bf16.mxu0 0
    %1038 = vmatmul.mubr.bf16.gmra.mrb[0].mxu0 %v1000
    %v1039 = vpop.f32.mrb[0].mxu0
    %v1040 = vadd.f32 0.0, %v1039
    %v1041 = vpop.f32.mrb[0].mxu0
    %v1042 = vpop.f32.mrb[0].mxu0
    %v1043 = vpop.f32.mrb[0].mxu0
    %1044 = vdwg.mxu0
    %1047 = vrot.lane.b32.xlu0 %v490, 8
    %v1048 = vpop.permute.xlu0 %1047
    %1049 = vrot.lane.b32.xlu0 %v600, 8
    %v1050 = vpop.permute.xlu0 %1049
    %1055 = vrot.lane.b32.xlu0 %v710, 16
    %v1056 = vpop.permute.xlu0 %1055
    %1057 = vrot.lane.b32.xlu0 %v820, 16
    %v1058 = vpop.permute.xlu0 %1057
    %1063 = vrot.lane.b32.xlu0 %v930, 24
    %v1064 = vpop.permute.xlu0 %1063
    %1065 = vrot.lane.b32.xlu0 %v1040, 24
    %v1066 = vpop.permute.xlu0 %1065
    %v1069 = vsel %vm166, %v269, %v1048
    %v1070 = vsel %vm166, %v380, %v1050
    %vm1071 = vcmask 130048
    %v1072 = vsel %vm1071, %v1069, %v1056
    %v1073 = vsel %vm1071, %v1070, %v1058
    %vm1074 = vcmask 195584
    %v1075 = vsel %vm1074, %v1072, %v1064
    %v1076 = vsel %vm1074, %v1073, %v1066
    %v1077 = vpack.c.bf16 %v1076, %v1075
    %v1079 = vlaneseq
    %v1080 = vshrl.u32 %v1079, 7
    %v1081 = vsub.s32 0, %v1080
    %v1082 = vrot.slane %v160, %v1081
    %v1088 = vunpack.c.l.b16 %v156
    %v1089 = vunpack.c.l.b16 %v157
    %v1090 = vunpack.c.l.b16 %v158
    %v1091 = vunpack.c.l.b16 %v159
    %v1092 = vpack.c.b16 %v1089, %v1088
    %v1093 = vpack.c.b16 %v1091, %v1090
    %v1097 = vsel %vm109, %v1077, 0
    %1099 = vmatprep.subr.bf16.mxu0 0
    %1100 = vmatpush1.bf16.msra.mxu0 %v1092
    %1101 = vmatprep.subr.bf16.mxu0 0
    %1102 = vmatpush1.bf16.msra.mxu0 %v1093
    %1103 = vmatprep.subr.bf16.mxu0 0
    %1104 = vmatpush1.bf16.msra.mxu0 0
    %1105 = vmatprep.subr.bf16.mxu0 0
    %1106 = vmatpush1.bf16.msra.mxu0 0
    %1107 = vmatprep.subr.bf16.mxu0 0
    %1108 = vmatpush1.bf16.msra.mxu0 0
    %1109 = vmatprep.subr.bf16.mxu0 0
    %1110 = vmatpush1.bf16.msra.mxu0 0
    %1111 = vmatprep.subr.bf16.mxu0 0
    %1112 = vmatpush1.bf16.msra.mxu0 0
    %1113 = vmatprep.subr.bf16.mxu0 0
    %1114 = vmatpush1.bf16.msra.mxu0 0
    %1115 = vmatprep.subr.bf16.mxu0 0
    %1116 = vmatpush1.bf16.msra.mxu0 0
    %1117 = vmatprep.subr.bf16.mxu0 0
    %1118 = vmatpush1.bf16.msra.mxu0 0
    %1119 = vmatprep.subr.bf16.mxu0 0
    %1120 = vmatpush1.bf16.msra.mxu0 0
    %1121 = vmatprep.subr.bf16.mxu0 0
    %1122 = vmatpush1.bf16.msra.mxu0 0
    %1123 = vmatprep.subr.bf16.mxu0 0
    %1124 = vmatpush1.bf16.msra.mxu0 0
    %1125 = vmatprep.subr.bf16.mxu0 0
    %1126 = vmatpush1.bf16.msra.mxu0 0
    %1127 = vmatprep.subr.bf16.mxu0 0
    %1128 = vmatpush1.bf16.msra.mxu0 0
    %1129 = vmatprep.subr.bf16.mxu0 0
    %1130 = vmatpush1.bf16.msra.mxu0 0
    %1131 = vmatprep.mubr.bf16.mxu0 0
    %1132 = vmatmul.mubr.bf16.gmra.mrb[0].mxu0 %v1097
    %v1133 = vpop.f32.mrb[0].mxu0
    %v1134 = vadd.f32 %v1082, %v1133
    %v1135 = vpop.f32.mrb[0].mxu0
    %v1136 = vpop.f32.mrb[0].mxu0
    %v1137 = vadd.f32 %v1082, %v1136
    %v1138 = vpop.f32.mrb[0].mxu0
    %1139 = vdwg.mxu0
    %v1140 = vadd.f32 %v79, %v1134
    %v1141 = vadd.f32 %v80, %v1137
    %v1142 = vld [vmem:[%s18] sm:$0x1]
    %v1143 = vld [vmem:[%s19] sm:$0x1]
    %v1144 = vsel %vm109, %v1140, 0.0
    %1145 = vadd.xlane.f32.xlu0 %v1144
    %v1146 = vpop.xlane.xlu0 %1145
    %v1147 = vsel %vm109, %v1141, 0.0
    %1148 = vadd.xlane.f32.xlu0 %v1147
    %v1149 = vpop.xlane.xlu0 %1148
    %v1150 = vrcp.pop 32.0
    %v1151 = vmul.f32 %v1146, %v1150
    %v1152 = vmul.f32 %v1149, %v1150
    %v1153 = vsub.f32 %v1140, %v1151
    %v1154 = vsub.f32 %v1141, %v1152
    %v1155 = vmul.f32 %v1153, %v1153
    %v1156 = vmul.f32 %v1154, %v1154
    %v1157 = vsel %vm109, %v1155, 0.0
    %1158 = vadd.xlane.f32.xlu0 %v1157
    %v1159 = vpop.xlane.xlu0 %1158
    %v1160 = vsel %vm109, %v1156, 0.0
    %1161 = vadd.xlane.f32.xlu0 %v1160
    %v1162 = vpop.xlane.xlu0 %1161
    %v1163 = vmul.f32 %v1159, %v1150
    %v1164 = vmul.f32 %v1162, %v1150
    %v1165 = vadd.f32 %v1163, 1e-05
    %v1166 = vadd.f32 %v1164, 1e-05
    %v1167 = vrsqrt.pop %v1165
    %v1168 = vrsqrt.pop %v1166
    %v1169 = vmul.f32 %v1153, %v1167
    %v1170 = vmul.f32 %v1154, %v1168
    %v1172 = vlaneseq
    %v1173 = vshrl.u32 %v1172, 7
    %v1174 = vsub.s32 0, %v1173
    %v1175 = vrot.slane %v1142, %v1174
    %v1177 = vmul.f32 %v1169, %v1175
    %v1178 = vmul.f32 %v1170, %v1175
    %v1180 = vlaneseq
    %v1181 = vshrl.u32 %v1180, 7
    %v1182 = vsub.s32 0, %v1181
    %v1183 = vrot.slane %v1143, %v1182
    %v1185 = vadd.f32 %v1177, %v1183
    %v1186 = vadd.f32 %v1178, %v1183
    %v1187 = vld [vmem:[%s8] sm:$0xf]
    %v1188 = vld [vmem:[%s8 + $0x4] sm:$0xf]
    %v1189 = vld [vmem:[%s8 + $0x8] sm:$0xf]
    %v1190 = vld [vmem:[%s8 + $0xc] sm:$0xf]
    %v1191 = vpack.c.bf16 %v1186, %v1185
    %v1192 = vld [vmem:[%s9] sm:$0x1]
    %v1194 = vlaneseq
    %v1195 = vshrl.u32 %v1194, 7
    %v1196 = vsub.s32 0, %v1195
    %v1197 = vrot.slane %v1192, %v1196
    %v1203 = vunpack.c.l.b16 %v1187
    %v1204 = vunpack.c.l.b16 %v1188
    %v1205 = vunpack.c.l.b16 %v1189
    %v1206 = vunpack.c.l.b16 %v1190
    %v1207 = vpack.c.b16 %v1204, %v1203
    %v1208 = vpack.c.b16 %v1206, %v1205
    %v1212 = vsel %vm109, %v1191, 0
    %1214 = vmatprep.subr.bf16.mxu0 0
    %1215 = vmatpush1.bf16.msra.mxu0 %v1207
    %1216 = vmatprep.subr.bf16.mxu0 0
    %1217 = vmatpush1.bf16.msra.mxu0 %v1208
    %1218 = vmatprep.subr.bf16.mxu0 0
    %1219 = vmatpush1.bf16.msra.mxu0 0
    %1220 = vmatprep.subr.bf16.mxu0 0
    %1221 = vmatpush1.bf16.msra.mxu0 0
    %1222 = vmatprep.subr.bf16.mxu0 0
    %1223 = vmatpush1.bf16.msra.mxu0 0
    %1224 = vmatprep.subr.bf16.mxu0 0
    %1225 = vmatpush1.bf16.msra.mxu0 0
    %1226 = vmatprep.subr.bf16.mxu0 0
    %1227 = vmatpush1.bf16.msra.mxu0 0
    %1228 = vmatprep.subr.bf16.mxu0 0
    %1229 = vmatpush1.bf16.msra.mxu0 0
    %1230 = vmatprep.subr.bf16.mxu0 0
    %1231 = vmatpush1.bf16.msra.mxu0 0
    %1232 = vmatprep.subr.bf16.mxu0 0
    %1233 = vmatpush1.bf16.msra.mxu0 0
    %1234 = vmatprep.subr.bf16.mxu0 0
    %1235 = vmatpush1.bf16.msra.mxu0 0
    %1236 = vmatprep.subr.bf16.mxu0 0
    %1237 = vmatpush1.bf16.msra.mxu0 0
    %1238 = vmatprep.subr.bf16.mxu0 0
    %1239 = vmatpush1.bf16.msra.mxu0 0
    %1240 = vmatprep.subr.bf16.mxu0 0
    %1241 = vmatpush1.bf16.msra.mxu0 0
    %1242 = vmatprep.subr.bf16.mxu0 0
    %1243 = vmatpush1.bf16.msra.mxu0 0
    %1244 = vmatprep.subr.bf16.mxu0 0
    %1245 = vmatpush1.bf16.msra.mxu0 0
    %1246 = vmatprep.mubr.bf16.mxu0 0
    %1247 = vmatmul.mubr.bf16.gmra.mrb[0].mxu0 %v1212
    %v1248 = vpop.f32.mrb[0].mxu0
    %v1249 = vadd.f32 %v1197, %v1248
    %v1250 = vpop.f32.mrb[0].mxu0
    %v1251 = vpop.f32.mrb[0].mxu0
    %v1252 = vadd.f32 %v1197, %v1251
    %v1253 = vpop.f32.mrb[0].mxu0
    %1254 = vdwg.mxu0
    %v1255 = vmul.f32 %v1249, 0.35355338
    %v1256 = vmul.f32 %v1252, 0.35355338
    %v1257 = vld [vmem:[%s10] sm:$0xf]
    %v1258 = vld [vmem:[%s10 + $0x4] sm:$0xf]
    %v1259 = vld [vmem:[%s10 + $0x8] sm:$0xf]
    %v1260 = vld [vmem:[%s10 + $0xc] sm:$0xf]
    %v1261 = vpack.c.bf16 %v82, %v81
    %v1262 = vld [vmem:[%s11] sm:$0x1]
    %v1264 = vlaneseq
    %v1265 = vshrl.u32 %v1264, 7
    %v1266 = vsub.s32 0, %v1265
    %v1267 = vrot.slane %v1262, %v1266
    %v1273 = vunpack.c.l.b16 %v1257
    %v1274 = vunpack.c.l.b16 %v1258
    %v1275 = vunpack.c.l.b16 %v1259
    %v1276 = vunpack.c.l.b16 %v1260
    %v1277 = vpack.c.b16 %v1274, %v1273
    %v1278 = vpack.c.b16 %v1276, %v1275
    %v1282 = vsel %vm109, %v1261, 0
    %1284 = vmatprep.subr.bf16.mxu0 0
    %1285 = vmatpush1.bf16.msra.mxu0 %v1277
    %1286 = vmatprep.subr.bf16.mxu0 0
    %1287 = vmatpush1.bf16.msra.mxu0 %v1278
    %1288 = vmatprep.subr.bf16.mxu0 0
    %1289 = vmatpush1.bf16.msra.mxu0 0
    %1290 = vmatprep.subr.bf16.mxu0 0
    %1291 = vmatpush1.bf16.msra.mxu0 0
    %1292 = vmatprep.subr.bf16.mxu0 0
    %1293 = vmatpush1.bf16.msra.mxu0 0
    %1294 = vmatprep.subr.bf16.mxu0 0
    %1295 = vmatpush1.bf16.msra.mxu0 0
    %1296 = vmatprep.subr.bf16.mxu0 0
    %1297 = vmatpush1.bf16.msra.mxu0 0
    %1298 = vmatprep.subr.bf16.mxu0 0
    %1299 = vmatpush1.bf16.msra.mxu0 0
    %1300 = vmatprep.subr.bf16.mxu0 0
    %1301 = vmatpush1.bf16.msra.mxu0 0
    %1302 = vmatprep.subr.bf16.mxu0 0
    %1303 = vmatpush1.bf16.msra.mxu0 0
    %1304 = vmatprep.subr.bf16.mxu0 0
    %1305 = vmatpush1.bf16.msra.mxu0 0
    %1306 = vmatprep.subr.bf16.mxu0 0
    %1307 = vmatpush1.bf16.msra.mxu0 0
    %1308 = vmatprep.subr.bf16.mxu0 0
    %1309 = vmatpush1.bf16.msra.mxu0 0
    %1310 = vmatprep.subr.bf16.mxu0 0
    %1311 = vmatpush1.bf16.msra.mxu0 0
    %1312 = vmatprep.subr.bf16.mxu0 0
    %1313 = vmatpush1.bf16.msra.mxu0 0
    %1314 = vmatprep.subr.bf16.mxu0 0
    %1315 = vmatpush1.bf16.msra.mxu0 0
    %1316 = vmatprep.mubr.bf16.mxu0 0
    %1317 = vmatmul.mubr.bf16.gmra.mrb[0].mxu0 %v1282
    %v1318 = vpop.f32.mrb[0].mxu0
    %v1319 = vadd.f32 %v1267, %v1318
    %v1320 = vpop.f32.mrb[0].mxu0
    %v1321 = vpop.f32.mrb[0].mxu0
    %v1322 = vadd.f32 %v1267, %v1321
    %v1323 = vpop.f32.mrb[0].mxu0
    %1324 = vdwg.mxu0
    %v1325 = vld [vmem:[%s12] sm:$0xf]
    %v1326 = vld [vmem:[%s12 + $0x4] sm:$0xf]
    %v1327 = vld [vmem:[%s12 + $0x8] sm:$0xf]
    %v1328 = vld [vmem:[%s12 + $0xc] sm:$0xf]
    %v1329 = vld [vmem:[%s13] sm:$0x1]
    %v1330 = vpack.c.bf16 %v1256, %v1255
    %v1331 = vpack.c.bf16 %v1322, %v1319
    %v1333 = vsel %vm166, %v1330, 0
    %v1336 = vsel %vm166, %v1331, 0
    %1338 = vmatprep.subr.bf16.mxu0 0
    %1339 = vmatpush1.bf16.xpose.msra.mxu0 %v1336
    %1340 = vmatprep.subr.bf16.mxu0 0
    %1341 = vmatpush1.bf16.xpose.msra.mxu0 0
    %1342 = vmatprep.subr.bf16.mxu0 0
    %1343 = vmatpush1.bf16.xpose.msra.mxu0 0
    %1344 = vmatprep.subr.bf16.mxu0 0
    %1345 = vmatpush1.bf16.xpose.msra.mxu0 0
    %1346 = vmatprep.subr.bf16.mxu0 0
    %1347 = vmatpush1.bf16.xpose.msra.mxu0 0
    %1348 = vmatprep.subr.bf16.mxu0 0
    %1349 = vmatpush1.bf16.xpose.msra.mxu0 0
    %1350 = vmatprep.subr.bf16.mxu0 0
    %1351 = vmatpush1.bf16.xpose.msra.mxu0 0
    %1352 = vmatprep.subr.bf16.mxu0 0
    %1353 = vmatpush1.bf16.xpose.msra.mxu0 0
    %1354 = vmatprep.subr.bf16.mxu0 0
    %1355 = vmatpush1.bf16.xpose.msra.mxu0 0
    %1356 = vmatprep.subr.bf16.mxu0 0
    %1357 = vmatpush1.bf16.xpose.msra.mxu0 0
    %1358 = vmatprep.subr.bf16.mxu0 0
    %1359 = vmatpush1.bf16.xpose.msra.mxu0 0
    %1360 = vmatprep.subr.bf16.mxu0 0
    %1361 = vmatpush1.bf16.xpose.msra.mxu0 0
    %1362 = vmatprep.subr.bf16.mxu0 0
    %1363 = vmatpush1.bf16.xpose.msra.mxu0 0
    %1364 = vmatprep.subr.bf16.mxu0 0
    %1365 = vmatpush1.bf16.xpose.msra.mxu0 0
    %1366 = vmatprep.subr.bf16.mxu0 0
    %1367 = vmatpush1.bf16.xpose.msra.mxu0 0
    %1368 = vmatprep.subr.bf16.mxu0 0
    %1369 = vmatpush1.bf16.xpose.msra.mxu0 0
    %1370 = vmatprep.mubr.bf16.mxu0 0
    %1371 = vmatmul.mubr.bf16.gmra.mrb[0].mxu0 %v1333
    %v1372 = vpop.f32.mrb[0].mxu0
    %v1373 = vadd.f32 %v84, %v1372
    %v1374 = vpop.f32.mrb[0].mxu0
    %v1375 = vpop.f32.mrb[0].mxu0
    %v1376 = vpop.f32.mrb[0].mxu0
    %1377 = vdwg.mxu0
    %v1378 = vsel %vm166, %v1373, -inf
    %1379 = vmax.xlane.f32.xlu0 %v1378
    %v1380 = vpop.xlane.xlu0 %1379
    %v1381 = vsub.f32 %v1373, %v1380
    %v1382 = vmul.f32 %v1381, 1.442695
    %v1383 = vpow.pop %v1382
    %v1384 = vsel %vm166, %v1383, 0.0
    %1385 = vadd.xlane.f32.xlu0 %v1384
    %v1386 = vpop.xlane.xlu0 %1385
    %v1387 = vrcp.pop %v1386
    %v1388 = vmul.f32 %v1383, %v1387
    %v1389 = vpack.c.bf16 %v1388, %v1388
    %1391 = vrot.lane.b32.xlu0 %v1331, 96
    %v1392 = vpop.permute.xlu0 %1391
    %v1394 = vsel %vm166, %v1389, 0
    %v1397 = vsel %vm230, %v1392, 0
    %1399 = vmatprep.subr.bf16.mxu0 0
    %1400 = vmatpush1.bf16.msra.mxu0 %v1397
    %1401 = vmatprep.subr.bf16.mxu0 0
    %1402 = vmatpush1.bf16.msra.mxu0 0
    %1403 = vmatprep.subr.bf16.mxu0 0
    %1404 = vmatpush1.bf16.msra.mxu0 0
    %1405 = vmatprep.subr.bf16.mxu0 0
    %1406 = vmatpush1.bf16.msra.mxu0 0
    %1407 = vmatprep.subr.bf16.mxu0 0
    %1408 = vmatpush1.bf16.msra.mxu0 0
    %1409 = vmatprep.subr.bf16.mxu0 0
    %1410 = vmatpush1.bf16.msra.mxu0 0
    %1411 = vmatprep.subr.bf16.mxu0 0
    %1412 = vmatpush1.bf16.msra.mxu0 0
    %1413 = vmatprep.subr.bf16.mxu0 0
    %1414 = vmatpush1.bf16.msra.mxu0 0
    %1415 = vmatprep.subr.bf16.mxu0 0
    %1416 = vmatpush1.bf16.msra.mxu0 0
    %1417 = vmatprep.subr.bf16.mxu0 0
    %1418 = vmatpush1.bf16.msra.mxu0 0
    %1419 = vmatprep.subr.bf16.mxu0 0
    %1420 = vmatpush1.bf16.msra.mxu0 0
    %1421 = vmatprep.subr.bf16.mxu0 0
    %1422 = vmatpush1.bf16.msra.mxu0 0
    %1423 = vmatprep.subr.bf16.mxu0 0
    %1424 = vmatpush1.bf16.msra.mxu0 0
    %1425 = vmatprep.subr.bf16.mxu0 0
    %1426 = vmatpush1.bf16.msra.mxu0 0
    %1427 = vmatprep.subr.bf16.mxu0 0
    %1428 = vmatpush1.bf16.msra.mxu0 0
    %1429 = vmatprep.subr.bf16.mxu0 0
    %1430 = vmatpush1.bf16.msra.mxu0 0
    %1431 = vmatprep.mubr.bf16.mxu0 0
    %1432 = vmatmul.mubr.bf16.gmra.mrb[0].mxu0 %v1394
    %v1433 = vpop.f32.mrb[0].mxu0
    %v1434 = vadd.f32 0.0, %v1433
    %v1435 = vpop.f32.mrb[0].mxu0
    %v1436 = vpop.f32.mrb[0].mxu0
    %v1437 = vpop.f32.mrb[0].mxu0
    %1438 = vdwg.mxu0
    %v1440 = vrot.slane %v1330, 4
    %v1441 = vrot.slane %v1331, 4
    %v1443 = vsel %vm166, %v1440, 0
    %v1446 = vsel %vm166, %v1441, 0
    %1448 = vmatprep.subr.bf16.mxu0 0
    %1449 = vmatpush1.bf16.xpose.msra.mxu0 %v1446
    %1450 = vmatprep.subr.bf16.mxu0 0
    %1451 = vmatpush1.bf16.xpose.msra.mxu0 0
    %1452 = vmatprep.subr.bf16.mxu0 0
    %1453 = vmatpush1.bf16.xpose.msra.mxu0 0
    %1454 = vmatprep.subr.bf16.mxu0 0
    %1455 = vmatpush1.bf16.xpose.msra.mxu0 0
    %1456 = vmatprep.subr.bf16.mxu0 0
    %1457 = vmatpush1.bf16.xpose.msra.mxu0 0
    %1458 = vmatprep.subr.bf16.mxu0 0
    %1459 = vmatpush1.bf16.xpose.msra.mxu0 0
    %1460 = vmatprep.subr.bf16.mxu0 0
    %1461 = vmatpush1.bf16.xpose.msra.mxu0 0
    %1462 = vmatprep.subr.bf16.mxu0 0
    %1463 = vmatpush1.bf16.xpose.msra.mxu0 0
    %1464 = vmatprep.subr.bf16.mxu0 0
    %1465 = vmatpush1.bf16.xpose.msra.mxu0 0
    %1466 = vmatprep.subr.bf16.mxu0 0
    %1467 = vmatpush1.bf16.xpose.msra.mxu0 0
    %1468 = vmatprep.subr.bf16.mxu0 0
    %1469 = vmatpush1.bf16.xpose.msra.mxu0 0
    %1470 = vmatprep.subr.bf16.mxu0 0
    %1471 = vmatpush1.bf16.xpose.msra.mxu0 0
    %1472 = vmatprep.subr.bf16.mxu0 0
    %1473 = vmatpush1.bf16.xpose.msra.mxu0 0
    %1474 = vmatprep.subr.bf16.mxu0 0
    %1475 = vmatpush1.bf16.xpose.msra.mxu0 0
    %1476 = vmatprep.subr.bf16.mxu0 0
    %1477 = vmatpush1.bf16.xpose.msra.mxu0 0
    %1478 = vmatprep.subr.bf16.mxu0 0
    %1479 = vmatpush1.bf16.xpose.msra.mxu0 0
    %1480 = vmatprep.mubr.bf16.mxu0 0
    %1481 = vmatmul.mubr.bf16.gmra.mrb[0].mxu0 %v1443
    %v1482 = vpop.f32.mrb[0].mxu0
    %v1483 = vadd.f32 %v84, %v1482
    %v1484 = vpop.f32.mrb[0].mxu0
    %v1485 = vpop.f32.mrb[0].mxu0
    %v1486 = vpop.f32.mrb[0].mxu0
    %1487 = vdwg.mxu0
    %v1488 = vsel %vm166, %v1483, -inf
    %1489 = vmax.xlane.f32.xlu0 %v1488
    %v1490 = vpop.xlane.xlu0 %1489
    %v1491 = vsub.f32 %v1483, %v1490
    %v1492 = vmul.f32 %v1491, 1.442695
    %v1493 = vpow.pop %v1492
    %v1494 = vsel %vm166, %v1493, 0.0
    %1495 = vadd.xlane.f32.xlu0 %v1494
    %v1496 = vpop.xlane.xlu0 %1495
    %v1497 = vrcp.pop %v1496
    %v1498 = vmul.f32 %v1493, %v1497
    %v1499 = vpack.c.bf16 %v1498, %v1498
    %1500 = vrot.lane.b32.xlu0 %v1441, 96
    %v1501 = vpop.permute.xlu0 %1500
    %v1503 = vsel %vm166, %v1499, 0
    %v1506 = vsel %vm230, %v1501, 0
    %1508 = vmatprep.subr.bf16.mxu0 0
    %1509 = vmatpush1.bf16.msra.mxu0 %v1506
    %1510 = vmatprep.subr.bf16.mxu0 0
    %1511 = vmatpush1.bf16.msra.mxu0 0
    %1512 = vmatprep.subr.bf16.mxu0 0
    %1513 = vmatpush1.bf16.msra.mxu0 0
    %1514 = vmatprep.subr.bf16.mxu0 0
    %1515 = vmatpush1.bf16.msra.mxu0 0
    %1516 = vmatprep.subr.bf16.mxu0 0
    %1517 = vmatpush1.bf16.msra.mxu0 0
    %1518 = vmatprep.subr.bf16.mxu0 0
    %1519 = vmatpush1.bf16.msra.mxu0 0
    %1520 = vmatprep.subr.bf16.mxu0 0
    %1521 = vmatpush1.bf16.msra.mxu0 0
    %1522 = vmatprep.subr.bf16.mxu0 0
    %1523 = vmatpush1.bf16.msra.mxu0 0
    %1524 = vmatprep.subr.bf16.mxu0 0
    %1525 = vmatpush1.bf16.msra.mxu0 0
    %1526 = vmatprep.subr.bf16.mxu0 0
    %1527 = vmatpush1.bf16.msra.mxu0 0
    %1528 = vmatprep.subr.bf16.mxu0 0
    %1529 = vmatpush1.bf16.msra.mxu0 0
    %1530 = vmatprep.subr.bf16.mxu0 0
    %1531 = vmatpush1.bf16.msra.mxu0 0
    %1532 = vmatprep.subr.bf16.mxu0 0
    %1533 = vmatpush1.bf16.msra.mxu0 0
    %1534 = vmatprep.subr.bf16.mxu0 0
    %1535 = vmatpush1.bf16.msra.mxu0 0
    %1536 = vmatprep.subr.bf16.mxu0 0
    %1537 = vmatpush1.bf16.msra.mxu0 0
    %1538 = vmatprep.subr.bf16.mxu0 0
    %1539 = vmatpush1.bf16.msra.mxu0 0
    %1540 = vmatprep.mubr.bf16.mxu0 0
    %1541 = vmatmul.mubr.bf16.gmra.mrb[0].mxu0 %v1503
    %v1542 = vpop.f32.mrb[0].mxu0
    %v1543 = vadd.f32 0.0, %v1542
    %v1544 = vpop.f32.mrb[0].mxu0
    %v1545 = vpop.f32.mrb[0].mxu0
    %v1546 = vpop.f32.mrb[0].mxu0
    %1547 = vdwg.mxu0
    %1548 = vrot.lane.b32.xlu0 %v1330, 120
    %v1549 = vpop.permute.xlu0 %1548
    %1550 = vrot.lane.b32.xlu0 %v1331, 120
    %v1551 = vpop.permute.xlu0 %1550
    %v1553 = vsel %vm166, %v1549, 0
    %v1556 = vsel %vm166, %v1551, 0
    %1558 = vmatprep.subr.bf16.mxu0 0
    %1559 = vmatpush1.bf16.xpose.msra.mxu0 %v1556
    %1560 = vmatprep.subr.bf16.mxu0 0
    %1561 = vmatpush1.bf16.xpose.msra.mxu0 0
    %1562 = vmatprep.subr.bf16.mxu0 0
    %1563 = vmatpush1.bf16.xpose.msra.mxu0 0
    %1564 = vmatprep.subr.bf16.mxu0 0
    %1565 = vmatpush1.bf16.xpose.msra.mxu0 0
    %1566 = vmatprep.subr.bf16.mxu0 0
    %1567 = vmatpush1.bf16.xpose.msra.mxu0 0
    %1568 = vmatprep.subr.bf16.mxu0 0
    %1569 = vmatpush1.bf16.xpose.msra.mxu0 0
    %1570 = vmatprep.subr.bf16.mxu0 0
    %1571 = vmatpush1.bf16.xpose.msra.mxu0 0
    %1572 = vmatprep.subr.bf16.mxu0 0
    %1573 = vmatpush1.bf16.xpose.msra.mxu0 0
    %1574 = vmatprep.subr.bf16.mxu0 0
    %1575 = vmatpush1.bf16.xpose.msra.mxu0 0
    %1576 = vmatprep.subr.bf16.mxu0 0
    %1577 = vmatpush1.bf16.xpose.msra.mxu0 0
    %1578 = vmatprep.subr.bf16.mxu0 0
    %1579 = vmatpush1.bf16.xpose.msra.mxu0 0
    %1580 = vmatprep.subr.bf16.mxu0 0
    %1581 = vmatpush1.bf16.xpose.msra.mxu0 0
    %1582 = vmatprep.subr.bf16.mxu0 0
    %1583 = vmatpush1.bf16.xpose.msra.mxu0 0
    %1584 = vmatprep.subr.bf16.mxu0 0
    %1585 = vmatpush1.bf16.xpose.msra.mxu0 0
    %1586 = vmatprep.subr.bf16.mxu0 0
    %1587 = vmatpush1.bf16.xpose.msra.mxu0 0
    %1588 = vmatprep.subr.bf16.mxu0 0
    %1589 = vmatpush1.bf16.xpose.msra.mxu0 0
    %1590 = vmatprep.mubr.bf16.mxu0 0
    %1591 = vmatmul.mubr.bf16.gmra.mrb[0].mxu0 %v1553
    %v1592 = vpop.f32.mrb[0].mxu0
    %v1593 = vadd.f32 %v84, %v1592
    %v1594 = vpop.f32.mrb[0].mxu0
    %v1595 = vpop.f32.mrb[0].mxu0
    %v1596 = vpop.f32.mrb[0].mxu0
    %1597 = vdwg.mxu0
    %v1598 = vsel %vm166, %v1593, -inf
    %1599 = vmax.xlane.f32.xlu0 %v1598
    %v1600 = vpop.xlane.xlu0 %1599
    %v1601 = vsub.f32 %v1593, %v1600
    %v1602 = vmul.f32 %v1601, 1.442695
    %v1603 = vpow.pop %v1602
    %v1604 = vsel %vm166, %v1603, 0.0
    %1605 = vadd.xlane.f32.xlu0 %v1604
    %v1606 = vpop.xlane.xlu0 %1605
    %v1607 = vrcp.pop %v1606
    %v1608 = vmul.f32 %v1603, %v1607
    %v1609 = vpack.c.bf16 %v1608, %v1608
    %1610 = vrot.lane.b32.xlu0 %v1331, 88
    %v1611 = vpop.permute.xlu0 %1610
    %v1613 = vsel %vm166, %v1609, 0
    %v1616 = vsel %vm230, %v1611, 0
    %1618 = vmatprep.subr.bf16.mxu0 0
    %1619 = vmatpush1.bf16.msra.mxu0 %v1616
    %1620 = vmatprep.subr.bf16.mxu0 0
    %1621 = vmatpush1.bf16.msra.mxu0 0
    %1622 = vmatprep.subr.bf16.mxu0 0
    %1623 = vmatpush1.bf16.msra.mxu0 0
    %1624 = vmatprep.subr.bf16.mxu0 0
    %1625 = vmatpush1.bf16.msra.mxu0 0
    %1626 = vmatprep.subr.bf16.mxu0 0
    %1627 = vmatpush1.bf16.msra.mxu0 0
    %1628 = vmatprep.subr.bf16.mxu0 0
    %1629 = vmatpush1.bf16.msra.mxu0 0
    %1630 = vmatprep.subr.bf16.mxu0 0
    %1631 = vmatpush1.bf16.msra.mxu0 0
    %1632 = vmatprep.subr.bf16.mxu0 0
    %1633 = vmatpush1.bf16.msra.mxu0 0
    %1634 = vmatprep.subr.bf16.mxu0 0
    %1635 = vmatpush1.bf16.msra.mxu0 0
    %1636 = vmatprep.subr.bf16.mxu0 0
    %1637 = vmatpush1.bf16.msra.mxu0 0
    %1638 = vmatprep.subr.bf16.mxu0 0
    %1639 = vmatpush1.bf16.msra.mxu0 0
    %1640 = vmatprep.subr.bf16.mxu0 0
    %1641 = vmatpush1.bf16.msra.mxu0 0
    %1642 = vmatprep.subr.bf16.mxu0 0
    %1643 = vmatpush1.bf16.msra.mxu0 0
    %1644 = vmatprep.subr.bf16.mxu0 0
    %1645 = vmatpush1.bf16.msra.mxu0 0
    %1646 = vmatprep.subr.bf16.mxu0 0
    %1647 = vmatpush1.bf16.msra.mxu0 0
    %1648 = vmatprep.subr.bf16.mxu0 0
    %1649 = vmatpush1.bf16.msra.mxu0 0
    %1650 = vmatprep.mubr.bf16.mxu0 0
    %1651 = vmatmul.mubr.bf16.gmra.mrb[0].mxu0 %v1613
    %v1652 = vpop.f32.mrb[0].mxu0
    %v1653 = vadd.f32 0.0, %v1652
    %v1654 = vpop.f32.mrb[0].mxu0
    %v1655 = vpop.f32.mrb[0].mxu0
    %v1656 = vpop.f32.mrb[0].mxu0
    %1657 = vdwg.mxu0
    %1658 = vrot.lane.b32.xlu0 %v1440, 120
    %v1659 = vpop.permute.xlu0 %1658
    %1660 = vrot.lane.b32.xlu0 %v1441, 120
    %v1661 = vpop.permute.xlu0 %1660
    %v1663 = vsel %vm166, %v1659, 0
    %v1666 = vsel %vm166, %v1661, 0
    %1668 = vmatprep.subr.bf16.mxu0 0
    %1669 = vmatpush1.bf16.xpose.msra.mxu0 %v1666
    %1670 = vmatprep.subr.bf16.mxu0 0
    %1671 = vmatpush1.bf16.xpose.msra.mxu0 0
    %1672 = vmatprep.subr.bf16.mxu0 0
    %1673 = vmatpush1.bf16.xpose.msra.mxu0 0
    %1674 = vmatprep.subr.bf16.mxu0 0
    %1675 = vmatpush1.bf16.xpose.msra.mxu0 0
    %1676 = vmatprep.subr.bf16.mxu0 0
    %1677 = vmatpush1.bf16.xpose.msra.mxu0 0
    %1678 = vmatprep.subr.bf16.mxu0 0
    %1679 = vmatpush1.bf16.xpose.msra.mxu0 0
    %1680 = vmatprep.subr.bf16.mxu0 0
    %1681 = vmatpush1.bf16.xpose.msra.mxu0 0
    %1682 = vmatprep.subr.bf16.mxu0 0
    %1683 = vmatpush1.bf16.xpose.msra.mxu0 0
    %1684 = vmatprep.subr.bf16.mxu0 0
    %1685 = vmatpush1.bf16.xpose.msra.mxu0 0
    %1686 = vmatprep.subr.bf16.mxu0 0
    %1687 = vmatpush1.bf16.xpose.msra.mxu0 0
    %1688 = vmatprep.subr.bf16.mxu0 0
    %1689 = vmatpush1.bf16.xpose.msra.mxu0 0
    %1690 = vmatprep.subr.bf16.mxu0 0
    %1691 = vmatpush1.bf16.xpose.msra.mxu0 0
    %1692 = vmatprep.subr.bf16.mxu0 0
    %1693 = vmatpush1.bf16.xpose.msra.mxu0 0
    %1694 = vmatprep.subr.bf16.mxu0 0
    %1695 = vmatpush1.bf16.xpose.msra.mxu0 0
    %1696 = vmatprep.subr.bf16.mxu0 0
    %1697 = vmatpush1.bf16.xpose.msra.mxu0 0
    %1698 = vmatprep.subr.bf16.mxu0 0
    %1699 = vmatpush1.bf16.xpose.msra.mxu0 0
    %1700 = vmatprep.mubr.bf16.mxu0 0
    %1701 = vmatmul.mubr.bf16.gmra.mrb[0].mxu0 %v1663
    %v1702 = vpop.f32.mrb[0].mxu0
    %v1703 = vadd.f32 %v84, %v1702
    %v1704 = vpop.f32.mrb[0].mxu0
    %v1705 = vpop.f32.mrb[0].mxu0
    %v1706 = vpop.f32.mrb[0].mxu0
    %1707 = vdwg.mxu0
    %v1708 = vsel %vm166, %v1703, -inf
    %1709 = vmax.xlane.f32.xlu0 %v1708
    %v1710 = vpop.xlane.xlu0 %1709
    %v1711 = vsub.f32 %v1703, %v1710
    %v1712 = vmul.f32 %v1711, 1.442695
    %v1713 = vpow.pop %v1712
    %v1714 = vsel %vm166, %v1713, 0.0
    %1715 = vadd.xlane.f32.xlu0 %v1714
    %v1716 = vpop.xlane.xlu0 %1715
    %v1717 = vrcp.pop %v1716
    %v1718 = vmul.f32 %v1713, %v1717
    %v1719 = vpack.c.bf16 %v1718, %v1718
    %1720 = vrot.lane.b32.xlu0 %v1441, 88
    %v1721 = vpop.permute.xlu0 %1720
    %v1723 = vsel %vm166, %v1719, 0
    %v1726 = vsel %vm230, %v1721, 0
    %1728 = vmatprep.subr.bf16.mxu0 0
    %1729 = vmatpush1.bf16.msra.mxu0 %v1726
    %1730 = vmatprep.subr.bf16.mxu0 0
    %1731 = vmatpush1.bf16.msra.mxu0 0
    %1732 = vmatprep.subr.bf16.mxu0 0
    %1733 = vmatpush1.bf16.msra.mxu0 0
    %1734 = vmatprep.subr.bf16.mxu0 0
    %1735 = vmatpush1.bf16.msra.mxu0 0
    %1736 = vmatprep.subr.bf16.mxu0 0
    %1737 = vmatpush1.bf16.msra.mxu0 0
    %1738 = vmatprep.subr.bf16.mxu0 0
    %1739 = vmatpush1.bf16.msra.mxu0 0
    %1740 = vmatprep.subr.bf16.mxu0 0
    %1741 = vmatpush1.bf16.msra.mxu0 0
    %1742 = vmatprep.subr.bf16.mxu0 0
    %1743 = vmatpush1.bf16.msra.mxu0 0
    %1744 = vmatprep.subr.bf16.mxu0 0
    %1745 = vmatpush1.bf16.msra.mxu0 0
    %1746 = vmatprep.subr.bf16.mxu0 0
    %1747 = vmatpush1.bf16.msra.mxu0 0
    %1748 = vmatprep.subr.bf16.mxu0 0
    %1749 = vmatpush1.bf16.msra.mxu0 0
    %1750 = vmatprep.subr.bf16.mxu0 0
    %1751 = vmatpush1.bf16.msra.mxu0 0
    %1752 = vmatprep.subr.bf16.mxu0 0
    %1753 = vmatpush1.bf16.msra.mxu0 0
    %1754 = vmatprep.subr.bf16.mxu0 0
    %1755 = vmatpush1.bf16.msra.mxu0 0
    %1756 = vmatprep.subr.bf16.mxu0 0
    %1757 = vmatpush1.bf16.msra.mxu0 0
    %1758 = vmatprep.subr.bf16.mxu0 0
    %1759 = vmatpush1.bf16.msra.mxu0 0
    %1760 = vmatprep.mubr.bf16.mxu0 0
    %1761 = vmatmul.mubr.bf16.gmra.mrb[0].mxu0 %v1723
    %v1762 = vpop.f32.mrb[0].mxu0
    %v1763 = vadd.f32 0.0, %v1762
    %v1764 = vpop.f32.mrb[0].mxu0
    %v1765 = vpop.f32.mrb[0].mxu0
    %v1766 = vpop.f32.mrb[0].mxu0
    %1767 = vdwg.mxu0
    %1768 = vrot.lane.b32.xlu0 %v1330, 112
    %v1769 = vpop.permute.xlu0 %1768
    %1770 = vrot.lane.b32.xlu0 %v1331, 112
    %v1771 = vpop.permute.xlu0 %1770
    %v1773 = vsel %vm166, %v1769, 0
    %v1776 = vsel %vm166, %v1771, 0
    %1778 = vmatprep.subr.bf16.mxu0 0
    %1779 = vmatpush1.bf16.xpose.msra.mxu0 %v1776
    %1780 = vmatprep.subr.bf16.mxu0 0
    %1781 = vmatpush1.bf16.xpose.msra.mxu0 0
    %1782 = vmatprep.subr.bf16.mxu0 0
    %1783 = vmatpush1.bf16.xpose.msra.mxu0 0
    %1784 = vmatprep.subr.bf16.mxu0 0
    %1785 = vmatpush1.bf16.xpose.msra.mxu0 0
    %1786 = vmatprep.subr.bf16.mxu0 0
    %1787 = vmatpush1.bf16.xpose.msra.mxu0 0
    %1788 = vmatprep.subr.bf16.mxu0 0
    %1789 = vmatpush1.bf16.xpose.msra.mxu0 0
    %1790 = vmatprep.subr.bf16.mxu0 0
    %1791 = vmatpush1.bf16.xpose.msra.mxu0 0
    %1792 = vmatprep.subr.bf16.mxu0 0
    %1793 = vmatpush1.bf16.xpose.msra.mxu0 0
    %1794 = vmatprep.subr.bf16.mxu0 0
    %1795 = vmatpush1.bf16.xpose.msra.mxu0 0
    %1796 = vmatprep.subr.bf16.mxu0 0
    %1797 = vmatpush1.bf16.xpose.msra.mxu0 0
    %1798 = vmatprep.subr.bf16.mxu0 0
    %1799 = vmatpush1.bf16.xpose.msra.mxu0 0
    %1800 = vmatprep.subr.bf16.mxu0 0
    %1801 = vmatpush1.bf16.xpose.msra.mxu0 0
    %1802 = vmatprep.subr.bf16.mxu0 0
    %1803 = vmatpush1.bf16.xpose.msra.mxu0 0
    %1804 = vmatprep.subr.bf16.mxu0 0
    %1805 = vmatpush1.bf16.xpose.msra.mxu0 0
    %1806 = vmatprep.subr.bf16.mxu0 0
    %1807 = vmatpush1.bf16.xpose.msra.mxu0 0
    %1808 = vmatprep.subr.bf16.mxu0 0
    %1809 = vmatpush1.bf16.xpose.msra.mxu0 0
    %1810 = vmatprep.mubr.bf16.mxu0 0
    %1811 = vmatmul.mubr.bf16.gmra.mrb[0].mxu0 %v1773
    %v1812 = vpop.f32.mrb[0].mxu0
    %v1813 = vadd.f32 %v84, %v1812
    %v1814 = vpop.f32.mrb[0].mxu0
    %v1815 = vpop.f32.mrb[0].mxu0
    %v1816 = vpop.f32.mrb[0].mxu0
    %1817 = vdwg.mxu0
    %v1818 = vsel %vm166, %v1813, -inf
    %1819 = vmax.xlane.f32.xlu0 %v1818
    %v1820 = vpop.xlane.xlu0 %1819
    %v1821 = vsub.f32 %v1813, %v1820
    %v1822 = vmul.f32 %v1821, 1.442695
    %v1823 = vpow.pop %v1822
    %v1824 = vsel %vm166, %v1823, 0.0
    %1825 = vadd.xlane.f32.xlu0 %v1824
    %v1826 = vpop.xlane.xlu0 %1825
    %v1827 = vrcp.pop %v1826
    %v1828 = vmul.f32 %v1823, %v1827
    %v1829 = vpack.c.bf16 %v1828, %v1828
    %1830 = vrot.lane.b32.xlu0 %v1331, 80
    %v1831 = vpop.permute.xlu0 %1830
    %v1833 = vsel %vm166, %v1829, 0
    %v1836 = vsel %vm230, %v1831, 0
    %1838 = vmatprep.subr.bf16.mxu0 0
    %1839 = vmatpush1.bf16.msra.mxu0 %v1836
    %1840 = vmatprep.subr.bf16.mxu0 0
    %1841 = vmatpush1.bf16.msra.mxu0 0
    %1842 = vmatprep.subr.bf16.mxu0 0
    %1843 = vmatpush1.bf16.msra.mxu0 0
    %1844 = vmatprep.subr.bf16.mxu0 0
    %1845 = vmatpush1.bf16.msra.mxu0 0
    %1846 = vmatprep.subr.bf16.mxu0 0
    %1847 = vmatpush1.bf16.msra.mxu0 0
    %1848 = vmatprep.subr.bf16.mxu0 0
    %1849 = vmatpush1.bf16.msra.mxu0 0
    %1850 = vmatprep.subr.bf16.mxu0 0
    %1851 = vmatpush1.bf16.msra.mxu0 0
    %1852 = vmatprep.subr.bf16.mxu0 0
    %1853 = vmatpush1.bf16.msra.mxu0 0
    %1854 = vmatprep.subr.bf16.mxu0 0
    %1855 = vmatpush1.bf16.msra.mxu0 0
    %1856 = vmatprep.subr.bf16.mxu0 0
    %1857 = vmatpush1.bf16.msra.mxu0 0
    %1858 = vmatprep.subr.bf16.mxu0 0
    %1859 = vmatpush1.bf16.msra.mxu0 0
    %1860 = vmatprep.subr.bf16.mxu0 0
    %1861 = vmatpush1.bf16.msra.mxu0 0
    %1862 = vmatprep.subr.bf16.mxu0 0
    %1863 = vmatpush1.bf16.msra.mxu0 0
    %1864 = vmatprep.subr.bf16.mxu0 0
    %1865 = vmatpush1.bf16.msra.mxu0 0
    %1866 = vmatprep.subr.bf16.mxu0 0
    %1867 = vmatpush1.bf16.msra.mxu0 0
    %1868 = vmatprep.subr.bf16.mxu0 0
    %1869 = vmatpush1.bf16.msra.mxu0 0
    %1870 = vmatprep.mubr.bf16.mxu0 0
    %1871 = vmatmul.mubr.bf16.gmra.mrb[0].mxu0 %v1833
    %v1872 = vpop.f32.mrb[0].mxu0
    %v1873 = vadd.f32 0.0, %v1872
    %v1874 = vpop.f32.mrb[0].mxu0
    %v1875 = vpop.f32.mrb[0].mxu0
    %v1876 = vpop.f32.mrb[0].mxu0
    %1877 = vdwg.mxu0
    %1878 = vrot.lane.b32.xlu0 %v1440, 112
    %v1879 = vpop.permute.xlu0 %1878
    %1880 = vrot.lane.b32.xlu0 %v1441, 112
    %v1881 = vpop.permute.xlu0 %1880
    %v1883 = vsel %vm166, %v1879, 0
    %v1886 = vsel %vm166, %v1881, 0
    %1888 = vmatprep.subr.bf16.mxu0 0
    %1889 = vmatpush1.bf16.xpose.msra.mxu0 %v1886
    %1890 = vmatprep.subr.bf16.mxu0 0
    %1891 = vmatpush1.bf16.xpose.msra.mxu0 0
    %1892 = vmatprep.subr.bf16.mxu0 0
    %1893 = vmatpush1.bf16.xpose.msra.mxu0 0
    %1894 = vmatprep.subr.bf16.mxu0 0
    %1895 = vmatpush1.bf16.xpose.msra.mxu0 0
    %1896 = vmatprep.subr.bf16.mxu0 0
    %1897 = vmatpush1.bf16.xpose.msra.mxu0 0
    %1898 = vmatprep.subr.bf16.mxu0 0
    %1899 = vmatpush1.bf16.xpose.msra.mxu0 0
    %1900 = vmatprep.subr.bf16.mxu0 0
    %1901 = vmatpush1.bf16.xpose.msra.mxu0 0
    %1902 = vmatprep.subr.bf16.mxu0 0
    %1903 = vmatpush1.bf16.xpose.msra.mxu0 0
    %1904 = vmatprep.subr.bf16.mxu0 0
    %1905 = vmatpush1.bf16.xpose.msra.mxu0 0
    %1906 = vmatprep.subr.bf16.mxu0 0
    %1907 = vmatpush1.bf16.xpose.msra.mxu0 0
    %1908 = vmatprep.subr.bf16.mxu0 0
    %1909 = vmatpush1.bf16.xpose.msra.mxu0 0
    %1910 = vmatprep.subr.bf16.mxu0 0
    %1911 = vmatpush1.bf16.xpose.msra.mxu0 0
    %1912 = vmatprep.subr.bf16.mxu0 0
    %1913 = vmatpush1.bf16.xpose.msra.mxu0 0
    %1914 = vmatprep.subr.bf16.mxu0 0
    %1915 = vmatpush1.bf16.xpose.msra.mxu0 0
    %1916 = vmatprep.subr.bf16.mxu0 0
    %1917 = vmatpush1.bf16.xpose.msra.mxu0 0
    %1918 = vmatprep.subr.bf16.mxu0 0
    %1919 = vmatpush1.bf16.xpose.msra.mxu0 0
    %1920 = vmatprep.mubr.bf16.mxu0 0
    %1921 = vmatmul.mubr.bf16.gmra.mrb[0].mxu0 %v1883
    %v1922 = vpop.f32.mrb[0].mxu0
    %v1923 = vadd.f32 %v84, %v1922
    %v1924 = vpop.f32.mrb[0].mxu0
    %v1925 = vpop.f32.mrb[0].mxu0
    %v1926 = vpop.f32.mrb[0].mxu0
    %1927 = vdwg.mxu0
    %v1928 = vsel %vm166, %v1923, -inf
    %1929 = vmax.xlane.f32.xlu0 %v1928
    %v1930 = vpop.xlane.xlu0 %1929
    %v1931 = vsub.f32 %v1923, %v1930
    %v1932 = vmul.f32 %v1931, 1.442695
    %v1933 = vpow.pop %v1932
    %v1934 = vsel %vm166, %v1933, 0.0
    %1935 = vadd.xlane.f32.xlu0 %v1934
    %v1936 = vpop.xlane.xlu0 %1935
    %v1937 = vrcp.pop %v1936
    %v1938 = vmul.f32 %v1933, %v1937
    %v1939 = vpack.c.bf16 %v1938, %v1938
    %1940 = vrot.lane.b32.xlu0 %v1441, 80
    %v1941 = vpop.permute.xlu0 %1940
    %v1943 = vsel %vm166, %v1939, 0
    %v1946 = vsel %vm230, %v1941, 0
    %1948 = vmatprep.subr.bf16.mxu0 0
    %1949 = vmatpush1.bf16.msra.mxu0 %v1946
    %1950 = vmatprep.subr.bf16.mxu0 0
    %1951 = vmatpush1.bf16.msra.mxu0 0
    %1952 = vmatprep.subr.bf16.mxu0 0
    %1953 = vmatpush1.bf16.msra.mxu0 0
    %1954 = vmatprep.subr.bf16.mxu0 0
    %1955 = vmatpush1.bf16.msra.mxu0 0
    %1956 = vmatprep.subr.bf16.mxu0 0
    %1957 = vmatpush1.bf16.msra.mxu0 0
    %1958 = vmatprep.subr.bf16.mxu0 0
    %1959 = vmatpush1.bf16.msra.mxu0 0
    %1960 = vmatprep.subr.bf16.mxu0 0
    %1961 = vmatpush1.bf16.msra.mxu0 0
    %1962 = vmatprep.subr.bf16.mxu0 0
    %1963 = vmatpush1.bf16.msra.mxu0 0
    %1964 = vmatprep.subr.bf16.mxu0 0
    %1965 = vmatpush1.bf16.msra.mxu0 0
    %1966 = vmatprep.subr.bf16.mxu0 0
    %1967 = vmatpush1.bf16.msra.mxu0 0
    %1968 = vmatprep.subr.bf16.mxu0 0
    %1969 = vmatpush1.bf16.msra.mxu0 0
    %1970 = vmatprep.subr.bf16.mxu0 0
    %1971 = vmatpush1.bf16.msra.mxu0 0
    %1972 = vmatprep.subr.bf16.mxu0 0
    %1973 = vmatpush1.bf16.msra.mxu0 0
    %1974 = vmatprep.subr.bf16.mxu0 0
    %1975 = vmatpush1.bf16.msra.mxu0 0
    %1976 = vmatprep.subr.bf16.mxu0 0
    %1977 = vmatpush1.bf16.msra.mxu0 0
    %1978 = vmatprep.subr.bf16.mxu0 0
    %1979 = vmatpush1.bf16.msra.mxu0 0
    %1980 = vmatprep.mubr.bf16.mxu0 0
    %1981 = vmatmul.mubr.bf16.gmra.mrb[0].mxu0 %v1943
    %v1982 = vpop.f32.mrb[0].mxu0
    %v1983 = vadd.f32 0.0, %v1982
    %v1984 = vpop.f32.mrb[0].mxu0
    %v1985 = vpop.f32.mrb[0].mxu0
    %v1986 = vpop.f32.mrb[0].mxu0
    %1987 = vdwg.mxu0
    %1988 = vrot.lane.b32.xlu0 %v1330, 104
    %v1989 = vpop.permute.xlu0 %1988
    %1990 = vrot.lane.b32.xlu0 %v1331, 104
    %v1991 = vpop.permute.xlu0 %1990
    %v1993 = vsel %vm166, %v1989, 0
    %v1996 = vsel %vm166, %v1991, 0
    %1998 = vmatprep.subr.bf16.mxu0 0
    %1999 = vmatpush1.bf16.xpose.msra.mxu0 %v1996
    %2000 = vmatprep.subr.bf16.mxu0 0
    %2001 = vmatpush1.bf16.xpose.msra.mxu0 0
    %2002 = vmatprep.subr.bf16.mxu0 0
    %2003 = vmatpush1.bf16.xpose.msra.mxu0 0
    %2004 = vmatprep.subr.bf16.mxu0 0
    %2005 = vmatpush1.bf16.xpose.msra.mxu0 0
    %2006 = vmatprep.subr.bf16.mxu0 0
    %2007 = vmatpush1.bf16.xpose.msra.mxu0 0
    %2008 = vmatprep.subr.bf16.mxu0 0
    %2009 = vmatpush1.bf16.xpose.msra.mxu0 0
    %2010 = vmatprep.subr.bf16.mxu0 0
    %2011 = vmatpush1.bf16.xpose.msra.mxu0 0
    %2012 = vmatprep.subr.bf16.mxu0 0
    %2013 = vmatpush1.bf16.xpose.msra.mxu0 0
    %2014 = vmatprep.subr.bf16.mxu0 0
    %2015 = vmatpush1.bf16.xpose.msra.mxu0 0
    %2016 = vmatprep.subr.bf16.mxu0 0
    %2017 = vmatpush1.bf16.xpose.msra.mxu0 0
    %2018 = vmatprep.subr.bf16.mxu0 0
    %2019 = vmatpush1.bf16.xpose.msra.mxu0 0
    %2020 = vmatprep.subr.bf16.mxu0 0
    %2021 = vmatpush1.bf16.xpose.msra.mxu0 0
    %2022 = vmatprep.subr.bf16.mxu0 0
    %2023 = vmatpush1.bf16.xpose.msra.mxu0 0
    %2024 = vmatprep.subr.bf16.mxu0 0
    %2025 = vmatpush1.bf16.xpose.msra.mxu0 0
    %2026 = vmatprep.subr.bf16.mxu0 0
    %2027 = vmatpush1.bf16.xpose.msra.mxu0 0
    %2028 = vmatprep.subr.bf16.mxu0 0
    %2029 = vmatpush1.bf16.xpose.msra.mxu0 0
    %2030 = vmatprep.mubr.bf16.mxu0 0
    %2031 = vmatmul.mubr.bf16.gmra.mrb[0].mxu0 %v1993
    %v2032 = vpop.f32.mrb[0].mxu0
    %v2033 = vadd.f32 %v84, %v2032
    %v2034 = vpop.f32.mrb[0].mxu0
    %v2035 = vpop.f32.mrb[0].mxu0
    %v2036 = vpop.f32.mrb[0].mxu0
    %2037 = vdwg.mxu0
    %v2038 = vsel %vm166, %v2033, -inf
    %2039 = vmax.xlane.f32.xlu0 %v2038
    %v2040 = vpop.xlane.xlu0 %2039
    %v2041 = vsub.f32 %v2033, %v2040
    %v2042 = vmul.f32 %v2041, 1.442695
    %v2043 = vpow.pop %v2042
    %v2044 = vsel %vm166, %v2043, 0.0
    %2045 = vadd.xlane.f32.xlu0 %v2044
    %v2046 = vpop.xlane.xlu0 %2045
    %v2047 = vrcp.pop %v2046
    %v2048 = vmul.f32 %v2043, %v2047
    %v2049 = vpack.c.bf16 %v2048, %v2048
    %2050 = vrot.lane.b32.xlu0 %v1331, 72
    %v2051 = vpop.permute.xlu0 %2050
    %v2053 = vsel %vm166, %v2049, 0
    %v2056 = vsel %vm230, %v2051, 0
    %2058 = vmatprep.subr.bf16.mxu0 0
    %2059 = vmatpush1.bf16.msra.mxu0 %v2056
    %2060 = vmatprep.subr.bf16.mxu0 0
    %2061 = vmatpush1.bf16.msra.mxu0 0
    %2062 = vmatprep.subr.bf16.mxu0 0
    %2063 = vmatpush1.bf16.msra.mxu0 0
    %2064 = vmatprep.subr.bf16.mxu0 0
    %2065 = vmatpush1.bf16.msra.mxu0 0
    %2066 = vmatprep.subr.bf16.mxu0 0
    %2067 = vmatpush1.bf16.msra.mxu0 0
    %2068 = vmatprep.subr.bf16.mxu0 0
    %2069 = vmatpush1.bf16.msra.mxu0 0
    %2070 = vmatprep.subr.bf16.mxu0 0
    %2071 = vmatpush1.bf16.msra.mxu0 0
    %2072 = vmatprep.subr.bf16.mxu0 0
    %2073 = vmatpush1.bf16.msra.mxu0 0
    %2074 = vmatprep.subr.bf16.mxu0 0
    %2075 = vmatpush1.bf16.msra.mxu0 0
    %2076 = vmatprep.subr.bf16.mxu0 0
    %2077 = vmatpush1.bf16.msra.mxu0 0
    %2078 = vmatprep.subr.bf16.mxu0 0
    %2079 = vmatpush1.bf16.msra.mxu0 0
    %2080 = vmatprep.subr.bf16.mxu0 0
    %2081 = vmatpush1.bf16.msra.mxu0 0
    %2082 = vmatprep.subr.bf16.mxu0 0
    %2083 = vmatpush1.bf16.msra.mxu0 0
    %2084 = vmatprep.subr.bf16.mxu0 0
    %2085 = vmatpush1.bf16.msra.mxu0 0
    %2086 = vmatprep.subr.bf16.mxu0 0
    %2087 = vmatpush1.bf16.msra.mxu0 0
    %2088 = vmatprep.subr.bf16.mxu0 0
    %2089 = vmatpush1.bf16.msra.mxu0 0
    %2090 = vmatprep.mubr.bf16.mxu0 0
    %2091 = vmatmul.mubr.bf16.gmra.mrb[0].mxu0 %v2053
    %v2092 = vpop.f32.mrb[0].mxu0
    %v2093 = vadd.f32 0.0, %v2092
    %v2094 = vpop.f32.mrb[0].mxu0
    %v2095 = vpop.f32.mrb[0].mxu0
    %v2096 = vpop.f32.mrb[0].mxu0
    %2097 = vdwg.mxu0
    %2098 = vrot.lane.b32.xlu0 %v1440, 104
    %v2099 = vpop.permute.xlu0 %2098
    %2100 = vrot.lane.b32.xlu0 %v1441, 104
    %v2101 = vpop.permute.xlu0 %2100
    %v2103 = vsel %vm166, %v2099, 0
    %v2106 = vsel %vm166, %v2101, 0
    %2108 = vmatprep.subr.bf16.mxu0 0
    %2109 = vmatpush1.bf16.xpose.msra.mxu0 %v2106
    %2110 = vmatprep.subr.bf16.mxu0 0
    %2111 = vmatpush1.bf16.xpose.msra.mxu0 0
    %2112 = vmatprep.subr.bf16.mxu0 0
    %2113 = vmatpush1.bf16.xpose.msra.mxu0 0
    %2114 = vmatprep.subr.bf16.mxu0 0
    %2115 = vmatpush1.bf16.xpose.msra.mxu0 0
    %2116 = vmatprep.subr.bf16.mxu0 0
    %2117 = vmatpush1.bf16.xpose.msra.mxu0 0
    %2118 = vmatprep.subr.bf16.mxu0 0
    %2119 = vmatpush1.bf16.xpose.msra.mxu0 0
    %2120 = vmatprep.subr.bf16.mxu0 0
    %2121 = vmatpush1.bf16.xpose.msra.mxu0 0
    %2122 = vmatprep.subr.bf16.mxu0 0
    %2123 = vmatpush1.bf16.xpose.msra.mxu0 0
    %2124 = vmatprep.subr.bf16.mxu0 0
    %2125 = vmatpush1.bf16.xpose.msra.mxu0 0
    %2126 = vmatprep.subr.bf16.mxu0 0
    %2127 = vmatpush1.bf16.xpose.msra.mxu0 0
    %2128 = vmatprep.subr.bf16.mxu0 0
    %2129 = vmatpush1.bf16.xpose.msra.mxu0 0
    %2130 = vmatprep.subr.bf16.mxu0 0
    %2131 = vmatpush1.bf16.xpose.msra.mxu0 0
    %2132 = vmatprep.subr.bf16.mxu0 0
    %2133 = vmatpush1.bf16.xpose.msra.mxu0 0
    %2134 = vmatprep.subr.bf16.mxu0 0
    %2135 = vmatpush1.bf16.xpose.msra.mxu0 0
    %2136 = vmatprep.subr.bf16.mxu0 0
    %2137 = vmatpush1.bf16.xpose.msra.mxu0 0
    %2138 = vmatprep.subr.bf16.mxu0 0
    %2139 = vmatpush1.bf16.xpose.msra.mxu0 0
    %2140 = vmatprep.mubr.bf16.mxu0 0
    %2141 = vmatmul.mubr.bf16.gmra.mrb[0].mxu0 %v2103
    %v2142 = vpop.f32.mrb[0].mxu0
    %v2143 = vadd.f32 %v84, %v2142
    %v2144 = vpop.f32.mrb[0].mxu0
    %v2145 = vpop.f32.mrb[0].mxu0
    %v2146 = vpop.f32.mrb[0].mxu0
    %2147 = vdwg.mxu0
    %v2148 = vsel %vm166, %v2143, -inf
    %2149 = vmax.xlane.f32.xlu0 %v2148
    %v2150 = vpop.xlane.xlu0 %2149
    %v2151 = vsub.f32 %v2143, %v2150
    %v2152 = vmul.f32 %v2151, 1.442695
    %v2153 = vpow.pop %v2152
    %v2154 = vsel %vm166, %v2153, 0.0
    %2155 = vadd.xlane.f32.xlu0 %v2154
    %v2156 = vpop.xlane.xlu0 %2155
    %v2157 = vrcp.pop %v2156
    %v2158 = vmul.f32 %v2153, %v2157
    %v2159 = vpack.c.bf16 %v2158, %v2158
    %2160 = vrot.lane.b32.xlu0 %v1441, 72
    %v2161 = vpop.permute.xlu0 %2160
    %v2163 = vsel %vm166, %v2159, 0
    %v2166 = vsel %vm230, %v2161, 0
    %2168 = vmatprep.subr.bf16.mxu0 0
    %2169 = vmatpush1.bf16.msra.mxu0 %v2166
    %2170 = vmatprep.subr.bf16.mxu0 0
    %2171 = vmatpush1.bf16.msra.mxu0 0
    %2172 = vmatprep.subr.bf16.mxu0 0
    %2173 = vmatpush1.bf16.msra.mxu0 0
    %2174 = vmatprep.subr.bf16.mxu0 0
    %2175 = vmatpush1.bf16.msra.mxu0 0
    %2176 = vmatprep.subr.bf16.mxu0 0
    %2177 = vmatpush1.bf16.msra.mxu0 0
    %2178 = vmatprep.subr.bf16.mxu0 0
    %2179 = vmatpush1.bf16.msra.mxu0 0
    %2180 = vmatprep.subr.bf16.mxu0 0
    %2181 = vmatpush1.bf16.msra.mxu0 0
    %2182 = vmatprep.subr.bf16.mxu0 0
    %2183 = vmatpush1.bf16.msra.mxu0 0
    %2184 = vmatprep.subr.bf16.mxu0 0
    %2185 = vmatpush1.bf16.msra.mxu0 0
    %2186 = vmatprep.subr.bf16.mxu0 0
    %2187 = vmatpush1.bf16.msra.mxu0 0
    %2188 = vmatprep.subr.bf16.mxu0 0
    %2189 = vmatpush1.bf16.msra.mxu0 0
    %2190 = vmatprep.subr.bf16.mxu0 0
    %2191 = vmatpush1.bf16.msra.mxu0 0
    %2192 = vmatprep.subr.bf16.mxu0 0
    %2193 = vmatpush1.bf16.msra.mxu0 0
    %2194 = vmatprep.subr.bf16.mxu0 0
    %2195 = vmatpush1.bf16.msra.mxu0 0
    %2196 = vmatprep.subr.bf16.mxu0 0
    %2197 = vmatpush1.bf16.msra.mxu0 0
    %2198 = vmatprep.subr.bf16.mxu0 0
    %2199 = vmatpush1.bf16.msra.mxu0 0
    %2200 = vmatprep.mubr.bf16.mxu0 0
    %2201 = vmatmul.mubr.bf16.gmra.mrb[0].mxu0 %v2163
    %v2202 = vpop.f32.mrb[0].mxu0
    %v2203 = vadd.f32 0.0, %v2202
    %v2204 = vpop.f32.mrb[0].mxu0
    %v2205 = vpop.f32.mrb[0].mxu0
    %v2206 = vpop.f32.mrb[0].mxu0
    %2207 = vdwg.mxu0
    %2210 = vrot.lane.b32.xlu0 %v1653, 8
    %v2211 = vpop.permute.xlu0 %2210
    %2212 = vrot.lane.b32.xlu0 %v1763, 8
    %v2213 = vpop.permute.xlu0 %2212
    %2218 = vrot.lane.b32.xlu0 %v1873, 16
    %v2219 = vpop.permute.xlu0 %2218
    %2220 = vrot.lane.b32.xlu0 %v1983, 16
    %v2221 = vpop.permute.xlu0 %2220
    %2226 = vrot.lane.b32.xlu0 %v2093, 24
    %v2227 = vpop.permute.xlu0 %2226
    %2228 = vrot.lane.b32.xlu0 %v2203, 24
    %v2229 = vpop.permute.xlu0 %2228
    %v2232 = vsel %vm166, %v1434, %v2211
    %v2233 = vsel %vm166, %v1543, %v2213
    %v2234 = vsel %vm1071, %v2232, %v2219
    %v2235 = vsel %vm1071, %v2233, %v2221
    %v2236 = vsel %vm1074, %v2234, %v2227
    %v2237 = vsel %vm1074, %v2235, %v2229
    %v2238 = vpack.c.bf16 %v2237, %v2236
    %v2240 = vlaneseq
    %v2241 = vshrl.u32 %v2240, 7
    %v2242 = vsub.s32 0, %v2241
    %v2243 = vrot.slane %v1329, %v2242
    %v2249 = vunpack.c.l.b16 %v1325
    %v2250 = vunpack.c.l.b16 %v1326
    %v2251 = vunpack.c.l.b16 %v1327
    %v2252 = vunpack.c.l.b16 %v1328
    %v2253 = vpack.c.b16 %v2250, %v2249
    %v2254 = vpack.c.b16 %v2252, %v2251
    %v2258 = vsel %vm109, %v2238, 0
    %2260 = vmatprep.subr.bf16.mxu0 0
    %2261 = vmatpush1.bf16.msra.mxu0 %v2253
    %2262 = vmatprep.subr.bf16.mxu0 0
    %2263 = vmatpush1.bf16.msra.mxu0 %v2254
    %2264 = vmatprep.subr.bf16.mxu0 0
    %2265 = vmatpush1.bf16.msra.mxu0 0
    %2266 = vmatprep.subr.bf16.mxu0 0
    %2267 = vmatpush1.bf16.msra.mxu0 0
    %2268 = vmatprep.subr.bf16.mxu0 0
    %2269 = vmatpush1.bf16.msra.mxu0 0
    %2270 = vmatprep.subr.bf16.mxu0 0
    %2271 = vmatpush1.bf16.msra.mxu0 0
    %2272 = vmatprep.subr.bf16.mxu0 0
    %2273 = vmatpush1.bf16.msra.mxu0 0
    %2274 = vmatprep.subr.bf16.mxu0 0
    %2275 = vmatpush1.bf16.msra.mxu0 0
    %2276 = vmatprep.subr.bf16.mxu0 0
    %2277 = vmatpush1.bf16.msra.mxu0 0
    %2278 = vmatprep.subr.bf16.mxu0 0
    %2279 = vmatpush1.bf16.msra.mxu0 0
    %2280 = vmatprep.subr.bf16.mxu0 0
    %2281 = vmatpush1.bf16.msra.mxu0 0
    %2282 = vmatprep.subr.bf16.mxu0 0
    %2283 = vmatpush1.bf16.msra.mxu0 0
    %2284 = vmatprep.subr.bf16.mxu0 0
    %2285 = vmatpush1.bf16.msra.mxu0 0
    %2286 = vmatprep.subr.bf16.mxu0 0
    %2287 = vmatpush1.bf16.msra.mxu0 0
    %2288 = vmatprep.subr.bf16.mxu0 0
    %2289 = vmatpush1.bf16.msra.mxu0 0
    %2290 = vmatprep.subr.bf16.mxu0 0
    %2291 = vmatpush1.bf16.msra.mxu0 0
    %2292 = vmatprep.mubr.bf16.mxu0 0
    %2293 = vmatmul.mubr.bf16.gmra.mrb[0].mxu0 %v2258
    %v2294 = vpop.f32.mrb[0].mxu0
    %v2295 = vadd.f32 %v2243, %v2294
    %v2296 = vpop.f32.mrb[0].mxu0
    %v2297 = vpop.f32.mrb[0].mxu0
    %v2298 = vadd.f32 %v2243, %v2297
    %v2299 = vpop.f32.mrb[0].mxu0
    %2300 = vdwg.mxu0
    %v2301 = vadd.f32 %v1185, %v2295
    %v2302 = vadd.f32 %v1186, %v2298
    %v2303 = vld [vmem:[%s20] sm:$0x1]
    %v2304 = vld [vmem:[%s21] sm:$0x1]
    %v2305 = vsel %vm109, %v2301, 0.0
    %2306 = vadd.xlane.f32.xlu0 %v2305
    %v2307 = vpop.xlane.xlu0 %2306
    %v2308 = vsel %vm109, %v2302, 0.0
    %2309 = vadd.xlane.f32.xlu0 %v2308
    %v2310 = vpop.xlane.xlu0 %2309
    %v2311 = vmul.f32 %v2307, %v1150
    %v2312 = vmul.f32 %v2310, %v1150
    %v2313 = vsub.f32 %v2301, %v2311
    %v2314 = vsub.f32 %v2302, %v2312
    %v2315 = vmul.f32 %v2313, %v2313
    %v2316 = vmul.f32 %v2314, %v2314
    %v2317 = vsel %vm109, %v2315, 0.0
    %2318 = vadd.xlane.f32.xlu0 %v2317
    %v2319 = vpop.xlane.xlu0 %2318
    %v2320 = vsel %vm109, %v2316, 0.0
    %2321 = vadd.xlane.f32.xlu0 %v2320
    %v2322 = vpop.xlane.xlu0 %2321
    %v2323 = vmul.f32 %v2319, %v1150
    %v2324 = vmul.f32 %v2322, %v1150
    %v2325 = vadd.f32 %v2323, 1e-05
    %v2326 = vadd.f32 %v2324, 1e-05
    %v2327 = vrsqrt.pop %v2325
    %v2328 = vrsqrt.pop %v2326
    %v2329 = vmul.f32 %v2313, %v2327
    %v2330 = vmul.f32 %v2314, %v2328
    %v2332 = vlaneseq
    %v2333 = vshrl.u32 %v2332, 7
    %v2334 = vsub.s32 0, %v2333
    %v2335 = vrot.slane %v2303, %v2334
    %v2337 = vmul.f32 %v2329, %v2335
    %v2338 = vmul.f32 %v2330, %v2335
    %v2340 = vlaneseq
    %v2341 = vshrl.u32 %v2340, 7
    %v2342 = vsub.s32 0, %v2341
    %v2343 = vrot.slane %v2304, %v2342
    %v2345 = vadd.f32 %v2337, %v2343
    %v2346 = vadd.f32 %v2338, %v2343
    %v2347 = vld [vmem:[%s14] sm:$0xf]
    %v2348 = vld [vmem:[%s14 + $0x4] sm:$0xf]
    %v2349 = vld [vmem:[%s14 + $0x8] sm:$0xf]
    %v2350 = vld [vmem:[%s14 + $0xc] sm:$0xf]
    %v2351 = vpack.c.bf16 %v2346, %v2345
    %v2352 = vld [vmem:[%s15] sm:$0x1]
    %v2354 = vlaneseq
    %v2355 = vshrl.u32 %v2354, 7
    %v2356 = vsub.s32 0, %v2355
    %v2357 = vrot.slane %v2352, %v2356
    %v2363 = vunpack.c.l.b16 %v2347
    %v2364 = vunpack.c.l.b16 %v2348
    %v2365 = vunpack.c.l.b16 %v2349
    %v2366 = vunpack.c.l.b16 %v2350
    %v2367 = vpack.c.b16 %v2364, %v2363
    %v2368 = vpack.c.b16 %v2366, %v2365
    %v2372 = vsel %vm109, %v2351, 0
    %2374 = vmatprep.subr.bf16.mxu0 0
    %2375 = vmatpush1.bf16.msra.mxu0 %v2367
    %2376 = vmatprep.subr.bf16.mxu0 0
    %2377 = vmatpush1.bf16.msra.mxu0 %v2368
    %2378 = vmatprep.subr.bf16.mxu0 0
    %2379 = vmatpush1.bf16.msra.mxu0 0
    %2380 = vmatprep.subr.bf16.mxu0 0
    %2381 = vmatpush1.bf16.msra.mxu0 0
    %2382 = vmatprep.subr.bf16.mxu0 0
    %2383 = vmatpush1.bf16.msra.mxu0 0
    %2384 = vmatprep.subr.bf16.mxu0 0
    %2385 = vmatpush1.bf16.msra.mxu0 0
    %2386 = vmatprep.subr.bf16.mxu0 0
    %2387 = vmatpush1.bf16.msra.mxu0 0
    %2388 = vmatprep.subr.bf16.mxu0 0
    %2389 = vmatpush1.bf16.msra.mxu0 0
    %2390 = vmatprep.subr.bf16.mxu0 0
    %2391 = vmatpush1.bf16.msra.mxu0 0
    %2392 = vmatprep.subr.bf16.mxu0 0
    %2393 = vmatpush1.bf16.msra.mxu0 0
    %2394 = vmatprep.subr.bf16.mxu0 0
    %2395 = vmatpush1.bf16.msra.mxu0 0
    %2396 = vmatprep.subr.bf16.mxu0 0
    %2397 = vmatpush1.bf16.msra.mxu0 0
    %2398 = vmatprep.subr.bf16.mxu0 0
    %2399 = vmatpush1.bf16.msra.mxu0 0
    %2400 = vmatprep.subr.bf16.mxu0 0
    %2401 = vmatpush1.bf16.msra.mxu0 0
    %2402 = vmatprep.subr.bf16.mxu0 0
    %2403 = vmatpush1.bf16.msra.mxu0 0
    %2404 = vmatprep.subr.bf16.mxu0 0
    %2405 = vmatpush1.bf16.msra.mxu0 0
    %2406 = vmatprep.mubr.bf16.mxu0 0
    %2407 = vmatmul.mubr.bf16.gmra.mrb[0].mxu0 %v2372
    %v2408 = vpop.f32.mrb[0].mxu0
    %v2409 = vadd.f32 %v2357, %v2408
    %v2410 = vpop.f32.mrb[0].mxu0
    %v2411 = vpop.f32.mrb[0].mxu0
    %v2412 = vadd.f32 %v2357, %v2411
    %v2413 = vpop.f32.mrb[0].mxu0
    %2414 = vdwg.mxu0
    %v2415 = vmax.f32 %v2409, 0.0
    %v2416 = vmax.f32 %v2412, 0.0
    %v2417 = vld [vmem:[%s16] sm:$0xf]
    %v2418 = vld [vmem:[%s16 + $0x4] sm:$0xf]
    %v2419 = vld [vmem:[%s16 + $0x8] sm:$0xf]
    %v2420 = vld [vmem:[%s16 + $0xc] sm:$0xf]
    %v2421 = vld [vmem:[%s16 + $0x10] sm:$0xf]
    %v2422 = vld [vmem:[%s16 + $0x14] sm:$0xf]
    %v2423 = vld [vmem:[%s16 + $0x18] sm:$0xf]
    %v2424 = vld [vmem:[%s16 + $0x1c] sm:$0xf]
    %v2425 = vpack.c.bf16 %v2416, %v2415
    %v2426 = vld [vmem:[%s17] sm:$0x1]
    %v2428 = vlaneseq
    %v2429 = vshrl.u32 %v2428, 7
    %v2430 = vsub.s32 0, %v2429
    %v2431 = vrot.slane %v2426, %v2430
    %v2441 = vunpack.c.l.b16 %v2417
    %v2442 = vunpack.c.l.b16 %v2418
    %v2443 = vunpack.c.l.b16 %v2419
    %v2444 = vunpack.c.l.b16 %v2420
    %v2445 = vunpack.c.l.b16 %v2421
    %v2446 = vunpack.c.l.b16 %v2422
    %v2447 = vunpack.c.l.b16 %v2423
    %v2448 = vunpack.c.l.b16 %v2424
    %v2449 = vpack.c.b16 %v2442, %v2441
    %v2450 = vpack.c.b16 %v2444, %v2443
    %v2451 = vpack.c.b16 %v2446, %v2445
    %v2452 = vpack.c.b16 %v2448, %v2447
    %vm2457 = vcmask 523264
    %v2459 = vsel %vm2457, %v2425, 0
    %2461 = vmatprep.subr.bf16.mxu0 0
    %2462 = vmatpush1.bf16.msra.mxu0 %v2449
    %2463 = vmatprep.subr.bf16.mxu0 0
    %2464 = vmatpush1.bf16.msra.mxu0 %v2450
    %2465 = vmatprep.subr.bf16.mxu0 0
    %2466 = vmatpush1.bf16.msra.mxu0 %v2451
    %2467 = vmatprep.subr.bf16.mxu0 0
    %2468 = vmatpush1.bf16.msra.mxu0 %v2452
    %2469 = vmatprep.subr.bf16.mxu0 0
    %2470 = vmatpush1.bf16.msra.mxu0 0
    %2471 = vmatprep.subr.bf16.mxu0 0
    %2472 = vmatpush1.bf16.msra.mxu0 0
    %2473 = vmatprep.subr.bf16.mxu0 0
    %2474 = vmatpush1.bf16.msra.mxu0 0
    %2475 = vmatprep.subr.bf16.mxu0 0
    %2476 = vmatpush1.bf16.msra.mxu0 0
    %2477 = vmatprep.subr.bf16.mxu0 0
    %2478 = vmatpush1.bf16.msra.mxu0 0
    %2479 = vmatprep.subr.bf16.mxu0 0
    %2480 = vmatpush1.bf16.msra.mxu0 0
    %2481 = vmatprep.subr.bf16.mxu0 0
    %2482 = vmatpush1.bf16.msra.mxu0 0
    %2483 = vmatprep.subr.bf16.mxu0 0
    %2484 = vmatpush1.bf16.msra.mxu0 0
    %2485 = vmatprep.subr.bf16.mxu0 0
    %2486 = vmatpush1.bf16.msra.mxu0 0
    %2487 = vmatprep.subr.bf16.mxu0 0
    %2488 = vmatpush1.bf16.msra.mxu0 0
    %2489 = vmatprep.subr.bf16.mxu0 0
    %2490 = vmatpush1.bf16.msra.mxu0 0
    %2491 = vmatprep.subr.bf16.mxu0 0
    %2492 = vmatpush1.bf16.msra.mxu0 0
    %2493 = vmatprep.mubr.bf16.mxu0 0
    %2494 = vmatmul.mubr.bf16.gmra.mrb[0].mxu0 %v2459
    %v2495 = vpop.f32.mrb[0].mxu0
    %v2496 = vadd.f32 %v2431, %v2495
    %v2497 = vpop.f32.mrb[0].mxu0
    %v2498 = vpop.f32.mrb[0].mxu0
    %v2499 = vadd.f32 %v2431, %v2498
    %v2500 = vpop.f32.mrb[0].mxu0
    %2501 = vdwg.mxu0
    %v2502 = vadd.f32 %v2345, %v2496
    %v2503 = vadd.f32 %v2346, %v2499
    %v2504 = vld [vmem:[%s22] sm:$0x1]
    %v2505 = vld [vmem:[%s23] sm:$0x1]
    %v2506 = vsel %vm109, %v2502, 0.0
    %2507 = vadd.xlane.f32.xlu0 %v2506
    %v2508 = vpop.xlane.xlu0 %2507
    %v2509 = vsel %vm109, %v2503, 0.0
    %2510 = vadd.xlane.f32.xlu0 %v2509
    %v2511 = vpop.xlane.xlu0 %2510
    %v2512 = vmul.f32 %v2508, %v1150
    %v2513 = vmul.f32 %v2511, %v1150
    %v2514 = vsub.f32 %v2502, %v2512
    %v2515 = vsub.f32 %v2503, %v2513
    %v2516 = vmul.f32 %v2514, %v2514
    %v2517 = vmul.f32 %v2515, %v2515
    %v2518 = vsel %vm109, %v2516, 0.0
    %2519 = vadd.xlane.f32.xlu0 %v2518
    %v2520 = vpop.xlane.xlu0 %2519
    %v2521 = vsel %vm109, %v2517, 0.0
    %2522 = vadd.xlane.f32.xlu0 %v2521
    %v2523 = vpop.xlane.xlu0 %2522
    %v2524 = vmul.f32 %v2520, %v1150
    %v2525 = vmul.f32 %v2523, %v1150
    %v2526 = vadd.f32 %v2524, 1e-05
    %v2527 = vadd.f32 %v2525, 1e-05
    %v2528 = vrsqrt.pop %v2526
    %v2529 = vrsqrt.pop %v2527
    %v2530 = vmul.f32 %v2514, %v2528
    %v2531 = vmul.f32 %v2515, %v2529
    %v2533 = vlaneseq
    %v2534 = vshrl.u32 %v2533, 7
    %v2535 = vsub.s32 0, %v2534
    %v2536 = vrot.slane %v2504, %v2535
    %v2538 = vmul.f32 %v2530, %v2536
    %v2539 = vmul.f32 %v2531, %v2536
    %v2541 = vlaneseq
    %v2542 = vshrl.u32 %v2541, 7
    %v2543 = vsub.s32 0, %v2542
    %v2544 = vrot.slane %v2505, %v2543
    %v2546 = vadd.f32 %v2538, %v2544
    %v2547 = vadd.f32 %v2539, %v2544
    %s2548 = scalar_lea.vmem %s4, 16
    %v2549 = vld [vmem:[%s2548] sm:$0xf]
    %v2550 = vld [vmem:[%s2548 + $0x4] sm:$0xf]
    %v2551 = vld [vmem:[%s2548 + $0x8] sm:$0xf]
    %v2552 = vld [vmem:[%s2548 + $0xc] sm:$0xf]
    %v2553 = vpack.c.bf16 %v2547, %v2546
    %s2554 = scalar_lea.vmem %s5, 1
    %v2555 = vld [vmem:[%s2554] sm:$0x1]
    %v2557 = vlaneseq
    %v2558 = vshrl.u32 %v2557, 7
    %v2559 = vsub.s32 0, %v2558
    %v2560 = vrot.slane %v2555, %v2559
    %v2566 = vunpack.c.l.b16 %v2549
    %v2567 = vunpack.c.l.b16 %v2550
    %v2568 = vunpack.c.l.b16 %v2551
    %v2569 = vunpack.c.l.b16 %v2552
    %v2570 = vpack.c.b16 %v2567, %v2566
    %v2571 = vpack.c.b16 %v2569, %v2568
    %v2575 = vsel %vm109, %v2553, 0
    %2577 = vmatprep.subr.bf16.mxu0 0
    %2578 = vmatpush1.bf16.msra.mxu0 %v2570
    %2579 = vmatprep.subr.bf16.mxu0 0
    %2580 = vmatpush1.bf16.msra.mxu0 %v2571
    %2581 = vmatprep.subr.bf16.mxu0 0
    %2582 = vmatpush1.bf16.msra.mxu0 0
    %2583 = vmatprep.subr.bf16.mxu0 0
    %2584 = vmatpush1.bf16.msra.mxu0 0
    %2585 = vmatprep.subr.bf16.mxu0 0
    %2586 = vmatpush1.bf16.msra.mxu0 0
    %2587 = vmatprep.subr.bf16.mxu0 0
    %2588 = vmatpush1.bf16.msra.mxu0 0
    %2589 = vmatprep.subr.bf16.mxu0 0
    %2590 = vmatpush1.bf16.msra.mxu0 0
    %2591 = vmatprep.subr.bf16.mxu0 0
    %2592 = vmatpush1.bf16.msra.mxu0 0
    %2593 = vmatprep.subr.bf16.mxu0 0
    %2594 = vmatpush1.bf16.msra.mxu0 0
    %2595 = vmatprep.subr.bf16.mxu0 0
    %2596 = vmatpush1.bf16.msra.mxu0 0
    %2597 = vmatprep.subr.bf16.mxu0 0
    %2598 = vmatpush1.bf16.msra.mxu0 0
    %2599 = vmatprep.subr.bf16.mxu0 0
    %2600 = vmatpush1.bf16.msra.mxu0 0
    %2601 = vmatprep.subr.bf16.mxu0 0
    %2602 = vmatpush1.bf16.msra.mxu0 0
    %2603 = vmatprep.subr.bf16.mxu0 0
    %2604 = vmatpush1.bf16.msra.mxu0 0
    %2605 = vmatprep.subr.bf16.mxu0 0
    %2606 = vmatpush1.bf16.msra.mxu0 0
    %2607 = vmatprep.subr.bf16.mxu0 0
    %2608 = vmatpush1.bf16.msra.mxu0 0
    %2609 = vmatprep.mubr.bf16.mxu0 0
    %2610 = vmatmul.mubr.bf16.gmra.mrb[0].mxu0 %v2575
    %v2611 = vpop.f32.mrb[0].mxu0
    %v2612 = vadd.f32 %v2560, %v2611
    %v2613 = vpop.f32.mrb[0].mxu0
    %v2614 = vpop.f32.mrb[0].mxu0
    %v2615 = vadd.f32 %v2560, %v2614
    %v2616 = vpop.f32.mrb[0].mxu0
    %2617 = vdwg.mxu0
    %v2618 = vmul.f32 %v2612, 0.35355338
    %v2619 = vmul.f32 %v2615, 0.35355338
    %s2620 = scalar_lea.vmem %s6, 16
    %v2621 = vld [vmem:[%s2620] sm:$0xf]
    %v2622 = vld [vmem:[%s2620 + $0x4] sm:$0xf]
    %v2623 = vld [vmem:[%s2620 + $0x8] sm:$0xf]
    %v2624 = vld [vmem:[%s2620 + $0xc] sm:$0xf]
    %s2625 = scalar_lea.vmem %s7, 1
    %v2626 = vld [vmem:[%s2625] sm:$0x1]
    %v2627 = vpack.c.bf16 %v2619, %v2618
    %v2628 = vpack.c.bf16 %v2615, %v2612
    %2630 = vrot.lane.b32.xlu0 %v2628, 96
    %v2631 = vpop.permute.xlu0 %2630
    %v2633 = vsel %vm166, %v2627, 0
    %v2636 = vsel %vm166, %v2631, 0
    %2638 = vmatprep.subr.bf16.mxu0 0
    %2639 = vmatpush1.bf16.xpose.msra.mxu0 %v2636
    %2640 = vmatprep.subr.bf16.mxu0 0
    %2641 = vmatpush1.bf16.xpose.msra.mxu0 0
    %2642 = vmatprep.subr.bf16.mxu0 0
    %2643 = vmatpush1.bf16.xpose.msra.mxu0 0
    %2644 = vmatprep.subr.bf16.mxu0 0
    %2645 = vmatpush1.bf16.xpose.msra.mxu0 0
    %2646 = vmatprep.subr.bf16.mxu0 0
    %2647 = vmatpush1.bf16.xpose.msra.mxu0 0
    %2648 = vmatprep.subr.bf16.mxu0 0
    %2649 = vmatpush1.bf16.xpose.msra.mxu0 0
    %2650 = vmatprep.subr.bf16.mxu0 0
    %2651 = vmatpush1.bf16.xpose.msra.mxu0 0
    %2652 = vmatprep.subr.bf16.mxu0 0
    %2653 = vmatpush1.bf16.xpose.msra.mxu0 0
    %2654 = vmatprep.subr.bf16.mxu0 0
    %2655 = vmatpush1.bf16.xpose.msra.mxu0 0
    %2656 = vmatprep.subr.bf16.mxu0 0
    %2657 = vmatpush1.bf16.xpose.msra.mxu0 0
    %2658 = vmatprep.subr.bf16.mxu0 0
    %2659 = vmatpush1.bf16.xpose.msra.mxu0 0
    %2660 = vmatprep.subr.bf16.mxu0 0
    %2661 = vmatpush1.bf16.xpose.msra.mxu0 0
    %2662 = vmatprep.subr.bf16.mxu0 0
    %2663 = vmatpush1.bf16.xpose.msra.mxu0 0
    %2664 = vmatprep.subr.bf16.mxu0 0
    %2665 = vmatpush1.bf16.xpose.msra.mxu0 0
    %2666 = vmatprep.subr.bf16.mxu0 0
    %2667 = vmatpush1.bf16.xpose.msra.mxu0 0
    %2668 = vmatprep.subr.bf16.mxu0 0
    %2669 = vmatpush1.bf16.xpose.msra.mxu0 0
    %2670 = vmatprep.mubr.bf16.mxu0 0
    %2671 = vmatmul.mubr.bf16.gmra.mrb[0].mxu0 %v2633
    %v2672 = vpop.f32.mrb[0].mxu0
    %v2673 = vadd.f32 %v83, %v2672
    %v2674 = vpop.f32.mrb[0].mxu0
    %v2675 = vpop.f32.mrb[0].mxu0
    %v2676 = vpop.f32.mrb[0].mxu0
    %2677 = vdwg.mxu0
    %v2678 = vsel %vm166, %v2673, -inf
    %2679 = vmax.xlane.f32.xlu0 %v2678
    %v2680 = vpop.xlane.xlu0 %2679
    %v2681 = vsub.f32 %v2673, %v2680
    %v2682 = vmul.f32 %v2681, 1.442695
    %v2683 = vpow.pop %v2682
    %v2684 = vsel %vm166, %v2683, 0.0
    %2685 = vadd.xlane.f32.xlu0 %v2684
    %v2686 = vpop.xlane.xlu0 %2685
    %v2687 = vrcp.pop %v2686
    %v2688 = vmul.f32 %v2683, %v2687
    %v2689 = vpack.c.bf16 %v2688, %v2688
    %2690 = vrot.lane.b32.xlu0 %v2628, 64
    %v2691 = vpop.permute.xlu0 %2690
    %v2693 = vsel %vm166, %v2689, 0
    %v2696 = vsel %vm230, %v2691, 0
    %2698 = vmatprep.subr.bf16.mxu0 0
    %2699 = vmatpush1.bf16.msra.mxu0 %v2696
    %2700 = vmatprep.subr.bf16.mxu0 0
    %2701 = vmatpush1.bf16.msra.mxu0 0
    %2702 = vmatprep.subr.bf16.mxu0 0
    %2703 = vmatpush1.bf16.msra.mxu0 0
    %2704 = vmatprep.subr.bf16.mxu0 0
    %2705 = vmatpush1.bf16.msra.mxu0 0
    %2706 = vmatprep.subr.bf16.mxu0 0
    %2707 = vmatpush1.bf16.msra.mxu0 0
    %2708 = vmatprep.subr.bf16.mxu0 0
    %2709 = vmatpush1.bf16.msra.mxu0 0
    %2710 = vmatprep.subr.bf16.mxu0 0
    %2711 = vmatpush1.bf16.msra.mxu0 0
    %2712 = vmatprep.subr.bf16.mxu0 0
    %2713 = vmatpush1.bf16.msra.mxu0 0
    %2714 = vmatprep.subr.bf16.mxu0 0
    %2715 = vmatpush1.bf16.msra.mxu0 0
    %2716 = vmatprep.subr.bf16.mxu0 0
    %2717 = vmatpush1.bf16.msra.mxu0 0
    %2718 = vmatprep.subr.bf16.mxu0 0
    %2719 = vmatpush1.bf16.msra.mxu0 0
    %2720 = vmatprep.subr.bf16.mxu0 0
    %2721 = vmatpush1.bf16.msra.mxu0 0
    %2722 = vmatprep.subr.bf16.mxu0 0
    %2723 = vmatpush1.bf16.msra.mxu0 0
    %2724 = vmatprep.subr.bf16.mxu0 0
    %2725 = vmatpush1.bf16.msra.mxu0 0
    %2726 = vmatprep.subr.bf16.mxu0 0
    %2727 = vmatpush1.bf16.msra.mxu0 0
    %2728 = vmatprep.subr.bf16.mxu0 0
    %2729 = vmatpush1.bf16.msra.mxu0 0
    %2730 = vmatprep.mubr.bf16.mxu0 0
    %2731 = vmatmul.mubr.bf16.gmra.mrb[0].mxu0 %v2693
    %v2732 = vpop.f32.mrb[0].mxu0
    %v2733 = vadd.f32 0.0, %v2732
    %v2734 = vpop.f32.mrb[0].mxu0
    %v2735 = vpop.f32.mrb[0].mxu0
    %v2736 = vpop.f32.mrb[0].mxu0
    %2737 = vdwg.mxu0
    %v2739 = vrot.slane %v2627, 4
    %v2740 = vrot.slane %v2628, 4
    %2741 = vrot.lane.b32.xlu0 %v2740, 96
    %v2742 = vpop.permute.xlu0 %2741
    %v2744 = vsel %vm166, %v2739, 0
    %v2747 = vsel %vm166, %v2742, 0
    %2749 = vmatprep.subr.bf16.mxu0 0
    %2750 = vmatpush1.bf16.xpose.msra.mxu0 %v2747
    %2751 = vmatprep.subr.bf16.mxu0 0
    %2752 = vmatpush1.bf16.xpose.msra.mxu0 0
    %2753 = vmatprep.subr.bf16.mxu0 0
    %2754 = vmatpush1.bf16.xpose.msra.mxu0 0
    %2755 = vmatprep.subr.bf16.mxu0 0
    %2756 = vmatpush1.bf16.xpose.msra.mxu0 0
    %2757 = vmatprep.subr.bf16.mxu0 0
    %2758 = vmatpush1.bf16.xpose.msra.mxu0 0
    %2759 = vmatprep.subr.bf16.mxu0 0
    %2760 = vmatpush1.bf16.xpose.msra.mxu0 0
    %2761 = vmatprep.subr.bf16.mxu0 0
    %2762 = vmatpush1.bf16.xpose.msra.mxu0 0
    %2763 = vmatprep.subr.bf16.mxu0 0
    %2764 = vmatpush1.bf16.xpose.msra.mxu0 0
    %2765 = vmatprep.subr.bf16.mxu0 0
    %2766 = vmatpush1.bf16.xpose.msra.mxu0 0
    %2767 = vmatprep.subr.bf16.mxu0 0
    %2768 = vmatpush1.bf16.xpose.msra.mxu0 0
    %2769 = vmatprep.subr.bf16.mxu0 0
    %2770 = vmatpush1.bf16.xpose.msra.mxu0 0
    %2771 = vmatprep.subr.bf16.mxu0 0
    %2772 = vmatpush1.bf16.xpose.msra.mxu0 0
    %2773 = vmatprep.subr.bf16.mxu0 0
    %2774 = vmatpush1.bf16.xpose.msra.mxu0 0
    %2775 = vmatprep.subr.bf16.mxu0 0
    %2776 = vmatpush1.bf16.xpose.msra.mxu0 0
    %2777 = vmatprep.subr.bf16.mxu0 0
    %2778 = vmatpush1.bf16.xpose.msra.mxu0 0
    %2779 = vmatprep.subr.bf16.mxu0 0
    %2780 = vmatpush1.bf16.xpose.msra.mxu0 0
    %2781 = vmatprep.mubr.bf16.mxu0 0
    %2782 = vmatmul.mubr.bf16.gmra.mrb[0].mxu0 %v2744
    %v2783 = vpop.f32.mrb[0].mxu0
    %v2784 = vadd.f32 %v83, %v2783
    %v2785 = vpop.f32.mrb[0].mxu0
    %v2786 = vpop.f32.mrb[0].mxu0
    %v2787 = vpop.f32.mrb[0].mxu0
    %2788 = vdwg.mxu0
    %v2789 = vsel %vm166, %v2784, -inf
    %2790 = vmax.xlane.f32.xlu0 %v2789
    %v2791 = vpop.xlane.xlu0 %2790
    %v2792 = vsub.f32 %v2784, %v2791
    %v2793 = vmul.f32 %v2792, 1.442695
    %v2794 = vpow.pop %v2793
    %v2795 = vsel %vm166, %v2794, 0.0
    %2796 = vadd.xlane.f32.xlu0 %v2795
    %v2797 = vpop.xlane.xlu0 %2796
    %v2798 = vrcp.pop %v2797
    %v2799 = vmul.f32 %v2794, %v2798
    %v2800 = vpack.c.bf16 %v2799, %v2799
    %2801 = vrot.lane.b32.xlu0 %v2740, 64
    %v2802 = vpop.permute.xlu0 %2801
    %v2804 = vsel %vm166, %v2800, 0
    %v2807 = vsel %vm230, %v2802, 0
    %2809 = vmatprep.subr.bf16.mxu0 0
    %2810 = vmatpush1.bf16.msra.mxu0 %v2807
    %2811 = vmatprep.subr.bf16.mxu0 0
    %2812 = vmatpush1.bf16.msra.mxu0 0
    %2813 = vmatprep.subr.bf16.mxu0 0
    %2814 = vmatpush1.bf16.msra.mxu0 0
    %2815 = vmatprep.subr.bf16.mxu0 0
    %2816 = vmatpush1.bf16.msra.mxu0 0
    %2817 = vmatprep.subr.bf16.mxu0 0
    %2818 = vmatpush1.bf16.msra.mxu0 0
    %2819 = vmatprep.subr.bf16.mxu0 0
    %2820 = vmatpush1.bf16.msra.mxu0 0
    %2821 = vmatprep.subr.bf16.mxu0 0
    %2822 = vmatpush1.bf16.msra.mxu0 0
    %2823 = vmatprep.subr.bf16.mxu0 0
    %2824 = vmatpush1.bf16.msra.mxu0 0
    %2825 = vmatprep.subr.bf16.mxu0 0
    %2826 = vmatpush1.bf16.msra.mxu0 0
    %2827 = vmatprep.subr.bf16.mxu0 0
    %2828 = vmatpush1.bf16.msra.mxu0 0
    %2829 = vmatprep.subr.bf16.mxu0 0
    %2830 = vmatpush1.bf16.msra.mxu0 0
    %2831 = vmatprep.subr.bf16.mxu0 0
    %2832 = vmatpush1.bf16.msra.mxu0 0
    %2833 = vmatprep.subr.bf16.mxu0 0
    %2834 = vmatpush1.bf16.msra.mxu0 0
    %2835 = vmatprep.subr.bf16.mxu0 0
    %2836 = vmatpush1.bf16.msra.mxu0 0
    %2837 = vmatprep.subr.bf16.mxu0 0
    %2838 = vmatpush1.bf16.msra.mxu0 0
    %2839 = vmatprep.subr.bf16.mxu0 0
    %2840 = vmatpush1.bf16.msra.mxu0 0
    %2841 = vmatprep.mubr.bf16.mxu0 0
    %2842 = vmatmul.mubr.bf16.gmra.mrb[0].mxu0 %v2804
    %v2843 = vpop.f32.mrb[0].mxu0
    %v2844 = vadd.f32 0.0, %v2843
    %v2845 = vpop.f32.mrb[0].mxu0
    %v2846 = vpop.f32.mrb[0].mxu0
    %v2847 = vpop.f32.mrb[0].mxu0
    %2848 = vdwg.mxu0
    %2849 = vrot.lane.b32.xlu0 %v2627, 120
    %v2850 = vpop.permute.xlu0 %2849
    %2851 = vrot.lane.b32.xlu0 %v2628, 88
    %v2852 = vpop.permute.xlu0 %2851
    %v2854 = vsel %vm166, %v2850, 0
    %v2857 = vsel %vm166, %v2852, 0
    %2859 = vmatprep.subr.bf16.mxu0 0
    %2860 = vmatpush1.bf16.xpose.msra.mxu0 %v2857
    %2861 = vmatprep.subr.bf16.mxu0 0
    %2862 = vmatpush1.bf16.xpose.msra.mxu0 0
    %2863 = vmatprep.subr.bf16.mxu0 0
    %2864 = vmatpush1.bf16.xpose.msra.mxu0 0
    %2865 = vmatprep.subr.bf16.mxu0 0
    %2866 = vmatpush1.bf16.xpose.msra.mxu0 0
    %2867 = vmatprep.subr.bf16.mxu0 0
    %2868 = vmatpush1.bf16.xpose.msra.mxu0 0
    %2869 = vmatprep.subr.bf16.mxu0 0
    %2870 = vmatpush1.bf16.xpose.msra.mxu0 0
    %2871 = vmatprep.subr.bf16.mxu0 0
    %2872 = vmatpush1.bf16.xpose.msra.mxu0 0
    %2873 = vmatprep.subr.bf16.mxu0 0
    %2874 = vmatpush1.bf16.xpose.msra.mxu0 0
    %2875 = vmatprep.subr.bf16.mxu0 0
    %2876 = vmatpush1.bf16.xpose.msra.mxu0 0
    %2877 = vmatprep.subr.bf16.mxu0 0
    %2878 = vmatpush1.bf16.xpose.msra.mxu0 0
    %2879 = vmatprep.subr.bf16.mxu0 0
    %2880 = vmatpush1.bf16.xpose.msra.mxu0 0
    %2881 = vmatprep.subr.bf16.mxu0 0
    %2882 = vmatpush1.bf16.xpose.msra.mxu0 0
    %2883 = vmatprep.subr.bf16.mxu0 0
    %2884 = vmatpush1.bf16.xpose.msra.mxu0 0
    %2885 = vmatprep.subr.bf16.mxu0 0
    %2886 = vmatpush1.bf16.xpose.msra.mxu0 0
    %2887 = vmatprep.subr.bf16.mxu0 0
    %2888 = vmatpush1.bf16.xpose.msra.mxu0 0
    %2889 = vmatprep.subr.bf16.mxu0 0
    %2890 = vmatpush1.bf16.xpose.msra.mxu0 0
    %2891 = vmatprep.mubr.bf16.mxu0 0
    %2892 = vmatmul.mubr.bf16.gmra.mrb[0].mxu0 %v2854
    %v2893 = vpop.f32.mrb[0].mxu0
    %v2894 = vadd.f32 %v83, %v2893
    %v2895 = vpop.f32.mrb[0].mxu0
    %v2896 = vpop.f32.mrb[0].mxu0
    %v2897 = vpop.f32.mrb[0].mxu0
    %2898 = vdwg.mxu0
    %v2899 = vsel %vm166, %v2894, -inf
    %2900 = vmax.xlane.f32.xlu0 %v2899
    %v2901 = vpop.xlane.xlu0 %2900
    %v2902 = vsub.f32 %v2894, %v2901
    %v2903 = vmul.f32 %v2902, 1.442695
    %v2904 = vpow.pop %v2903
    %v2905 = vsel %vm166, %v2904, 0.0
    %2906 = vadd.xlane.f32.xlu0 %v2905
    %v2907 = vpop.xlane.xlu0 %2906
    %v2908 = vrcp.pop %v2907
    %v2909 = vmul.f32 %v2904, %v2908
    %v2910 = vpack.c.bf16 %v2909, %v2909
    %2911 = vrot.lane.b32.xlu0 %v2628, 56
    %v2912 = vpop.permute.xlu0 %2911
    %v2914 = vsel %vm166, %v2910, 0
    %v2917 = vsel %vm230, %v2912, 0
    %2919 = vmatprep.subr.bf16.mxu0 0
    %2920 = vmatpush1.bf16.msra.mxu0 %v2917
    %2921 = vmatprep.subr.bf16.mxu0 0
    %2922 = vmatpush1.bf16.msra.mxu0 0
    %2923 = vmatprep.subr.bf16.mxu0 0
    %2924 = vmatpush1.bf16.msra.mxu0 0
    %2925 = vmatprep.subr.bf16.mxu0 0
    %2926 = vmatpush1.bf16.msra.mxu0 0
    %2927 = vmatprep.subr.bf16.mxu0 0
    %2928 = vmatpush1.bf16.msra.mxu0 0
    %2929 = vmatprep.subr.bf16.mxu0 0
    %2930 = vmatpush1.bf16.msra.mxu0 0
    %2931 = vmatprep.subr.bf16.mxu0 0
    %2932 = vmatpush1.bf16.msra.mxu0 0
    %2933 = vmatprep.subr.bf16.mxu0 0
    %2934 = vmatpush1.bf16.msra.mxu0 0
    %2935 = vmatprep.subr.bf16.mxu0 0
    %2936 = vmatpush1.bf16.msra.mxu0 0
    %2937 = vmatprep.subr.bf16.mxu0 0
    %2938 = vmatpush1.bf16.msra.mxu0 0
    %2939 = vmatprep.subr.bf16.mxu0 0
    %2940 = vmatpush1.bf16.msra.mxu0 0
    %2941 = vmatprep.subr.bf16.mxu0 0
    %2942 = vmatpush1.bf16.msra.mxu0 0
    %2943 = vmatprep.subr.bf16.mxu0 0
    %2944 = vmatpush1.bf16.msra.mxu0 0
    %2945 = vmatprep.subr.bf16.mxu0 0
    %2946 = vmatpush1.bf16.msra.mxu0 0
    %2947 = vmatprep.subr.bf16.mxu0 0
    %2948 = vmatpush1.bf16.msra.mxu0 0
    %2949 = vmatprep.subr.bf16.mxu0 0
    %2950 = vmatpush1.bf16.msra.mxu0 0
    %2951 = vmatprep.mubr.bf16.mxu0 0
    %2952 = vmatmul.mubr.bf16.gmra.mrb[0].mxu0 %v2914
    %v2953 = vpop.f32.mrb[0].mxu0
    %v2954 = vadd.f32 0.0, %v2953
    %v2955 = vpop.f32.mrb[0].mxu0
    %v2956 = vpop.f32.mrb[0].mxu0
    %v2957 = vpop.f32.mrb[0].mxu0
    %2958 = vdwg.mxu0
    %2959 = vrot.lane.b32.xlu0 %v2739, 120
    %v2960 = vpop.permute.xlu0 %2959
    %2961 = vrot.lane.b32.xlu0 %v2740, 88
    %v2962 = vpop.permute.xlu0 %2961
    %v2964 = vsel %vm166, %v2960, 0
    %v2967 = vsel %vm166, %v2962, 0
    %2969 = vmatprep.subr.bf16.mxu0 0
    %2970 = vmatpush1.bf16.xpose.msra.mxu0 %v2967
    %2971 = vmatprep.subr.bf16.mxu0 0
    %2972 = vmatpush1.bf16.xpose.msra.mxu0 0
    %2973 = vmatprep.subr.bf16.mxu0 0
    %2974 = vmatpush1.bf16.xpose.msra.mxu0 0
    %2975 = vmatprep.subr.bf16.mxu0 0
    %2976 = vmatpush1.bf16.xpose.msra.mxu0 0
    %2977 = vmatprep.subr.bf16.mxu0 0
    %2978 = vmatpush1.bf16.xpose.msra.mxu0 0
    %2979 = vmatprep.subr.bf16.mxu0 0
    %2980 = vmatpush1.bf16.xpose.msra.mxu0 0
    %2981 = vmatprep.subr.bf16.mxu0 0
    %2982 = vmatpush1.bf16.xpose.msra.mxu0 0
    %2983 = vmatprep.subr.bf16.mxu0 0
    %2984 = vmatpush1.bf16.xpose.msra.mxu0 0
    %2985 = vmatprep.subr.bf16.mxu0 0
    %2986 = vmatpush1.bf16.xpose.msra.mxu0 0
    %2987 = vmatprep.subr.bf16.mxu0 0
    %2988 = vmatpush1.bf16.xpose.msra.mxu0 0
    %2989 = vmatprep.subr.bf16.mxu0 0
    %2990 = vmatpush1.bf16.xpose.msra.mxu0 0
    %2991 = vmatprep.subr.bf16.mxu0 0
    %2992 = vmatpush1.bf16.xpose.msra.mxu0 0
    %2993 = vmatprep.subr.bf16.mxu0 0
    %2994 = vmatpush1.bf16.xpose.msra.mxu0 0
    %2995 = vmatprep.subr.bf16.mxu0 0
    %2996 = vmatpush1.bf16.xpose.msra.mxu0 0
    %2997 = vmatprep.subr.bf16.mxu0 0
    %2998 = vmatpush1.bf16.xpose.msra.mxu0 0
    %2999 = vmatprep.subr.bf16.mxu0 0
    %3000 = vmatpush1.bf16.xpose.msra.mxu0 0
    %3001 = vmatprep.mubr.bf16.mxu0 0
    %3002 = vmatmul.mubr.bf16.gmra.mrb[0].mxu0 %v2964
    %v3003 = vpop.f32.mrb[0].mxu0
    %v3004 = vadd.f32 %v83, %v3003
    %v3005 = vpop.f32.mrb[0].mxu0
    %v3006 = vpop.f32.mrb[0].mxu0
    %v3007 = vpop.f32.mrb[0].mxu0
    %3008 = vdwg.mxu0
    %v3009 = vsel %vm166, %v3004, -inf
    %3010 = vmax.xlane.f32.xlu0 %v3009
    %v3011 = vpop.xlane.xlu0 %3010
    %v3012 = vsub.f32 %v3004, %v3011
    %v3013 = vmul.f32 %v3012, 1.442695
    %v3014 = vpow.pop %v3013
    %v3015 = vsel %vm166, %v3014, 0.0
    %3016 = vadd.xlane.f32.xlu0 %v3015
    %v3017 = vpop.xlane.xlu0 %3016
    %v3018 = vrcp.pop %v3017
    %v3019 = vmul.f32 %v3014, %v3018
    %v3020 = vpack.c.bf16 %v3019, %v3019
    %3021 = vrot.lane.b32.xlu0 %v2740, 56
    %v3022 = vpop.permute.xlu0 %3021
    %v3024 = vsel %vm166, %v3020, 0
    %v3027 = vsel %vm230, %v3022, 0
    %3029 = vmatprep.subr.bf16.mxu0 0
    %3030 = vmatpush1.bf16.msra.mxu0 %v3027
    %3031 = vmatprep.subr.bf16.mxu0 0
    %3032 = vmatpush1.bf16.msra.mxu0 0
    %3033 = vmatprep.subr.bf16.mxu0 0
    %3034 = vmatpush1.bf16.msra.mxu0 0
    %3035 = vmatprep.subr.bf16.mxu0 0
    %3036 = vmatpush1.bf16.msra.mxu0 0
    %3037 = vmatprep.subr.bf16.mxu0 0
    %3038 = vmatpush1.bf16.msra.mxu0 0
    %3039 = vmatprep.subr.bf16.mxu0 0
    %3040 = vmatpush1.bf16.msra.mxu0 0
    %3041 = vmatprep.subr.bf16.mxu0 0
    %3042 = vmatpush1.bf16.msra.mxu0 0
    %3043 = vmatprep.subr.bf16.mxu0 0
    %3044 = vmatpush1.bf16.msra.mxu0 0
    %3045 = vmatprep.subr.bf16.mxu0 0
    %3046 = vmatpush1.bf16.msra.mxu0 0
    %3047 = vmatprep.subr.bf16.mxu0 0
    %3048 = vmatpush1.bf16.msra.mxu0 0
    %3049 = vmatprep.subr.bf16.mxu0 0
    %3050 = vmatpush1.bf16.msra.mxu0 0
    %3051 = vmatprep.subr.bf16.mxu0 0
    %3052 = vmatpush1.bf16.msra.mxu0 0
    %3053 = vmatprep.subr.bf16.mxu0 0
    %3054 = vmatpush1.bf16.msra.mxu0 0
    %3055 = vmatprep.subr.bf16.mxu0 0
    %3056 = vmatpush1.bf16.msra.mxu0 0
    %3057 = vmatprep.subr.bf16.mxu0 0
    %3058 = vmatpush1.bf16.msra.mxu0 0
    %3059 = vmatprep.subr.bf16.mxu0 0
    %3060 = vmatpush1.bf16.msra.mxu0 0
    %3061 = vmatprep.mubr.bf16.mxu0 0
    %3062 = vmatmul.mubr.bf16.gmra.mrb[0].mxu0 %v3024
    %v3063 = vpop.f32.mrb[0].mxu0
    %v3064 = vadd.f32 0.0, %v3063
    %v3065 = vpop.f32.mrb[0].mxu0
    %v3066 = vpop.f32.mrb[0].mxu0
    %v3067 = vpop.f32.mrb[0].mxu0
    %3068 = vdwg.mxu0
    %3069 = vrot.lane.b32.xlu0 %v2627, 112
    %v3070 = vpop.permute.xlu0 %3069
    %3071 = vrot.lane.b32.xlu0 %v2628, 80
    %v3072 = vpop.permute.xlu0 %3071
    %v3074 = vsel %vm166, %v3070, 0
    %v3077 = vsel %vm166, %v3072, 0
    %3079 = vmatprep.subr.bf16.mxu0 0
    %3080 = vmatpush1.bf16.xpose.msra.mxu0 %v3077
    %3081 = vmatprep.subr.bf16.mxu0 0
    %3082 = vmatpush1.bf16.xpose.msra.mxu0 0
    %3083 = vmatprep.subr.bf16.mxu0 0
    %3084 = vmatpush1.bf16.xpose.msra.mxu0 0
    %3085 = vmatprep.subr.bf16.mxu0 0
    %3086 = vmatpush1.bf16.xpose.msra.mxu0 0
    %3087 = vmatprep.subr.bf16.mxu0 0
    %3088 = vmatpush1.bf16.xpose.msra.mxu0 0
    %3089 = vmatprep.subr.bf16.mxu0 0
    %3090 = vmatpush1.bf16.xpose.msra.mxu0 0
    %3091 = vmatprep.subr.bf16.mxu0 0
    %3092 = vmatpush1.bf16.xpose.msra.mxu0 0
    %3093 = vmatprep.subr.bf16.mxu0 0
    %3094 = vmatpush1.bf16.xpose.msra.mxu0 0
    %3095 = vmatprep.subr.bf16.mxu0 0
    %3096 = vmatpush1.bf16.xpose.msra.mxu0 0
    %3097 = vmatprep.subr.bf16.mxu0 0
    %3098 = vmatpush1.bf16.xpose.msra.mxu0 0
    %3099 = vmatprep.subr.bf16.mxu0 0
    %3100 = vmatpush1.bf16.xpose.msra.mxu0 0
    %3101 = vmatprep.subr.bf16.mxu0 0
    %3102 = vmatpush1.bf16.xpose.msra.mxu0 0
    %3103 = vmatprep.subr.bf16.mxu0 0
    %3104 = vmatpush1.bf16.xpose.msra.mxu0 0
    %3105 = vmatprep.subr.bf16.mxu0 0
    %3106 = vmatpush1.bf16.xpose.msra.mxu0 0
    %3107 = vmatprep.subr.bf16.mxu0 0
    %3108 = vmatpush1.bf16.xpose.msra.mxu0 0
    %3109 = vmatprep.subr.bf16.mxu0 0
    %3110 = vmatpush1.bf16.xpose.msra.mxu0 0
    %3111 = vmatprep.mubr.bf16.mxu0 0
    %3112 = vmatmul.mubr.bf16.gmra.mrb[0].mxu0 %v3074
    %v3113 = vpop.f32.mrb[0].mxu0
    %v3114 = vadd.f32 %v83, %v3113
    %v3115 = vpop.f32.mrb[0].mxu0
    %v3116 = vpop.f32.mrb[0].mxu0
    %v3117 = vpop.f32.mrb[0].mxu0
    %3118 = vdwg.mxu0
    %v3119 = vsel %vm166, %v3114, -inf
    %3120 = vmax.xlane.f32.xlu0 %v3119
    %v3121 = vpop.xlane.xlu0 %3120
    %v3122 = vsub.f32 %v3114, %v3121
    %v3123 = vmul.f32 %v3122, 1.442695
    %v3124 = vpow.pop %v3123
    %v3125 = vsel %vm166, %v3124, 0.0
    %3126 = vadd.xlane.f32.xlu0 %v3125
    %v3127 = vpop.xlane.xlu0 %3126
    %v3128 = vrcp.pop %v3127
    %v3129 = vmul.f32 %v3124, %v3128
    %v3130 = vpack.c.bf16 %v3129, %v3129
    %3131 = vrot.lane.b32.xlu0 %v2628, 48
    %v3132 = vpop.permute.xlu0 %3131
    %v3134 = vsel %vm166, %v3130, 0
    %v3137 = vsel %vm230, %v3132, 0
    %3139 = vmatprep.subr.bf16.mxu0 0
    %3140 = vmatpush1.bf16.msra.mxu0 %v3137
    %3141 = vmatprep.subr.bf16.mxu0 0
    %3142 = vmatpush1.bf16.msra.mxu0 0
    %3143 = vmatprep.subr.bf16.mxu0 0
    %3144 = vmatpush1.bf16.msra.mxu0 0
    %3145 = vmatprep.subr.bf16.mxu0 0
    %3146 = vmatpush1.bf16.msra.mxu0 0
    %3147 = vmatprep.subr.bf16.mxu0 0
    %3148 = vmatpush1.bf16.msra.mxu0 0
    %3149 = vmatprep.subr.bf16.mxu0 0
    %3150 = vmatpush1.bf16.msra.mxu0 0
    %3151 = vmatprep.subr.bf16.mxu0 0
    %3152 = vmatpush1.bf16.msra.mxu0 0
    %3153 = vmatprep.subr.bf16.mxu0 0
    %3154 = vmatpush1.bf16.msra.mxu0 0
    %3155 = vmatprep.subr.bf16.mxu0 0
    %3156 = vmatpush1.bf16.msra.mxu0 0
    %3157 = vmatprep.subr.bf16.mxu0 0
    %3158 = vmatpush1.bf16.msra.mxu0 0
    %3159 = vmatprep.subr.bf16.mxu0 0
    %3160 = vmatpush1.bf16.msra.mxu0 0
    %3161 = vmatprep.subr.bf16.mxu0 0
    %3162 = vmatpush1.bf16.msra.mxu0 0
    %3163 = vmatprep.subr.bf16.mxu0 0
    %3164 = vmatpush1.bf16.msra.mxu0 0
    %3165 = vmatprep.subr.bf16.mxu0 0
    %3166 = vmatpush1.bf16.msra.mxu0 0
    %3167 = vmatprep.subr.bf16.mxu0 0
    %3168 = vmatpush1.bf16.msra.mxu0 0
    %3169 = vmatprep.subr.bf16.mxu0 0
    %3170 = vmatpush1.bf16.msra.mxu0 0
    %3171 = vmatprep.mubr.bf16.mxu0 0
    %3172 = vmatmul.mubr.bf16.gmra.mrb[0].mxu0 %v3134
    %v3173 = vpop.f32.mrb[0].mxu0
    %v3174 = vadd.f32 0.0, %v3173
    %v3175 = vpop.f32.mrb[0].mxu0
    %v3176 = vpop.f32.mrb[0].mxu0
    %v3177 = vpop.f32.mrb[0].mxu0
    %3178 = vdwg.mxu0
    %3179 = vrot.lane.b32.xlu0 %v2739, 112
    %v3180 = vpop.permute.xlu0 %3179
    %3181 = vrot.lane.b32.xlu0 %v2740, 80
    %v3182 = vpop.permute.xlu0 %3181
    %v3184 = vsel %vm166, %v3180, 0
    %v3187 = vsel %vm166, %v3182, 0
    %3189 = vmatprep.subr.bf16.mxu0 0
    %3190 = vmatpush1.bf16.xpose.msra.mxu0 %v3187
    %3191 = vmatprep.subr.bf16.mxu0 0
    %3192 = vmatpush1.bf16.xpose.msra.mxu0 0
    %3193 = vmatprep.subr.bf16.mxu0 0
    %3194 = vmatpush1.bf16.xpose.msra.mxu0 0
    %3195 = vmatprep.subr.bf16.mxu0 0
    %3196 = vmatpush1.bf16.xpose.msra.mxu0 0
    %3197 = vmatprep.subr.bf16.mxu0 0
    %3198 = vmatpush1.bf16.xpose.msra.mxu0 0
    %3199 = vmatprep.subr.bf16.mxu0 0
    %3200 = vmatpush1.bf16.xpose.msra.mxu0 0
    %3201 = vmatprep.subr.bf16.mxu0 0
    %3202 = vmatpush1.bf16.xpose.msra.mxu0 0
    %3203 = vmatprep.subr.bf16.mxu0 0
    %3204 = vmatpush1.bf16.xpose.msra.mxu0 0
    %3205 = vmatprep.subr.bf16.mxu0 0
    %3206 = vmatpush1.bf16.xpose.msra.mxu0 0
    %3207 = vmatprep.subr.bf16.mxu0 0
    %3208 = vmatpush1.bf16.xpose.msra.mxu0 0
    %3209 = vmatprep.subr.bf16.mxu0 0
    %3210 = vmatpush1.bf16.xpose.msra.mxu0 0
    %3211 = vmatprep.subr.bf16.mxu0 0
    %3212 = vmatpush1.bf16.xpose.msra.mxu0 0
    %3213 = vmatprep.subr.bf16.mxu0 0
    %3214 = vmatpush1.bf16.xpose.msra.mxu0 0
    %3215 = vmatprep.subr.bf16.mxu0 0
    %3216 = vmatpush1.bf16.xpose.msra.mxu0 0
    %3217 = vmatprep.subr.bf16.mxu0 0
    %3218 = vmatpush1.bf16.xpose.msra.mxu0 0
    %3219 = vmatprep.subr.bf16.mxu0 0
    %3220 = vmatpush1.bf16.xpose.msra.mxu0 0
    %3221 = vmatprep.mubr.bf16.mxu0 0
    %3222 = vmatmul.mubr.bf16.gmra.mrb[0].mxu0 %v3184
    %v3223 = vpop.f32.mrb[0].mxu0
    %v3224 = vadd.f32 %v83, %v3223
    %v3225 = vpop.f32.mrb[0].mxu0
    %v3226 = vpop.f32.mrb[0].mxu0
    %v3227 = vpop.f32.mrb[0].mxu0
    %3228 = vdwg.mxu0
    %v3229 = vsel %vm166, %v3224, -inf
    %3230 = vmax.xlane.f32.xlu0 %v3229
    %v3231 = vpop.xlane.xlu0 %3230
    %v3232 = vsub.f32 %v3224, %v3231
    %v3233 = vmul.f32 %v3232, 1.442695
    %v3234 = vpow.pop %v3233
    %v3235 = vsel %vm166, %v3234, 0.0
    %3236 = vadd.xlane.f32.xlu0 %v3235
    %v3237 = vpop.xlane.xlu0 %3236
    %v3238 = vrcp.pop %v3237
    %v3239 = vmul.f32 %v3234, %v3238
    %v3240 = vpack.c.bf16 %v3239, %v3239
    %3241 = vrot.lane.b32.xlu0 %v2740, 48
    %v3242 = vpop.permute.xlu0 %3241
    %v3244 = vsel %vm166, %v3240, 0
    %v3247 = vsel %vm230, %v3242, 0
    %3249 = vmatprep.subr.bf16.mxu0 0
    %3250 = vmatpush1.bf16.msra.mxu0 %v3247
    %3251 = vmatprep.subr.bf16.mxu0 0
    %3252 = vmatpush1.bf16.msra.mxu0 0
    %3253 = vmatprep.subr.bf16.mxu0 0
    %3254 = vmatpush1.bf16.msra.mxu0 0
    %3255 = vmatprep.subr.bf16.mxu0 0
    %3256 = vmatpush1.bf16.msra.mxu0 0
    %3257 = vmatprep.subr.bf16.mxu0 0
    %3258 = vmatpush1.bf16.msra.mxu0 0
    %3259 = vmatprep.subr.bf16.mxu0 0
    %3260 = vmatpush1.bf16.msra.mxu0 0
    %3261 = vmatprep.subr.bf16.mxu0 0
    %3262 = vmatpush1.bf16.msra.mxu0 0
    %3263 = vmatprep.subr.bf16.mxu0 0
    %3264 = vmatpush1.bf16.msra.mxu0 0
    %3265 = vmatprep.subr.bf16.mxu0 0
    %3266 = vmatpush1.bf16.msra.mxu0 0
    %3267 = vmatprep.subr.bf16.mxu0 0
    %3268 = vmatpush1.bf16.msra.mxu0 0
    %3269 = vmatprep.subr.bf16.mxu0 0
    %3270 = vmatpush1.bf16.msra.mxu0 0
    %3271 = vmatprep.subr.bf16.mxu0 0
    %3272 = vmatpush1.bf16.msra.mxu0 0
    %3273 = vmatprep.subr.bf16.mxu0 0
    %3274 = vmatpush1.bf16.msra.mxu0 0
    %3275 = vmatprep.subr.bf16.mxu0 0
    %3276 = vmatpush1.bf16.msra.mxu0 0
    %3277 = vmatprep.subr.bf16.mxu0 0
    %3278 = vmatpush1.bf16.msra.mxu0 0
    %3279 = vmatprep.subr.bf16.mxu0 0
    %3280 = vmatpush1.bf16.msra.mxu0 0
    %3281 = vmatprep.mubr.bf16.mxu0 0
    %3282 = vmatmul.mubr.bf16.gmra.mrb[0].mxu0 %v3244
    %v3283 = vpop.f32.mrb[0].mxu0
    %v3284 = vadd.f32 0.0, %v3283
    %v3285 = vpop.f32.mrb[0].mxu0
    %v3286 = vpop.f32.mrb[0].mxu0
    %v3287 = vpop.f32.mrb[0].mxu0
    %3288 = vdwg.mxu0
    %3289 = vrot.lane.b32.xlu0 %v2627, 104
    %v3290 = vpop.permute.xlu0 %3289
    %3291 = vrot.lane.b32.xlu0 %v2628, 72
    %v3292 = vpop.permute.xlu0 %3291
    %v3294 = vsel %vm166, %v3290, 0
    %v3297 = vsel %vm166, %v3292, 0
    %3299 = vmatprep.subr.bf16.mxu0 0
    %3300 = vmatpush1.bf16.xpose.msra.mxu0 %v3297
    %3301 = vmatprep.subr.bf16.mxu0 0
    %3302 = vmatpush1.bf16.xpose.msra.mxu0 0
    %3303 = vmatprep.subr.bf16.mxu0 0
    %3304 = vmatpush1.bf16.xpose.msra.mxu0 0
    %3305 = vmatprep.subr.bf16.mxu0 0
    %3306 = vmatpush1.bf16.xpose.msra.mxu0 0
    %3307 = vmatprep.subr.bf16.mxu0 0
    %3308 = vmatpush1.bf16.xpose.msra.mxu0 0
    %3309 = vmatprep.subr.bf16.mxu0 0
    %3310 = vmatpush1.bf16.xpose.msra.mxu0 0
    %3311 = vmatprep.subr.bf16.mxu0 0
    %3312 = vmatpush1.bf16.xpose.msra.mxu0 0
    %3313 = vmatprep.subr.bf16.mxu0 0
    %3314 = vmatpush1.bf16.xpose.msra.mxu0 0
    %3315 = vmatprep.subr.bf16.mxu0 0
    %3316 = vmatpush1.bf16.xpose.msra.mxu0 0
    %3317 = vmatprep.subr.bf16.mxu0 0
    %3318 = vmatpush1.bf16.xpose.msra.mxu0 0
    %3319 = vmatprep.subr.bf16.mxu0 0
    %3320 = vmatpush1.bf16.xpose.msra.mxu0 0
    %3321 = vmatprep.subr.bf16.mxu0 0
    %3322 = vmatpush1.bf16.xpose.msra.mxu0 0
    %3323 = vmatprep.subr.bf16.mxu0 0
    %3324 = vmatpush1.bf16.xpose.msra.mxu0 0
    %3325 = vmatprep.subr.bf16.mxu0 0
    %3326 = vmatpush1.bf16.xpose.msra.mxu0 0
    %3327 = vmatprep.subr.bf16.mxu0 0
    %3328 = vmatpush1.bf16.xpose.msra.mxu0 0
    %3329 = vmatprep.subr.bf16.mxu0 0
    %3330 = vmatpush1.bf16.xpose.msra.mxu0 0
    %3331 = vmatprep.mubr.bf16.mxu0 0
    %3332 = vmatmul.mubr.bf16.gmra.mrb[0].mxu0 %v3294
    %v3333 = vpop.f32.mrb[0].mxu0
    %v3334 = vadd.f32 %v83, %v3333
    %v3335 = vpop.f32.mrb[0].mxu0
    %v3336 = vpop.f32.mrb[0].mxu0
    %v3337 = vpop.f32.mrb[0].mxu0
    %3338 = vdwg.mxu0
    %v3339 = vsel %vm166, %v3334, -inf
    %3340 = vmax.xlane.f32.xlu0 %v3339
    %v3341 = vpop.xlane.xlu0 %3340
    %v3342 = vsub.f32 %v3334, %v3341
    %v3343 = vmul.f32 %v3342, 1.442695
    %v3344 = vpow.pop %v3343
    %v3345 = vsel %vm166, %v3344, 0.0
    %3346 = vadd.xlane.f32.xlu0 %v3345
    %v3347 = vpop.xlane.xlu0 %3346
    %v3348 = vrcp.pop %v3347
    %v3349 = vmul.f32 %v3344, %v3348
    %v3350 = vpack.c.bf16 %v3349, %v3349
    %3351 = vrot.lane.b32.xlu0 %v2628, 40
    %v3352 = vpop.permute.xlu0 %3351
    %v3354 = vsel %vm166, %v3350, 0
    %v3357 = vsel %vm230, %v3352, 0
    %3359 = vmatprep.subr.bf16.mxu0 0
    %3360 = vmatpush1.bf16.msra.mxu0 %v3357
    %3361 = vmatprep.subr.bf16.mxu0 0
    %3362 = vmatpush1.bf16.msra.mxu0 0
    %3363 = vmatprep.subr.bf16.mxu0 0
    %3364 = vmatpush1.bf16.msra.mxu0 0
    %3365 = vmatprep.subr.bf16.mxu0 0
    %3366 = vmatpush1.bf16.msra.mxu0 0
    %3367 = vmatprep.subr.bf16.mxu0 0
    %3368 = vmatpush1.bf16.msra.mxu0 0
    %3369 = vmatprep.subr.bf16.mxu0 0
    %3370 = vmatpush1.bf16.msra.mxu0 0
    %3371 = vmatprep.subr.bf16.mxu0 0
    %3372 = vmatpush1.bf16.msra.mxu0 0
    %3373 = vmatprep.subr.bf16.mxu0 0
    %3374 = vmatpush1.bf16.msra.mxu0 0
    %3375 = vmatprep.subr.bf16.mxu0 0
    %3376 = vmatpush1.bf16.msra.mxu0 0
    %3377 = vmatprep.subr.bf16.mxu0 0
    %3378 = vmatpush1.bf16.msra.mxu0 0
    %3379 = vmatprep.subr.bf16.mxu0 0
    %3380 = vmatpush1.bf16.msra.mxu0 0
    %3381 = vmatprep.subr.bf16.mxu0 0
    %3382 = vmatpush1.bf16.msra.mxu0 0
    %3383 = vmatprep.subr.bf16.mxu0 0
    %3384 = vmatpush1.bf16.msra.mxu0 0
    %3385 = vmatprep.subr.bf16.mxu0 0
    %3386 = vmatpush1.bf16.msra.mxu0 0
    %3387 = vmatprep.subr.bf16.mxu0 0
    %3388 = vmatpush1.bf16.msra.mxu0 0
    %3389 = vmatprep.subr.bf16.mxu0 0
    %3390 = vmatpush1.bf16.msra.mxu0 0
    %3391 = vmatprep.mubr.bf16.mxu0 0
    %3392 = vmatmul.mubr.bf16.gmra.mrb[0].mxu0 %v3354
    %v3393 = vpop.f32.mrb[0].mxu0
    %v3394 = vadd.f32 0.0, %v3393
    %v3395 = vpop.f32.mrb[0].mxu0
    %v3396 = vpop.f32.mrb[0].mxu0
    %v3397 = vpop.f32.mrb[0].mxu0
    %3398 = vdwg.mxu0
    %3399 = vrot.lane.b32.xlu0 %v2739, 104
    %v3400 = vpop.permute.xlu0 %3399
    %3401 = vrot.lane.b32.xlu0 %v2740, 72
    %v3402 = vpop.permute.xlu0 %3401
    %v3404 = vsel %vm166, %v3400, 0
    %v3407 = vsel %vm166, %v3402, 0
    %3409 = vmatprep.subr.bf16.mxu0 0
    %3410 = vmatpush1.bf16.xpose.msra.mxu0 %v3407
    %3411 = vmatprep.subr.bf16.mxu0 0
    %3412 = vmatpush1.bf16.xpose.msra.mxu0 0
    %3413 = vmatprep.subr.bf16.mxu0 0
    %3414 = vmatpush1.bf16.xpose.msra.mxu0 0
    %3415 = vmatprep.subr.bf16.mxu0 0
    %3416 = vmatpush1.bf16.xpose.msra.mxu0 0
    %3417 = vmatprep.subr.bf16.mxu0 0
    %3418 = vmatpush1.bf16.xpose.msra.mxu0 0
    %3419 = vmatprep.subr.bf16.mxu0 0
    %3420 = vmatpush1.bf16.xpose.msra.mxu0 0
    %3421 = vmatprep.subr.bf16.mxu0 0
    %3422 = vmatpush1.bf16.xpose.msra.mxu0 0
    %3423 = vmatprep.subr.bf16.mxu0 0
    %3424 = vmatpush1.bf16.xpose.msra.mxu0 0
    %3425 = vmatprep.subr.bf16.mxu0 0
    %3426 = vmatpush1.bf16.xpose.msra.mxu0 0
    %3427 = vmatprep.subr.bf16.mxu0 0
    %3428 = vmatpush1.bf16.xpose.msra.mxu0 0
    %3429 = vmatprep.subr.bf16.mxu0 0
    %3430 = vmatpush1.bf16.xpose.msra.mxu0 0
    %3431 = vmatprep.subr.bf16.mxu0 0
    %3432 = vmatpush1.bf16.xpose.msra.mxu0 0
    %3433 = vmatprep.subr.bf16.mxu0 0
    %3434 = vmatpush1.bf16.xpose.msra.mxu0 0
    %3435 = vmatprep.subr.bf16.mxu0 0
    %3436 = vmatpush1.bf16.xpose.msra.mxu0 0
    %3437 = vmatprep.subr.bf16.mxu0 0
    %3438 = vmatpush1.bf16.xpose.msra.mxu0 0
    %3439 = vmatprep.subr.bf16.mxu0 0
    %3440 = vmatpush1.bf16.xpose.msra.mxu0 0
    %3441 = vmatprep.mubr.bf16.mxu0 0
    %3442 = vmatmul.mubr.bf16.gmra.mrb[0].mxu0 %v3404
    %v3443 = vpop.f32.mrb[0].mxu0
    %v3444 = vadd.f32 %v83, %v3443
    %v3445 = vpop.f32.mrb[0].mxu0
    %v3446 = vpop.f32.mrb[0].mxu0
    %v3447 = vpop.f32.mrb[0].mxu0
    %3448 = vdwg.mxu0
    %v3449 = vsel %vm166, %v3444, -inf
    %3450 = vmax.xlane.f32.xlu0 %v3449
    %v3451 = vpop.xlane.xlu0 %3450
    %v3452 = vsub.f32 %v3444, %v3451
    %v3453 = vmul.f32 %v3452, 1.442695
    %v3454 = vpow.pop %v3453
    %v3455 = vsel %vm166, %v3454, 0.0
    %3456 = vadd.xlane.f32.xlu0 %v3455
    %v3457 = vpop.xlane.xlu0 %3456
    %v3458 = vrcp.pop %v3457
    %v3459 = vmul.f32 %v3454, %v3458
    %v3460 = vpack.c.bf16 %v3459, %v3459
    %3461 = vrot.lane.b32.xlu0 %v2740, 40
    %v3462 = vpop.permute.xlu0 %3461
    %v3464 = vsel %vm166, %v3460, 0
    %v3467 = vsel %vm230, %v3462, 0
    %3469 = vmatprep.subr.bf16.mxu0 0
    %3470 = vmatpush1.bf16.msra.mxu0 %v3467
    %3471 = vmatprep.subr.bf16.mxu0 0
    %3472 = vmatpush1.bf16.msra.mxu0 0
    %3473 = vmatprep.subr.bf16.mxu0 0
    %3474 = vmatpush1.bf16.msra.mxu0 0
    %3475 = vmatprep.subr.bf16.mxu0 0
    %3476 = vmatpush1.bf16.msra.mxu0 0
    %3477 = vmatprep.subr.bf16.mxu0 0
    %3478 = vmatpush1.bf16.msra.mxu0 0
    %3479 = vmatprep.subr.bf16.mxu0 0
    %3480 = vmatpush1.bf16.msra.mxu0 0
    %3481 = vmatprep.subr.bf16.mxu0 0
    %3482 = vmatpush1.bf16.msra.mxu0 0
    %3483 = vmatprep.subr.bf16.mxu0 0
    %3484 = vmatpush1.bf16.msra.mxu0 0
    %3485 = vmatprep.subr.bf16.mxu0 0
    %3486 = vmatpush1.bf16.msra.mxu0 0
    %3487 = vmatprep.subr.bf16.mxu0 0
    %3488 = vmatpush1.bf16.msra.mxu0 0
    %3489 = vmatprep.subr.bf16.mxu0 0
    %3490 = vmatpush1.bf16.msra.mxu0 0
    %3491 = vmatprep.subr.bf16.mxu0 0
    %3492 = vmatpush1.bf16.msra.mxu0 0
    %3493 = vmatprep.subr.bf16.mxu0 0
    %3494 = vmatpush1.bf16.msra.mxu0 0
    %3495 = vmatprep.subr.bf16.mxu0 0
    %3496 = vmatpush1.bf16.msra.mxu0 0
    %3497 = vmatprep.subr.bf16.mxu0 0
    %3498 = vmatpush1.bf16.msra.mxu0 0
    %3499 = vmatprep.subr.bf16.mxu0 0
    %3500 = vmatpush1.bf16.msra.mxu0 0
    %3501 = vmatprep.mubr.bf16.mxu0 0
    %3502 = vmatmul.mubr.bf16.gmra.mrb[0].mxu0 %v3464
    %v3503 = vpop.f32.mrb[0].mxu0
    %v3504 = vadd.f32 0.0, %v3503
    %v3505 = vpop.f32.mrb[0].mxu0
    %v3506 = vpop.f32.mrb[0].mxu0
    %v3507 = vpop.f32.mrb[0].mxu0
    %3508 = vdwg.mxu0
    %3511 = vrot.lane.b32.xlu0 %v2954, 8
    %v3512 = vpop.permute.xlu0 %3511
    %3513 = vrot.lane.b32.xlu0 %v3064, 8
    %v3514 = vpop.permute.xlu0 %3513
    %3519 = vrot.lane.b32.xlu0 %v3174, 16
    %v3520 = vpop.permute.xlu0 %3519
    %3521 = vrot.lane.b32.xlu0 %v3284, 16
    %v3522 = vpop.permute.xlu0 %3521
    %3527 = vrot.lane.b32.xlu0 %v3394, 24
    %v3528 = vpop.permute.xlu0 %3527
    %3529 = vrot.lane.b32.xlu0 %v3504, 24
    %v3530 = vpop.permute.xlu0 %3529
    %v3533 = vsel %vm166, %v2733, %v3512
    %v3534 = vsel %vm166, %v2844, %v3514
    %v3535 = vsel %vm1071, %v3533, %v3520
    %v3536 = vsel %vm1071, %v3534, %v3522
    %v3537 = vsel %vm1074, %v3535, %v3528
    %v3538 = vsel %vm1074, %v3536, %v3530
    %v3539 = vpack.c.bf16 %v3538, %v3537
    %v3541 = vlaneseq
    %v3542 = vshrl.u32 %v3541, 7
    %v3543 = vsub.s32 0, %v3542
    %v3544 = vrot.slane %v2626, %v3543
    %v3550 = vunpack.c.l.b16 %v2621
    %v3551 = vunpack.c.l.b16 %v2622
    %v3552 = vunpack.c.l.b16 %v2623
    %v3553 = vunpack.c.l.b16 %v2624
    %v3554 = vpack.c.b16 %v3551, %v3550
    %v3555 = vpack.c.b16 %v3553, %v3552
    %v3559 = vsel %vm109, %v3539, 0
    %3561 = vmatprep.subr.bf16.mxu0 0
    %3562 = vmatpush1.bf16.msra.mxu0 %v3554
    %3563 = vmatprep.subr.bf16.mxu0 0
    %3564 = vmatpush1.bf16.msra.mxu0 %v3555
    %3565 = vmatprep.subr.bf16.mxu0 0
    %3566 = vmatpush1.bf16.msra.mxu0 0
    %3567 = vmatprep.subr.bf16.mxu0 0
    %3568 = vmatpush1.bf16.msra.mxu0 0
    %3569 = vmatprep.subr.bf16.mxu0 0
    %3570 = vmatpush1.bf16.msra.mxu0 0
    %3571 = vmatprep.subr.bf16.mxu0 0
    %3572 = vmatpush1.bf16.msra.mxu0 0
    %3573 = vmatprep.subr.bf16.mxu0 0
    %3574 = vmatpush1.bf16.msra.mxu0 0
    %3575 = vmatprep.subr.bf16.mxu0 0
    %3576 = vmatpush1.bf16.msra.mxu0 0
    %3577 = vmatprep.subr.bf16.mxu0 0
    %3578 = vmatpush1.bf16.msra.mxu0 0
    %3579 = vmatprep.subr.bf16.mxu0 0
    %3580 = vmatpush1.bf16.msra.mxu0 0
    %3581 = vmatprep.subr.bf16.mxu0 0
    %3582 = vmatpush1.bf16.msra.mxu0 0
    %3583 = vmatprep.subr.bf16.mxu0 0
    %3584 = vmatpush1.bf16.msra.mxu0 0
    %3585 = vmatprep.subr.bf16.mxu0 0
    %3586 = vmatpush1.bf16.msra.mxu0 0
    %3587 = vmatprep.subr.bf16.mxu0 0
    %3588 = vmatpush1.bf16.msra.mxu0 0
    %3589 = vmatprep.subr.bf16.mxu0 0
    %3590 = vmatpush1.bf16.msra.mxu0 0
    %3591 = vmatprep.subr.bf16.mxu0 0
    %3592 = vmatpush1.bf16.msra.mxu0 0
    %3593 = vmatprep.mubr.bf16.mxu0 0
    %3594 = vmatmul.mubr.bf16.gmra.mrb[0].mxu0 %v3559
    %v3595 = vpop.f32.mrb[0].mxu0
    %v3596 = vadd.f32 %v3544, %v3595
    %v3597 = vpop.f32.mrb[0].mxu0
    %v3598 = vpop.f32.mrb[0].mxu0
    %v3599 = vadd.f32 %v3544, %v3598
    %v3600 = vpop.f32.mrb[0].mxu0
    %3601 = vdwg.mxu0
    %v3602 = vadd.f32 %v2546, %v3596
    %v3603 = vadd.f32 %v2547, %v3599
    %s3604 = scalar_lea.vmem %s18, 1
    %v3605 = vld [vmem:[%s3604] sm:$0x1]
    %s3606 = scalar_lea.vmem %s19, 1
    %v3607 = vld [vmem:[%s3606] sm:$0x1]
    %v3608 = vsel %vm109, %v3602, 0.0
    %3609 = vadd.xlane.f32.xlu0 %v3608
    %v3610 = vpop.xlane.xlu0 %3609
    %v3611 = vsel %vm109, %v3603, 0.0
    %3612 = vadd.xlane.f32.xlu0 %v3611
    %v3613 = vpop.xlane.xlu0 %3612
    %v3614 = vmul.f32 %v3610, %v1150
    %v3615 = vmul.f32 %v3613, %v1150
    %v3616 = vsub.f32 %v3602, %v3614
    %v3617 = vsub.f32 %v3603, %v3615
    %v3618 = vmul.f32 %v3616, %v3616
    %v3619 = vmul.f32 %v3617, %v3617
    %v3620 = vsel %vm109, %v3618, 0.0
    %3621 = vadd.xlane.f32.xlu0 %v3620
    %v3622 = vpop.xlane.xlu0 %3621
    %v3623 = vsel %vm109, %v3619, 0.0
    %3624 = vadd.xlane.f32.xlu0 %v3623
    %v3625 = vpop.xlane.xlu0 %3624
    %v3626 = vmul.f32 %v3622, %v1150
    %v3627 = vmul.f32 %v3625, %v1150
    %v3628 = vadd.f32 %v3626, 1e-05
    %v3629 = vadd.f32 %v3627, 1e-05
    %v3630 = vrsqrt.pop %v3628
    %v3631 = vrsqrt.pop %v3629
    %v3632 = vmul.f32 %v3616, %v3630
    %v3633 = vmul.f32 %v3617, %v3631
    %v3635 = vlaneseq
    %v3636 = vshrl.u32 %v3635, 7
    %v3637 = vsub.s32 0, %v3636
    %v3638 = vrot.slane %v3605, %v3637
    %v3640 = vmul.f32 %v3632, %v3638
    %v3641 = vmul.f32 %v3633, %v3638
    %v3643 = vlaneseq
    %v3644 = vshrl.u32 %v3643, 7
    %v3645 = vsub.s32 0, %v3644
    %v3646 = vrot.slane %v3607, %v3645
    %v3648 = vadd.f32 %v3640, %v3646
    %v3649 = vadd.f32 %v3641, %v3646
    %s3650 = scalar_lea.vmem %s8, 16
    %v3651 = vld [vmem:[%s3650] sm:$0xf]
    %v3652 = vld [vmem:[%s3650 + $0x4] sm:$0xf]
    %v3653 = vld [vmem:[%s3650 + $0x8] sm:$0xf]
    %v3654 = vld [vmem:[%s3650 + $0xc] sm:$0xf]
    %v3655 = vpack.c.bf16 %v3649, %v3648
    %s3656 = scalar_lea.vmem %s9, 1
    %v3657 = vld [vmem:[%s3656] sm:$0x1]
    %v3659 = vlaneseq
    %v3660 = vshrl.u32 %v3659, 7
    %v3661 = vsub.s32 0, %v3660
    %v3662 = vrot.slane %v3657, %v3661
    %v3668 = vunpack.c.l.b16 %v3651
    %v3669 = vunpack.c.l.b16 %v3652
    %v3670 = vunpack.c.l.b16 %v3653
    %v3671 = vunpack.c.l.b16 %v3654
    %v3672 = vpack.c.b16 %v3669, %v3668
    %v3673 = vpack.c.b16 %v3671, %v3670
    %v3677 = vsel %vm109, %v3655, 0
    %3679 = vmatprep.subr.bf16.mxu0 0
    %3680 = vmatpush1.bf16.msra.mxu0 %v3672
    %3681 = vmatprep.subr.bf16.mxu0 0
    %3682 = vmatpush1.bf16.msra.mxu0 %v3673
    %3683 = vmatprep.subr.bf16.mxu0 0
    %3684 = vmatpush1.bf16.msra.mxu0 0
    %3685 = vmatprep.subr.bf16.mxu0 0
    %3686 = vmatpush1.bf16.msra.mxu0 0
    %3687 = vmatprep.subr.bf16.mxu0 0
    %3688 = vmatpush1.bf16.msra.mxu0 0
    %3689 = vmatprep.subr.bf16.mxu0 0
    %3690 = vmatpush1.bf16.msra.mxu0 0
    %3691 = vmatprep.subr.bf16.mxu0 0
    %3692 = vmatpush1.bf16.msra.mxu0 0
    %3693 = vmatprep.subr.bf16.mxu0 0
    %3694 = vmatpush1.bf16.msra.mxu0 0
    %3695 = vmatprep.subr.bf16.mxu0 0
    %3696 = vmatpush1.bf16.msra.mxu0 0
    %3697 = vmatprep.subr.bf16.mxu0 0
    %3698 = vmatpush1.bf16.msra.mxu0 0
    %3699 = vmatprep.subr.bf16.mxu0 0
    %3700 = vmatpush1.bf16.msra.mxu0 0
    %3701 = vmatprep.subr.bf16.mxu0 0
    %3702 = vmatpush1.bf16.msra.mxu0 0
    %3703 = vmatprep.subr.bf16.mxu0 0
    %3704 = vmatpush1.bf16.msra.mxu0 0
    %3705 = vmatprep.subr.bf16.mxu0 0
    %3706 = vmatpush1.bf16.msra.mxu0 0
    %3707 = vmatprep.subr.bf16.mxu0 0
    %3708 = vmatpush1.bf16.msra.mxu0 0
    %3709 = vmatprep.subr.bf16.mxu0 0
    %3710 = vmatpush1.bf16.msra.mxu0 0
    %3711 = vmatprep.mubr.bf16.mxu0 0
    %3712 = vmatmul.mubr.bf16.gmra.mrb[0].mxu0 %v3677
    %v3713 = vpop.f32.mrb[0].mxu0
    %v3714 = vadd.f32 %v3662, %v3713
    %v3715 = vpop.f32.mrb[0].mxu0
    %v3716 = vpop.f32.mrb[0].mxu0
    %v3717 = vadd.f32 %v3662, %v3716
    %v3718 = vpop.f32.mrb[0].mxu0
    %3719 = vdwg.mxu0
    %v3720 = vmul.f32 %v3714, 0.35355338
    %v3721 = vmul.f32 %v3717, 0.35355338
    %s3722 = scalar_lea.vmem %s10, 16
    %v3723 = vld [vmem:[%s3722] sm:$0xf]
    %v3724 = vld [vmem:[%s3722 + $0x4] sm:$0xf]
    %v3725 = vld [vmem:[%s3722 + $0x8] sm:$0xf]
    %v3726 = vld [vmem:[%s3722 + $0xc] sm:$0xf]
    %s3727 = scalar_lea.vmem %s11, 1
    %v3728 = vld [vmem:[%s3727] sm:$0x1]
    %v3730 = vlaneseq
    %v3731 = vshrl.u32 %v3730, 7
    %v3732 = vsub.s32 0, %v3731
    %v3733 = vrot.slane %v3728, %v3732
    %v3739 = vunpack.c.l.b16 %v3723
    %v3740 = vunpack.c.l.b16 %v3724
    %v3741 = vunpack.c.l.b16 %v3725
    %v3742 = vunpack.c.l.b16 %v3726
    %v3743 = vpack.c.b16 %v3740, %v3739
    %v3744 = vpack.c.b16 %v3742, %v3741
    %3747 = vmatprep.subr.bf16.mxu0 0
    %3748 = vmatpush1.bf16.msra.mxu0 %v3743
    %3749 = vmatprep.subr.bf16.mxu0 0
    %3750 = vmatpush1.bf16.msra.mxu0 %v3744
    %3751 = vmatprep.subr.bf16.mxu0 0
    %3752 = vmatpush1.bf16.msra.mxu0 0
    %3753 = vmatprep.subr.bf16.mxu0 0
    %3754 = vmatpush1.bf16.msra.mxu0 0
    %3755 = vmatprep.subr.bf16.mxu0 0
    %3756 = vmatpush1.bf16.msra.mxu0 0
    %3757 = vmatprep.subr.bf16.mxu0 0
    %3758 = vmatpush1.bf16.msra.mxu0 0
    %3759 = vmatprep.subr.bf16.mxu0 0
    %3760 = vmatpush1.bf16.msra.mxu0 0
    %3761 = vmatprep.subr.bf16.mxu0 0
    %3762 = vmatpush1.bf16.msra.mxu0 0
    %3763 = vmatprep.subr.bf16.mxu0 0
    %3764 = vmatpush1.bf16.msra.mxu0 0
    %3765 = vmatprep.subr.bf16.mxu0 0
    %3766 = vmatpush1.bf16.msra.mxu0 0
    %3767 = vmatprep.subr.bf16.mxu0 0
    %3768 = vmatpush1.bf16.msra.mxu0 0
    %3769 = vmatprep.subr.bf16.mxu0 0
    %3770 = vmatpush1.bf16.msra.mxu0 0
    %3771 = vmatprep.subr.bf16.mxu0 0
    %3772 = vmatpush1.bf16.msra.mxu0 0
    %3773 = vmatprep.subr.bf16.mxu0 0
    %3774 = vmatpush1.bf16.msra.mxu0 0
    %3775 = vmatprep.subr.bf16.mxu0 0
    %3776 = vmatpush1.bf16.msra.mxu0 0
    %3777 = vmatprep.subr.bf16.mxu0 0
    %3778 = vmatpush1.bf16.msra.mxu0 0
    %3779 = vmatprep.mubr.bf16.mxu0 0
    %3780 = vmatmul.mubr.bf16.gmra.mrb[0].mxu0 %v1282
    %v3781 = vpop.f32.mrb[0].mxu0
    %v3782 = vadd.f32 %v3733, %v3781
    %v3783 = vpop.f32.mrb[0].mxu0
    %v3784 = vpop.f32.mrb[0].mxu0
    %v3785 = vadd.f32 %v3733, %v3784
    %v3786 = vpop.f32.mrb[0].mxu0
    %3787 = vdwg.mxu0
    %s3788 = scalar_lea.vmem %s12, 16
    %v3789 = vld [vmem:[%s3788] sm:$0xf]
    %v3790 = vld [vmem:[%s3788 + $0x4] sm:$0xf]
    %v3791 = vld [vmem:[%s3788 + $0x8] sm:$0xf]
    %v3792 = vld [vmem:[%s3788 + $0xc] sm:$0xf]
    %s3793 = scalar_lea.vmem %s13, 1
    %v3794 = vld [vmem:[%s3793] sm:$0x1]
    %v3795 = vpack.c.bf16 %v3721, %v3720
    %v3796 = vpack.c.bf16 %v3785, %v3782
    %v3798 = vsel %vm166, %v3795, 0
    %v3801 = vsel %vm166, %v3796, 0
    %3803 = vmatprep.subr.bf16.mxu0 0
    %3804 = vmatpush1.bf16.xpose.msra.mxu0 %v3801
    %3805 = vmatprep.subr.bf16.mxu0 0
    %3806 = vmatpush1.bf16.xpose.msra.mxu0 0
    %3807 = vmatprep.subr.bf16.mxu0 0
    %3808 = vmatpush1.bf16.xpose.msra.mxu0 0
    %3809 = vmatprep.subr.bf16.mxu0 0
    %3810 = vmatpush1.bf16.xpose.msra.mxu0 0
    %3811 = vmatprep.subr.bf16.mxu0 0
    %3812 = vmatpush1.bf16.xpose.msra.mxu0 0
    %3813 = vmatprep.subr.bf16.mxu0 0
    %3814 = vmatpush1.bf16.xpose.msra.mxu0 0
    %3815 = vmatprep.subr.bf16.mxu0 0
    %3816 = vmatpush1.bf16.xpose.msra.mxu0 0
    %3817 = vmatprep.subr.bf16.mxu0 0
    %3818 = vmatpush1.bf16.xpose.msra.mxu0 0
    %3819 = vmatprep.subr.bf16.mxu0 0
    %3820 = vmatpush1.bf16.xpose.msra.mxu0 0
    %3821 = vmatprep.subr.bf16.mxu0 0
    %3822 = vmatpush1.bf16.xpose.msra.mxu0 0
    %3823 = vmatprep.subr.bf16.mxu0 0
    %3824 = vmatpush1.bf16.xpose.msra.mxu0 0
    %3825 = vmatprep.subr.bf16.mxu0 0
    %3826 = vmatpush1.bf16.xpose.msra.mxu0 0
    %3827 = vmatprep.subr.bf16.mxu0 0
    %3828 = vmatpush1.bf16.xpose.msra.mxu0 0
    %3829 = vmatprep.subr.bf16.mxu0 0
    %3830 = vmatpush1.bf16.xpose.msra.mxu0 0
    %3831 = vmatprep.subr.bf16.mxu0 0
    %3832 = vmatpush1.bf16.xpose.msra.mxu0 0
    %3833 = vmatprep.subr.bf16.mxu0 0
    %3834 = vmatpush1.bf16.xpose.msra.mxu0 0
    %3835 = vmatprep.mubr.bf16.mxu0 0
    %3836 = vmatmul.mubr.bf16.gmra.mrb[0].mxu0 %v3798
    %v3837 = vpop.f32.mrb[0].mxu0
    %v3838 = vadd.f32 %v84, %v3837
    %v3839 = vpop.f32.mrb[0].mxu0
    %v3840 = vpop.f32.mrb[0].mxu0
    %v3841 = vpop.f32.mrb[0].mxu0
    %3842 = vdwg.mxu0
    %v3843 = vsel %vm166, %v3838, -inf
    %3844 = vmax.xlane.f32.xlu0 %v3843
    %v3845 = vpop.xlane.xlu0 %3844
    %v3846 = vsub.f32 %v3838, %v3845
    %v3847 = vmul.f32 %v3846, 1.442695
    %v3848 = vpow.pop %v3847
    %v3849 = vsel %vm166, %v3848, 0.0
    %3850 = vadd.xlane.f32.xlu0 %v3849
    %v3851 = vpop.xlane.xlu0 %3850
    %v3852 = vrcp.pop %v3851
    %v3853 = vmul.f32 %v3848, %v3852
    %v3854 = vpack.c.bf16 %v3853, %v3853
    %3856 = vrot.lane.b32.xlu0 %v3796, 96
    %v3857 = vpop.permute.xlu0 %3856
    %v3859 = vsel %vm166, %v3854, 0
    %v3862 = vsel %vm230, %v3857, 0
    %3864 = vmatprep.subr.bf16.mxu0 0
    %3865 = vmatpush1.bf16.msra.mxu0 %v3862
    %3866 = vmatprep.subr.bf16.mxu0 0
    %3867 = vmatpush1.bf16.msra.mxu0 0
    %3868 = vmatprep.subr.bf16.mxu0 0
    %3869 = vmatpush1.bf16.msra.mxu0 0
    %3870 = vmatprep.subr.bf16.mxu0 0
    %3871 = vmatpush1.bf16.msra.mxu0 0
    %3872 = vmatprep.subr.bf16.mxu0 0
    %3873 = vmatpush1.bf16.msra.mxu0 0
    %3874 = vmatprep.subr.bf16.mxu0 0
    %3875 = vmatpush1.bf16.msra.mxu0 0
    %3876 = vmatprep.subr.bf16.mxu0 0
    %3877 = vmatpush1.bf16.msra.mxu0 0
    %3878 = vmatprep.subr.bf16.mxu0 0
    %3879 = vmatpush1.bf16.msra.mxu0 0
    %3880 = vmatprep.subr.bf16.mxu0 0
    %3881 = vmatpush1.bf16.msra.mxu0 0
    %3882 = vmatprep.subr.bf16.mxu0 0
    %3883 = vmatpush1.bf16.msra.mxu0 0
    %3884 = vmatprep.subr.bf16.mxu0 0
    %3885 = vmatpush1.bf16.msra.mxu0 0
    %3886 = vmatprep.subr.bf16.mxu0 0
    %3887 = vmatpush1.bf16.msra.mxu0 0
    %3888 = vmatprep.subr.bf16.mxu0 0
    %3889 = vmatpush1.bf16.msra.mxu0 0
    %3890 = vmatprep.subr.bf16.mxu0 0
    %3891 = vmatpush1.bf16.msra.mxu0 0
    %3892 = vmatprep.subr.bf16.mxu0 0
    %3893 = vmatpush1.bf16.msra.mxu0 0
    %3894 = vmatprep.subr.bf16.mxu0 0
    %3895 = vmatpush1.bf16.msra.mxu0 0
    %3896 = vmatprep.mubr.bf16.mxu0 0
    %3897 = vmatmul.mubr.bf16.gmra.mrb[0].mxu0 %v3859
    %v3898 = vpop.f32.mrb[0].mxu0
    %v3899 = vadd.f32 0.0, %v3898
    %v3900 = vpop.f32.mrb[0].mxu0
    %v3901 = vpop.f32.mrb[0].mxu0
    %v3902 = vpop.f32.mrb[0].mxu0
    %3903 = vdwg.mxu0
    %v3905 = vrot.slane %v3795, 4
    %v3906 = vrot.slane %v3796, 4
    %v3908 = vsel %vm166, %v3905, 0
    %v3911 = vsel %vm166, %v3906, 0
    %3913 = vmatprep.subr.bf16.mxu0 0
    %3914 = vmatpush1.bf16.xpose.msra.mxu0 %v3911
    %3915 = vmatprep.subr.bf16.mxu0 0
    %3916 = vmatpush1.bf16.xpose.msra.mxu0 0
    %3917 = vmatprep.subr.bf16.mxu0 0
    %3918 = vmatpush1.bf16.xpose.msra.mxu0 0
    %3919 = vmatprep.subr.bf16.mxu0 0
    %3920 = vmatpush1.bf16.xpose.msra.mxu0 0
    %3921 = vmatprep.subr.bf16.mxu0 0
    %3922 = vmatpush1.bf16.xpose.msra.mxu0 0
    %3923 = vmatprep.subr.bf16.mxu0 0
    %3924 = vmatpush1.bf16.xpose.msra.mxu0 0
    %3925 = vmatprep.subr.bf16.mxu0 0
    %3926 = vmatpush1.bf16.xpose.msra.mxu0 0
    %3927 = vmatprep.subr.bf16.mxu0 0
    %3928 = vmatpush1.bf16.xpose.msra.mxu0 0
    %3929 = vmatprep.subr.bf16.mxu0 0
    %3930 = vmatpush1.bf16.xpose.msra.mxu0 0
    %3931 = vmatprep.subr.bf16.mxu0 0
    %3932 = vmatpush1.bf16.xpose.msra.mxu0 0
    %3933 = vmatprep.subr.bf16.mxu0 0
    %3934 = vmatpush1.bf16.xpose.msra.mxu0 0
    %3935 = vmatprep.subr.bf16.mxu0 0
    %3936 = vmatpush1.bf16.xpose.msra.mxu0 0
    %3937 = vmatprep.subr.bf16.mxu0 0
    %3938 = vmatpush1.bf16.xpose.msra.mxu0 0
    %3939 = vmatprep.subr.bf16.mxu0 0
    %3940 = vmatpush1.bf16.xpose.msra.mxu0 0
    %3941 = vmatprep.subr.bf16.mxu0 0
    %3942 = vmatpush1.bf16.xpose.msra.mxu0 0
    %3943 = vmatprep.subr.bf16.mxu0 0
    %3944 = vmatpush1.bf16.xpose.msra.mxu0 0
    %3945 = vmatprep.mubr.bf16.mxu0 0
    %3946 = vmatmul.mubr.bf16.gmra.mrb[0].mxu0 %v3908
    %v3947 = vpop.f32.mrb[0].mxu0
    %v3948 = vadd.f32 %v84, %v3947
    %v3949 = vpop.f32.mrb[0].mxu0
    %v3950 = vpop.f32.mrb[0].mxu0
    %v3951 = vpop.f32.mrb[0].mxu0
    %3952 = vdwg.mxu0
    %v3953 = vsel %vm166, %v3948, -inf
    %3954 = vmax.xlane.f32.xlu0 %v3953
    %v3955 = vpop.xlane.xlu0 %3954
    %v3956 = vsub.f32 %v3948, %v3955
    %v3957 = vmul.f32 %v3956, 1.442695
    %v3958 = vpow.pop %v3957
    %v3959 = vsel %vm166, %v3958, 0.0
    %3960 = vadd.xlane.f32.xlu0 %v3959
    %v3961 = vpop.xlane.xlu0 %3960
    %v3962 = vrcp.pop %v3961
    %v3963 = vmul.f32 %v3958, %v3962
    %v3964 = vpack.c.bf16 %v3963, %v3963
    %3965 = vrot.lane.b32.xlu0 %v3906, 96
    %v3966 = vpop.permute.xlu0 %3965
    %v3968 = vsel %vm166, %v3964, 0
    %v3971 = vsel %vm230, %v3966, 0
    %3973 = vmatprep.subr.bf16.mxu0 0
    %3974 = vmatpush1.bf16.msra.mxu0 %v3971
    %3975 = vmatprep.subr.bf16.mxu0 0
    %3976 = vmatpush1.bf16.msra.mxu0 0
    %3977 = vmatprep.subr.bf16.mxu0 0
    %3978 = vmatpush1.bf16.msra.mxu0 0
    %3979 = vmatprep.subr.bf16.mxu0 0
    %3980 = vmatpush1.bf16.msra.mxu0 0
    %3981 = vmatprep.subr.bf16.mxu0 0
    %3982 = vmatpush1.bf16.msra.mxu0 0
    %3983 = vmatprep.subr.bf16.mxu0 0
    %3984 = vmatpush1.bf16.msra.mxu0 0
    %3985 = vmatprep.subr.bf16.mxu0 0
    %3986 = vmatpush1.bf16.msra.mxu0 0
    %3987 = vmatprep.subr.bf16.mxu0 0
    %3988 = vmatpush1.bf16.msra.mxu0 0
    %3989 = vmatprep.subr.bf16.mxu0 0
    %3990 = vmatpush1.bf16.msra.mxu0 0
    %3991 = vmatprep.subr.bf16.mxu0 0
    %3992 = vmatpush1.bf16.msra.mxu0 0
    %3993 = vmatprep.subr.bf16.mxu0 0
    %3994 = vmatpush1.bf16.msra.mxu0 0
    %3995 = vmatprep.subr.bf16.mxu0 0
    %3996 = vmatpush1.bf16.msra.mxu0 0
    %3997 = vmatprep.subr.bf16.mxu0 0
    %3998 = vmatpush1.bf16.msra.mxu0 0
    %3999 = vmatprep.subr.bf16.mxu0 0
    %4000 = vmatpush1.bf16.msra.mxu0 0
    %4001 = vmatprep.subr.bf16.mxu0 0
    %4002 = vmatpush1.bf16.msra.mxu0 0
    %4003 = vmatprep.subr.bf16.mxu0 0
    %4004 = vmatpush1.bf16.msra.mxu0 0
    %4005 = vmatprep.mubr.bf16.mxu0 0
    %4006 = vmatmul.mubr.bf16.gmra.mrb[0].mxu0 %v3968
    %v4007 = vpop.f32.mrb[0].mxu0
    %v4008 = vadd.f32 0.0, %v4007
    %v4009 = vpop.f32.mrb[0].mxu0
    %v4010 = vpop.f32.mrb[0].mxu0
    %v4011 = vpop.f32.mrb[0].mxu0
    %4012 = vdwg.mxu0
    %4013 = vrot.lane.b32.xlu0 %v3795, 120
    %v4014 = vpop.permute.xlu0 %4013
    %4015 = vrot.lane.b32.xlu0 %v3796, 120
    %v4016 = vpop.permute.xlu0 %4015
    %v4018 = vsel %vm166, %v4014, 0
    %v4021 = vsel %vm166, %v4016, 0
    %4023 = vmatprep.subr.bf16.mxu0 0
    %4024 = vmatpush1.bf16.xpose.msra.mxu0 %v4021
    %4025 = vmatprep.subr.bf16.mxu0 0
    %4026 = vmatpush1.bf16.xpose.msra.mxu0 0
    %4027 = vmatprep.subr.bf16.mxu0 0
    %4028 = vmatpush1.bf16.xpose.msra.mxu0 0
    %4029 = vmatprep.subr.bf16.mxu0 0
    %4030 = vmatpush1.bf16.xpose.msra.mxu0 0
    %4031 = vmatprep.subr.bf16.mxu0 0
    %4032 = vmatpush1.bf16.xpose.msra.mxu0 0
    %4033 = vmatprep.subr.bf16.mxu0 0
    %4034 = vmatpush1.bf16.xpose.msra.mxu0 0
    %4035 = vmatprep.subr.bf16.mxu0 0
    %4036 = vmatpush1.bf16.xpose.msra.mxu0 0
    %4037 = vmatprep.subr.bf16.mxu0 0
    %4038 = vmatpush1.bf16.xpose.msra.mxu0 0
    %4039 = vmatprep.subr.bf16.mxu0 0
    %4040 = vmatpush1.bf16.xpose.msra.mxu0 0
    %4041 = vmatprep.subr.bf16.mxu0 0
    %4042 = vmatpush1.bf16.xpose.msra.mxu0 0
    %4043 = vmatprep.subr.bf16.mxu0 0
    %4044 = vmatpush1.bf16.xpose.msra.mxu0 0
    %4045 = vmatprep.subr.bf16.mxu0 0
    %4046 = vmatpush1.bf16.xpose.msra.mxu0 0
    %4047 = vmatprep.subr.bf16.mxu0 0
    %4048 = vmatpush1.bf16.xpose.msra.mxu0 0
    %4049 = vmatprep.subr.bf16.mxu0 0
    %4050 = vmatpush1.bf16.xpose.msra.mxu0 0
    %4051 = vmatprep.subr.bf16.mxu0 0
    %4052 = vmatpush1.bf16.xpose.msra.mxu0 0
    %4053 = vmatprep.subr.bf16.mxu0 0
    %4054 = vmatpush1.bf16.xpose.msra.mxu0 0
    %4055 = vmatprep.mubr.bf16.mxu0 0
    %4056 = vmatmul.mubr.bf16.gmra.mrb[0].mxu0 %v4018
    %v4057 = vpop.f32.mrb[0].mxu0
    %v4058 = vadd.f32 %v84, %v4057
    %v4059 = vpop.f32.mrb[0].mxu0
    %v4060 = vpop.f32.mrb[0].mxu0
    %v4061 = vpop.f32.mrb[0].mxu0
    %4062 = vdwg.mxu0
    %v4063 = vsel %vm166, %v4058, -inf
    %4064 = vmax.xlane.f32.xlu0 %v4063
    %v4065 = vpop.xlane.xlu0 %4064
    %v4066 = vsub.f32 %v4058, %v4065
    %v4067 = vmul.f32 %v4066, 1.442695
    %v4068 = vpow.pop %v4067
    %v4069 = vsel %vm166, %v4068, 0.0
    %4070 = vadd.xlane.f32.xlu0 %v4069
    %v4071 = vpop.xlane.xlu0 %4070
    %v4072 = vrcp.pop %v4071
    %v4073 = vmul.f32 %v4068, %v4072
    %v4074 = vpack.c.bf16 %v4073, %v4073
    %4075 = vrot.lane.b32.xlu0 %v3796, 88
    %v4076 = vpop.permute.xlu0 %4075
    %v4078 = vsel %vm166, %v4074, 0
    %v4081 = vsel %vm230, %v4076, 0
    %4083 = vmatprep.subr.bf16.mxu0 0
    %4084 = vmatpush1.bf16.msra.mxu0 %v4081
    %4085 = vmatprep.subr.bf16.mxu0 0
    %4086 = vmatpush1.bf16.msra.mxu0 0
    %4087 = vmatprep.subr.bf16.mxu0 0
    %4088 = vmatpush1.bf16.msra.mxu0 0
    %4089 = vmatprep.subr.bf16.mxu0 0
    %4090 = vmatpush1.bf16.msra.mxu0 0
    %4091 = vmatprep.subr.bf16.mxu0 0
    %4092 = vmatpush1.bf16.msra.mxu0 0
    %4093 = vmatprep.subr.bf16.mxu0 0
    %4094 = vmatpush1.bf16.msra.mxu0 0
    %4095 = vmatprep.subr.bf16.mxu0 0
    %4096 = vmatpush1.bf16.msra.mxu0 0
    %4097 = vmatprep.subr.bf16.mxu0 0
    %4098 = vmatpush1.bf16.msra.mxu0 0
    %4099 = vmatprep.subr.bf16.mxu0 0
    %4100 = vmatpush1.bf16.msra.mxu0 0
    %4101 = vmatprep.subr.bf16.mxu0 0
    %4102 = vmatpush1.bf16.msra.mxu0 0
    %4103 = vmatprep.subr.bf16.mxu0 0
    %4104 = vmatpush1.bf16.msra.mxu0 0
    %4105 = vmatprep.subr.bf16.mxu0 0
    %4106 = vmatpush1.bf16.msra.mxu0 0
    %4107 = vmatprep.subr.bf16.mxu0 0
    %4108 = vmatpush1.bf16.msra.mxu0 0
    %4109 = vmatprep.subr.bf16.mxu0 0
    %4110 = vmatpush1.bf16.msra.mxu0 0
    %4111 = vmatprep.subr.bf16.mxu0 0
    %4112 = vmatpush1.bf16.msra.mxu0 0
    %4113 = vmatprep.subr.bf16.mxu0 0
    %4114 = vmatpush1.bf16.msra.mxu0 0
    %4115 = vmatprep.mubr.bf16.mxu0 0
    %4116 = vmatmul.mubr.bf16.gmra.mrb[0].mxu0 %v4078
    %v4117 = vpop.f32.mrb[0].mxu0
    %v4118 = vadd.f32 0.0, %v4117
    %v4119 = vpop.f32.mrb[0].mxu0
    %v4120 = vpop.f32.mrb[0].mxu0
    %v4121 = vpop.f32.mrb[0].mxu0
    %4122 = vdwg.mxu0
    %4123 = vrot.lane.b32.xlu0 %v3905, 120
    %v4124 = vpop.permute.xlu0 %4123
    %4125 = vrot.lane.b32.xlu0 %v3906, 120
    %v4126 = vpop.permute.xlu0 %4125
    %v4128 = vsel %vm166, %v4124, 0
    %v4131 = vsel %vm166, %v4126, 0
    %4133 = vmatprep.subr.bf16.mxu0 0
    %4134 = vmatpush1.bf16.xpose.msra.mxu0 %v4131
    %4135 = vmatprep.subr.bf16.mxu0 0
    %4136 = vmatpush1.bf16.xpose.msra.mxu0 0
    %4137 = vmatprep.subr.bf16.mxu0 0
    %4138 = vmatpush1.bf16.xpose.msra.mxu0 0
    %4139 = vmatprep.subr.bf16.mxu0 0
    %4140 = vmatpush1.bf16.xpose.msra.mxu0 0
    %4141 = vmatprep.subr.bf16.mxu0 0
    %4142 = vmatpush1.bf16.xpose.msra.mxu0 0
    %4143 = vmatprep.subr.bf16.mxu0 0
    %4144 = vmatpush1.bf16.xpose.msra.mxu0 0
    %4145 = vmatprep.subr.bf16.mxu0 0
    %4146 = vmatpush1.bf16.xpose.msra.mxu0 0
    %4147 = vmatprep.subr.bf16.mxu0 0
    %4148 = vmatpush1.bf16.xpose.msra.mxu0 0
    %4149 = vmatprep.subr.bf16.mxu0 0
    %4150 = vmatpush1.bf16.xpose.msra.mxu0 0
    %4151 = vmatprep.subr.bf16.mxu0 0
    %4152 = vmatpush1.bf16.xpose.msra.mxu0 0
    %4153 = vmatprep.subr.bf16.mxu0 0
    %4154 = vmatpush1.bf16.xpose.msra.mxu0 0
    %4155 = vmatprep.subr.bf16.mxu0 0
    %4156 = vmatpush1.bf16.xpose.msra.mxu0 0
    %4157 = vmatprep.subr.bf16.mxu0 0
    %4158 = vmatpush1.bf16.xpose.msra.mxu0 0
    %4159 = vmatprep.subr.bf16.mxu0 0
    %4160 = vmatpush1.bf16.xpose.msra.mxu0 0
    %4161 = vmatprep.subr.bf16.mxu0 0
    %4162 = vmatpush1.bf16.xpose.msra.mxu0 0
    %4163 = vmatprep.subr.bf16.mxu0 0
    %4164 = vmatpush1.bf16.xpose.msra.mxu0 0
    %4165 = vmatprep.mubr.bf16.mxu0 0
    %4166 = vmatmul.mubr.bf16.gmra.mrb[0].mxu0 %v4128
    %v4167 = vpop.f32.mrb[0].mxu0
    %v4168 = vadd.f32 %v84, %v4167
    %v4169 = vpop.f32.mrb[0].mxu0
    %v4170 = vpop.f32.mrb[0].mxu0
    %v4171 = vpop.f32.mrb[0].mxu0
    %4172 = vdwg.mxu0
    %v4173 = vsel %vm166, %v4168, -inf
    %4174 = vmax.xlane.f32.xlu0 %v4173
    %v4175 = vpop.xlane.xlu0 %4174
    %v4176 = vsub.f32 %v4168, %v4175
    %v4177 = vmul.f32 %v4176, 1.442695
    %v4178 = vpow.pop %v4177
    %v4179 = vsel %vm166, %v4178, 0.0
    %4180 = vadd.xlane.f32.xlu0 %v4179
    %v4181 = vpop.xlane.xlu0 %4180
    %v4182 = vrcp.pop %v4181
    %v4183 = vmul.f32 %v4178, %v4182
    %v4184 = vpack.c.bf16 %v4183, %v4183
    %4185 = vrot.lane.b32.xlu0 %v3906, 88
    %v4186 = vpop.permute.xlu0 %4185
    %v4188 = vsel %vm166, %v4184, 0
    %v4191 = vsel %vm230, %v4186, 0
    %4193 = vmatprep.subr.bf16.mxu0 0
    %4194 = vmatpush1.bf16.msra.mxu0 %v4191
    %4195 = vmatprep.subr.bf16.mxu0 0
    %4196 = vmatpush1.bf16.msra.mxu0 0
    %4197 = vmatprep.subr.bf16.mxu0 0
    %4198 = vmatpush1.bf16.msra.mxu0 0
    %4199 = vmatprep.subr.bf16.mxu0 0
    %4200 = vmatpush1.bf16.msra.mxu0 0
    %4201 = vmatprep.subr.bf16.mxu0 0
    %4202 = vmatpush1.bf16.msra.mxu0 0
    %4203 = vmatprep.subr.bf16.mxu0 0
    %4204 = vmatpush1.bf16.msra.mxu0 0
    %4205 = vmatprep.subr.bf16.mxu0 0
    %4206 = vmatpush1.bf16.msra.mxu0 0
    %4207 = vmatprep.subr.bf16.mxu0 0
    %4208 = vmatpush1.bf16.msra.mxu0 0
    %4209 = vmatprep.subr.bf16.mxu0 0
    %4210 = vmatpush1.bf16.msra.mxu0 0
    %4211 = vmatprep.subr.bf16.mxu0 0
    %4212 = vmatpush1.bf16.msra.mxu0 0
    %4213 = vmatprep.subr.bf16.mxu0 0
    %4214 = vmatpush1.bf16.msra.mxu0 0
    %4215 = vmatprep.subr.bf16.mxu0 0
    %4216 = vmatpush1.bf16.msra.mxu0 0
    %4217 = vmatprep.subr.bf16.mxu0 0
    %4218 = vmatpush1.bf16.msra.mxu0 0
    %4219 = vmatprep.subr.bf16.mxu0 0
    %4220 = vmatpush1.bf16.msra.mxu0 0
    %4221 = vmatprep.subr.bf16.mxu0 0
    %4222 = vmatpush1.bf16.msra.mxu0 0
    %4223 = vmatprep.subr.bf16.mxu0 0
    %4224 = vmatpush1.bf16.msra.mxu0 0
    %4225 = vmatprep.mubr.bf16.mxu0 0
    %4226 = vmatmul.mubr.bf16.gmra.mrb[0].mxu0 %v4188
    %v4227 = vpop.f32.mrb[0].mxu0
    %v4228 = vadd.f32 0.0, %v4227
    %v4229 = vpop.f32.mrb[0].mxu0
    %v4230 = vpop.f32.mrb[0].mxu0
    %v4231 = vpop.f32.mrb[0].mxu0
    %4232 = vdwg.mxu0
    %4233 = vrot.lane.b32.xlu0 %v3795, 112
    %v4234 = vpop.permute.xlu0 %4233
    %4235 = vrot.lane.b32.xlu0 %v3796, 112
    %v4236 = vpop.permute.xlu0 %4235
    %v4238 = vsel %vm166, %v4234, 0
    %v4241 = vsel %vm166, %v4236, 0
    %4243 = vmatprep.subr.bf16.mxu0 0
    %4244 = vmatpush1.bf16.xpose.msra.mxu0 %v4241
    %4245 = vmatprep.subr.bf16.mxu0 0
    %4246 = vmatpush1.bf16.xpose.msra.mxu0 0
    %4247 = vmatprep.subr.bf16.mxu0 0
    %4248 = vmatpush1.bf16.xpose.msra.mxu0 0
    %4249 = vmatprep.subr.bf16.mxu0 0
    %4250 = vmatpush1.bf16.xpose.msra.mxu0 0
    %4251 = vmatprep.subr.bf16.mxu0 0
    %4252 = vmatpush1.bf16.xpose.msra.mxu0 0
    %4253 = vmatprep.subr.bf16.mxu0 0
    %4254 = vmatpush1.bf16.xpose.msra.mxu0 0
    %4255 = vmatprep.subr.bf16.mxu0 0
    %4256 = vmatpush1.bf16.xpose.msra.mxu0 0
    %4257 = vmatprep.subr.bf16.mxu0 0
    %4258 = vmatpush1.bf16.xpose.msra.mxu0 0
    %4259 = vmatprep.subr.bf16.mxu0 0
    %4260 = vmatpush1.bf16.xpose.msra.mxu0 0
    %4261 = vmatprep.subr.bf16.mxu0 0
    %4262 = vmatpush1.bf16.xpose.msra.mxu0 0
    %4263 = vmatprep.subr.bf16.mxu0 0
    %4264 = vmatpush1.bf16.xpose.msra.mxu0 0
    %4265 = vmatprep.subr.bf16.mxu0 0
    %4266 = vmatpush1.bf16.xpose.msra.mxu0 0
    %4267 = vmatprep.subr.bf16.mxu0 0
    %4268 = vmatpush1.bf16.xpose.msra.mxu0 0
    %4269 = vmatprep.subr.bf16.mxu0 0
    %4270 = vmatpush1.bf16.xpose.msra.mxu0 0
    %4271 = vmatprep.subr.bf16.mxu0 0
    %4272 = vmatpush1.bf16.xpose.msra.mxu0 0
    %4273 = vmatprep.subr.bf16.mxu0 0
    %4274 = vmatpush1.bf16.xpose.msra.mxu0 0
    %4275 = vmatprep.mubr.bf16.mxu0 0
    %4276 = vmatmul.mubr.bf16.gmra.mrb[0].mxu0 %v4238
    %v4277 = vpop.f32.mrb[0].mxu0
    %v4278 = vadd.f32 %v84, %v4277
    %v4279 = vpop.f32.mrb[0].mxu0
    %v4280 = vpop.f32.mrb[0].mxu0
    %v4281 = vpop.f32.mrb[0].mxu0
    %4282 = vdwg.mxu0
    %v4283 = vsel %vm166, %v4278, -inf
    %4284 = vmax.xlane.f32.xlu0 %v4283
    %v4285 = vpop.xlane.xlu0 %4284
    %v4286 = vsub.f32 %v4278, %v4285
    %v4287 = vmul.f32 %v4286, 1.442695
    %v4288 = vpow.pop %v4287
    %v4289 = vsel %vm166, %v4288, 0.0
    %4290 = vadd.xlane.f32.xlu0 %v4289
    %v4291 = vpop.xlane.xlu0 %4290
    %v4292 = vrcp.pop %v4291
    %v4293 = vmul.f32 %v4288, %v4292
    %v4294 = vpack.c.bf16 %v4293, %v4293
    %4295 = vrot.lane.b32.xlu0 %v3796, 80
    %v4296 = vpop.permute.xlu0 %4295
    %v4298 = vsel %vm166, %v4294, 0
    %v4301 = vsel %vm230, %v4296, 0
    %4303 = vmatprep.subr.bf16.mxu0 0
    %4304 = vmatpush1.bf16.msra.mxu0 %v4301
    %4305 = vmatprep.subr.bf16.mxu0 0
    %4306 = vmatpush1.bf16.msra.mxu0 0
    %4307 = vmatprep.subr.bf16.mxu0 0
    %4308 = vmatpush1.bf16.msra.mxu0 0
    %4309 = vmatprep.subr.bf16.mxu0 0
    %4310 = vmatpush1.bf16.msra.mxu0 0
    %4311 = vmatprep.subr.bf16.mxu0 0
    %4312 = vmatpush1.bf16.msra.mxu0 0
    %4313 = vmatprep.subr.bf16.mxu0 0
    %4314 = vmatpush1.bf16.msra.mxu0 0
    %4315 = vmatprep.subr.bf16.mxu0 0
    %4316 = vmatpush1.bf16.msra.mxu0 0
    %4317 = vmatprep.subr.bf16.mxu0 0
    %4318 = vmatpush1.bf16.msra.mxu0 0
    %4319 = vmatprep.subr.bf16.mxu0 0
    %4320 = vmatpush1.bf16.msra.mxu0 0
    %4321 = vmatprep.subr.bf16.mxu0 0
    %4322 = vmatpush1.bf16.msra.mxu0 0
    %4323 = vmatprep.subr.bf16.mxu0 0
    %4324 = vmatpush1.bf16.msra.mxu0 0
    %4325 = vmatprep.subr.bf16.mxu0 0
    %4326 = vmatpush1.bf16.msra.mxu0 0
    %4327 = vmatprep.subr.bf16.mxu0 0
    %4328 = vmatpush1.bf16.msra.mxu0 0
    %4329 = vmatprep.subr.bf16.mxu0 0
    %4330 = vmatpush1.bf16.msra.mxu0 0
    %4331 = vmatprep.subr.bf16.mxu0 0
    %4332 = vmatpush1.bf16.msra.mxu0 0
    %4333 = vmatprep.subr.bf16.mxu0 0
    %4334 = vmatpush1.bf16.msra.mxu0 0
    %4335 = vmatprep.mubr.bf16.mxu0 0
    %4336 = vmatmul.mubr.bf16.gmra.mrb[0].mxu0 %v4298
    %v4337 = vpop.f32.mrb[0].mxu0
    %v4338 = vadd.f32 0.0, %v4337
    %v4339 = vpop.f32.mrb[0].mxu0
    %v4340 = vpop.f32.mrb[0].mxu0
    %v4341 = vpop.f32.mrb[0].mxu0
    %4342 = vdwg.mxu0
    %4343 = vrot.lane.b32.xlu0 %v3905, 112
    %v4344 = vpop.permute.xlu0 %4343
    %4345 = vrot.lane.b32.xlu0 %v3906, 112
    %v4346 = vpop.permute.xlu0 %4345
    %v4348 = vsel %vm166, %v4344, 0
    %v4351 = vsel %vm166, %v4346, 0
    %4353 = vmatprep.subr.bf16.mxu0 0
    %4354 = vmatpush1.bf16.xpose.msra.mxu0 %v4351
    %4355 = vmatprep.subr.bf16.mxu0 0
    %4356 = vmatpush1.bf16.xpose.msra.mxu0 0
    %4357 = vmatprep.subr.bf16.mxu0 0
    %4358 = vmatpush1.bf16.xpose.msra.mxu0 0
    %4359 = vmatprep.subr.bf16.mxu0 0
    %4360 = vmatpush1.bf16.xpose.msra.mxu0 0
    %4361 = vmatprep.subr.bf16.mxu0 0
    %4362 = vmatpush1.bf16.xpose.msra.mxu0 0
    %4363 = vmatprep.subr.bf16.mxu0 0
    %4364 = vmatpush1.bf16.xpose.msra.mxu0 0
    %4365 = vmatprep.subr.bf16.mxu0 0
    %4366 = vmatpush1.bf16.xpose.msra.mxu0 0
    %4367 = vmatprep.subr.bf16.mxu0 0
    %4368 = vmatpush1.bf16.xpose.msra.mxu0 0
    %4369 = vmatprep.subr.bf16.mxu0 0
    %4370 = vmatpush1.bf16.xpose.msra.mxu0 0
    %4371 = vmatprep.subr.bf16.mxu0 0
    %4372 = vmatpush1.bf16.xpose.msra.mxu0 0
    %4373 = vmatprep.subr.bf16.mxu0 0
    %4374 = vmatpush1.bf16.xpose.msra.mxu0 0
    %4375 = vmatprep.subr.bf16.mxu0 0
    %4376 = vmatpush1.bf16.xpose.msra.mxu0 0
    %4377 = vmatprep.subr.bf16.mxu0 0
    %4378 = vmatpush1.bf16.xpose.msra.mxu0 0
    %4379 = vmatprep.subr.bf16.mxu0 0
    %4380 = vmatpush1.bf16.xpose.msra.mxu0 0
    %4381 = vmatprep.subr.bf16.mxu0 0
    %4382 = vmatpush1.bf16.xpose.msra.mxu0 0
    %4383 = vmatprep.subr.bf16.mxu0 0
    %4384 = vmatpush1.bf16.xpose.msra.mxu0 0
    %4385 = vmatprep.mubr.bf16.mxu0 0
    %4386 = vmatmul.mubr.bf16.gmra.mrb[0].mxu0 %v4348
    %v4387 = vpop.f32.mrb[0].mxu0
    %v4388 = vadd.f32 %v84, %v4387
    %v4389 = vpop.f32.mrb[0].mxu0
    %v4390 = vpop.f32.mrb[0].mxu0
    %v4391 = vpop.f32.mrb[0].mxu0
    %4392 = vdwg.mxu0
    %v4393 = vsel %vm166, %v4388, -inf
    %4394 = vmax.xlane.f32.xlu0 %v4393
    %v4395 = vpop.xlane.xlu0 %4394
    %v4396 = vsub.f32 %v4388, %v4395
    %v4397 = vmul.f32 %v4396, 1.442695
    %v4398 = vpow.pop %v4397
    %v4399 = vsel %vm166, %v4398, 0.0
    %4400 = vadd.xlane.f32.xlu0 %v4399
    %v4401 = vpop.xlane.xlu0 %4400
    %v4402 = vrcp.pop %v4401
    %v4403 = vmul.f32 %v4398, %v4402
    %v4404 = vpack.c.bf16 %v4403, %v4403
    %4405 = vrot.lane.b32.xlu0 %v3906, 80
    %v4406 = vpop.permute.xlu0 %4405
    %v4408 = vsel %vm166, %v4404, 0
    %v4411 = vsel %vm230, %v4406, 0
    %4413 = vmatprep.subr.bf16.mxu0 0
    %4414 = vmatpush1.bf16.msra.mxu0 %v4411
    %4415 = vmatprep.subr.bf16.mxu0 0
    %4416 = vmatpush1.bf16.msra.mxu0 0
    %4417 = vmatprep.subr.bf16.mxu0 0
    %4418 = vmatpush1.bf16.msra.mxu0 0
    %4419 = vmatprep.subr.bf16.mxu0 0
    %4420 = vmatpush1.bf16.msra.mxu0 0
    %4421 = vmatprep.subr.bf16.mxu0 0
    %4422 = vmatpush1.bf16.msra.mxu0 0
    %4423 = vmatprep.subr.bf16.mxu0 0
    %4424 = vmatpush1.bf16.msra.mxu0 0
    %4425 = vmatprep.subr.bf16.mxu0 0
    %4426 = vmatpush1.bf16.msra.mxu0 0
    %4427 = vmatprep.subr.bf16.mxu0 0
    %4428 = vmatpush1.bf16.msra.mxu0 0
    %4429 = vmatprep.subr.bf16.mxu0 0
    %4430 = vmatpush1.bf16.msra.mxu0 0
    %4431 = vmatprep.subr.bf16.mxu0 0
    %4432 = vmatpush1.bf16.msra.mxu0 0
    %4433 = vmatprep.subr.bf16.mxu0 0
    %4434 = vmatpush1.bf16.msra.mxu0 0
    %4435 = vmatprep.subr.bf16.mxu0 0
    %4436 = vmatpush1.bf16.msra.mxu0 0
    %4437 = vmatprep.subr.bf16.mxu0 0
    %4438 = vmatpush1.bf16.msra.mxu0 0
    %4439 = vmatprep.subr.bf16.mxu0 0
    %4440 = vmatpush1.bf16.msra.mxu0 0
    %4441 = vmatprep.subr.bf16.mxu0 0
    %4442 = vmatpush1.bf16.msra.mxu0 0
    %4443 = vmatprep.subr.bf16.mxu0 0
    %4444 = vmatpush1.bf16.msra.mxu0 0
    %4445 = vmatprep.mubr.bf16.mxu0 0
    %4446 = vmatmul.mubr.bf16.gmra.mrb[0].mxu0 %v4408
    %v4447 = vpop.f32.mrb[0].mxu0
    %v4448 = vadd.f32 0.0, %v4447
    %v4449 = vpop.f32.mrb[0].mxu0
    %v4450 = vpop.f32.mrb[0].mxu0
    %v4451 = vpop.f32.mrb[0].mxu0
    %4452 = vdwg.mxu0
    %4453 = vrot.lane.b32.xlu0 %v3795, 104
    %v4454 = vpop.permute.xlu0 %4453
    %4455 = vrot.lane.b32.xlu0 %v3796, 104
    %v4456 = vpop.permute.xlu0 %4455
    %v4458 = vsel %vm166, %v4454, 0
    %v4461 = vsel %vm166, %v4456, 0
    %4463 = vmatprep.subr.bf16.mxu0 0
    %4464 = vmatpush1.bf16.xpose.msra.mxu0 %v4461
    %4465 = vmatprep.subr.bf16.mxu0 0
    %4466 = vmatpush1.bf16.xpose.msra.mxu0 0
    %4467 = vmatprep.subr.bf16.mxu0 0
    %4468 = vmatpush1.bf16.xpose.msra.mxu0 0
    %4469 = vmatprep.subr.bf16.mxu0 0
    %4470 = vmatpush1.bf16.xpose.msra.mxu0 0
    %4471 = vmatprep.subr.bf16.mxu0 0
    %4472 = vmatpush1.bf16.xpose.msra.mxu0 0
    %4473 = vmatprep.subr.bf16.mxu0 0
    %4474 = vmatpush1.bf16.xpose.msra.mxu0 0
    %4475 = vmatprep.subr.bf16.mxu0 0
    %4476 = vmatpush1.bf16.xpose.msra.mxu0 0
    %4477 = vmatprep.subr.bf16.mxu0 0
    %4478 = vmatpush1.bf16.xpose.msra.mxu0 0
    %4479 = vmatprep.subr.bf16.mxu0 0
    %4480 = vmatpush1.bf16.xpose.msra.mxu0 0
    %4481 = vmatprep.subr.bf16.mxu0 0
    %4482 = vmatpush1.bf16.xpose.msra.mxu0 0
    %4483 = vmatprep.subr.bf16.mxu0 0
    %4484 = vmatpush1.bf16.xpose.msra.mxu0 0
    %4485 = vmatprep.subr.bf16.mxu0 0
    %4486 = vmatpush1.bf16.xpose.msra.mxu0 0
    %4487 = vmatprep.subr.bf16.mxu0 0
    %4488 = vmatpush1.bf16.xpose.msra.mxu0 0
    %4489 = vmatprep.subr.bf16.mxu0 0
    %4490 = vmatpush1.bf16.xpose.msra.mxu0 0
    %4491 = vmatprep.subr.bf16.mxu0 0
    %4492 = vmatpush1.bf16.xpose.msra.mxu0 0
    %4493 = vmatprep.subr.bf16.mxu0 0
    %4494 = vmatpush1.bf16.xpose.msra.mxu0 0
    %4495 = vmatprep.mubr.bf16.mxu0 0
    %4496 = vmatmul.mubr.bf16.gmra.mrb[0].mxu0 %v4458
    %v4497 = vpop.f32.mrb[0].mxu0
    %v4498 = vadd.f32 %v84, %v4497
    %v4499 = vpop.f32.mrb[0].mxu0
    %v4500 = vpop.f32.mrb[0].mxu0
    %v4501 = vpop.f32.mrb[0].mxu0
    %4502 = vdwg.mxu0
    %v4503 = vsel %vm166, %v4498, -inf
    %4504 = vmax.xlane.f32.xlu0 %v4503
    %v4505 = vpop.xlane.xlu0 %4504
    %v4506 = vsub.f32 %v4498, %v4505
    %v4507 = vmul.f32 %v4506, 1.442695
    %v4508 = vpow.pop %v4507
    %v4509 = vsel %vm166, %v4508, 0.0
    %4510 = vadd.xlane.f32.xlu0 %v4509
    %v4511 = vpop.xlane.xlu0 %4510
    %v4512 = vrcp.pop %v4511
    %v4513 = vmul.f32 %v4508, %v4512
    %v4514 = vpack.c.bf16 %v4513, %v4513
    %4515 = vrot.lane.b32.xlu0 %v3796, 72
    %v4516 = vpop.permute.xlu0 %4515
    %v4518 = vsel %vm166, %v4514, 0
    %v4521 = vsel %vm230, %v4516, 0
    %4523 = vmatprep.subr.bf16.mxu0 0
    %4524 = vmatpush1.bf16.msra.mxu0 %v4521
    %4525 = vmatprep.subr.bf16.mxu0 0
    %4526 = vmatpush1.bf16.msra.mxu0 0
    %4527 = vmatprep.subr.bf16.mxu0 0
    %4528 = vmatpush1.bf16.msra.mxu0 0
    %4529 = vmatprep.subr.bf16.mxu0 0
    %4530 = vmatpush1.bf16.msra.mxu0 0
    %4531 = vmatprep.subr.bf16.mxu0 0
    %4532 = vmatpush1.bf16.msra.mxu0 0
    %4533 = vmatprep.subr.bf16.mxu0 0
    %4534 = vmatpush1.bf16.msra.mxu0 0
    %4535 = vmatprep.subr.bf16.mxu0 0
    %4536 = vmatpush1.bf16.msra.mxu0 0
    %4537 = vmatprep.subr.bf16.mxu0 0
    %4538 = vmatpush1.bf16.msra.mxu0 0
    %4539 = vmatprep.subr.bf16.mxu0 0
    %4540 = vmatpush1.bf16.msra.mxu0 0
    %4541 = vmatprep.subr.bf16.mxu0 0
    %4542 = vmatpush1.bf16.msra.mxu0 0
    %4543 = vmatprep.subr.bf16.mxu0 0
    %4544 = vmatpush1.bf16.msra.mxu0 0
    %4545 = vmatprep.subr.bf16.mxu0 0
    %4546 = vmatpush1.bf16.msra.mxu0 0
    %4547 = vmatprep.subr.bf16.mxu0 0
    %4548 = vmatpush1.bf16.msra.mxu0 0
    %4549 = vmatprep.subr.bf16.mxu0 0
    %4550 = vmatpush1.bf16.msra.mxu0 0
    %4551 = vmatprep.subr.bf16.mxu0 0
    %4552 = vmatpush1.bf16.msra.mxu0 0
    %4553 = vmatprep.subr.bf16.mxu0 0
    %4554 = vmatpush1.bf16.msra.mxu0 0
    %4555 = vmatprep.mubr.bf16.mxu0 0
    %4556 = vmatmul.mubr.bf16.gmra.mrb[0].mxu0 %v4518
    %v4557 = vpop.f32.mrb[0].mxu0
    %v4558 = vadd.f32 0.0, %v4557
    %v4559 = vpop.f32.mrb[0].mxu0
    %v4560 = vpop.f32.mrb[0].mxu0
    %v4561 = vpop.f32.mrb[0].mxu0
    %4562 = vdwg.mxu0
    %4563 = vrot.lane.b32.xlu0 %v3905, 104
    %v4564 = vpop.permute.xlu0 %4563
    %4565 = vrot.lane.b32.xlu0 %v3906, 104
    %v4566 = vpop.permute.xlu0 %4565
    %v4568 = vsel %vm166, %v4564, 0
    %v4571 = vsel %vm166, %v4566, 0
    %4573 = vmatprep.subr.bf16.mxu0 0
    %4574 = vmatpush1.bf16.xpose.msra.mxu0 %v4571
    %4575 = vmatprep.subr.bf16.mxu0 0
    %4576 = vmatpush1.bf16.xpose.msra.mxu0 0
    %4577 = vmatprep.subr.bf16.mxu0 0
    %4578 = vmatpush1.bf16.xpose.msra.mxu0 0
    %4579 = vmatprep.subr.bf16.mxu0 0
    %4580 = vmatpush1.bf16.xpose.msra.mxu0 0
    %4581 = vmatprep.subr.bf16.mxu0 0
    %4582 = vmatpush1.bf16.xpose.msra.mxu0 0
    %4583 = vmatprep.subr.bf16.mxu0 0
    %4584 = vmatpush1.bf16.xpose.msra.mxu0 0
    %4585 = vmatprep.subr.bf16.mxu0 0
    %4586 = vmatpush1.bf16.xpose.msra.mxu0 0
    %4587 = vmatprep.subr.bf16.mxu0 0
    %4588 = vmatpush1.bf16.xpose.msra.mxu0 0
    %4589 = vmatprep.subr.bf16.mxu0 0
    %4590 = vmatpush1.bf16.xpose.msra.mxu0 0
    %4591 = vmatprep.subr.bf16.mxu0 0
    %4592 = vmatpush1.bf16.xpose.msra.mxu0 0
    %4593 = vmatprep.subr.bf16.mxu0 0
    %4594 = vmatpush1.bf16.xpose.msra.mxu0 0
    %4595 = vmatprep.subr.bf16.mxu0 0
    %4596 = vmatpush1.bf16.xpose.msra.mxu0 0
    %4597 = vmatprep.subr.bf16.mxu0 0
    %4598 = vmatpush1.bf16.xpose.msra.mxu0 0
    %4599 = vmatprep.subr.bf16.mxu0 0
    %4600 = vmatpush1.bf16.xpose.msra.mxu0 0
    %4601 = vmatprep.subr.bf16.mxu0 0
    %4602 = vmatpush1.bf16.xpose.msra.mxu0 0
    %4603 = vmatprep.subr.bf16.mxu0 0
    %4604 = vmatpush1.bf16.xpose.msra.mxu0 0
    %4605 = vmatprep.mubr.bf16.mxu0 0
    %4606 = vmatmul.mubr.bf16.gmra.mrb[0].mxu0 %v4568
    %v4607 = vpop.f32.mrb[0].mxu0
    %v4608 = vadd.f32 %v84, %v4607
    %v4609 = vpop.f32.mrb[0].mxu0
    %v4610 = vpop.f32.mrb[0].mxu0
    %v4611 = vpop.f32.mrb[0].mxu0
    %4612 = vdwg.mxu0
    %v4613 = vsel %vm166, %v4608, -inf
    %4614 = vmax.xlane.f32.xlu0 %v4613
    %v4615 = vpop.xlane.xlu0 %4614
    %v4616 = vsub.f32 %v4608, %v4615
    %v4617 = vmul.f32 %v4616, 1.442695
    %v4618 = vpow.pop %v4617
    %v4619 = vsel %vm166, %v4618, 0.0
    %4620 = vadd.xlane.f32.xlu0 %v4619
    %v4621 = vpop.xlane.xlu0 %4620
    %v4622 = vrcp.pop %v4621
    %v4623 = vmul.f32 %v4618, %v4622
    %v4624 = vpack.c.bf16 %v4623, %v4623
    %4625 = vrot.lane.b32.xlu0 %v3906, 72
    %v4626 = vpop.permute.xlu0 %4625
    %v4628 = vsel %vm166, %v4624, 0
    %v4631 = vsel %vm230, %v4626, 0
    %4633 = vmatprep.subr.bf16.mxu0 0
    %4634 = vmatpush1.bf16.msra.mxu0 %v4631
    %4635 = vmatprep.subr.bf16.mxu0 0
    %4636 = vmatpush1.bf16.msra.mxu0 0
    %4637 = vmatprep.subr.bf16.mxu0 0
    %4638 = vmatpush1.bf16.msra.mxu0 0
    %4639 = vmatprep.subr.bf16.mxu0 0
    %4640 = vmatpush1.bf16.msra.mxu0 0
    %4641 = vmatprep.subr.bf16.mxu0 0
    %4642 = vmatpush1.bf16.msra.mxu0 0
    %4643 = vmatprep.subr.bf16.mxu0 0
    %4644 = vmatpush1.bf16.msra.mxu0 0
    %4645 = vmatprep.subr.bf16.mxu0 0
    %4646 = vmatpush1.bf16.msra.mxu0 0
    %4647 = vmatprep.subr.bf16.mxu0 0
    %4648 = vmatpush1.bf16.msra.mxu0 0
    %4649 = vmatprep.subr.bf16.mxu0 0
    %4650 = vmatpush1.bf16.msra.mxu0 0
    %4651 = vmatprep.subr.bf16.mxu0 0
    %4652 = vmatpush1.bf16.msra.mxu0 0
    %4653 = vmatprep.subr.bf16.mxu0 0
    %4654 = vmatpush1.bf16.msra.mxu0 0
    %4655 = vmatprep.subr.bf16.mxu0 0
    %4656 = vmatpush1.bf16.msra.mxu0 0
    %4657 = vmatprep.subr.bf16.mxu0 0
    %4658 = vmatpush1.bf16.msra.mxu0 0
    %4659 = vmatprep.subr.bf16.mxu0 0
    %4660 = vmatpush1.bf16.msra.mxu0 0
    %4661 = vmatprep.subr.bf16.mxu0 0
    %4662 = vmatpush1.bf16.msra.mxu0 0
    %4663 = vmatprep.subr.bf16.mxu0 0
    %4664 = vmatpush1.bf16.msra.mxu0 0
    %4665 = vmatprep.mubr.bf16.mxu0 0
    %4666 = vmatmul.mubr.bf16.gmra.mrb[0].mxu0 %v4628
    %v4667 = vpop.f32.mrb[0].mxu0
    %v4668 = vadd.f32 0.0, %v4667
    %v4669 = vpop.f32.mrb[0].mxu0
    %v4670 = vpop.f32.mrb[0].mxu0
    %v4671 = vpop.f32.mrb[0].mxu0
    %4672 = vdwg.mxu0
    %4675 = vrot.lane.b32.xlu0 %v4118, 8
    %v4676 = vpop.permute.xlu0 %4675
    %4677 = vrot.lane.b32.xlu0 %v4228, 8
    %v4678 = vpop.permute.xlu0 %4677
    %4683 = vrot.lane.b32.xlu0 %v4338, 16
    %v4684 = vpop.permute.xlu0 %4683
    %4685 = vrot.lane.b32.xlu0 %v4448, 16
    %v4686 = vpop.permute.xlu0 %4685
    %4691 = vrot.lane.b32.xlu0 %v4558, 24
    %v4692 = vpop.permute.xlu0 %4691
    %4693 = vrot.lane.b32.xlu0 %v4668, 24
    %v4694 = vpop.permute.xlu0 %4693
    %v4697 = vsel %vm166, %v3899, %v4676
    %v4698 = vsel %vm166, %v4008, %v4678
    %v4699 = vsel %vm1071, %v4697, %v4684
    %v4700 = vsel %vm1071, %v4698, %v4686
    %v4701 = vsel %vm1074, %v4699, %v4692
    %v4702 = vsel %vm1074, %v4700, %v4694
    %v4703 = vpack.c.bf16 %v4702, %v4701
    %v4705 = vlaneseq
    %v4706 = vshrl.u32 %v4705, 7
    %v4707 = vsub.s32 0, %v4706
    %v4708 = vrot.slane %v3794, %v4707
    %v4714 = vunpack.c.l.b16 %v3789
    %v4715 = vunpack.c.l.b16 %v3790
    %v4716 = vunpack.c.l.b16 %v3791
    %v4717 = vunpack.c.l.b16 %v3792
    %v4718 = vpack.c.b16 %v4715, %v4714
    %v4719 = vpack.c.b16 %v4717, %v4716
    %v4723 = vsel %vm109, %v4703, 0
    %4725 = vmatprep.subr.bf16.mxu0 0
    %4726 = vmatpush1.bf16.msra.mxu0 %v4718
    %4727 = vmatprep.subr.bf16.mxu0 0
    %4728 = vmatpush1.bf16.msra.mxu0 %v4719
    %4729 = vmatprep.subr.bf16.mxu0 0
    %4730 = vmatpush1.bf16.msra.mxu0 0
    %4731 = vmatprep.subr.bf16.mxu0 0
    %4732 = vmatpush1.bf16.msra.mxu0 0
    %4733 = vmatprep.subr.bf16.mxu0 0
    %4734 = vmatpush1.bf16.msra.mxu0 0
    %4735 = vmatprep.subr.bf16.mxu0 0
    %4736 = vmatpush1.bf16.msra.mxu0 0
    %4737 = vmatprep.subr.bf16.mxu0 0
    %4738 = vmatpush1.bf16.msra.mxu0 0
    %4739 = vmatprep.subr.bf16.mxu0 0
    %4740 = vmatpush1.bf16.msra.mxu0 0
    %4741 = vmatprep.subr.bf16.mxu0 0
    %4742 = vmatpush1.bf16.msra.mxu0 0
    %4743 = vmatprep.subr.bf16.mxu0 0
    %4744 = vmatpush1.bf16.msra.mxu0 0
    %4745 = vmatprep.subr.bf16.mxu0 0
    %4746 = vmatpush1.bf16.msra.mxu0 0
    %4747 = vmatprep.subr.bf16.mxu0 0
    %4748 = vmatpush1.bf16.msra.mxu0 0
    %4749 = vmatprep.subr.bf16.mxu0 0
    %4750 = vmatpush1.bf16.msra.mxu0 0
    %4751 = vmatprep.subr.bf16.mxu0 0
    %4752 = vmatpush1.bf16.msra.mxu0 0
    %4753 = vmatprep.subr.bf16.mxu0 0
    %4754 = vmatpush1.bf16.msra.mxu0 0
    %4755 = vmatprep.subr.bf16.mxu0 0
    %4756 = vmatpush1.bf16.msra.mxu0 0
    %4757 = vmatprep.mubr.bf16.mxu0 0
    %4758 = vmatmul.mubr.bf16.gmra.mrb[0].mxu0 %v4723
    %v4759 = vpop.f32.mrb[0].mxu0
    %v4760 = vadd.f32 %v4708, %v4759
    %v4761 = vpop.f32.mrb[0].mxu0
    %v4762 = vpop.f32.mrb[0].mxu0
    %v4763 = vadd.f32 %v4708, %v4762
    %v4764 = vpop.f32.mrb[0].mxu0
    %4765 = vdwg.mxu0
    %v4766 = vadd.f32 %v3648, %v4760
    %v4767 = vadd.f32 %v3649, %v4763
    %s4768 = scalar_lea.vmem %s20, 1
    %v4769 = vld [vmem:[%s4768] sm:$0x1]
    %s4770 = scalar_lea.vmem %s21, 1
    %v4771 = vld [vmem:[%s4770] sm:$0x1]
    %v4772 = vsel %vm109, %v4766, 0.0
    %4773 = vadd.xlane.f32.xlu0 %v4772
    %v4774 = vpop.xlane.xlu0 %4773
    %v4775 = vsel %vm109, %v4767, 0.0
    %4776 = vadd.xlane.f32.xlu0 %v4775
    %v4777 = vpop.xlane.xlu0 %4776
    %v4778 = vmul.f32 %v4774, %v1150
    %v4779 = vmul.f32 %v4777, %v1150
    %v4780 = vsub.f32 %v4766, %v4778
    %v4781 = vsub.f32 %v4767, %v4779
    %v4782 = vmul.f32 %v4780, %v4780
    %v4783 = vmul.f32 %v4781, %v4781
    %v4784 = vsel %vm109, %v4782, 0.0
    %4785 = vadd.xlane.f32.xlu0 %v4784
    %v4786 = vpop.xlane.xlu0 %4785
    %v4787 = vsel %vm109, %v4783, 0.0
    %4788 = vadd.xlane.f32.xlu0 %v4787
    %v4789 = vpop.xlane.xlu0 %4788
    %v4790 = vmul.f32 %v4786, %v1150
    %v4791 = vmul.f32 %v4789, %v1150
    %v4792 = vadd.f32 %v4790, 1e-05
    %v4793 = vadd.f32 %v4791, 1e-05
    %v4794 = vrsqrt.pop %v4792
    %v4795 = vrsqrt.pop %v4793
    %v4796 = vmul.f32 %v4780, %v4794
    %v4797 = vmul.f32 %v4781, %v4795
    %v4799 = vlaneseq
    %v4800 = vshrl.u32 %v4799, 7
    %v4801 = vsub.s32 0, %v4800
    %v4802 = vrot.slane %v4769, %v4801
    %v4804 = vmul.f32 %v4796, %v4802
    %v4805 = vmul.f32 %v4797, %v4802
    %v4807 = vlaneseq
    %v4808 = vshrl.u32 %v4807, 7
    %v4809 = vsub.s32 0, %v4808
    %v4810 = vrot.slane %v4771, %v4809
    %v4812 = vadd.f32 %v4804, %v4810
    %v4813 = vadd.f32 %v4805, %v4810
    %s4814 = scalar_lea.vmem %s14, 16
    %v4815 = vld [vmem:[%s4814] sm:$0xf]
    %v4816 = vld [vmem:[%s4814 + $0x4] sm:$0xf]
    %v4817 = vld [vmem:[%s4814 + $0x8] sm:$0xf]
    %v4818 = vld [vmem:[%s4814 + $0xc] sm:$0xf]
    %v4819 = vpack.c.bf16 %v4813, %v4812
    %s4820 = scalar_lea.vmem %s15, 1
    %v4821 = vld [vmem:[%s4820] sm:$0x1]
    %v4823 = vlaneseq
    %v4824 = vshrl.u32 %v4823, 7
    %v4825 = vsub.s32 0, %v4824
    %v4826 = vrot.slane %v4821, %v4825
    %v4832 = vunpack.c.l.b16 %v4815
    %v4833 = vunpack.c.l.b16 %v4816
    %v4834 = vunpack.c.l.b16 %v4817
    %v4835 = vunpack.c.l.b16 %v4818
    %v4836 = vpack.c.b16 %v4833, %v4832
    %v4837 = vpack.c.b16 %v4835, %v4834
    %v4841 = vsel %vm109, %v4819, 0
    %4843 = vmatprep.subr.bf16.mxu0 0
    %4844 = vmatpush1.bf16.msra.mxu0 %v4836
    %4845 = vmatprep.subr.bf16.mxu0 0
    %4846 = vmatpush1.bf16.msra.mxu0 %v4837
    %4847 = vmatprep.subr.bf16.mxu0 0
    %4848 = vmatpush1.bf16.msra.mxu0 0
    %4849 = vmatprep.subr.bf16.mxu0 0
    %4850 = vmatpush1.bf16.msra.mxu0 0
    %4851 = vmatprep.subr.bf16.mxu0 0
    %4852 = vmatpush1.bf16.msra.mxu0 0
    %4853 = vmatprep.subr.bf16.mxu0 0
    %4854 = vmatpush1.bf16.msra.mxu0 0
    %4855 = vmatprep.subr.bf16.mxu0 0
    %4856 = vmatpush1.bf16.msra.mxu0 0
    %4857 = vmatprep.subr.bf16.mxu0 0
    %4858 = vmatpush1.bf16.msra.mxu0 0
    %4859 = vmatprep.subr.bf16.mxu0 0
    %4860 = vmatpush1.bf16.msra.mxu0 0
    %4861 = vmatprep.subr.bf16.mxu0 0
    %4862 = vmatpush1.bf16.msra.mxu0 0
    %4863 = vmatprep.subr.bf16.mxu0 0
    %4864 = vmatpush1.bf16.msra.mxu0 0
    %4865 = vmatprep.subr.bf16.mxu0 0
    %4866 = vmatpush1.bf16.msra.mxu0 0
    %4867 = vmatprep.subr.bf16.mxu0 0
    %4868 = vmatpush1.bf16.msra.mxu0 0
    %4869 = vmatprep.subr.bf16.mxu0 0
    %4870 = vmatpush1.bf16.msra.mxu0 0
    %4871 = vmatprep.subr.bf16.mxu0 0
    %4872 = vmatpush1.bf16.msra.mxu0 0
    %4873 = vmatprep.subr.bf16.mxu0 0
    %4874 = vmatpush1.bf16.msra.mxu0 0
    %4875 = vmatprep.mubr.bf16.mxu0 0
    %4876 = vmatmul.mubr.bf16.gmra.mrb[0].mxu0 %v4841
    %v4877 = vpop.f32.mrb[0].mxu0
    %v4878 = vadd.f32 %v4826, %v4877
    %v4879 = vpop.f32.mrb[0].mxu0
    %v4880 = vpop.f32.mrb[0].mxu0
    %v4881 = vadd.f32 %v4826, %v4880
    %v4882 = vpop.f32.mrb[0].mxu0
    %4883 = vdwg.mxu0
    %v4884 = vmax.f32 %v4878, 0.0
    %v4885 = vmax.f32 %v4881, 0.0
    %s4886 = scalar_lea.vmem %s16, 32
    %v4887 = vld [vmem:[%s4886] sm:$0xf]
    %v4888 = vld [vmem:[%s4886 + $0x4] sm:$0xf]
    %v4889 = vld [vmem:[%s4886 + $0x8] sm:$0xf]
    %v4890 = vld [vmem:[%s4886 + $0xc] sm:$0xf]
    %v4891 = vld [vmem:[%s4886 + $0x10] sm:$0xf]
    %v4892 = vld [vmem:[%s4886 + $0x14] sm:$0xf]
    %v4893 = vld [vmem:[%s4886 + $0x18] sm:$0xf]
    %v4894 = vld [vmem:[%s4886 + $0x1c] sm:$0xf]
    %v4895 = vpack.c.bf16 %v4885, %v4884
    %s4896 = scalar_lea.vmem %s17, 1
    %v4897 = vld [vmem:[%s4896] sm:$0x1]
    %v4899 = vlaneseq
    %v4900 = vshrl.u32 %v4899, 7
    %v4901 = vsub.s32 0, %v4900
    %v4902 = vrot.slane %v4897, %v4901
    %v4912 = vunpack.c.l.b16 %v4887
    %v4913 = vunpack.c.l.b16 %v4888
    %v4914 = vunpack.c.l.b16 %v4889
    %v4915 = vunpack.c.l.b16 %v4890
    %v4916 = vunpack.c.l.b16 %v4891
    %v4917 = vunpack.c.l.b16 %v4892
    %v4918 = vunpack.c.l.b16 %v4893
    %v4919 = vunpack.c.l.b16 %v4894
    %v4920 = vpack.c.b16 %v4913, %v4912
    %v4921 = vpack.c.b16 %v4915, %v4914
    %v4922 = vpack.c.b16 %v4917, %v4916
    %v4923 = vpack.c.b16 %v4919, %v4918
    %v4929 = vsel %vm2457, %v4895, 0
    %4931 = vmatprep.subr.bf16.mxu0 0
    %4932 = vmatpush1.bf16.msra.mxu0 %v4920
    %4933 = vmatprep.subr.bf16.mxu0 0
    %4934 = vmatpush1.bf16.msra.mxu0 %v4921
    %4935 = vmatprep.subr.bf16.mxu0 0
    %4936 = vmatpush1.bf16.msra.mxu0 %v4922
    %4937 = vmatprep.subr.bf16.mxu0 0
    %4938 = vmatpush1.bf16.msra.mxu0 %v4923
    %4939 = vmatprep.subr.bf16.mxu0 0
    %4940 = vmatpush1.bf16.msra.mxu0 0
    %4941 = vmatprep.subr.bf16.mxu0 0
    %4942 = vmatpush1.bf16.msra.mxu0 0
    %4943 = vmatprep.subr.bf16.mxu0 0
    %4944 = vmatpush1.bf16.msra.mxu0 0
    %4945 = vmatprep.subr.bf16.mxu0 0
    %4946 = vmatpush1.bf16.msra.mxu0 0
    %4947 = vmatprep.subr.bf16.mxu0 0
    %4948 = vmatpush1.bf16.msra.mxu0 0
    %4949 = vmatprep.subr.bf16.mxu0 0
    %4950 = vmatpush1.bf16.msra.mxu0 0
    %4951 = vmatprep.subr.bf16.mxu0 0
    %4952 = vmatpush1.bf16.msra.mxu0 0
    %4953 = vmatprep.subr.bf16.mxu0 0
    %4954 = vmatpush1.bf16.msra.mxu0 0
    %4955 = vmatprep.subr.bf16.mxu0 0
    %4956 = vmatpush1.bf16.msra.mxu0 0
    %4957 = vmatprep.subr.bf16.mxu0 0
    %4958 = vmatpush1.bf16.msra.mxu0 0
    %4959 = vmatprep.subr.bf16.mxu0 0
    %4960 = vmatpush1.bf16.msra.mxu0 0
    %4961 = vmatprep.subr.bf16.mxu0 0
    %4962 = vmatpush1.bf16.msra.mxu0 0
    %4963 = vmatprep.mubr.bf16.mxu0 0
    %4964 = vmatmul.mubr.bf16.gmra.mrb[0].mxu0 %v4929
    %v4965 = vpop.f32.mrb[0].mxu0
    %v4966 = vadd.f32 %v4902, %v4965
    %v4967 = vpop.f32.mrb[0].mxu0
    %v4968 = vpop.f32.mrb[0].mxu0
    %v4969 = vadd.f32 %v4902, %v4968
    %v4970 = vpop.f32.mrb[0].mxu0
    %4971 = vdwg.mxu0
    %v4972 = vadd.f32 %v4812, %v4966
    %v4973 = vadd.f32 %v4813, %v4969
    %s4974 = scalar_lea.vmem %s22, 1
    %v4975 = vld [vmem:[%s4974] sm:$0x1]
    %s4976 = scalar_lea.vmem %s23, 1
    %v4977 = vld [vmem:[%s4976] sm:$0x1]
    %v4978 = vsel %vm109, %v4972, 0.0
    %4979 = vadd.xlane.f32.xlu0 %v4978
    %v4980 = vpop.xlane.xlu0 %4979
    %v4981 = vsel %vm109, %v4973, 0.0
    %4982 = vadd.xlane.f32.xlu0 %v4981
    %v4983 = vpop.xlane.xlu0 %4982
    %v4984 = vmul.f32 %v4980, %v1150
    %v4985 = vmul.f32 %v4983, %v1150
    %v4986 = vsub.f32 %v4972, %v4984
    %v4987 = vsub.f32 %v4973, %v4985
    %v4988 = vmul.f32 %v4986, %v4986
    %v4989 = vmul.f32 %v4987, %v4987
    %v4990 = vsel %vm109, %v4988, 0.0
    %4991 = vadd.xlane.f32.xlu0 %v4990
    %v4992 = vpop.xlane.xlu0 %4991
    %v4993 = vsel %vm109, %v4989, 0.0
    %4994 = vadd.xlane.f32.xlu0 %v4993
    %v4995 = vpop.xlane.xlu0 %4994
    %v4996 = vmul.f32 %v4992, %v1150
    %v4997 = vmul.f32 %v4995, %v1150
    %v4998 = vadd.f32 %v4996, 1e-05
    %v4999 = vadd.f32 %v4997, 1e-05
    %v5000 = vrsqrt.pop %v4998
    %v5001 = vrsqrt.pop %v4999
    %v5002 = vmul.f32 %v4986, %v5000
    %v5003 = vmul.f32 %v4987, %v5001
    %v5005 = vlaneseq
    %v5006 = vshrl.u32 %v5005, 7
    %v5007 = vsub.s32 0, %v5006
    %v5008 = vrot.slane %v4975, %v5007
    %v5010 = vmul.f32 %v5002, %v5008
    %v5011 = vmul.f32 %v5003, %v5008
    %v5013 = vlaneseq
    %v5014 = vshrl.u32 %v5013, 7
    %v5015 = vsub.s32 0, %v5014
    %v5016 = vrot.slane %v4977, %v5015
    %v5018 = vadd.f32 %v5010, %v5016
    %v5019 = vadd.f32 %v5011, %v5016
    %5020 = vst.msk [vmem:[#allocation2] sm:$0xff] %vm109, %v5018
    %5021 = vst.msk [vmem:[#allocation2 + $0x8] sm:$0xff] %vm109, %v5019
    // Predicated region
    $region98: #{decoder_forward.1} parent=1 // pred_check
      _
    $region99: #{decoder_forward.1} parent=1 // pred_check_branch
      %5023 = sbr.rel (0) target = $region101
    $region100: #{decoder_forward.1} parent=1 // pred_region
      %s5025 = ssub.s32 256, 256
      %5026 = vsyncadd [#allocation3], %s5025
      %s5027 = sshll.u32 [#allocation2], 4
      %s5028 = int_to_ptr.vmem [resolvable:$true] %s5027
      %5033 = dma.vmem_to_hbm [thread:$0]  %s5028, 256, %s24, [#allocation3], 128, 128, 8
    $region101: #{decoder_forward.1} parent=1 // pred_fallthru
      _
    // Predicated region
    $region102: #{decoder_forward.1} parent=1 // pred_check
      _
    $region103: #{decoder_forward.1} parent=1 // pred_check_branch
      %5035 = sbr.rel (0) target = $region105
    $region104: #{decoder_forward.1} parent=1 // pred_region
      %5036 = dma.done [#allocation3], 256
    $region105: #{decoder_forward.1} parent=1 // pred_fallthru
      _
    %5037 = vsyncpa [#allocation3], 1

</llo_original>
